<compile_context>
chip_gen: v7x
topology: tpu7x:2x2x1
jax: 0.10.0
libtpu: 0.0.40
codegen_flags: <defaults>
</compile_context>

<pallas_src>
import functools
import numpy as np

import jax
import jax.numpy as jnp
from jax import lax
from jax.experimental import pallas as pl
from jax.experimental.pallas import tpu as pltpu

# ----------------------------- scaled-down ViT config -----------------------------
IMG = 32
PATCH = 16
IN_CH = 3
GRID_HW = IMG // PATCH           # 2
N_PATCH = GRID_HW * GRID_HW      # 4
N_TOK = N_PATCH + 1              # cls + patches = 5
T_PAD = 8                        # pad sequence length to a sublane multiple
D = 128                          # embed dim (ViT-L: 1024)
DEPTH = 2                        # ViT-L: 24
HEADS = 4                        # ViT-L: 16
HD = D // HEADS                  # 32
MLP = 4 * D                      # 512
NUM_CLASSES = 5
CPP = IN_CH * PATCH * PATCH      # 768 (channel-major patch vector, matches Conv2d)
HEAD_PAD = 128                   # lane-dense padded logits width
BATCH = 2

# erf-GELU (torch.nn.GELU default) vs tanh fallback, selected by a cached lowering probe.
_USE_ERF = [True]


def _gelu(x):
    if _USE_ERF[0]:
        # exact GELU: 0.5 * x * (1 + erf(x / sqrt(2)))  -- matches nn.GELU() default
        return 0.5 * x * (1.0 + lax.erf(x * 0.7071067811865475))
    # TODO(synk): erf not lowerable by Mosaic on this jax version -> tanh-approx GELU
    # fallback (small numeric divergence from the PyTorch erf GELU).
    return jax.nn.gelu(x, approximate=True)


def _ln(x, g, b, eps):
    """LayerNorm over the last (lane) axis; statistics in f32."""
    mu = jnp.mean(x, axis=-1, keepdims=True)
    xc = x - mu
    var = jnp.mean(xc * xc, axis=-1, keepdims=True)
    return xc * lax.rsqrt(var + eps) * g + b


def _fixed(shape):
    """BlockSpec for an input that is identical for every grid step (DMA'd once)."""
    zeros = (0,) * len(shape)
    return pl.BlockSpec(shape, lambda d, _z=zeros: _z)


def _per_depth(shape):
    """BlockSpec for a (DEPTH, *shape) weight: stream block d's slice, squeeze depth."""
    nz = len(shape)
    return pl.BlockSpec((None,) + tuple(shape), lambda d, _n=nz: (d,) + (0,) * _n)


# ------------------------------ fully fused ViT kernel ------------------------------
def _vit_kernel(
    patches_ref, pw_ref, pb_ref, cls_ref, pos_ref,                    # embed
    ln1_g, ln1_b, qkv_w, qkv_b, proj_w, proj_b,                       # block d (attn)
    ln2_g, ln2_b, fc1_w, fc1_b, fc2_w, fc2_b,                         # block d (mlp)
    ng, nb, hg, hb, w1, b1, w2, b2, w3, b3,                           # final norm + head
    o_ref,                                                            # (B, HEAD_PAD)
    x_scr,                                                            # (B*T_PAD, D) VMEM
    *, scale, batch):
    d = pl.program_id(0)
    last = pl.num_programs(0) - 1

    # ---- patch embed + cls token + pos embed + pad (first grid step only) ----
    @pl.when(d == 0)
    def _embed():
        tok = jnp.dot(patches_ref[...], pw_ref[...],
                      preferred_element_type=jnp.float32) + pb_ref[...]  # (B*N_PATCH, D)
        for b in range(batch):
            r0 = b * T_PAD
            x_scr[r0:r0 + 1, :] = cls_ref[...] + pos_ref[0:1, :]
            x_scr[r0 + 1:r0 + N_TOK, :] = (tok[b * N_PATCH:(b + 1) * N_PATCH, :]
                                           + pos_ref[1:N_TOK, :])
            x_scr[r0 + N_TOK:r0 + T_PAD, :] = jnp.zeros((T_PAD - N_TOK, D), jnp.float32)

    # ---- transformer block d (batch rows stacked: (B*T_PAD, D), all in VMEM) ----
    x = x_scr[...]
    h = _ln(x, ln1_g[...], ln1_b[...], 1e-6)
    qkv = jnp.dot(h, qkv_w[...], preferred_element_type=jnp.float32) + qkv_b[...]

    # mask padded key columns; padded *query* rows produce garbage but are never read
    # (only the cls row feeds the head), so they are left unmasked on purpose.
    key_mask = lax.broadcasted_iota(jnp.int32, (T_PAD, T_PAD), 1) < N_TOK

    attn = []
    for b in range(batch):                                            # unrolled, batch=2
        rows = qkv[b * T_PAD:(b + 1) * T_PAD, :]                      # (T_PAD, 3D)
        heads = []
        for hh in range(HEADS):                                       # unrolled, HEADS=4
            lo = hh * HD
            qh = rows[:, lo:lo + HD]                                  # (T, HD) lane slice
            kh = rows[:, D + lo:D + lo + HD]
            vh = rows[:, 2 * D + lo:2 * D + lo + HD]
            s = jnp.dot(qh, kh.T, preferred_element_type=jnp.float32) * scale  # (T, T)
            s = jnp.where(key_mask, s, -1e30)
            m = jnp.max(s, axis=-1, keepdims=True)
            p = jnp.exp(s - m)
            p = p * pl.reciprocal(jnp.sum(p, axis=-1, keepdims=True), approx=True)
            heads.append(jnp.dot(p, vh, preferred_element_type=jnp.float32))
        attn.append(jnp.concatenate(heads, axis=-1))                  # (T, D)
    o = jnp.concatenate(attn, axis=0)                                 # (B*T_PAD, D)

    x = x + jnp.dot(o, proj_w[...], preferred_element_type=jnp.float32) + proj_b[...]

    h = _ln(x, ln2_g[...], ln2_b[...], 1e-6)
    h = _gelu(jnp.dot(h, fc1_w[...], preferred_element_type=jnp.float32) + fc1_b[...])
    h = jnp.dot(h, fc2_w[...], preferred_element_type=jnp.float32) + fc2_b[...]
    x = x + h
    x_scr[...] = x

    # ---- final ViT norm (cls row) + token pooling + custom head (last step only) ----
    @pl.when(d == last)
    def _head():
        cls = jnp.concatenate([x[b * T_PAD:b * T_PAD + 1, :] for b in range(batch)],
                              axis=0)                                 # (B, D)
        z = _ln(cls, ng[...], nb[...], 1e-6)                          # ViT final LayerNorm
        z = _ln(z, hg[...], hb[...], 1e-5)                            # head LayerNorm
        z = _gelu(jnp.dot(z, w1[...], preferred_element_type=jnp.float32) + b1[...])
        # nn.Dropout(0.4)/(0.3) are identity in eval mode (train-mode RNG dropout omitted).
        z = _gelu(jnp.dot(z, w2[...], preferred_element_type=jnp.float32) + b2[...])
        o_ref[...] = jnp.dot(z, w3[...], preferred_element_type=jnp.float32) + b3[...]


# --------------------------------- pallas_call wrapper ---------------------------------
def vit_forward_call(patches, params):
    blk = params["blk"]
    # zero-pad w3/b3 to a lane-dense 128-wide output slab (sliced to NUM_CLASSES outside)
    w3p = jnp.pad(params["head_w3"], ((0, 0), (0, HEAD_PAD - NUM_CLASSES)))
    b3p = jnp.pad(params["head_b3"], ((0, HEAD_PAD - NUM_CLASSES),)).reshape(1, HEAD_PAD)
    pos = jnp.pad(params["pos_embed"][0], ((0, T_PAD - N_TOK), (0, 0)))  # (T_PAD, D)

    kern = functools.partial(_vit_kernel, scale=1.0 / float(np.sqrt(HD)), batch=BATCH)
    return pl.pallas_call(
        kern,
        out_shape=jax.ShapeDtypeStruct((BATCH, HEAD_PAD), jnp.float32),
        grid=(DEPTH,),
        in_specs=[
            # --- embed (fixed across depth) ---
            _fixed((BATCH * N_PATCH, CPP)),
            _fixed((CPP, D)),
            _fixed((1, D)),
            _fixed((1, D)),
            _fixed((T_PAD, D)),
            # --- per-depth block weights (streamed, double-buffered) ---
            _per_depth((1, D)), _per_depth((1, D)),
            _per_depth((D, 3 * D)), _per_depth((1, 3 * D)),
            _per_depth((D, D)), _per_depth((1, D)),
            _per_depth((1, D)), _per_depth((1, D)),
            _per_depth((D, MLP)), _per_depth((1, MLP)),
            _per_depth((MLP, D)), _per_depth((1, D)),
            # --- final norm + head (fixed across depth) ---
            _fixed((1, D)), _fixed((1, D)),
            _fixed((1, D)), _fixed((1, D)),
            _fixed((D, 1024)), _fixed((1, 1024)),
            _fixed((1024, 512)), _fixed((1, 512)),
            _fixed((512, HEAD_PAD)), _fixed((1, HEAD_PAD)),
        ],
        out_specs=_fixed((BATCH, HEAD_PAD)),
        scratch_shapes=[pltpu.VMEM((BATCH * T_PAD, D), jnp.float32)],
        compiler_params=pltpu.CompilerParams(dimension_semantics=("arbitrary",)),
    )(
        patches,
        params["patch_w"], params["patch_b"].reshape(1, D),
        params["cls_token"].reshape(1, D), pos,
        blk["ln1_g"], blk["ln1_b"],
        blk["qkv_w"], blk["qkv_b"],
        blk["proj_w"], blk["proj_b"],
        blk["ln2_g"], blk["ln2_b"],
        blk["fc1_w"], blk["fc1_b"],
        blk["fc2_w"], blk["fc2_b"],
        params["norm_g"].reshape(1, D), params["norm_b"].reshape(1, D),
        params["head_ln_g"].reshape(1, D), params["head_ln_b"].reshape(1, D),
        params["head_w1"], params["head_b1"].reshape(1, 1024),
        params["head_w2"], params["head_b2"].reshape(1, 512),
        w3p, b3p,
    )


# ------------------------------------ model glue ------------------------------------
def patchify(x):
    """NCHW image -> (B*N_PATCH, C*P*P), channel-major within a patch (matches Conv2d)."""
    B = x.shape[0]
    x = x.reshape(B, IN_CH, GRID_HW, PATCH, GRID_HW, PATCH)
    x = x.transpose(0, 2, 4, 1, 3, 5)                       # (B, Gh, Gw, C, P, P)
    return x.reshape(B * N_PATCH, CPP)


def flower_classifier_forward(params, x):
    patches = patchify(x)                                   # tiny XLA transpose
    logits_pad = vit_forward_call(patches, params)          # (B, 128) lane-dense
    return logits_pad[:, :NUM_CLASSES]                      # (B, NUM_CLASSES)


# --------------------------------- deterministic init --------------------------------
def init_params(key):
    keys = iter(jax.random.split(key, 64))

    def w(shape, scale=0.02):
        return (scale * jax.random.normal(next(keys), shape)).astype(jnp.float32)

    return dict(
        patch_w=w((CPP, D)),
        patch_b=jnp.zeros((D,), jnp.float32),
        cls_token=w((1, 1, D)),
        pos_embed=w((1, N_TOK, D)),
        norm_g=jnp.ones((D,), jnp.float32),
        norm_b=jnp.zeros((D,), jnp.float32),
        head_ln_g=jnp.ones((D,), jnp.float32),
        head_ln_b=jnp.zeros((D,), jnp.float32),
        head_w1=w((D, 1024)), head_b1=jnp.zeros((1024,), jnp.float32),
        head_w2=w((1024, 512)), head_b2=jnp.zeros((512,), jnp.float32),
        head_w3=w((512, NUM_CLASSES)), head_b3=jnp.zeros((NUM_CLASSES,), jnp.float32),
        blk=dict(  # per-depth block weights, stacked along a leading DEPTH axis
            ln1_g=jnp.ones((DEPTH, 1, D), jnp.float32),
            ln1_b=jnp.zeros((DEPTH, 1, D), jnp.float32),
            qkv_w=w((DEPTH, D, 3 * D)),
            qkv_b=jnp.zeros((DEPTH, 1, 3 * D), jnp.float32),
            proj_w=w((DEPTH, D, D)),
            proj_b=jnp.zeros((DEPTH, 1, D), jnp.float32),
            ln2_g=jnp.ones((DEPTH, 1, D), jnp.float32),
            ln2_b=jnp.zeros((DEPTH, 1, D), jnp.float32),
            fc1_w=w((DEPTH, D, MLP)),
            fc1_b=jnp.zeros((DEPTH, 1, MLP), jnp.float32),
            fc2_w=w((DEPTH, MLP, D)),
            fc2_b=jnp.zeros((DEPTH, 1, D), jnp.float32),
        ),
    )


@functools.lru_cache(maxsize=1)
def _erf_lowers():
    """Cached probe: does lax.erf lower through Mosaic?  Fall back to tanh GELU otherwise."""
    def k(x_ref, o_ref):
        o_ref[...] = lax.erf(x_ref[...])
    try:
        jax.block_until_ready(
            pl.pallas_call(k, out_shape=jax.ShapeDtypeStruct((8, 128), jnp.float32))(
                jnp.zeros((8, 128), jnp.float32)))
        return True
    except Exception:
        return False


if __name__ == "__main__":
    _USE_ERF[0] = _erf_lowers()

    key = jax.random.PRNGKey(0)
    k_param, k_x = jax.random.split(key)
    params = init_params(k_param)
    x = jax.random.normal(k_x, (BATCH, IN_CH, IMG, IMG), dtype=jnp.float32)  # NCHW input

    fwd = jax.jit(flower_classifier_forward)
    logits = fwd(params, x)
    jax.block_until_ready(logits)
    assert logits.shape == (BATCH, NUM_CLASSES)
    print("KERNEL_OK")
</pallas_src>

<mosaic_0001>
module attributes {stable_mosaic.version = 11 : i64} {
  func.func @k(%arg0: memref<8x128xf32, #tpu.memory_space<vmem>>, %arg1: memref<8x128xf32, #tpu.memory_space<vmem>>) attributes {dimension_semantics = [], scalar_prefetch = 0 : i64, scratch_operands = 0 : i64, tpu.core_type = #tpu.core_type<tc>} {
    %c0 = arith.constant 0 : index
    %c0_0 = arith.constant 0 : index
    %0 = vector.load %arg0[%c0, %c0_0] : memref<8x128xf32, #tpu.memory_space<vmem>>, vector<8x128xf32>
    %1 = math.erf %0 : vector<8x128xf32>
    %c0_1 = arith.constant 0 : index
    %c0_2 = arith.constant 0 : index
    %2 = vector.load %arg1[%c0_1, %c0_2] : memref<8x128xf32, #tpu.memory_space<vmem>>, vector<8x128xf32>
    tpu.vector_store %arg1[%c0_1, %c0_2], %1 {strides = array<i32>} : memref<8x128xf32, #tpu.memory_space<vmem>>, vector<8x128xf32>,
    return
  }
}

module attributes {stable_mosaic.version = 11 : i64} {
  func.func @_vit_kernel(%arg0: i32, %arg1: memref<8x768xf32, #tpu.memory_space<vmem>>, %arg2: memref<768x128xf32, #tpu.memory_space<vmem>>, %arg3: memref<1x128xf32, #tpu.memory_space<vmem>>, %arg4: memref<1x128xf32, #tpu.memory_space<vmem>>, %arg5: memref<8x128xf32, #tpu.memory_space<vmem>>, %arg6: memref<1x1x128xf32, #tpu.memory_space<vmem>>, %arg7: memref<1x1x128xf32, #tpu.memory_space<vmem>>, %arg8: memref<1x128x384xf32, #tpu.memory_space<vmem>>, %arg9: memref<1x1x384xf32, #tpu.memory_space<vmem>>, %arg10: memref<1x128x128xf32, #tpu.memory_space<vmem>>, %arg11: memref<1x1x128xf32, #tpu.memory_space<vmem>>, %arg12: memref<1x1x128xf32, #tpu.memory_space<vmem>>, %arg13: memref<1x1x128xf32, #tpu.memory_space<vmem>>, %arg14: memref<1x128x512xf32, #tpu.memory_space<vmem>>, %arg15: memref<1x1x512xf32, #tpu.memory_space<vmem>>, %arg16: memref<1x512x128xf32, #tpu.memory_space<vmem>>, %arg17: memref<1x1x128xf32, #tpu.memory_space<vmem>>, %arg18: memref<1x128xf32, #tpu.memory_space<vmem>>, %arg19: memref<1x128xf32, #tpu.memory_space<vmem>>, %arg20: memref<1x128xf32, #tpu.memory_space<vmem>>, %arg21: memref<1x128xf32, #tpu.memory_space<vmem>>, %arg22: memref<128x1024xf32, #tpu.memory_space<vmem>>, %arg23: memref<1x1024xf32, #tpu.memory_space<vmem>>, %arg24: memref<1024x512xf32, #tpu.memory_space<vmem>>, %arg25: memref<1x512xf32, #tpu.memory_space<vmem>>, %arg26: memref<512x128xf32, #tpu.memory_space<vmem>>, %arg27: memref<1x128xf32, #tpu.memory_space<vmem>>, %arg28: memref<2x128xf32, #tpu.memory_space<vmem>>, %arg29: memref<16x128xf32, #tpu.memory_space<vmem>>) attributes {dimension_semantics = [#tpu.dimension_semantics<arbitrary>], iteration_bounds = array<i64: 2>, scalar_prefetch = 0 : i64, scratch_operands = 1 : i64, tpu.core_type = #tpu.core_type<tc>, window_params = [{pipeline_mode = #tpu.pipeline_mode<synchronous>, transform_indices = @transform_0, window_bounds = array<i64: 8, 768>}, {pipeline_mode = #tpu.pipeline_mode<synchronous>, transform_indices = @transform_1, window_bounds = array<i64: 768, 128>}, {pipeline_mode = #tpu.pipeline_mode<synchronous>, transform_indices = @transform_2, window_bounds = array<i64: 1, 128>}, {pipeline_mode = #tpu.pipeline_mode<synchronous>, transform_indices = @transform_3, window_bounds = array<i64: 1, 128>}, {pipeline_mode = #tpu.pipeline_mode<synchronous>, transform_indices = @transform_4, window_bounds = array<i64: 8, 128>}, {transform_indices = @transform_5, window_bounds = array<i64: 1, 1, 128>}, {transform_indices = @transform_6, window_bounds = array<i64: 1, 1, 128>}, {transform_indices = @transform_7, window_bounds = array<i64: 1, 128, 384>}, {transform_indices = @transform_8, window_bounds = array<i64: 1, 1, 384>}, {transform_indices = @transform_9, window_bounds = array<i64: 1, 128, 128>}, {transform_indices = @transform_10, window_bounds = array<i64: 1, 1, 128>}, {transform_indices = @transform_11, window_bounds = array<i64: 1, 1, 128>}, {transform_indices = @transform_12, window_bounds = array<i64: 1, 1, 128>}, {transform_indices = @transform_13, window_bounds = array<i64: 1, 128, 512>}, {transform_indices = @transform_14, window_bounds = array<i64: 1, 1, 512>}, {transform_indices = @transform_15, window_bounds = array<i64: 1, 512, 128>}, {transform_indices = @transform_16, window_bounds = array<i64: 1, 1, 128>}, {pipeline_mode = #tpu.pipeline_mode<synchronous>, transform_indices = @transform_17, window_bounds = array<i64: 1, 128>}, {pipeline_mode = #tpu.pipeline_mode<synchronous>, transform_indices = @transform_18, window_bounds = array<i64: 1, 128>}, {pipeline_mode = #tpu.pipeline_mode<synchronous>, transform_indices = @transform_19, window_bounds = array<i64: 1, 128>}, {pipeline_mode = #tpu.pipeline_mode<synchronous>, transform_indices = @transform_20, window_bounds = array<i64: 1, 128>}, {pipeline_mode = #tpu.pipeline_mode<synchronous>, transform_indices = @transform_21, window_bounds = array<i64: 128, 1024>}, {pipeline_mode = #tpu.pipeline_mode<synchronous>, transform_indices = @transform_22, window_bounds = array<i64: 1, 1024>}, {pipeline_mode = #tpu.pipeline_mode<synchronous>, transform_indices = @transform_23, window_bounds = array<i64: 1024, 512>}, {pipeline_mode = #tpu.pipeline_mode<synchronous>, transform_indices = @transform_24, window_bounds = array<i64: 1, 512>}, {pipeline_mode = #tpu.pipeline_mode<synchronous>, transform_indices = @transform_25, window_bounds = array<i64: 512, 128>}, {pipeline_mode = #tpu.pipeline_mode<synchronous>, transform_indices = @transform_26, window_bounds = array<i64: 1, 128>}, {pipeline_mode = #tpu.pipeline_mode<synchronous>, transform_indices = @transform_27, window_bounds = array<i64: 2, 128>}]} {
    %c0_i32 = arith.constant 0 : i32
    %0 = arith.cmpi eq, %arg0, %c0_i32 : i32
    %1 = arith.extui %0 : i1 to i32
    %c0_i32_0 = arith.constant 0 : i32
    %2 = arith.cmpi ne, %1, %c0_i32_0 : i32
    scf.if %2 {
      %c0_106 = arith.constant 0 : index
      %c0_107 = arith.constant 0 : index
      %267 = vector.load %arg1[%c0_106, %c0_107] : memref<8x768xf32, #tpu.memory_space<vmem>>, vector<8x768xf32>
      %c0_108 = arith.constant 0 : index
      %c0_109 = arith.constant 0 : index
      %268 = vector.load %arg2[%c0_108, %c0_109] : memref<768x128xf32, #tpu.memory_space<vmem>>, vector<768x128xf32>
      %cst_110 = arith.constant dense<0.000000e+00> : vector<8x128xf32>
      %269 = tpu.matmul %267, %268, %cst_110 {dimension_numbers = #tpu.dot_dimension_numbers<[1], [0], [0], [1], [0, 0, 1, 1], [], []>} : vector<8x768xf32>, vector<768x128xf32>, vector<8x128xf32> -> vector<8x128xf32>
      %c0_111 = arith.constant 0 : index
      %c0_112 = arith.constant 0 : index
      %270 = vector.load %arg3[%c0_111, %c0_112] : memref<1x128xf32, #tpu.memory_space<vmem>>, vector<1x128xf32>
      %271 = vector.broadcast %270 : vector<1x128xf32> to vector<8x128xf32>
      %272 = arith.addf %269, %271 : vector<8x128xf32>
      %c0_113 = arith.constant 0 : index
      %c0_114 = arith.constant 0 : index
      %273 = vector.load %arg4[%c0_113, %c0_114] : memref<1x128xf32, #tpu.memory_space<vmem>>, vector<1x128xf32>
      %c0_115 = arith.constant 0 : index
      %c0_116 = arith.constant 0 : index
      %274 = vector.load %arg5[%c0_115, %c0_116] : memref<8x128xf32, #tpu.memory_space<vmem>>, vector<1x128xf32>
      %275 = arith.addf %273, %274 : vector<1x128xf32>
      %c0_117 = arith.constant 0 : index
      %c0_118 = arith.constant 0 : index
      %276 = vector.load %arg29[%c0_117, %c0_118] : memref<16x128xf32, #tpu.memory_space<vmem>>, vector<1x128xf32>
      tpu.vector_store %arg29[%c0_117, %c0_118], %275 {strides = array<i32>} : memref<16x128xf32, #tpu.memory_space<vmem>>, vector<1x128xf32>,
      %277 = vector.extract_strided_slice %272 {offsets = [0, 0], sizes = [4, 128], strides = [1, 1]} : vector<8x128xf32> to vector<4x128xf32>
      %c1 = arith.constant 1 : index
      %c0_119 = arith.constant 0 : index
      %278 = vector.load %arg5[%c1, %c0_119] : memref<8x128xf32, #tpu.memory_space<vmem>>, vector<4x128xf32>
      %279 = arith.addf %277, %278 : vector<4x128xf32>
      %c1_120 = arith.constant 1 : index
      %c0_121 = arith.constant 0 : index
      %280 = vector.load %arg29[%c1_120, %c0_121] : memref<16x128xf32, #tpu.memory_space<vmem>>, vector<4x128xf32>
      tpu.vector_store %arg29[%c1_120, %c0_121], %279 {strides = array<i32>} : memref<16x128xf32, #tpu.memory_space<vmem>>, vector<4x128xf32>,
      %cst_122 = arith.constant 0.000000e+00 : f32
      %281 = vector.broadcast %cst_122 : f32 to vector<3x128xf32>
      %c5 = arith.constant 5 : index
      %c0_123 = arith.constant 0 : index
      %282 = vector.load %arg29[%c5, %c0_123] : memref<16x128xf32, #tpu.memory_space<vmem>>, vector<3x128xf32>
      tpu.vector_store %arg29[%c5, %c0_123], %281 {strides = array<i32>} : memref<16x128xf32, #tpu.memory_space<vmem>>, vector<3x128xf32>,
      %c0_124 = arith.constant 0 : index
      %c0_125 = arith.constant 0 : index
      %283 = vector.load %arg4[%c0_124, %c0_125] : memref<1x128xf32, #tpu.memory_space<vmem>>, vector<1x128xf32>
      %c0_126 = arith.constant 0 : index
      %c0_127 = arith.constant 0 : index
      %284 = vector.load %arg5[%c0_126, %c0_127] : memref<8x128xf32, #tpu.memory_space<vmem>>, vector<1x128xf32>
      %285 = arith.addf %283, %284 : vector<1x128xf32>
      %c8 = arith.constant 8 : index
      %c0_128 = arith.constant 0 : index
      %286 = vector.load %arg29[%c8, %c0_128] : memref<16x128xf32, #tpu.memory_space<vmem>>, vector<1x128xf32>
      tpu.vector_store %arg29[%c8, %c0_128], %285 {strides = array<i32>} : memref<16x128xf32, #tpu.memory_space<vmem>>, vector<1x128xf32>,
      %287 = vector.extract_strided_slice %272 {offsets = [4, 0], sizes = [4, 128], strides = [1, 1]} : vector<8x128xf32> to vector<4x128xf32>
      %c1_129 = arith.constant 1 : index
      %c0_130 = arith.constant 0 : index
      %288 = vector.load %arg5[%c1_129, %c0_130] : memref<8x128xf32, #tpu.memory_space<vmem>>, vector<4x128xf32>
      %289 = arith.addf %287, %288 : vector<4x128xf32>
      %c9 = arith.constant 9 : index
      %c0_131 = arith.constant 0 : index
      %290 = vector.load %arg29[%c9, %c0_131] : memref<16x128xf32, #tpu.memory_space<vmem>>, vector<4x128xf32>
      tpu.vector_store %arg29[%c9, %c0_131], %289 {strides = array<i32>} : memref<16x128xf32, #tpu.memory_space<vmem>>, vector<4x128xf32>,
      %cst_132 = arith.constant 0.000000e+00 : f32
      %291 = vector.broadcast %cst_132 : f32 to vector<3x128xf32>
      %c13 = arith.constant 13 : index
      %c0_133 = arith.constant 0 : index
      %292 = vector.load %arg29[%c13, %c0_133] : memref<16x128xf32, #tpu.memory_space<vmem>>, vector<3x128xf32>
      tpu.vector_store %arg29[%c13, %c0_133], %291 {strides = array<i32>} : memref<16x128xf32, #tpu.memory_space<vmem>>, vector<3x128xf32>,
    } else {
    }
    %c0 = arith.constant 0 : index
    %c0_1 = arith.constant 0 : index
    %3 = vector.load %arg29[%c0, %c0_1] : memref<16x128xf32, #tpu.memory_space<vmem>>, vector<16x128xf32>
    %c0_2 = arith.constant 0 : index
    %c0_3 = arith.constant 0 : index
    %c0_4 = arith.constant 0 : index
    %4 = vector.load %arg6[%c0_2, %c0_3, %c0_4] : memref<1x1x128xf32, #tpu.memory_space<vmem>>, vector<1x1x128xf32>
    %5 = vector.shape_cast %4 : vector<1x1x128xf32> to vector<1x128xf32>
    %c0_5 = arith.constant 0 : index
    %c0_6 = arith.constant 0 : index
    %c0_7 = arith.constant 0 : index
    %6 = vector.load %arg7[%c0_5, %c0_6, %c0_7] : memref<1x1x128xf32, #tpu.memory_space<vmem>>, vector<1x1x128xf32>
    %7 = vector.shape_cast %6 : vector<1x1x128xf32> to vector<1x128xf32>
    %cst = arith.constant dense<0.000000e+00> : vector<16xf32>
    %8 = vector.multi_reduction <add>, %3, %cst [1] : vector<16x128xf32> to vector<16xf32>
    %9 = vector.shape_cast %8 : vector<16xf32> to vector<16x1xf32>
    %cst_8 = arith.constant 1.280000e+02 : f32
    %10 = vector.broadcast %cst_8 : f32 to vector<16x1xf32>
    %11 = arith.divf %9, %10 : vector<16x1xf32>
    %12 = vector.broadcast %11 : vector<16x1xf32> to vector<16x128xf32>
    %13 = arith.subf %3, %12 : vector<16x128xf32>
    %14 = arith.mulf %13, %13 : vector<16x128xf32>
    %cst_9 = arith.constant dense<0.000000e+00> : vector<16xf32>
    %15 = vector.multi_reduction <add>, %14, %cst_9 [1] : vector<16x128xf32> to vector<16xf32>
    %16 = vector.shape_cast %15 : vector<16xf32> to vector<16x1xf32>
    %cst_10 = arith.constant 1.280000e+02 : f32
    %17 = vector.broadcast %cst_10 : f32 to vector<16x1xf32>
    %18 = arith.divf %16, %17 : vector<16x1xf32>
    %cst_11 = arith.constant 9.99999997E-7 : f32
    %19 = vector.broadcast %cst_11 : f32 to vector<16x1xf32>
    %20 = arith.addf %18, %19 : vector<16x1xf32>
    %21 = math.rsqrt %20 : vector<16x1xf32>
    %22 = vector.broadcast %21 : vector<16x1xf32> to vector<16x128xf32>
    %23 = arith.mulf %13, %22 : vector<16x128xf32>
    %24 = vector.broadcast %5 : vector<1x128xf32> to vector<16x128xf32>
    %25 = arith.mulf %23, %24 : vector<16x128xf32>
    %26 = vector.broadcast %7 : vector<1x128xf32> to vector<16x128xf32>
    %27 = arith.addf %25, %26 : vector<16x128xf32>
    %c0_12 = arith.constant 0 : index
    %c0_13 = arith.constant 0 : index
    %c0_14 = arith.constant 0 : index
    %28 = vector.load %arg8[%c0_12, %c0_13, %c0_14] : memref<1x128x384xf32, #tpu.memory_space<vmem>>, vector<1x128x384xf32>
    %29 = vector.shape_cast %28 : vector<1x128x384xf32> to vector<128x384xf32>
    %cst_15 = arith.constant dense<0.000000e+00> : vector<16x384xf32>
    %30 = tpu.matmul %27, %29, %cst_15 {dimension_numbers = #tpu.dot_dimension_numbers<[1], [0], [0], [1], [0, 0, 1, 1], [], []>} : vector<16x128xf32>, vector<128x384xf32>, vector<16x384xf32> -> vector<16x384xf32>
    %c0_16 = arith.constant 0 : index
    %c0_17 = arith.constant 0 : index
    %c0_18 = arith.constant 0 : index
    %31 = vector.load %arg9[%c0_16, %c0_17, %c0_18] : memref<1x1x384xf32, #tpu.memory_space<vmem>>, vector<1x1x384xf32>
    %32 = vector.shape_cast %31 : vector<1x1x384xf32> to vector<1x384xf32>
    %33 = vector.broadcast %32 : vector<1x384xf32> to vector<16x384xf32>
    %34 = arith.addf %30, %33 : vector<16x384xf32>
    %35 = tpu.iota {dimensions = array<i32: 1>} : vector<8x8xi32>
    %c5_i32 = arith.constant 5 : i32
    %36 = vector.broadcast %c5_i32 : i32 to vector<8x8xi32>
    %37 = arith.cmpi slt, %35, %36 : vector<8x8xi32>
    %38 = vector.extract_strided_slice %34 {offsets = [0, 0], sizes = [8, 384], strides = [1, 1]} : vector<16x384xf32> to vector<8x384xf32>
    %39 = vector.extract_strided_slice %38 {offsets = [0, 0], sizes = [8, 32], strides = [1, 1]} : vector<8x384xf32> to vector<8x32xf32>
    %40 = vector.extract_strided_slice %38 {offsets = [0, 128], sizes = [8, 32], strides = [1, 1]} : vector<8x384xf32> to vector<8x32xf32>
    %41 = vector.extract_strided_slice %38 {offsets = [0, 256], sizes = [8, 32], strides = [1, 1]} : vector<8x384xf32> to vector<8x32xf32>
    %42 = tpu.transpose %40, [1, 0] : vector<8x32xf32> -> vector<32x8xf32>
    %cst_19 = arith.constant dense<0.000000e+00> : vector<8x8xf32>
    %43 = tpu.matmul %39, %42, %cst_19 {dimension_numbers = #tpu.dot_dimension_numbers<[1], [0], [0], [1], [0, 0, 1, 1], [], []>} : vector<8x32xf32>, vector<32x8xf32>, vector<8x8xf32> -> vector<8x8xf32>
    %cst_20 = arith.constant 0.176776692 : f32
    %44 = vector.broadcast %cst_20 : f32 to vector<8x8xf32>
    %45 = arith.mulf %43, %44 : vector<8x8xf32>
    %cst_21 = arith.constant -1.000000e+30 : f32
    %46 = vector.broadcast %cst_21 : f32 to vector<8x8xf32>
    %47 = arith.select %37, %45, %46 : vector<8x8xi1>, vector<8x8xf32>
    %cst_22 = arith.constant dense<0xFF800000> : vector<8xf32>
    %48 = vector.multi_reduction <maximumf>, %47, %cst_22 [1] : vector<8x8xf32> to vector<8xf32>
    %49 = vector.shape_cast %48 : vector<8xf32> to vector<8x1xf32>
    %50 = vector.broadcast %49 : vector<8x1xf32> to vector<8x8xf32>
    %51 = arith.subf %47, %50 : vector<8x8xf32>
    %52 = math.exp %51 : vector<8x8xf32>
    %cst_23 = arith.constant dense<0.000000e+00> : vector<8xf32>
    %53 = vector.multi_reduction <add>, %52, %cst_23 [1] : vector<8x8xf32> to vector<8xf32>
    %54 = vector.shape_cast %53 : vector<8xf32> to vector<8x1xf32>
    %55 = tpu.reciprocal %54 {approx = true} : vector<8x1xf32> -> vector<8x1xf32>
    %56 = vector.broadcast %55 : vector<8x1xf32> to vector<8x8xf32>
    %57 = arith.mulf %52, %56 : vector<8x8xf32>
    %cst_24 = arith.constant dense<0.000000e+00> : vector<8x32xf32>
    %58 = tpu.matmul %57, %41, %cst_24 {dimension_numbers = #tpu.dot_dimension_numbers<[1], [0], [0], [1], [0, 0, 1, 1], [], []>} : vector<8x8xf32>, vector<8x32xf32>, vector<8x32xf32> -> vector<8x32xf32>
    %59 = vector.extract_strided_slice %38 {offsets = [0, 32], sizes = [8, 32], strides = [1, 1]} : vector<8x384xf32> to vector<8x32xf32>
    %60 = vector.extract_strided_slice %38 {offsets = [0, 160], sizes = [8, 32], strides = [1, 1]} : vector<8x384xf32> to vector<8x32xf32>
    %61 = vector.extract_strided_slice %38 {offsets = [0, 288], sizes = [8, 32], strides = [1, 1]} : vector<8x384xf32> to vector<8x32xf32>
    %62 = tpu.transpose %60, [1, 0] : vector<8x32xf32> -> vector<32x8xf32>
    %cst_25 = arith.constant dense<0.000000e+00> : vector<8x8xf32>
    %63 = tpu.matmul %59, %62, %cst_25 {dimension_numbers = #tpu.dot_dimension_numbers<[1], [0], [0], [1], [0, 0, 1, 1], [], []>} : vector<8x32xf32>, vector<32x8xf32>, vector<8x8xf32> -> vector<8x8xf32>
    %cst_26 = arith.constant 0.176776692 : f32
    %64 = vector.broadcast %cst_26 : f32 to vector<8x8xf32>
    %65 = arith.mulf %63, %64 : vector<8x8xf32>
    %cst_27 = arith.constant -1.000000e+30 : f32
    %66 = vector.broadcast %cst_27 : f32 to vector<8x8xf32>
    %67 = arith.select %37, %65, %66 : vector<8x8xi1>, vector<8x8xf32>
    %cst_28 = arith.constant dense<0xFF800000> : vector<8xf32>
    %68 = vector.multi_reduction <maximumf>, %67, %cst_28 [1] : vector<8x8xf32> to vector<8xf32>
    %69 = vector.shape_cast %68 : vector<8xf32> to vector<8x1xf32>
    %70 = vector.broadcast %69 : vector<8x1xf32> to vector<8x8xf32>
    %71 = arith.subf %67, %70 : vector<8x8xf32>
    %72 = math.exp %71 : vector<8x8xf32>
    %cst_29 = arith.constant dense<0.000000e+00> : vector<8xf32>
    %73 = vector.multi_reduction <add>, %72, %cst_29 [1] : vector<8x8xf32> to vector<8xf32>
    %74 = vector.shape_cast %73 : vector<8xf32> to vector<8x1xf32>
    %75 = tpu.reciprocal %74 {approx = true} : vector<8x1xf32> -> vector<8x1xf32>
    %76 = vector.broadcast %75 : vector<8x1xf32> to vector<8x8xf32>
    %77 = arith.mulf %72, %76 : vector<8x8xf32>
    %cst_30 = arith.constant dense<0.000000e+00> : vector<8x32xf32>
    %78 = tpu.matmul %77, %61, %cst_30 {dimension_numbers = #tpu.dot_dimension_numbers<[1], [0], [0], [1], [0, 0, 1, 1], [], []>} : vector<8x8xf32>, vector<8x32xf32>, vector<8x32xf32> -> vector<8x32xf32>
    %79 = vector.extract_strided_slice %38 {offsets = [0, 64], sizes = [8, 32], strides = [1, 1]} : vector<8x384xf32> to vector<8x32xf32>
    %80 = vector.extract_strided_slice %38 {offsets = [0, 192], sizes = [8, 32], strides = [1, 1]} : vector<8x384xf32> to vector<8x32xf32>
    %81 = vector.extract_strided_slice %38 {offsets = [0, 320], sizes = [8, 32], strides = [1, 1]} : vector<8x384xf32> to vector<8x32xf32>
    %82 = tpu.transpose %80, [1, 0] : vector<8x32xf32> -> vector<32x8xf32>
    %cst_31 = arith.constant dense<0.000000e+00> : vector<8x8xf32>
    %83 = tpu.matmul %79, %82, %cst_31 {dimension_numbers = #tpu.dot_dimension_numbers<[1], [0], [0], [1], [0, 0, 1, 1], [], []>} : vector<8x32xf32>, vector<32x8xf32>, vector<8x8xf32> -> vector<8x8xf32>
    %cst_32 = arith.constant 0.176776692 : f32
    %84 = vector.broadcast %cst_32 : f32 to vector<8x8xf32>
    %85 = arith.mulf %83, %84 : vector<8x8xf32>
    %cst_33 = arith.constant -1.000000e+30 : f32
    %86 = vector.broadcast %cst_33 : f32 to vector<8x8xf32>
    %87 = arith.select %37, %85, %86 : vector<8x8xi1>, vector<8x8xf32>
    %cst_34 = arith.constant dense<0xFF800000> : vector<8xf32>
    %88 = vector.multi_reduction <maximumf>, %87, %cst_34 [1] : vector<8x8xf32> to vector<8xf32>
    %89 = vector.shape_cast %88 : vector<8xf32> to vector<8x1xf32>
    %90 = vector.broadcast %89 : vector<8x1xf32> to vector<8x8xf32>
    %91 = arith.subf %87, %90 : vector<8x8xf32>
    %92 = math.exp %91 : vector<8x8xf32>
    %cst_35 = arith.constant dense<0.000000e+00> : vector<8xf32>
    %93 = vector.multi_reduction <add>, %92, %cst_35 [1] : vector<8x8xf32> to vector<8xf32>
    %94 = vector.shape_cast %93 : vector<8xf32> to vector<8x1xf32>
    %95 = tpu.reciprocal %94 {approx = true} : vector<8x1xf32> -> vector<8x1xf32>
    %96 = vector.broadcast %95 : vector<8x1xf32> to vector<8x8xf32>
    %97 = arith.mulf %92, %96 : vector<8x8xf32>
    %cst_36 = arith.constant dense<0.000000e+00> : vector<8x32xf32>
    %98 = tpu.matmul %97, %81, %cst_36 {dimension_numbers = #tpu.dot_dimension_numbers<[1], [0], [0], [1], [0, 0, 1, 1], [], []>} : vector<8x8xf32>, vector<8x32xf32>, vector<8x32xf32> -> vector<8x32xf32>
    %99 = vector.extract_strided_slice %38 {offsets = [0, 96], sizes = [8, 32], strides = [1, 1]} : vector<8x384xf32> to vector<8x32xf32>
    %100 = vector.extract_strided_slice %38 {offsets = [0, 224], sizes = [8, 32], strides = [1, 1]} : vector<8x384xf32> to vector<8x32xf32>
    %101 = vector.extract_strided_slice %38 {offsets = [0, 352], sizes = [8, 32], strides = [1, 1]} : vector<8x384xf32> to vector<8x32xf32>
    %102 = tpu.transpose %100, [1, 0] : vector<8x32xf32> -> vector<32x8xf32>
    %cst_37 = arith.constant dense<0.000000e+00> : vector<8x8xf32>
    %103 = tpu.matmul %99, %102, %cst_37 {dimension_numbers = #tpu.dot_dimension_numbers<[1], [0], [0], [1], [0, 0, 1, 1], [], []>} : vector<8x32xf32>, vector<32x8xf32>, vector<8x8xf32> -> vector<8x8xf32>
    %cst_38 = arith.constant 0.176776692 : f32
    %104 = vector.broadcast %cst_38 : f32 to vector<8x8xf32>
    %105 = arith.mulf %103, %104 : vector<8x8xf32>
    %cst_39 = arith.constant -1.000000e+30 : f32
    %106 = vector.broadcast %cst_39 : f32 to vector<8x8xf32>
    %107 = arith.select %37, %105, %106 : vector<8x8xi1>, vector<8x8xf32>
    %cst_40 = arith.constant dense<0xFF800000> : vector<8xf32>
    %108 = vector.multi_reduction <maximumf>, %107, %cst_40 [1] : vector<8x8xf32> to vector<8xf32>
    %109 = vector.shape_cast %108 : vector<8xf32> to vector<8x1xf32>
    %110 = vector.broadcast %109 : vector<8x1xf32> to vector<8x8xf32>
    %111 = arith.subf %107, %110 : vector<8x8xf32>
    %112 = math.exp %111 : vector<8x8xf32>
    %cst_41 = arith.constant dense<0.000000e+00> : vector<8xf32>
    %113 = vector.multi_reduction <add>, %112, %cst_41 [1] : vector<8x8xf32> to vector<8xf32>
    %114 = vector.shape_cast %113 : vector<8xf32> to vector<8x1xf32>
    %115 = tpu.reciprocal %114 {approx = true} : vector<8x1xf32> -> vector<8x1xf32>
    %116 = vector.broadcast %115 : vector<8x1xf32> to vector<8x8xf32>
    %117 = arith.mulf %112, %116 : vector<8x8xf32>
    %cst_42 = arith.constant dense<0.000000e+00> : vector<8x32xf32>
    %118 = tpu.matmul %117, %101, %cst_42 {dimension_numbers = #tpu.dot_dimension_numbers<[1], [0], [0], [1], [0, 0, 1, 1], [], []>} : vector<8x8xf32>, vector<8x32xf32>, vector<8x32xf32> -> vector<8x32xf32>
    %119 = tpu.concatenate %58, %78, %98, %118 in 1 : vector<8x32xf32>, vector<8x32xf32>, vector<8x32xf32>, vector<8x32xf32> -> vector<8x128xf32>
    %120 = vector.extract_strided_slice %34 {offsets = [8, 0], sizes = [8, 384], strides = [1, 1]} : vector<16x384xf32> to vector<8x384xf32>
    %121 = vector.extract_strided_slice %120 {offsets = [0, 0], sizes = [8, 32], strides = [1, 1]} : vector<8x384xf32> to vector<8x32xf32>
    %122 = vector.extract_strided_slice %120 {offsets = [0, 128], sizes = [8, 32], strides = [1, 1]} : vector<8x384xf32> to vector<8x32xf32>
    %123 = vector.extract_strided_slice %120 {offsets = [0, 256], sizes = [8, 32], strides = [1, 1]} : vector<8x384xf32> to vector<8x32xf32>
    %124 = tpu.transpose %122, [1, 0] : vector<8x32xf32> -> vector<32x8xf32>
    %cst_43 = arith.constant dense<0.000000e+00> : vector<8x8xf32>
    %125 = tpu.matmul %121, %124, %cst_43 {dimension_numbers = #tpu.dot_dimension_numbers<[1], [0], [0], [1], [0, 0, 1, 1], [], []>} : vector<8x32xf32>, vector<32x8xf32>, vector<8x8xf32> -> vector<8x8xf32>
    %cst_44 = arith.constant 0.176776692 : f32
    %126 = vector.broadcast %cst_44 : f32 to vector<8x8xf32>
    %127 = arith.mulf %125, %126 : vector<8x8xf32>
    %cst_45 = arith.constant -1.000000e+30 : f32
    %128 = vector.broadcast %cst_45 : f32 to vector<8x8xf32>
    %129 = arith.select %37, %127, %128 : vector<8x8xi1>, vector<8x8xf32>
    %cst_46 = arith.constant dense<0xFF800000> : vector<8xf32>
    %130 = vector.multi_reduction <maximumf>, %129, %cst_46 [1] : vector<8x8xf32> to vector<8xf32>
    %131 = vector.shape_cast %130 : vector<8xf32> to vector<8x1xf32>
    %132 = vector.broadcast %131 : vector<8x1xf32> to vector<8x8xf32>
    %133 = arith.subf %129, %132 : vector<8x8xf32>
    %134 = math.exp %133 : vector<8x8xf32>
    %cst_47 = arith.constant dense<0.000000e+00> : vector<8xf32>
    %135 = vector.multi_reduction <add>, %134, %cst_47 [1] : vector<8x8xf32> to vector<8xf32>
    %136 = vector.shape_cast %135 : vector<8xf32> to vector<8x1xf32>
    %137 = tpu.reciprocal %136 {approx = true} : vector<8x1xf32> -> vector<8x1xf32>
    %138 = vector.broadcast %137 : vector<8x1xf32> to vector<8x8xf32>
    %139 = arith.mulf %134, %138 : vector<8x8xf32>
    %cst_48 = arith.constant dense<0.000000e+00> : vector<8x32xf32>
    %140 = tpu.matmul %139, %123, %cst_48 {dimension_numbers = #tpu.dot_dimension_numbers<[1], [0], [0], [1], [0, 0, 1, 1], [], []>} : vector<8x8xf32>, vector<8x32xf32>, vector<8x32xf32> -> vector<8x32xf32>
    %141 = vector.extract_strided_slice %120 {offsets = [0, 32], sizes = [8, 32], strides = [1, 1]} : vector<8x384xf32> to vector<8x32xf32>
    %142 = vector.extract_strided_slice %120 {offsets = [0, 160], sizes = [8, 32], strides = [1, 1]} : vector<8x384xf32> to vector<8x32xf32>
    %143 = vector.extract_strided_slice %120 {offsets = [0, 288], sizes = [8, 32], strides = [1, 1]} : vector<8x384xf32> to vector<8x32xf32>
    %144 = tpu.transpose %142, [1, 0] : vector<8x32xf32> -> vector<32x8xf32>
    %cst_49 = arith.constant dense<0.000000e+00> : vector<8x8xf32>
    %145 = tpu.matmul %141, %144, %cst_49 {dimension_numbers = #tpu.dot_dimension_numbers<[1], [0], [0], [1], [0, 0, 1, 1], [], []>} : vector<8x32xf32>, vector<32x8xf32>, vector<8x8xf32> -> vector<8x8xf32>
    %cst_50 = arith.constant 0.176776692 : f32
    %146 = vector.broadcast %cst_50 : f32 to vector<8x8xf32>
    %147 = arith.mulf %145, %146 : vector<8x8xf32>
    %cst_51 = arith.constant -1.000000e+30 : f32
    %148 = vector.broadcast %cst_51 : f32 to vector<8x8xf32>
    %149 = arith.select %37, %147, %148 : vector<8x8xi1>, vector<8x8xf32>
    %cst_52 = arith.constant dense<0xFF800000> : vector<8xf32>
    %150 = vector.multi_reduction <maximumf>, %149, %cst_52 [1] : vector<8x8xf32> to vector<8xf32>
    %151 = vector.shape_cast %150 : vector<8xf32> to vector<8x1xf32>
    %152 = vector.broadcast %151 : vector<8x1xf32> to vector<8x8xf32>
    %153 = arith.subf %149, %152 : vector<8x8xf32>
    %154 = math.exp %153 : vector<8x8xf32>
    %cst_53 = arith.constant dense<0.000000e+00> : vector<8xf32>
    %155 = vector.multi_reduction <add>, %154, %cst_53 [1] : vector<8x8xf32> to vector<8xf32>
    %156 = vector.shape_cast %155 : vector<8xf32> to vector<8x1xf32>
    %157 = tpu.reciprocal %156 {approx = true} : vector<8x1xf32> -> vector<8x1xf32>
    %158 = vector.broadcast %157 : vector<8x1xf32> to vector<8x8xf32>
    %159 = arith.mulf %154, %158 : vector<8x8xf32>
    %cst_54 = arith.constant dense<0.000000e+00> : vector<8x32xf32>
    %160 = tpu.matmul %159, %143, %cst_54 {dimension_numbers = #tpu.dot_dimension_numbers<[1], [0], [0], [1], [0, 0, 1, 1], [], []>} : vector<8x8xf32>, vector<8x32xf32>, vector<8x32xf32> -> vector<8x32xf32>
    %161 = vector.extract_strided_slice %120 {offsets = [0, 64], sizes = [8, 32], strides = [1, 1]} : vector<8x384xf32> to vector<8x32xf32>
    %162 = vector.extract_strided_slice %120 {offsets = [0, 192], sizes = [8, 32], strides = [1, 1]} : vector<8x384xf32> to vector<8x32xf32>
    %163 = vector.extract_strided_slice %120 {offsets = [0, 320], sizes = [8, 32], strides = [1, 1]} : vector<8x384xf32> to vector<8x32xf32>
    %164 = tpu.transpose %162, [1, 0] : vector<8x32xf32> -> vector<32x8xf32>
    %cst_55 = arith.constant dense<0.000000e+00> : vector<8x8xf32>
    %165 = tpu.matmul %161, %164, %cst_55 {dimension_numbers = #tpu.dot_dimension_numbers<[1], [0], [0], [1], [0, 0, 1, 1], [], []>} : vector<8x32xf32>, vector<32x8xf32>, vector<8x8xf32> -> vector<8x8xf32>
    %cst_56 = arith.constant 0.176776692 : f32
    %166 = vector.broadcast %cst_56 : f32 to vector<8x8xf32>
    %167 = arith.mulf %165, %166 : vector<8x8xf32>
    %cst_57 = arith.constant -1.000000e+30 : f32
    %168 = vector.broadcast %cst_57 : f32 to vector<8x8xf32>
    %169 = arith.select %37, %167, %168 : vector<8x8xi1>, vector<8x8xf32>
    %cst_58 = arith.constant dense<0xFF800000> : vector<8xf32>
    %170 = vector.multi_reduction <maximumf>, %169, %cst_58 [1] : vector<8x8xf32> to vector<8xf32>
    %171 = vector.shape_cast %170 : vector<8xf32> to vector<8x1xf32>
    %172 = vector.broadcast %171 : vector<8x1xf32> to vector<8x8xf32>
    %173 = arith.subf %169, %172 : vector<8x8xf32>
    %174 = math.exp %173 : vector<8x8xf32>
    %cst_59 = arith.constant dense<0.000000e+00> : vector<8xf32>
    %175 = vector.multi_reduction <add>, %174, %cst_59 [1] : vector<8x8xf32> to vector<8xf32>
    %176 = vector.shape_cast %175 : vector<8xf32> to vector<8x1xf32>
    %177 = tpu.reciprocal %176 {approx = true} : vector<8x1xf32> -> vector<8x1xf32>
    %178 = vector.broadcast %177 : vector<8x1xf32> to vector<8x8xf32>
    %179 = arith.mulf %174, %178 : vector<8x8xf32>
    %cst_60 = arith.constant dense<0.000000e+00> : vector<8x32xf32>
    %180 = tpu.matmul %179, %163, %cst_60 {dimension_numbers = #tpu.dot_dimension_numbers<[1], [0], [0], [1], [0, 0, 1, 1], [], []>} : vector<8x8xf32>, vector<8x32xf32>, vector<8x32xf32> -> vector<8x32xf32>
    %181 = vector.extract_strided_slice %120 {offsets = [0, 96], sizes = [8, 32], strides = [1, 1]} : vector<8x384xf32> to vector<8x32xf32>
    %182 = vector.extract_strided_slice %120 {offsets = [0, 224], sizes = [8, 32], strides = [1, 1]} : vector<8x384xf32> to vector<8x32xf32>
    %183 = vector.extract_strided_slice %120 {offsets = [0, 352], sizes = [8, 32], strides = [1, 1]} : vector<8x384xf32> to vector<8x32xf32>
    %184 = tpu.transpose %182, [1, 0] : vector<8x32xf32> -> vector<32x8xf32>
    %cst_61 = arith.constant dense<0.000000e+00> : vector<8x8xf32>
    %185 = tpu.matmul %181, %184, %cst_61 {dimension_numbers = #tpu.dot_dimension_numbers<[1], [0], [0], [1], [0, 0, 1, 1], [], []>} : vector<8x32xf32>, vector<32x8xf32>, vector<8x8xf32> -> vector<8x8xf32>
    %cst_62 = arith.constant 0.176776692 : f32
    %186 = vector.broadcast %cst_62 : f32 to vector<8x8xf32>
    %187 = arith.mulf %185, %186 : vector<8x8xf32>
    %cst_63 = arith.constant -1.000000e+30 : f32
    %188 = vector.broadcast %cst_63 : f32 to vector<8x8xf32>
    %189 = arith.select %37, %187, %188 : vector<8x8xi1>, vector<8x8xf32>
    %cst_64 = arith.constant dense<0xFF800000> : vector<8xf32>
    %190 = vector.multi_reduction <maximumf>, %189, %cst_64 [1] : vector<8x8xf32> to vector<8xf32>
    %191 = vector.shape_cast %190 : vector<8xf32> to vector<8x1xf32>
    %192 = vector.broadcast %191 : vector<8x1xf32> to vector<8x8xf32>
    %193 = arith.subf %189, %192 : vector<8x8xf32>
    %194 = math.exp %193 : vector<8x8xf32>
    %cst_65 = arith.constant dense<0.000000e+00> : vector<8xf32>
    %195 = vector.multi_reduction <add>, %194, %cst_65 [1] : vector<8x8xf32> to vector<8xf32>
    %196 = vector.shape_cast %195 : vector<8xf32> to vector<8x1xf32>
    %197 = tpu.reciprocal %196 {approx = true} : vector<8x1xf32> -> vector<8x1xf32>
    %198 = vector.broadcast %197 : vector<8x1xf32> to vector<8x8xf32>
    %199 = arith.mulf %194, %198 : vector<8x8xf32>
    %cst_66 = arith.constant dense<0.000000e+00> : vector<8x32xf32>
    %200 = tpu.matmul %199, %183, %cst_66 {dimension_numbers = #tpu.dot_dimension_numbers<[1], [0], [0], [1], [0, 0, 1, 1], [], []>} : vector<8x8xf32>, vector<8x32xf32>, vector<8x32xf32> -> vector<8x32xf32>
    %201 = tpu.concatenate %140, %160, %180, %200 in 1 : vector<8x32xf32>, vector<8x32xf32>, vector<8x32xf32>, vector<8x32xf32> -> vector<8x128xf32>
    %202 = tpu.concatenate %119, %201 in 0 : vector<8x128xf32>, vector<8x128xf32> -> vector<16x128xf32>
    %c0_67 = arith.constant 0 : index
    %c0_68 = arith.constant 0 : index
    %c0_69 = arith.constant 0 : index
    %203 = vector.load %arg10[%c0_67, %c0_68, %c0_69] : memref<1x128x128xf32, #tpu.memory_space<vmem>>, vector<1x128x128xf32>
    %204 = vector.shape_cast %203 : vector<1x128x128xf32> to vector<128x128xf32>
    %cst_70 = arith.constant dense<0.000000e+00> : vector<16x128xf32>
    %205 = tpu.matmul %202, %204, %cst_70 {dimension_numbers = #tpu.dot_dimension_numbers<[1], [0], [0], [1], [0, 0, 1, 1], [], []>} : vector<16x128xf32>, vector<128x128xf32>, vector<16x128xf32> -> vector<16x128xf32>
    %206 = arith.addf %3, %205 : vector<16x128xf32>
    %c0_71 = arith.constant 0 : index
    %c0_72 = arith.constant 0 : index
    %c0_73 = arith.constant 0 : index
    %207 = vector.load %arg11[%c0_71, %c0_72, %c0_73] : memref<1x1x128xf32, #tpu.memory_space<vmem>>, vector<1x1x128xf32>
    %208 = vector.shape_cast %207 : vector<1x1x128xf32> to vector<1x128xf32>
    %209 = vector.broadcast %208 : vector<1x128xf32> to vector<16x128xf32>
    %210 = arith.addf %206, %209 : vector<16x128xf32>
    %c0_74 = arith.constant 0 : index
    %c0_75 = arith.constant 0 : index
    %c0_76 = arith.constant 0 : index
    %211 = vector.load %arg12[%c0_74, %c0_75, %c0_76] : memref<1x1x128xf32, #tpu.memory_space<vmem>>, vector<1x1x128xf32>
    %212 = vector.shape_cast %211 : vector<1x1x128xf32> to vector<1x128xf32>
    %c0_77 = arith.constant 0 : index
    %c0_78 = arith.constant 0 : index
    %c0_79 = arith.constant 0 : index
    %213 = vector.load %arg13[%c0_77, %c0_78, %c0_79] : memref<1x1x128xf32, #tpu.memory_space<vmem>>, vector<1x1x128xf32>
    %214 = vector.shape_cast %213 : vector<1x1x128xf32> to vector<1x128xf32>
    %cst_80 = arith.constant dense<0.000000e+00> : vector<16xf32>
    %215 = vector.multi_reduction <add>, %210, %cst_80 [1] : vector<16x128xf32> to vector<16xf32>
    %216 = vector.shape_cast %215 : vector<16xf32> to vector<16x1xf32>
    %cst_81 = arith.constant 1.280000e+02 : f32
    %217 = vector.broadcast %cst_81 : f32 to vector<16x1xf32>
    %218 = arith.divf %216, %217 : vector<16x1xf32>
    %219 = vector.broadcast %218 : vector<16x1xf32> to vector<16x128xf32>
    %220 = arith.subf %210, %219 : vector<16x128xf32>
    %221 = arith.mulf %220, %220 : vector<16x128xf32>
    %cst_82 = arith.constant dense<0.000000e+00> : vector<16xf32>
    %222 = vector.multi_reduction <add>, %221, %cst_82 [1] : vector<16x128xf32> to vector<16xf32>
    %223 = vector.shape_cast %222 : vector<16xf32> to vector<16x1xf32>
    %cst_83 = arith.constant 1.280000e+02 : f32
    %224 = vector.broadcast %cst_83 : f32 to vector<16x1xf32>
    %225 = arith.divf %223, %224 : vector<16x1xf32>
    %cst_84 = arith.constant 9.99999997E-7 : f32
    %226 = vector.broadcast %cst_84 : f32 to vector<16x1xf32>
    %227 = arith.addf %225, %226 : vector<16x1xf32>
    %228 = math.rsqrt %227 : vector<16x1xf32>
    %229 = vector.broadcast %228 : vector<16x1xf32> to vector<16x128xf32>
    %230 = arith.mulf %220, %229 : vector<16x128xf32>
    %231 = vector.broadcast %212 : vector<1x128xf32> to vector<16x128xf32>
    %232 = arith.mulf %230, %231 : vector<16x128xf32>
    %233 = vector.broadcast %214 : vector<1x128xf32> to vector<16x128xf32>
    %234 = arith.addf %232, %233 : vector<16x128xf32>
    %c0_85 = arith.constant 0 : index
    %c0_86 = arith.constant 0 : index
    %c0_87 = arith.constant 0 : index
    %235 = vector.load %arg14[%c0_85, %c0_86, %c0_87] : memref<1x128x512xf32, #tpu.memory_space<vmem>>, vector<1x128x512xf32>
    %236 = vector.shape_cast %235 : vector<1x128x512xf32> to vector<128x512xf32>
    %cst_88 = arith.constant dense<0.000000e+00> : vector<16x512xf32>
    %237 = tpu.matmul %234, %236, %cst_88 {dimension_numbers = #tpu.dot_dimension_numbers<[1], [0], [0], [1], [0, 0, 1, 1], [], []>} : vector<16x128xf32>, vector<128x512xf32>, vector<16x512xf32> -> vector<16x512xf32>
    %c0_89 = arith.constant 0 : index
    %c0_90 = arith.constant 0 : index
    %c0_91 = arith.constant 0 : index
    %238 = vector.load %arg15[%c0_89, %c0_90, %c0_91] : memref<1x1x512xf32, #tpu.memory_space<vmem>>, vector<1x1x512xf32>
    %239 = vector.shape_cast %238 : vector<1x1x512xf32> to vector<1x512xf32>
    %240 = vector.broadcast %239 : vector<1x512xf32> to vector<16x512xf32>
    %241 = arith.addf %237, %240 : vector<16x512xf32>
    %242 = arith.mulf %241, %241 : vector<16x512xf32>
    %243 = arith.mulf %241, %242 : vector<16x512xf32>
    %cst_92 = arith.constant 4.471500e-02 : f32
    %244 = vector.broadcast %cst_92 : f32 to vector<16x512xf32>
    %245 = arith.mulf %244, %243 : vector<16x512xf32>
    %246 = arith.addf %241, %245 : vector<16x512xf32>
    %cst_93 = arith.constant 0.797884583 : f32
    %247 = vector.broadcast %cst_93 : f32 to vector<16x512xf32>
    %248 = arith.mulf %247, %246 : vector<16x512xf32>
    %249 = math.tanh %248 : vector<16x512xf32>
    %cst_94 = arith.constant 1.000000e+00 : f32
    %250 = vector.broadcast %cst_94 : f32 to vector<16x512xf32>
    %251 = arith.addf %250, %249 : vector<16x512xf32>
    %cst_95 = arith.constant 5.000000e-01 : f32
    %252 = vector.broadcast %cst_95 : f32 to vector<16x512xf32>
    %253 = arith.mulf %252, %251 : vector<16x512xf32>
    %254 = arith.mulf %241, %253 : vector<16x512xf32>
    %c0_96 = arith.constant 0 : index
    %c0_97 = arith.constant 0 : index
    %c0_98 = arith.constant 0 : index
    %255 = vector.load %arg16[%c0_96, %c0_97, %c0_98] : memref<1x512x128xf32, #tpu.memory_space<vmem>>, vector<1x512x128xf32>
    %256 = vector.shape_cast %255 : vector<1x512x128xf32> to vector<512x128xf32>
    %cst_99 = arith.constant dense<0.000000e+00> : vector<16x128xf32>
    %257 = tpu.matmul %254, %256, %cst_99 {dimension_numbers = #tpu.dot_dimension_numbers<[1], [0], [0], [1], [0, 0, 1, 1], [], []>} : vector<16x512xf32>, vector<512x128xf32>, vector<16x128xf32> -> vector<16x128xf32>
    %c0_100 = arith.constant 0 : index
    %c0_101 = arith.constant 0 : index
    %c0_102 = arith.constant 0 : index
    %258 = vector.load %arg17[%c0_100, %c0_101, %c0_102] : memref<1x1x128xf32, #tpu.memory_space<vmem>>, vector<1x1x128xf32>
    %259 = vector.shape_cast %258 : vector<1x1x128xf32> to vector<1x128xf32>
    %260 = vector.broadcast %259 : vector<1x128xf32> to vector<16x128xf32>
    %261 = arith.addf %257, %260 : vector<16x128xf32>
    %262 = arith.addf %210, %261 : vector<16x128xf32>
    %c0_103 = arith.constant 0 : index
    %c0_104 = arith.constant 0 : index
    %263 = vector.load %arg29[%c0_103, %c0_104] : memref<16x128xf32, #tpu.memory_space<vmem>>, vector<16x128xf32>
    tpu.vector_store %arg29[%c0_103, %c0_104], %262 {strides = array<i32>} : memref<16x128xf32, #tpu.memory_space<vmem>>, vector<16x128xf32>,
    %c1_i32 = arith.constant 1 : i32
    %264 = arith.cmpi eq, %arg0, %c1_i32 : i32
    %265 = arith.extui %264 : i1 to i32
    %c0_i32_105 = arith.constant 0 : i32
    %266 = arith.cmpi ne, %265, %c0_i32_105 : i32
    scf.if %266 {
      %267 = vector.extract_strided_slice %262 {offsets = [0, 0], sizes = [1, 128], strides = [1, 1]} : vector<16x128xf32> to vector<1x128xf32>
      %268 = vector.extract_strided_slice %262 {offsets = [8, 0], sizes = [1, 128], strides = [1, 1]} : vector<16x128xf32> to vector<1x128xf32>
      %269 = tpu.concatenate %267, %268 in 0 : vector<1x128xf32>, vector<1x128xf32> -> vector<2x128xf32>
      %c0_106 = arith.constant 0 : index
      %c0_107 = arith.constant 0 : index
      %270 = vector.load %arg18[%c0_106, %c0_107] : memref<1x128xf32, #tpu.memory_space<vmem>>, vector<1x128xf32>
      %c0_108 = arith.constant 0 : index
      %c0_109 = arith.constant 0 : index
      %271 = vector.load %arg19[%c0_108, %c0_109] : memref<1x128xf32, #tpu.memory_space<vmem>>, vector<1x128xf32>
      %cst_110 = arith.constant dense<0.000000e+00> : vector<2xf32>
      %272 = vector.multi_reduction <add>, %269, %cst_110 [1] : vector<2x128xf32> to vector<2xf32>
      %273 = vector.shape_cast %272 : vector<2xf32> to vector<2x1xf32>
      %cst_111 = arith.constant 1.280000e+02 : f32
      %274 = vector.broadcast %cst_111 : f32 to vector<2x1xf32>
      %275 = arith.divf %273, %274 : vector<2x1xf32>
      %276 = vector.broadcast %275 : vector<2x1xf32> to vector<2x128xf32>
      %277 = arith.subf %269, %276 : vector<2x128xf32>
      %278 = arith.mulf %277, %277 : vector<2x128xf32>
      %cst_112 = arith.constant dense<0.000000e+00> : vector<2xf32>
      %279 = vector.multi_reduction <add>, %278, %cst_112 [1] : vector<2x128xf32> to vector<2xf32>
      %280 = vector.shape_cast %279 : vector<2xf32> to vector<2x1xf32>
      %cst_113 = arith.constant 1.280000e+02 : f32
      %281 = vector.broadcast %cst_113 : f32 to vector<2x1xf32>
      %282 = arith.divf %280, %281 : vector<2x1xf32>
      %cst_114 = arith.constant 9.99999997E-7 : f32
      %283 = vector.broadcast %cst_114 : f32 to vector<2x1xf32>
      %284 = arith.addf %282, %283 : vector<2x1xf32>
      %285 = math.rsqrt %284 : vector<2x1xf32>
      %286 = vector.broadcast %285 : vector<2x1xf32> to vector<2x128xf32>
      %287 = arith.mulf %277, %286 : vector<2x128xf32>
      %288 = vector.broadcast %270 : vector<1x128xf32> to vector<2x128xf32>
      %289 = arith.mulf %287, %288 : vector<2x128xf32>
      %290 = vector.broadcast %271 : vector<1x128xf32> to vector<2x128xf32>
      %291 = arith.addf %289, %290 : vector<2x128xf32>
      %c0_115 = arith.constant 0 : index
      %c0_116 = arith.constant 0 : index
      %292 = vector.load %arg20[%c0_115, %c0_116] : memref<1x128xf32, #tpu.memory_space<vmem>>, vector<1x128xf32>
      %c0_117 = arith.constant 0 : index
      %c0_118 = arith.constant 0 : index
      %293 = vector.load %arg21[%c0_117, %c0_118] : memref<1x128xf32, #tpu.memory_space<vmem>>, vector<1x128xf32>
      %cst_119 = arith.constant dense<0.000000e+00> : vector<2xf32>
      %294 = vector.multi_reduction <add>, %291, %cst_119 [1] : vector<2x128xf32> to vector<2xf32>
      %295 = vector.shape_cast %294 : vector<2xf32> to vector<2x1xf32>
      %cst_120 = arith.constant 1.280000e+02 : f32
      %296 = vector.broadcast %cst_120 : f32 to vector<2x1xf32>
      %297 = arith.divf %295, %296 : vector<2x1xf32>
      %298 = vector.broadcast %297 : vector<2x1xf32> to vector<2x128xf32>
      %299 = arith.subf %291, %298 : vector<2x128xf32>
      %300 = arith.mulf %299, %299 : vector<2x128xf32>
      %cst_121 = arith.constant dense<0.000000e+00> : vector<2xf32>
      %301 = vector.multi_reduction <add>, %300, %cst_121 [1] : vector<2x128xf32> to vector<2xf32>
      %302 = vector.shape_cast %301 : vector<2xf32> to vector<2x1xf32>
      %cst_122 = arith.constant 1.280000e+02 : f32
      %303 = vector.broadcast %cst_122 : f32 to vector<2x1xf32>
      %304 = arith.divf %302, %303 : vector<2x1xf32>
      %cst_123 = arith.constant 9.99999974E-6 : f32
      %305 = vector.broadcast %cst_123 : f32 to vector<2x1xf32>
      %306 = arith.addf %304, %305 : vector<2x1xf32>
      %307 = math.rsqrt %306 : vector<2x1xf32>
      %308 = vector.broadcast %307 : vector<2x1xf32> to vector<2x128xf32>
      %309 = arith.mulf %299, %308 : vector<2x128xf32>
      %310 = vector.broadcast %292 : vector<1x128xf32> to vector<2x128xf32>
      %311 = arith.mulf %309, %310 : vector<2x128xf32>
      %312 = vector.broadcast %293 : vector<1x128xf32> to vector<2x128xf32>
      %313 = arith.addf %311, %312 : vector<2x128xf32>
      %c0_124 = arith.constant 0 : index
      %c0_125 = arith.constant 0 : index
      %314 = vector.load %arg22[%c0_124, %c0_125] : memref<128x1024xf32, #tpu.memory_space<vmem>>, vector<128x1024xf32>
      %cst_126 = arith.constant dense<0.000000e+00> : vector<2x1024xf32>
      %315 = tpu.matmul %313, %314, %cst_126 {dimension_numbers = #tpu.dot_dimension_numbers<[1], [0], [0], [1], [0, 0, 1, 1], [], []>} : vector<2x128xf32>, vector<128x1024xf32>, vector<2x1024xf32> -> vector<2x1024xf32>
      %c0_127 = arith.constant 0 : index
      %c0_128 = arith.constant 0 : index
      %316 = vector.load %arg23[%c0_127, %c0_128] : memref<1x1024xf32, #tpu.memory_space<vmem>>, vector<1x1024xf32>
      %317 = vector.broadcast %316 : vector<1x1024xf32> to vector<2x1024xf32>
      %318 = arith.addf %315, %317 : vector<2x1024xf32>
      %319 = arith.mulf %318, %318 : vector<2x1024xf32>
      %320 = arith.mulf %318, %319 : vector<2x1024xf32>
      %cst_129 = arith.constant 4.471500e-02 : f32
      %321 = vector.broadcast %cst_129 : f32 to vector<2x1024xf32>
      %322 = arith.mulf %321, %320 : vector<2x1024xf32>
      %323 = arith.addf %318, %322 : vector<2x1024xf32>
      %cst_130 = arith.constant 0.797884583 : f32
      %324 = vector.broadcast %cst_130 : f32 to vector<2x1024xf32>
      %325 = arith.mulf %324, %323 : vector<2x1024xf32>
      %326 = math.tanh %325 : vector<2x1024xf32>
      %cst_131 = arith.constant 1.000000e+00 : f32
      %327 = vector.broadcast %cst_131 : f32 to vector<2x1024xf32>
      %328 = arith.addf %327, %326 : vector<2x1024xf32>
      %cst_132 = arith.constant 5.000000e-01 : f32
      %329 = vector.broadcast %cst_132 : f32 to vector<2x1024xf32>
      %330 = arith.mulf %329, %328 : vector<2x1024xf32>
      %331 = arith.mulf %318, %330 : vector<2x1024xf32>
      %c0_133 = arith.constant 0 : index
      %c0_134 = arith.constant 0 : index
      %332 = vector.load %arg24[%c0_133, %c0_134] : memref<1024x512xf32, #tpu.memory_space<vmem>>, vector<1024x512xf32>
      %cst_135 = arith.constant dense<0.000000e+00> : vector<2x512xf32>
      %333 = tpu.matmul %331, %332, %cst_135 {dimension_numbers = #tpu.dot_dimension_numbers<[1], [0], [0], [1], [0, 0, 1, 1], [], []>} : vector<2x1024xf32>, vector<1024x512xf32>, vector<2x512xf32> -> vector<2x512xf32>
      %c0_136 = arith.constant 0 : index
      %c0_137 = arith.constant 0 : index
      %334 = vector.load %arg25[%c0_136, %c0_137] : memref<1x512xf32, #tpu.memory_space<vmem>>, vector<1x512xf32>
      %335 = vector.broadcast %334 : vector<1x512xf32> to vector<2x512xf32>
      %336 = arith.addf %333, %335 : vector<2x512xf32>
      %337 = arith.mulf %336, %336 : vector<2x512xf32>
      %338 = arith.mulf %336, %337 : vector<2x512xf32>
      %cst_138 = arith.constant 4.471500e-02 : f32
      %339 = vector.broadcast %cst_138 : f32 to vector<2x512xf32>
      %340 = arith.mulf %339, %338 : vector<2x512xf32>
      %341 = arith.addf %336, %340 : vector<2x512xf32>
      %cst_139 = arith.constant 0.797884583 : f32
      %342 = vector.broadcast %cst_139 : f32 to vector<2x512xf32>
      %343 = arith.mulf %342, %341 : vector<2x512xf32>
      %344 = math.tanh %343 : vector<2x512xf32>
      %cst_140 = arith.constant 1.000000e+00 : f32
      %345 = vector.broadcast %cst_140 : f32 to vector<2x512xf32>
      %346 = arith.addf %345, %344 : vector<2x512xf32>
      %cst_141 = arith.constant 5.000000e-01 : f32
      %347 = vector.broadcast %cst_141 : f32 to vector<2x512xf32>
      %348 = arith.mulf %347, %346 : vector<2x512xf32>
      %349 = arith.mulf %336, %348 : vector<2x512xf32>
      %c0_142 = arith.constant 0 : index
      %c0_143 = arith.constant 0 : index
      %350 = vector.load %arg26[%c0_142, %c0_143] : memref<512x128xf32, #tpu.memory_space<vmem>>, vector<512x128xf32>
      %cst_144 = arith.constant dense<0.000000e+00> : vector<2x128xf32>
      %351 = tpu.matmul %349, %350, %cst_144 {dimension_numbers = #tpu.dot_dimension_numbers<[1], [0], [0], [1], [0, 0, 1, 1], [], []>} : vector<2x512xf32>, vector<512x128xf32>, vector<2x128xf32> -> vector<2x128xf32>
      %c0_145 = arith.constant 0 : index
      %c0_146 = arith.constant 0 : index
      %352 = vector.load %arg27[%c0_145, %c0_146] : memref<1x128xf32, #tpu.memory_space<vmem>>, vector<1x128xf32>
      %353 = vector.broadcast %352 : vector<1x128xf32> to vector<2x128xf32>
      %354 = arith.addf %351, %353 : vector<2x128xf32>
      %c0_147 = arith.constant 0 : index
      %c0_148 = arith.constant 0 : index
      %355 = vector.load %arg28[%c0_147, %c0_148] : memref<2x128xf32, #tpu.memory_space<vmem>>, vector<2x128xf32>
      tpu.vector_store %arg28[%c0_147, %c0_148], %354 {strides = array<i32>} : memref<2x128xf32, #tpu.memory_space<vmem>>, vector<2x128xf32>,
    } else {
    }
    return
  }
  func.func @transform_0(%arg0: i32) -> (i32, i32) {
    %c0_i32 = arith.constant 0 : i32
    %c0_i32_0 = arith.constant 0 : i32
    %c0_i32_1 = arith.constant 0 : i32
    return %c0_i32, %c0_i32_0 : i32, i32
  }
  func.func @transform_1(%arg0: i32) -> (i32, i32) {
    %c0_i32 = arith.constant 0 : i32
    %c0_i32_0 = arith.constant 0 : i32
    %c0_i32_1 = arith.constant 0 : i32
    return %c0_i32, %c0_i32_0 : i32, i32
  }
  func.func @transform_2(%arg0: i32) -> (i32, i32) {
    %c0_i32 = arith.constant 0 : i32
    %c0_i32_0 = arith.constant 0 : i32
    %c0_i32_1 = arith.constant 0 : i32
    return %c0_i32, %c0_i32_0 : i32, i32
  }
  func.func @transform_3(%arg0: i32) -> (i32, i32) {
    %c0_i32 = arith.constant 0 : i32
    %c0_i32_0 = arith.constant 0 : i32
    %c0_i32_1 = arith.constant 0 : i32
    return %c0_i32, %c0_i32_0 : i32, i32
  }
  func.func @transform_4(%arg0: i32) -> (i32, i32) {
    %c0_i32 = arith.constant 0 : i32
    %c0_i32_0 = arith.constant 0 : i32
    %c0_i32_1 = arith.constant 0 : i32
    return %c0_i32, %c0_i32_0 : i32, i32
  }
  func.func @transform_5(%arg0: i32) -> (i32, i32, i32) {
    %c0_i32 = arith.constant 0 : i32
    %c0_i32_0 = arith.constant 0 : i32
    %c0_i32_1 = arith.constant 0 : i32
    return %arg0, %c0_i32, %c0_i32_0 : i32, i32, i32
  }
  func.func @transform_6(%arg0: i32) -> (i32, i32, i32) {
    %c0_i32 = arith.constant 0 : i32
    %c0_i32_0 = arith.constant 0 : i32
    %c0_i32_1 = arith.constant 0 : i32
    return %arg0, %c0_i32, %c0_i32_0 : i32, i32, i32
  }
  func.func @transform_7(%arg0: i32) -> (i32, i32, i32) {
    %c0_i32 = arith.constant 0 : i32
    %c0_i32_0 = arith.constant 0 : i32
    %c0_i32_1 = arith.constant 0 : i32
    return %arg0, %c0_i32, %c0_i32_0 : i32, i32, i32
  }
  func.func @transform_8(%arg0: i32) -> (i32, i32, i32) {
    %c0_i32 = arith.constant 0 : i32
    %c0_i32_0 = arith.constant 0 : i32
    %c0_i32_1 = arith.constant 0 : i32
    return %arg0, %c0_i32, %c0_i32_0 : i32, i32, i32
  }
  func.func @transform_9(%arg0: i32) -> (i32, i32, i32) {
    %c0_i32 = arith.constant 0 : i32
    %c0_i32_0 = arith.constant 0 : i32
    %c0_i32_1 = arith.constant 0 : i32
    return %arg0, %c0_i32, %c0_i32_0 : i32, i32, i32
  }
  func.func @transform_10(%arg0: i32) -> (i32, i32, i32) {
    %c0_i32 = arith.constant 0 : i32
    %c0_i32_0 = arith.constant 0 : i32
    %c0_i32_1 = arith.constant 0 : i32
    return %arg0, %c0_i32, %c0_i32_0 : i32, i32, i32
  }
  func.func @transform_11(%arg0: i32) -> (i32, i32, i32) {
    %c0_i32 = arith.constant 0 : i32
    %c0_i32_0 = arith.constant 0 : i32
    %c0_i32_1 = arith.constant 0 : i32
    return %arg0, %c0_i32, %c0_i32_0 : i32, i32, i32
  }
  func.func @transform_12(%arg0: i32) -> (i32, i32, i32) {
    %c0_i32 = arith.constant 0 : i32
    %c0_i32_0 = arith.constant 0 : i32
    %c0_i32_1 = arith.constant 0 : i32
    return %arg0, %c0_i32, %c0_i32_0 : i32, i32, i32
  }
  func.func @transform_13(%arg0: i32) -> (i32, i32, i32) {
    %c0_i32 = arith.constant 0 : i32
    %c0_i32_0 = arith.constant 0 : i32
    %c0_i32_1 = arith.constant 0 : i32
    return %arg0, %c0_i32, %c0_i32_0 : i32, i32, i32
  }
  func.func @transform_14(%arg0: i32) -> (i32, i32, i32) {
    %c0_i32 = arith.constant 0 : i32
    %c0_i32_0 = arith.constant 0 : i32
    %c0_i32_1 = arith.constant 0 : i32
    return %arg0, %c0_i32, %c0_i32_0 : i32, i32, i32
  }
  func.func @transform_15(%arg0: i32) -> (i32, i32, i32) {
    %c0_i32 = arith.constant 0 : i32
    %c0_i32_0 = arith.constant 0 : i32
    %c0_i32_1 = arith.constant 0 : i32
    return %arg0, %c0_i32, %c0_i32_0 : i32, i32, i32
  }
  func.func @transform_16(%arg0: i32) -> (i32, i32, i32) {
    %c0_i32 = arith.constant 0 : i32
    %c0_i32_0 = arith.constant 0 : i32
    %c0_i32_1 = arith.constant 0 : i32
    return %arg0, %c0_i32, %c0_i32_0 : i32, i32, i32
  }
  func.func @transform_17(%arg0: i32) -> (i32, i32) {
    %c0_i32 = arith.constant 0 : i32
    %c0_i32_0 = arith.constant 0 : i32
    %c0_i32_1 = arith.constant 0 : i32
    return %c0_i32, %c0_i32_0 : i32, i32
  }
  func.func @transform_18(%arg0: i32) -> (i32, i32) {
    %c0_i32 = arith.constant 0 : i32
    %c0_i32_0 = arith.constant 0 : i32
    %c0_i32_1 = arith.constant 0 : i32
    return %c0_i32, %c0_i32_0 : i32, i32
  }
  func.func @transform_19(%arg0: i32) -> (i32, i32) {
    %c0_i32 = arith.constant 0 : i32
    %c0_i32_0 = arith.constant 0 : i32
    %c0_i32_1 = arith.constant 0 : i32
    return %c0_i32, %c0_i32_0 : i32, i32
  }
  func.func @transform_20(%arg0: i32) -> (i32, i32) {
    %c0_i32 = arith.constant 0 : i32
    %c0_i32_0 = arith.constant 0 : i32
    %c0_i32_1 = arith.constant 0 : i32
    return %c0_i32, %c0_i32_0 : i32, i32
  }
  func.func @transform_21(%arg0: i32) -> (i32, i32) {
    %c0_i32 = arith.constant 0 : i32
    %c0_i32_0 = arith.constant 0 : i32
    %c0_i32_1 = arith.constant 0 : i32
    return %c0_i32, %c0_i32_0 : i32, i32
  }
  func.func @transform_22(%arg0: i32) -> (i32, i32) {
    %c0_i32 = arith.constant 0 : i32
    %c0_i32_0 = arith.constant 0 : i32
    %c0_i32_1 = arith.constant 0 : i32
    return %c0_i32, %c0_i32_0 : i32, i32
  }
  func.func @transform_23(%arg0: i32) -> (i32, i32) {
    %c0_i32 = arith.constant 0 : i32
    %c0_i32_0 = arith.constant 0 : i32
    %c0_i32_1 = arith.constant 0 : i32
    return %c0_i32, %c0_i32_0 : i32, i32
  }
  func.func @transform_24(%arg0: i32) -> (i32, i32) {
    %c0_i32 = arith.constant 0 : i32
    %c0_i32_0 = arith.constant 0 : i32
    %c0_i32_1 = arith.constant 0 : i32
    return %c0_i32, %c0_i32_0 : i32, i32
  }
  func.func @transform_25(%arg0: i32) -> (i32, i32) {
    %c0_i32 = arith.constant 0 : i32
    %c0_i32_0 = arith.constant 0 : i32
    %c0_i32_1 = arith.constant 0 : i32
    return %c0_i32, %c0_i32_0 : i32, i32
  }
  func.func @transform_26(%arg0: i32) -> (i32, i32) {
    %c0_i32 = arith.constant 0 : i32
    %c0_i32_0 = arith.constant 0 : i32
    %c0_i32_1 = arith.constant 0 : i32
    return %c0_i32, %c0_i32_0 : i32, i32
  }
  func.func @transform_27(%arg0: i32) -> (i32, i32) {
    %c0_i32 = arith.constant 0 : i32
    %c0_i32_0 = arith.constant 0 : i32
    %c0_i32_1 = arith.constant 0 : i32
    return %c0_i32, %c0_i32_0 : i32, i32
  }
}

</mosaic_0001>

<llo_original>
// kernel: tpu_custom_call.1
$region0: #{tpu_custom_call.1}
  #allocation0 [shape = 'u32[]', space=smem, size = 0x4, offset = 0x4, fixed_abs, tag = 'smem constant byte address 0x4 - core index']
  #allocation1 [shape = 'u32[144,128]{1,0:T(1,128)}', space=vmem, size = 0x12000, scoped, tag = 'internal scratch']
  %s0 = inlined_call_operand.hbm [shape: f32[8,128], index: 0, kind: input, shape index: {}]
  %s1 = inlined_call_operand.hbm [shape: f32[8,128], index: 1, kind: output, shape index: {}]
  %s2 = sld [smem:[#allocation0]]
  $region18: #{tpu_custom_call.1} parent=0
    _
  %s4 = ssub.s32 1, %s2
  %s5 = scalar_select 0, %s4, %s2
  $region1: #{tpu_custom_call.1} parent=0
    #allocation2 [shape = 'u8[4096]{0}', space=vmem, size = 0x1000, scoped, tag = 'input window, operand 0, single buffered']
    #allocation3 [shape = 's32[1]{0}', space=sflag, size = 0x4, scoped, tag = 'scoped memory for tpu_custom_call.1']
    #allocation4 [shape = 's32[1]{0}', space=sflag, size = 0x4, scoped, tag = 'scoped memory for tpu_custom_call.1']
    #allocation5 [shape = 'u8[4096]{0}', space=vmem, size = 0x1000, scoped, tag = 'output window, operand 0, single buffered']
    %6 = vsyncpa [#allocation3], 0
    %7 = vsyncpa [#allocation4], 0
    // Predicated region
    $region2: #{tpu_custom_call.1} parent=1 // pred_check
      _
    $region3: #{tpu_custom_call.1} parent=1 // pred_check_branch
      %9 = sbr.rel (0) target = $region5
    $region4: #{tpu_custom_call.1} parent=1 // pred_region
      %s11 = ssub.s32 128, 128
      %12 = vsyncadd [#allocation3], %s11
      %s14 = sshll.u32 [#allocation2], 4
      %s15 = int_to_ptr.vmem [resolvable:$true] %s14
      %17 = dma.hbm_to_vmem [thread:$0]  %s0, 128, %s15, [#allocation3]
    $region5: #{tpu_custom_call.1} parent=1 // pred_fallthru
      _
    // Predicated region
    $region6: #{tpu_custom_call.1} parent=1 // pred_check
      _
    $region7: #{tpu_custom_call.1} parent=1 // pred_check_branch
      %19 = sbr.rel (0) target = $region9
    $region8: #{tpu_custom_call.1} parent=1 // pred_region
      %20 = dma.done [#allocation3], 128
    $region9: #{tpu_custom_call.1} parent=1 // pred_fallthru
      _
    %v21 = vld [vmem:[#allocation2] sm:$0xff]
    %v22 = verf.f32.pop %v21
    %23 = vst [vmem:[#allocation5] sm:$0xff] %v22
    // Predicated region
    $region10: #{tpu_custom_call.1} parent=1 // pred_check
      _
    $region11: #{tpu_custom_call.1} parent=1 // pred_check_branch
      %25 = sbr.rel (0) target = $region13
    $region12: #{tpu_custom_call.1} parent=1 // pred_region
      %s27 = ssub.s32 128, 128
      %28 = vsyncadd [#allocation4], %s27
      %s30 = sshll.u32 [#allocation5], 4
      %s31 = int_to_ptr.vmem [resolvable:$true] %s30
      %33 = dma.vmem_to_hbm [thread:$0]  %s31, 128, %s1, [#allocation4]
    $region13: #{tpu_custom_call.1} parent=1 // pred_fallthru
      _
    // Predicated region
    $region14: #{tpu_custom_call.1} parent=1 // pred_check
      _
    $region15: #{tpu_custom_call.1} parent=1 // pred_check_branch
      %35 = sbr.rel (0) target = $region17
    $region16: #{tpu_custom_call.1} parent=1 // pred_region
      %36 = dma.done [#allocation4], 128
    $region17: #{tpu_custom_call.1} parent=1 // pred_fallthru
      _
    %37 = vsyncpa [#allocation3], 1
    %38 = vsyncpa [#allocation4], 1

// kernel: flower_classifier_forward.1
$region0: #{flower_classifier_forward.1}
  #allocation0 [shape = 'u32[]', space=smem, size = 0x4, offset = 0x4, fixed_abs, tag = 'smem constant byte address 0x4 - core index']
  #allocation1 [shape = 'u32[144,128]{1,0:T(1,128)}', space=vmem, size = 0x12000, scoped, tag = 'internal scratch']
  #allocation2 [shape = 'f32[16,128]{1,0:T(8,128)}', space=vmem, size = 0x2000, scoped, tag = 'scratch operand']
  %s0 = inlined_call_operand.vmem [shape: f32[8,768], index: 0, kind: input, shape index: {}]
  %s1 = inlined_call_operand.hbm [shape: f32[768,128], index: 1, kind: input, shape index: {}]
  %s2 = inlined_call_operand.hbm [shape: f32[1,128], index: 2, kind: input, shape index: {}]
  %s3 = inlined_call_operand.hbm [shape: f32[1,128], index: 3, kind: input, shape index: {}]
  %s4 = inlined_call_operand.vmem [shape: f32[8,128], index: 4, kind: input, shape index: {}]
  %s5 = inlined_call_operand.hbm [shape: f32[2,1,128], index: 5, kind: input, shape index: {}]
  %s6 = inlined_call_operand.hbm [shape: f32[2,1,128], index: 6, kind: input, shape index: {}]
  %s7 = inlined_call_operand.hbm [shape: f32[2,128,384], index: 7, kind: input, shape index: {}]
  %s8 = inlined_call_operand.hbm [shape: f32[2,1,384], index: 8, kind: input, shape index: {}]
  %s9 = inlined_call_operand.hbm [shape: f32[2,128,128], index: 9, kind: input, shape index: {}]
  %s10 = inlined_call_operand.hbm [shape: f32[2,1,128], index: 10, kind: input, shape index: {}]
  %s11 = inlined_call_operand.hbm [shape: f32[2,1,128], index: 11, kind: input, shape index: {}]
  %s12 = inlined_call_operand.hbm [shape: f32[2,1,128], index: 12, kind: input, shape index: {}]
  %s13 = inlined_call_operand.vmem [shape: f32[2,128,512], index: 13, kind: input, shape index: {}]
  %s14 = inlined_call_operand.hbm [shape: f32[2,1,512], index: 14, kind: input, shape index: {}]
  %s15 = inlined_call_operand.vmem [shape: f32[2,512,128], index: 15, kind: input, shape index: {}]
  %s16 = inlined_call_operand.hbm [shape: f32[2,1,128], index: 16, kind: input, shape index: {}]
  %s17 = inlined_call_operand.hbm [shape: f32[1,128], index: 17, kind: input, shape index: {}]
  %s18 = inlined_call_operand.hbm [shape: f32[1,128], index: 18, kind: input, shape index: {}]
  %s19 = inlined_call_operand.hbm [shape: f32[1,128], index: 19, kind: input, shape index: {}]
  %s20 = inlined_call_operand.hbm [shape: f32[1,128], index: 20, kind: input, shape index: {}]
  %s21 = inlined_call_operand.vmem [shape: f32[128,1024], index: 21, kind: input, shape index: {}]
  %s22 = inlined_call_operand.hbm [shape: f32[1,1024], index: 22, kind: input, shape index: {}]
  %s23 = inlined_call_operand.hbm [shape: f32[1024,512], index: 23, kind: input, shape index: {}]
  %s24 = inlined_call_operand.hbm [shape: f32[1,512], index: 24, kind: input, shape index: {}]
  %s25 = inlined_call_operand.vmem [shape: f32[512,128], index: 25, kind: input, shape index: {}]
  %s26 = inlined_call_operand.vmem [shape: f32[1,128], index: 26, kind: input, shape index: {}]
  %s27 = inlined_call_operand.hbm [shape: f32[2,128], index: 27, kind: output, shape index: {}]
  %s28 = sld [smem:[#allocation0]]
  $region229: #{flower_classifier_forward.1} parent=0
    _
  %s30 = ssub.s32 1, %s28
  %s31 = scalar_select 0, %s30, %s28
  $region1: #{flower_classifier_forward.1} parent=0
    #allocation3 [shape = 'u8[393216]{0}', space=vmem, size = 0x60000, scoped, tag = 'input window, operand 1, single buffered']
    #allocation4 [shape = 's32[2]{0}', space=sflag, size = 0x8, scoped, tag = 'scoped memory for flower_classifier_forward.1']
    #allocation5 [shape = 's32[2]{0}', space=sflag, size = 0x8, scoped, tag = 'scoped memory for flower_classifier_forward.1']
    #allocation6 [shape = 'u8[512]{0}', space=vmem, size = 0x400, scoped, tag = 'input window, operand 2, single buffered']
    #allocation7 [shape = 's32[1]{0}', space=sflag, size = 0x4, scoped, tag = 'scoped memory for flower_classifier_forward.1']
    #allocation8 [shape = 'u8[512]{0}', space=vmem, size = 0x400, scoped, tag = 'input window, operand 3, single buffered']
    #allocation9 [shape = 'u8[1024]{0}', space=vmem, size = 0x400, scoped, tag = 'input window, operand 5']
    #allocation10 [shape = 's32[2]{0}', space=sflag, size = 0x8, scoped, tag = 'scoped memory for flower_classifier_forward.1']
    #allocation11 [shape = 'u8[1024]{0}', space=vmem, size = 0x400, scoped, tag = 'input window, operand 6']
    #allocation12 [shape = 'u8[393216]{0}', space=vmem, size = 0x60000, scoped, tag = 'input window, operand 7']
    #allocation13 [shape = 's32[2]{0}', space=sflag, size = 0x8, scoped, tag = 'scoped memory for flower_classifier_forward.1']
    #allocation14 [shape = 'u8[3072]{0}', space=vmem, size = 0xc00, scoped, tag = 'input window, operand 8']
    #allocation15 [shape = 'u8[131072]{0}', space=vmem, size = 0x20000, scoped, tag = 'input window, operand 9']
    #allocation16 [shape = 's32[2]{0}', space=sflag, size = 0x8, scoped, tag = 'scoped memory for flower_classifier_forward.1']
    #allocation17 [shape = 'u8[1024]{0}', space=vmem, size = 0x400, scoped, tag = 'input window, operand 10']
    #allocation18 [shape = 'u8[1024]{0}', space=vmem, size = 0x400, scoped, tag = 'input window, operand 11']
    #allocation19 [shape = 's32[2]{0}', space=sflag, size = 0x8, scoped, tag = 'scoped memory for flower_classifier_forward.1']
    #allocation20 [shape = 'u8[1024]{0}', space=vmem, size = 0x400, scoped, tag = 'input window, operand 12']
    #allocation21 [shape = 'u8[4096]{0}', space=vmem, size = 0x1000, scoped, tag = 'input window, operand 14']
    #allocation22 [shape = 's32[2]{0}', space=sflag, size = 0x8, scoped, tag = 'scoped memory for flower_classifier_forward.1']
    #allocation23 [shape = 'u8[1024]{0}', space=vmem, size = 0x400, scoped, tag = 'input window, operand 16']
    #allocation24 [shape = 'u8[512]{0}', space=vmem, size = 0x400, scoped, tag = 'input window, operand 17, single buffered']
    #allocation25 [shape = 's32[1]{0}', space=sflag, size = 0x4, scoped, tag = 'scoped memory for flower_classifier_forward.1']
    #allocation26 [shape = 'u8[512]{0}', space=vmem, size = 0x400, scoped, tag = 'input window, operand 18, single buffered']
    #allocation27 [shape = 'u8[512]{0}', space=vmem, size = 0x400, scoped, tag = 'input window, operand 19, single buffered']
    #allocation28 [shape = 's32[1]{0}', space=sflag, size = 0x4, scoped, tag = 'scoped memory for flower_classifier_forward.1']
    #allocation29 [shape = 'u8[512]{0}', space=vmem, size = 0x400, scoped, tag = 'input window, operand 20, single buffered']
    #allocation30 [shape = 'u8[4096]{0}', space=vmem, size = 0x1000, scoped, tag = 'input window, operand 22, single buffered']
    #allocation31 [shape = 's32[1]{0}', space=sflag, size = 0x4, scoped, tag = 'scoped memory for flower_classifier_forward.1']
    #allocation32 [shape = 'u8[2097152]{0}', space=vmem, size = 0x200000, scoped, tag = 'input window, operand 23, single buffered']
    #allocation33 [shape = 'u8[2048]{0}', space=vmem, size = 0x800, scoped, tag = 'input window, operand 24, single buffered']
    #allocation34 [shape = 's32[1]{0}', space=sflag, size = 0x4, scoped, tag = 'scoped memory for flower_classifier_forward.1']
    #allocation35 [shape = 'u8[1024]{0}', space=vmem, size = 0x400, scoped, tag = 'output window, operand 0, single buffered']
    %32 = vsyncpa [#allocation4], 0
    %33 = vsyncpa [#allocation7], 0
    %34 = vsyncpa [#allocation10], 0
    %s35 = scalar_lea.sflag [#allocation10], 1
    %36 = vsyncpa %s35, 0
    %37 = vsyncpa [#allocation13], 0
    %s38 = scalar_lea.sflag [#allocation13], 1
    %39 = vsyncpa %s38, 0
    %40 = vsyncpa [#allocation16], 0
    %s41 = scalar_lea.sflag [#allocation16], 1
    %42 = vsyncpa %s41, 0
    %43 = vsyncpa [#allocation19], 0
    %s44 = scalar_lea.sflag [#allocation19], 1
    %45 = vsyncpa %s44, 0
    %46 = vsyncpa [#allocation22], 0
    %s47 = scalar_lea.sflag [#allocation22], 1
    %48 = vsyncpa %s47, 0
    %49 = vsyncpa [#allocation25], 0
    %50 = vsyncpa [#allocation28], 0
    %51 = vsyncpa [#allocation31], 0
    %52 = vsyncpa [#allocation34], 0
    %53 = vsyncpa [#allocation5], 0
    loop: start=0, step=1, limit=4
    $region2: #{flower_classifier_forward.1} parent=1 // loop_pre_header
      _
    $region3: #{flower_classifier_forward.1} parent=1 // loop_header
      %s55 = sphi 0, %s59
      %p56 = scmp.ge.s32.totalorder %s55, 4
      %s63 = sphi 0, %s63
      %s65 = sphi 0, %s63
      %s66 = sphi 0, %s65
      %s80 = sphi 0, %s66
      %s84 = sphi 0, %s84
      %s86 = sphi 0, %s84
      %s87 = sphi 0, %s86
      %s101 = sphi 0, %s87
      %s105 = sphi 0, %s105
      %s107 = sphi 0, %s105
      %s108 = sphi 0, %s107
      %s122 = sphi 0, %s108
      %s126 = sphi 0, %s126
      %s128 = sphi 0, %s126
      %s129 = sphi 0, %s128
      %s143 = sphi 0, %s129
      %s147 = sphi 0, %s147
      %s149 = sphi 0, %s147
      %s150 = sphi 0, %s149
      %s164 = sphi 0, %s150
      %s170 = sphi 0, %s172
      %s173 = sphi 0, %s170
      %s174 = sphi 0, %s173
      %s190 = sphi 0, %s174
      %s196 = sphi 0, %s198
      %s199 = sphi 0, %s196
      %s200 = sphi 0, %s199
      %s216 = sphi 0, %s200
      %s222 = sphi 0, %s224
      %s225 = sphi 0, %s222
      %s226 = sphi 0, %s225
      %s242 = sphi 0, %s226
      %s248 = sphi 0, %s250
      %s251 = sphi 0, %s248
      %s252 = sphi 0, %s251
      %s268 = sphi 0, %s252
      %s274 = sphi 0, %s276
      %s277 = sphi 0, %s274
      %s278 = sphi 0, %s277
      %s294 = sphi 0, %s278
      %s300 = sphi 0, %s302
      %s303 = sphi 0, %s300
      %s304 = sphi 0, %s303
      %s320 = sphi 0, %s304
      %s326 = sphi 0, %s328
      %s329 = sphi 0, %s326
      %s330 = sphi 0, %s329
      %s346 = sphi 0, %s330
      %s352 = sphi 0, %s354
      %s355 = sphi 0, %s352
      %s356 = sphi 0, %s355
      %s372 = sphi 0, %s356
      %s378 = sphi 0, %s380
      %s381 = sphi 0, %s378
      %s382 = sphi 0, %s381
      %s398 = sphi 0, %s382
      %s404 = sphi 0, %s406
      %s407 = sphi 0, %s404
      %s408 = sphi 0, %s407
      %s424 = sphi 0, %s408
      %s430 = sphi 0, %s432
      %s433 = sphi 0, %s430
      %s434 = sphi 0, %s433
      %s450 = sphi 0, %s434
      %s456 = sphi 0, %s458
      %s459 = sphi 0, %s456
      %s460 = sphi 0, %s459
      %s476 = sphi 0, %s460
      %s480 = sphi 0, %s480
      %s482 = sphi 0, %s480
      %s483 = sphi 0, %s482
      %s497 = sphi 0, %s483
      %s501 = sphi 0, %s501
      %s503 = sphi 0, %s501
      %s504 = sphi 0, %s503
      %s518 = sphi 0, %s504
      %s522 = sphi 0, %s522
      %s524 = sphi 0, %s522
      %s525 = sphi 0, %s524
      %s539 = sphi 0, %s525
      %s543 = sphi 0, %s543
      %s545 = sphi 0, %s543
      %s546 = sphi 0, %s545
      %s560 = sphi 0, %s546
      %s564 = sphi 0, %s564
      %s566 = sphi 0, %s564
      %s567 = sphi 0, %s566
      %s581 = sphi 0, %s567
      %s585 = sphi 0, %s585
      %s587 = sphi 0, %s585
      %s588 = sphi 0, %s587
      %s602 = sphi 0, %s588
      %s606 = sphi 0, %s606
      %s608 = sphi 0, %s606
      %s609 = sphi 0, %s608
      %s623 = sphi 0, %s609
      %s627 = sphi 0, %s627
      %s629 = sphi 0, %s627
      %s630 = sphi 0, %s629
      %s644 = sphi 0, %s630
      %s648 = sphi 0, %s648
      %s650 = sphi 0, %s648
      %s651 = sphi 0, %s650
      %s665 = sphi 0, %s651
      %s669 = sphi 0, %s669
      %s671 = sphi 0, %s669
      %s672 = sphi 0, %s671
      %s686 = sphi 0, %s672
      %s690 = sphi 0, %s690
      %s692 = sphi 0, %s690
      %s693 = sphi 0, %s692
      %s707 = sphi 0, %s693
    $region4: #{flower_classifier_forward.1} parent=1 // loop_header_branch
      %58 = sbr.rel (%p56) target = $region8
    $region5: #{flower_classifier_forward.1} parent=1 // loop_body
      %s60 = ssub.s32 %s55, 1
      %s61 = ssub.s32 %s55, 2
      %s62 = sadd.s32 %s55, 1
      %s64 = sadd.s32 %s63, 1
      %p67 = scmp.eq.s32.totalorder %s55, 1
      %p68 = scmp.ne.s32.totalorder %s63, %s65
      %p69 = scmp.eq.s32.totalorder %s55, 0
      %p70 = por %p68, %p69
      %p71 = scmp.ne.s32.totalorder %s63, %s65
      %p72 = scmp.eq.s32.totalorder %s60, 1
      %p73 = por %p71, %p72
      %p74 = scmp.ne.s32.totalorder %s65, %s66
      %p75 = scmp.eq.s32.totalorder %s60, 0
      %p76 = por %p74, %p75
      %p77 = scmp.ne.s32.totalorder %s65, %s66
      %p78 = scmp.eq.s32.totalorder %s61, 1
      %p79 = por %p77, %p78
      %p81 = scmp.ne.s32.totalorder %s66, %s80
      %p82 = scmp.eq.s32.totalorder %s61, 0
      %p83 = por %p81, %p82
      %s85 = sadd.s32 %s84, 1
      %p88 = scmp.eq.s32.totalorder %s55, 1
      %p89 = scmp.ne.s32.totalorder %s84, %s86
      %p90 = scmp.eq.s32.totalorder %s55, 0
      %p91 = por %p89, %p90
      %p92 = scmp.ne.s32.totalorder %s84, %s86
      %p93 = scmp.eq.s32.totalorder %s60, 1
      %p94 = por %p92, %p93
      %p95 = scmp.ne.s32.totalorder %s86, %s87
      %p96 = scmp.eq.s32.totalorder %s60, 0
      %p97 = por %p95, %p96
      %p98 = scmp.ne.s32.totalorder %s86, %s87
      %p99 = scmp.eq.s32.totalorder %s61, 1
      %p100 = por %p98, %p99
      %p102 = scmp.ne.s32.totalorder %s87, %s101
      %p103 = scmp.eq.s32.totalorder %s61, 0
      %p104 = por %p102, %p103
      %s106 = sadd.s32 %s105, 1
      %p109 = scmp.eq.s32.totalorder %s55, 1
      %p110 = scmp.ne.s32.totalorder %s105, %s107
      %p111 = scmp.eq.s32.totalorder %s55, 0
      %p112 = por %p110, %p111
      %p113 = scmp.ne.s32.totalorder %s105, %s107
      %p114 = scmp.eq.s32.totalorder %s60, 1
      %p115 = por %p113, %p114
      %p116 = scmp.ne.s32.totalorder %s107, %s108
      %p117 = scmp.eq.s32.totalorder %s60, 0
      %p118 = por %p116, %p117
      %p119 = scmp.ne.s32.totalorder %s107, %s108
      %p120 = scmp.eq.s32.totalorder %s61, 1
      %p121 = por %p119, %p120
      %p123 = scmp.ne.s32.totalorder %s108, %s122
      %p124 = scmp.eq.s32.totalorder %s61, 0
      %p125 = por %p123, %p124
      %s127 = sadd.s32 %s126, 1
      %p130 = scmp.eq.s32.totalorder %s55, 1
      %p131 = scmp.ne.s32.totalorder %s126, %s128
      %p132 = scmp.eq.s32.totalorder %s55, 0
      %p133 = por %p131, %p132
      %p134 = scmp.ne.s32.totalorder %s126, %s128
      %p135 = scmp.eq.s32.totalorder %s60, 1
      %p136 = por %p134, %p135
      %p137 = scmp.ne.s32.totalorder %s128, %s129
      %p138 = scmp.eq.s32.totalorder %s60, 0
      %p139 = por %p137, %p138
      %p140 = scmp.ne.s32.totalorder %s128, %s129
      %p141 = scmp.eq.s32.totalorder %s61, 1
      %p142 = por %p140, %p141
      %p144 = scmp.ne.s32.totalorder %s129, %s143
      %p145 = scmp.eq.s32.totalorder %s61, 0
      %p146 = por %p144, %p145
      %s148 = sadd.s32 %s147, 1
      %p151 = scmp.eq.s32.totalorder %s55, 1
      %p152 = scmp.ne.s32.totalorder %s147, %s149
      %p153 = scmp.eq.s32.totalorder %s55, 0
      %p154 = por %p152, %p153
      %p155 = scmp.ne.s32.totalorder %s147, %s149
      %p156 = scmp.eq.s32.totalorder %s60, 1
      %p157 = por %p155, %p156
      %p158 = scmp.ne.s32.totalorder %s149, %s150
      %p159 = scmp.eq.s32.totalorder %s60, 0
      %p160 = por %p158, %p159
      %p161 = scmp.ne.s32.totalorder %s149, %s150
      %p162 = scmp.eq.s32.totalorder %s61, 1
      %p163 = por %p161, %p162
      %p165 = scmp.ne.s32.totalorder %s150, %s164
      %p166 = scmp.eq.s32.totalorder %s61, 0
      %p167 = por %p165, %p166
      %s168 = ssub.s32 %s55, %s62
      %p169 = scmp.eq.s32.totalorder %s168, 0
      %s171 = sadd.s32 %s170, 1
      %s172 = scalar_select %p169, %s170, %s171
      %p175 = pneg %p169
      %p176 = scmp.eq.s32.totalorder %s55, 1
      %p177 = por %p175, %p176
      %p178 = scmp.ne.s32.totalorder %s170, %s173
      %p179 = scmp.eq.s32.totalorder %s55, 0
      %p180 = por %p178, %p179
      %p181 = scmp.ne.s32.totalorder %s170, %s173
      %p182 = scmp.eq.s32.totalorder %s60, 1
      %p183 = por %p181, %p182
      %p184 = scmp.ne.s32.totalorder %s173, %s174
      %p185 = scmp.eq.s32.totalorder %s60, 0
      %p186 = por %p184, %p185
      %p187 = scmp.ne.s32.totalorder %s173, %s174
      %p188 = scmp.eq.s32.totalorder %s61, 1
      %p189 = por %p187, %p188
      %p191 = scmp.ne.s32.totalorder %s174, %s190
      %p192 = scmp.eq.s32.totalorder %s61, 0
      %p193 = por %p191, %p192
      %s194 = ssub.s32 %s55, %s62
      %p195 = scmp.eq.s32.totalorder %s194, 0
      %s197 = sadd.s32 %s196, 1
      %s198 = scalar_select %p195, %s196, %s197
      %p201 = pneg %p195
      %p202 = scmp.eq.s32.totalorder %s55, 1
      %p203 = por %p201, %p202
      %p204 = scmp.ne.s32.totalorder %s196, %s199
      %p205 = scmp.eq.s32.totalorder %s55, 0
      %p206 = por %p204, %p205
      %p207 = scmp.ne.s32.totalorder %s196, %s199
      %p208 = scmp.eq.s32.totalorder %s60, 1
      %p209 = por %p207, %p208
      %p210 = scmp.ne.s32.totalorder %s199, %s200
      %p211 = scmp.eq.s32.totalorder %s60, 0
      %p212 = por %p210, %p211
      %p213 = scmp.ne.s32.totalorder %s199, %s200
      %p214 = scmp.eq.s32.totalorder %s61, 1
      %p215 = por %p213, %p214
      %p217 = scmp.ne.s32.totalorder %s200, %s216
      %p218 = scmp.eq.s32.totalorder %s61, 0
      %p219 = por %p217, %p218
      %s220 = ssub.s32 %s55, %s62
      %p221 = scmp.eq.s32.totalorder %s220, 0
      %s223 = sadd.s32 %s222, 1
      %s224 = scalar_select %p221, %s222, %s223
      %p227 = pneg %p221
      %p228 = scmp.eq.s32.totalorder %s55, 1
      %p229 = por %p227, %p228
      %p230 = scmp.ne.s32.totalorder %s222, %s225
      %p231 = scmp.eq.s32.totalorder %s55, 0
      %p232 = por %p230, %p231
      %p233 = scmp.ne.s32.totalorder %s222, %s225
      %p234 = scmp.eq.s32.totalorder %s60, 1
      %p235 = por %p233, %p234
      %p236 = scmp.ne.s32.totalorder %s225, %s226
      %p237 = scmp.eq.s32.totalorder %s60, 0
      %p238 = por %p236, %p237
      %p239 = scmp.ne.s32.totalorder %s225, %s226
      %p240 = scmp.eq.s32.totalorder %s61, 1
      %p241 = por %p239, %p240
      %p243 = scmp.ne.s32.totalorder %s226, %s242
      %p244 = scmp.eq.s32.totalorder %s61, 0
      %p245 = por %p243, %p244
      %s246 = ssub.s32 %s55, %s62
      %p247 = scmp.eq.s32.totalorder %s246, 0
      %s249 = sadd.s32 %s248, 1
      %s250 = scalar_select %p247, %s248, %s249
      %p253 = pneg %p247
      %p254 = scmp.eq.s32.totalorder %s55, 1
      %p255 = por %p253, %p254
      %p256 = scmp.ne.s32.totalorder %s248, %s251
      %p257 = scmp.eq.s32.totalorder %s55, 0
      %p258 = por %p256, %p257
      %p259 = scmp.ne.s32.totalorder %s248, %s251
      %p260 = scmp.eq.s32.totalorder %s60, 1
      %p261 = por %p259, %p260
      %p262 = scmp.ne.s32.totalorder %s251, %s252
      %p263 = scmp.eq.s32.totalorder %s60, 0
      %p264 = por %p262, %p263
      %p265 = scmp.ne.s32.totalorder %s251, %s252
      %p266 = scmp.eq.s32.totalorder %s61, 1
      %p267 = por %p265, %p266
      %p269 = scmp.ne.s32.totalorder %s252, %s268
      %p270 = scmp.eq.s32.totalorder %s61, 0
      %p271 = por %p269, %p270
      %s272 = ssub.s32 %s55, %s62
      %p273 = scmp.eq.s32.totalorder %s272, 0
      %s275 = sadd.s32 %s274, 1
      %s276 = scalar_select %p273, %s274, %s275
      %p279 = pneg %p273
      %p280 = scmp.eq.s32.totalorder %s55, 1
      %p281 = por %p279, %p280
      %p282 = scmp.ne.s32.totalorder %s274, %s277
      %p283 = scmp.eq.s32.totalorder %s55, 0
      %p284 = por %p282, %p283
      %p285 = scmp.ne.s32.totalorder %s274, %s277
      %p286 = scmp.eq.s32.totalorder %s60, 1
      %p287 = por %p285, %p286
      %p288 = scmp.ne.s32.totalorder %s277, %s278
      %p289 = scmp.eq.s32.totalorder %s60, 0
      %p290 = por %p288, %p289
      %p291 = scmp.ne.s32.totalorder %s277, %s278
      %p292 = scmp.eq.s32.totalorder %s61, 1
      %p293 = por %p291, %p292
      %p295 = scmp.ne.s32.totalorder %s278, %s294
      %p296 = scmp.eq.s32.totalorder %s61, 0
      %p297 = por %p295, %p296
      %s298 = ssub.s32 %s55, %s62
      %p299 = scmp.eq.s32.totalorder %s298, 0
      %s301 = sadd.s32 %s300, 1
      %s302 = scalar_select %p299, %s300, %s301
      %p305 = pneg %p299
      %p306 = scmp.eq.s32.totalorder %s55, 1
      %p307 = por %p305, %p306
      %p308 = scmp.ne.s32.totalorder %s300, %s303
      %p309 = scmp.eq.s32.totalorder %s55, 0
      %p310 = por %p308, %p309
      %p311 = scmp.ne.s32.totalorder %s300, %s303
      %p312 = scmp.eq.s32.totalorder %s60, 1
      %p313 = por %p311, %p312
      %p314 = scmp.ne.s32.totalorder %s303, %s304
      %p315 = scmp.eq.s32.totalorder %s60, 0
      %p316 = por %p314, %p315
      %p317 = scmp.ne.s32.totalorder %s303, %s304
      %p318 = scmp.eq.s32.totalorder %s61, 1
      %p319 = por %p317, %p318
      %p321 = scmp.ne.s32.totalorder %s304, %s320
      %p322 = scmp.eq.s32.totalorder %s61, 0
      %p323 = por %p321, %p322
      %s324 = ssub.s32 %s55, %s62
      %p325 = scmp.eq.s32.totalorder %s324, 0
      %s327 = sadd.s32 %s326, 1
      %s328 = scalar_select %p325, %s326, %s327
      %p331 = pneg %p325
      %p332 = scmp.eq.s32.totalorder %s55, 1
      %p333 = por %p331, %p332
      %p334 = scmp.ne.s32.totalorder %s326, %s329
      %p335 = scmp.eq.s32.totalorder %s55, 0
      %p336 = por %p334, %p335
      %p337 = scmp.ne.s32.totalorder %s326, %s329
      %p338 = scmp.eq.s32.totalorder %s60, 1
      %p339 = por %p337, %p338
      %p340 = scmp.ne.s32.totalorder %s329, %s330
      %p341 = scmp.eq.s32.totalorder %s60, 0
      %p342 = por %p340, %p341
      %p343 = scmp.ne.s32.totalorder %s329, %s330
      %p344 = scmp.eq.s32.totalorder %s61, 1
      %p345 = por %p343, %p344
      %p347 = scmp.ne.s32.totalorder %s330, %s346
      %p348 = scmp.eq.s32.totalorder %s61, 0
      %p349 = por %p347, %p348
      %s350 = ssub.s32 %s55, %s62
      %p351 = scmp.eq.s32.totalorder %s350, 0
      %s353 = sadd.s32 %s352, 1
      %s354 = scalar_select %p351, %s352, %s353
      %p357 = pneg %p351
      %p358 = scmp.eq.s32.totalorder %s55, 1
      %p359 = por %p357, %p358
      %p360 = scmp.ne.s32.totalorder %s352, %s355
      %p361 = scmp.eq.s32.totalorder %s55, 0
      %p362 = por %p360, %p361
      %p363 = scmp.ne.s32.totalorder %s352, %s355
      %p364 = scmp.eq.s32.totalorder %s60, 1
      %p365 = por %p363, %p364
      %p366 = scmp.ne.s32.totalorder %s355, %s356
      %p367 = scmp.eq.s32.totalorder %s60, 0
      %p368 = por %p366, %p367
      %p369 = scmp.ne.s32.totalorder %s355, %s356
      %p370 = scmp.eq.s32.totalorder %s61, 1
      %p371 = por %p369, %p370
      %p373 = scmp.ne.s32.totalorder %s356, %s372
      %p374 = scmp.eq.s32.totalorder %s61, 0
      %p375 = por %p373, %p374
      %s376 = ssub.s32 %s55, %s62
      %p377 = scmp.eq.s32.totalorder %s376, 0
      %s379 = sadd.s32 %s378, 1
      %s380 = scalar_select %p377, %s378, %s379
      %p383 = pneg %p377
      %p384 = scmp.eq.s32.totalorder %s55, 1
      %p385 = por %p383, %p384
      %p386 = scmp.ne.s32.totalorder %s378, %s381
      %p387 = scmp.eq.s32.totalorder %s55, 0
      %p388 = por %p386, %p387
      %p389 = scmp.ne.s32.totalorder %s378, %s381
      %p390 = scmp.eq.s32.totalorder %s60, 1
      %p391 = por %p389, %p390
      %p392 = scmp.ne.s32.totalorder %s381, %s382
      %p393 = scmp.eq.s32.totalorder %s60, 0
      %p394 = por %p392, %p393
      %p395 = scmp.ne.s32.totalorder %s381, %s382
      %p396 = scmp.eq.s32.totalorder %s61, 1
      %p397 = por %p395, %p396
      %p399 = scmp.ne.s32.totalorder %s382, %s398
      %p400 = scmp.eq.s32.totalorder %s61, 0
      %p401 = por %p399, %p400
      %s402 = ssub.s32 %s55, %s62
      %p403 = scmp.eq.s32.totalorder %s402, 0
      %s405 = sadd.s32 %s404, 1
      %s406 = scalar_select %p403, %s404, %s405
      %p409 = pneg %p403
      %p410 = scmp.eq.s32.totalorder %s55, 1
      %p411 = por %p409, %p410
      %p412 = scmp.ne.s32.totalorder %s404, %s407
      %p413 = scmp.eq.s32.totalorder %s55, 0
      %p414 = por %p412, %p413
      %p415 = scmp.ne.s32.totalorder %s404, %s407
      %p416 = scmp.eq.s32.totalorder %s60, 1
      %p417 = por %p415, %p416
      %p418 = scmp.ne.s32.totalorder %s407, %s408
      %p419 = scmp.eq.s32.totalorder %s60, 0
      %p420 = por %p418, %p419
      %p421 = scmp.ne.s32.totalorder %s407, %s408
      %p422 = scmp.eq.s32.totalorder %s61, 1
      %p423 = por %p421, %p422
      %p425 = scmp.ne.s32.totalorder %s408, %s424
      %p426 = scmp.eq.s32.totalorder %s61, 0
      %p427 = por %p425, %p426
      %s428 = ssub.s32 %s55, %s62
      %p429 = scmp.eq.s32.totalorder %s428, 0
      %s431 = sadd.s32 %s430, 1
      %s432 = scalar_select %p429, %s430, %s431
      %p435 = pneg %p429
      %p436 = scmp.eq.s32.totalorder %s55, 1
      %p437 = por %p435, %p436
      %p438 = scmp.ne.s32.totalorder %s430, %s433
      %p439 = scmp.eq.s32.totalorder %s55, 0
      %p440 = por %p438, %p439
      %p441 = scmp.ne.s32.totalorder %s430, %s433
      %p442 = scmp.eq.s32.totalorder %s60, 1
      %p443 = por %p441, %p442
      %p444 = scmp.ne.s32.totalorder %s433, %s434
      %p445 = scmp.eq.s32.totalorder %s60, 0
      %p446 = por %p444, %p445
      %p447 = scmp.ne.s32.totalorder %s433, %s434
      %p448 = scmp.eq.s32.totalorder %s61, 1
      %p449 = por %p447, %p448
      %p451 = scmp.ne.s32.totalorder %s434, %s450
      %p452 = scmp.eq.s32.totalorder %s61, 0
      %p453 = por %p451, %p452
      %s454 = ssub.s32 %s55, %s62
      %p455 = scmp.eq.s32.totalorder %s454, 0
      %s457 = sadd.s32 %s456, 1
      %s458 = scalar_select %p455, %s456, %s457
      %p461 = pneg %p455
      %p462 = scmp.eq.s32.totalorder %s55, 1
      %p463 = por %p461, %p462
      %p464 = scmp.ne.s32.totalorder %s456, %s459
      %p465 = scmp.eq.s32.totalorder %s55, 0
      %p466 = por %p464, %p465
      %p467 = scmp.ne.s32.totalorder %s456, %s459
      %p468 = scmp.eq.s32.totalorder %s60, 1
      %p469 = por %p467, %p468
      %p470 = scmp.ne.s32.totalorder %s459, %s460
      %p471 = scmp.eq.s32.totalorder %s60, 0
      %p472 = por %p470, %p471
      %p473 = scmp.ne.s32.totalorder %s459, %s460
      %p474 = scmp.eq.s32.totalorder %s61, 1
      %p475 = por %p473, %p474
      %p477 = scmp.ne.s32.totalorder %s460, %s476
      %p478 = scmp.eq.s32.totalorder %s61, 0
      %p479 = por %p477, %p478
      %s481 = sadd.s32 %s480, 1
      %p484 = scmp.eq.s32.totalorder %s55, 1
      %p485 = scmp.ne.s32.totalorder %s480, %s482
      %p486 = scmp.eq.s32.totalorder %s55, 0
      %p487 = por %p485, %p486
      %p488 = scmp.ne.s32.totalorder %s480, %s482
      %p489 = scmp.eq.s32.totalorder %s60, 1
      %p490 = por %p488, %p489
      %p491 = scmp.ne.s32.totalorder %s482, %s483
      %p492 = scmp.eq.s32.totalorder %s60, 0
      %p493 = por %p491, %p492
      %p494 = scmp.ne.s32.totalorder %s482, %s483
      %p495 = scmp.eq.s32.totalorder %s61, 1
      %p496 = por %p494, %p495
      %p498 = scmp.ne.s32.totalorder %s483, %s497
      %p499 = scmp.eq.s32.totalorder %s61, 0
      %p500 = por %p498, %p499
      %s502 = sadd.s32 %s501, 1
      %p505 = scmp.eq.s32.totalorder %s55, 1
      %p506 = scmp.ne.s32.totalorder %s501, %s503
      %p507 = scmp.eq.s32.totalorder %s55, 0
      %p508 = por %p506, %p507
      %p509 = scmp.ne.s32.totalorder %s501, %s503
      %p510 = scmp.eq.s32.totalorder %s60, 1
      %p511 = por %p509, %p510
      %p512 = scmp.ne.s32.totalorder %s503, %s504
      %p513 = scmp.eq.s32.totalorder %s60, 0
      %p514 = por %p512, %p513
      %p515 = scmp.ne.s32.totalorder %s503, %s504
      %p516 = scmp.eq.s32.totalorder %s61, 1
      %p517 = por %p515, %p516
      %p519 = scmp.ne.s32.totalorder %s504, %s518
      %p520 = scmp.eq.s32.totalorder %s61, 0
      %p521 = por %p519, %p520
      %s523 = sadd.s32 %s522, 1
      %p526 = scmp.eq.s32.totalorder %s55, 1
      %p527 = scmp.ne.s32.totalorder %s522, %s524
      %p528 = scmp.eq.s32.totalorder %s55, 0
      %p529 = por %p527, %p528
      %p530 = scmp.ne.s32.totalorder %s522, %s524
      %p531 = scmp.eq.s32.totalorder %s60, 1
      %p532 = por %p530, %p531
      %p533 = scmp.ne.s32.totalorder %s524, %s525
      %p534 = scmp.eq.s32.totalorder %s60, 0
      %p535 = por %p533, %p534
      %p536 = scmp.ne.s32.totalorder %s524, %s525
      %p537 = scmp.eq.s32.totalorder %s61, 1
      %p538 = por %p536, %p537
      %p540 = scmp.ne.s32.totalorder %s525, %s539
      %p541 = scmp.eq.s32.totalorder %s61, 0
      %p542 = por %p540, %p541
      %s544 = sadd.s32 %s543, 1
      %p547 = scmp.eq.s32.totalorder %s55, 1
      %p548 = scmp.ne.s32.totalorder %s543, %s545
      %p549 = scmp.eq.s32.totalorder %s55, 0
      %p550 = por %p548, %p549
      %p551 = scmp.ne.s32.totalorder %s543, %s545
      %p552 = scmp.eq.s32.totalorder %s60, 1
      %p553 = por %p551, %p552
      %p554 = scmp.ne.s32.totalorder %s545, %s546
      %p555 = scmp.eq.s32.totalorder %s60, 0
      %p556 = por %p554, %p555
      %p557 = scmp.ne.s32.totalorder %s545, %s546
      %p558 = scmp.eq.s32.totalorder %s61, 1
      %p559 = por %p557, %p558
      %p561 = scmp.ne.s32.totalorder %s546, %s560
      %p562 = scmp.eq.s32.totalorder %s61, 0
      %p563 = por %p561, %p562
      %s565 = sadd.s32 %s564, 1
      %p568 = scmp.eq.s32.totalorder %s55, 1
      %p569 = scmp.ne.s32.totalorder %s564, %s566
      %p570 = scmp.eq.s32.totalorder %s55, 0
      %p571 = por %p569, %p570
      %p572 = scmp.ne.s32.totalorder %s564, %s566
      %p573 = scmp.eq.s32.totalorder %s60, 1
      %p574 = por %p572, %p573
      %p575 = scmp.ne.s32.totalorder %s566, %s567
      %p576 = scmp.eq.s32.totalorder %s60, 0
      %p577 = por %p575, %p576
      %p578 = scmp.ne.s32.totalorder %s566, %s567
      %p579 = scmp.eq.s32.totalorder %s61, 1
      %p580 = por %p578, %p579
      %p582 = scmp.ne.s32.totalorder %s567, %s581
      %p583 = scmp.eq.s32.totalorder %s61, 0
      %p584 = por %p582, %p583
      %s586 = sadd.s32 %s585, 1
      %p589 = scmp.eq.s32.totalorder %s55, 1
      %p590 = scmp.ne.s32.totalorder %s585, %s587
      %p591 = scmp.eq.s32.totalorder %s55, 0
      %p592 = por %p590, %p591
      %p593 = scmp.ne.s32.totalorder %s585, %s587
      %p594 = scmp.eq.s32.totalorder %s60, 1
      %p595 = por %p593, %p594
      %p596 = scmp.ne.s32.totalorder %s587, %s588
      %p597 = scmp.eq.s32.totalorder %s60, 0
      %p598 = por %p596, %p597
      %p599 = scmp.ne.s32.totalorder %s587, %s588
      %p600 = scmp.eq.s32.totalorder %s61, 1
      %p601 = por %p599, %p600
      %p603 = scmp.ne.s32.totalorder %s588, %s602
      %p604 = scmp.eq.s32.totalorder %s61, 0
      %p605 = por %p603, %p604
      %s607 = sadd.s32 %s606, 1
      %p610 = scmp.eq.s32.totalorder %s55, 1
      %p611 = scmp.ne.s32.totalorder %s606, %s608
      %p612 = scmp.eq.s32.totalorder %s55, 0
      %p613 = por %p611, %p612
      %p614 = scmp.ne.s32.totalorder %s606, %s608
      %p615 = scmp.eq.s32.totalorder %s60, 1
      %p616 = por %p614, %p615
      %p617 = scmp.ne.s32.totalorder %s608, %s609
      %p618 = scmp.eq.s32.totalorder %s60, 0
      %p619 = por %p617, %p618
      %p620 = scmp.ne.s32.totalorder %s608, %s609
      %p621 = scmp.eq.s32.totalorder %s61, 1
      %p622 = por %p620, %p621
      %p624 = scmp.ne.s32.totalorder %s609, %s623
      %p625 = scmp.eq.s32.totalorder %s61, 0
      %p626 = por %p624, %p625
      %s628 = sadd.s32 %s627, 1
      %p631 = scmp.eq.s32.totalorder %s55, 1
      %p632 = scmp.ne.s32.totalorder %s627, %s629
      %p633 = scmp.eq.s32.totalorder %s55, 0
      %p634 = por %p632, %p633
      %p635 = scmp.ne.s32.totalorder %s627, %s629
      %p636 = scmp.eq.s32.totalorder %s60, 1
      %p637 = por %p635, %p636
      %p638 = scmp.ne.s32.totalorder %s629, %s630
      %p639 = scmp.eq.s32.totalorder %s60, 0
      %p640 = por %p638, %p639
      %p641 = scmp.ne.s32.totalorder %s629, %s630
      %p642 = scmp.eq.s32.totalorder %s61, 1
      %p643 = por %p641, %p642
      %p645 = scmp.ne.s32.totalorder %s630, %s644
      %p646 = scmp.eq.s32.totalorder %s61, 0
      %p647 = por %p645, %p646
      %s649 = sadd.s32 %s648, 1
      %p652 = scmp.eq.s32.totalorder %s55, 1
      %p653 = scmp.ne.s32.totalorder %s648, %s650
      %p654 = scmp.eq.s32.totalorder %s55, 0
      %p655 = por %p653, %p654
      %p656 = scmp.ne.s32.totalorder %s648, %s650
      %p657 = scmp.eq.s32.totalorder %s60, 1
      %p658 = por %p656, %p657
      %p659 = scmp.ne.s32.totalorder %s650, %s651
      %p660 = scmp.eq.s32.totalorder %s60, 0
      %p661 = por %p659, %p660
      %p662 = scmp.ne.s32.totalorder %s650, %s651
      %p663 = scmp.eq.s32.totalorder %s61, 1
      %p664 = por %p662, %p663
      %p666 = scmp.ne.s32.totalorder %s651, %s665
      %p667 = scmp.eq.s32.totalorder %s61, 0
      %p668 = por %p666, %p667
      %s670 = sadd.s32 %s669, 1
      %p673 = scmp.eq.s32.totalorder %s55, 1
      %p674 = scmp.ne.s32.totalorder %s669, %s671
      %p675 = scmp.eq.s32.totalorder %s55, 0
      %p676 = por %p674, %p675
      %p677 = scmp.ne.s32.totalorder %s669, %s671
      %p678 = scmp.eq.s32.totalorder %s60, 1
      %p679 = por %p677, %p678
      %p680 = scmp.ne.s32.totalorder %s671, %s672
      %p681 = scmp.eq.s32.totalorder %s60, 0
      %p682 = por %p680, %p681
      %p683 = scmp.ne.s32.totalorder %s671, %s672
      %p684 = scmp.eq.s32.totalorder %s61, 1
      %p685 = por %p683, %p684
      %p687 = scmp.ne.s32.totalorder %s672, %s686
      %p688 = scmp.eq.s32.totalorder %s61, 0
      %p689 = por %p687, %p688
      %s691 = sadd.s32 %s690, 1
      %p694 = scmp.eq.s32.totalorder %s55, 1
      %p695 = scmp.ne.s32.totalorder %s690, %s692
      %p696 = scmp.eq.s32.totalorder %s55, 0
      %p697 = por %p695, %p696
      %p698 = scmp.ne.s32.totalorder %s690, %s692
      %p699 = scmp.eq.s32.totalorder %s60, 1
      %p700 = por %p698, %p699
      %p701 = scmp.ne.s32.totalorder %s692, %s693
      %p702 = scmp.eq.s32.totalorder %s60, 0
      %p703 = por %p701, %p702
      %p704 = scmp.ne.s32.totalorder %s692, %s693
      %p705 = scmp.eq.s32.totalorder %s61, 1
      %p706 = por %p704, %p705
      %p708 = scmp.ne.s32.totalorder %s693, %s707
      %p709 = scmp.eq.s32.totalorder %s61, 0
      %p710 = por %p708, %p709
      %p711 = scmp.le.s32.totalorder 1, %s55
      %p712 = scmp.lt.s32.totalorder %s55, 3
      %p713 = pnand %p711, %p712
      %p714 = pneg %p713
      // Predicated region
      $region9: #{flower_classifier_forward.1} parent=5 // pred_check
        _
      $region10: #{flower_classifier_forward.1} parent=5 // pred_check_branch
        %716 = sbr.rel (%p713) target = $region12
      $region11: #{flower_classifier_forward.1} parent=5 // pred_region
        %s717 = ssub.s32 %s55, 1
        // Predicated region
        $region13: #{flower_classifier_forward.1} parent=11 // pred_check
          %p718 = pneg %p76
        $region14: #{flower_classifier_forward.1} parent=11 // pred_check_branch
          %720 = sbr.rel (%p718) target = $region16
        $region15: #{flower_classifier_forward.1} parent=11 // pred_region
          _
        $region16: #{flower_classifier_forward.1} parent=11 // pred_fallthru
          _
        // Predicated region
        $region17: #{flower_classifier_forward.1} parent=11 // pred_check
          %p721 = pneg %p97
        $region18: #{flower_classifier_forward.1} parent=11 // pred_check_branch
          %723 = sbr.rel (%p721) target = $region20
        $region19: #{flower_classifier_forward.1} parent=11 // pred_region
          %s725 = ssub.s32 12288, 12288
          %726 = vsyncadd [#allocation4], %s725
          %s727 = sshll.u32 [#allocation3], 4
          %s728 = int_to_ptr.vmem [resolvable:$true] %s727
          %733 = dma.hbm_to_vmem [thread:$0]  %s1, 12288, %s728, [#allocation4], 128, 128, 8
        $region20: #{flower_classifier_forward.1} parent=11 // pred_fallthru
          _
        // Predicated region
        $region21: #{flower_classifier_forward.1} parent=11 // pred_check
          %p734 = pneg %p118
        $region22: #{flower_classifier_forward.1} parent=11 // pred_check_branch
          %736 = sbr.rel (%p734) target = $region24
        $region23: #{flower_classifier_forward.1} parent=11 // pred_region
          %s738 = ssub.s32 16, 16
          %739 = vsyncadd [#allocation7], %s738
          %s741 = sshll.u32 [#allocation6], 4
          %s742 = int_to_ptr.vmem [resolvable:$true] %s741
          %744 = dma.hbm_to_vmem [thread:$0]  %s2, 16, %s742, [#allocation7]
        $region24: #{flower_classifier_forward.1} parent=11 // pred_fallthru
          _
        // Predicated region
        $region25: #{flower_classifier_forward.1} parent=11 // pred_check
          %p745 = pneg %p139
        $region26: #{flower_classifier_forward.1} parent=11 // pred_check_branch
          %747 = sbr.rel (%p745) target = $region28
        $region27: #{flower_classifier_forward.1} parent=11 // pred_region
          %s749 = ssub.s32 16, 16
          %750 = vsyncadd [#allocation7], %s749
          %s752 = sshll.u32 [#allocation8], 4
          %s753 = int_to_ptr.vmem [resolvable:$true] %s752
          %755 = dma.hbm_to_vmem [thread:$0]  %s3, 16, %s753, [#allocation7]
        $region28: #{flower_classifier_forward.1} parent=11 // pred_fallthru
          _
        // Predicated region
        $region29: #{flower_classifier_forward.1} parent=11 // pred_check
          %p756 = pneg %p160
        $region30: #{flower_classifier_forward.1} parent=11 // pred_check_branch
          %758 = sbr.rel (%p756) target = $region32
        $region31: #{flower_classifier_forward.1} parent=11 // pred_region
          _
        $region32: #{flower_classifier_forward.1} parent=11 // pred_fallthru
          _
        // Predicated region
        $region33: #{flower_classifier_forward.1} parent=11 // pred_check
          %p759 = pneg %p493
        $region34: #{flower_classifier_forward.1} parent=11 // pred_check_branch
          %761 = sbr.rel (%p759) target = $region36
        $region35: #{flower_classifier_forward.1} parent=11 // pred_region
          %s763 = ssub.s32 16, 16
          %764 = vsyncadd [#allocation25], %s763
          %s766 = sshll.u32 [#allocation24], 4
          %s767 = int_to_ptr.vmem [resolvable:$true] %s766
          %769 = dma.hbm_to_vmem [thread:$0]  %s17, 16, %s767, [#allocation25]
        $region36: #{flower_classifier_forward.1} parent=11 // pred_fallthru
          _
        // Predicated region
        $region37: #{flower_classifier_forward.1} parent=11 // pred_check
          %p770 = pneg %p514
        $region38: #{flower_classifier_forward.1} parent=11 // pred_check_branch
          %772 = sbr.rel (%p770) target = $region40
        $region39: #{flower_classifier_forward.1} parent=11 // pred_region
          %s774 = ssub.s32 16, 16
          %775 = vsyncadd [#allocation25], %s774
          %s777 = sshll.u32 [#allocation26], 4
          %s778 = int_to_ptr.vmem [resolvable:$true] %s777
          %780 = dma.hbm_to_vmem [thread:$0]  %s18, 16, %s778, [#allocation25]
        $region40: #{flower_classifier_forward.1} parent=11 // pred_fallthru
          _
        // Predicated region
        $region41: #{flower_classifier_forward.1} parent=11 // pred_check
          %p781 = pneg %p535
        $region42: #{flower_classifier_forward.1} parent=11 // pred_check_branch
          %783 = sbr.rel (%p781) target = $region44
        $region43: #{flower_classifier_forward.1} parent=11 // pred_region
          %s785 = ssub.s32 16, 16
          %786 = vsyncadd [#allocation28], %s785
          %s788 = sshll.u32 [#allocation27], 4
          %s789 = int_to_ptr.vmem [resolvable:$true] %s788
          %791 = dma.hbm_to_vmem [thread:$0]  %s19, 16, %s789, [#allocation28]
        $region44: #{flower_classifier_forward.1} parent=11 // pred_fallthru
          _
        // Predicated region
        $region45: #{flower_classifier_forward.1} parent=11 // pred_check
          %p792 = pneg %p556
        $region46: #{flower_classifier_forward.1} parent=11 // pred_check_branch
          %794 = sbr.rel (%p792) target = $region48
        $region47: #{flower_classifier_forward.1} parent=11 // pred_region
          %s796 = ssub.s32 16, 16
          %797 = vsyncadd [#allocation28], %s796
          %s799 = sshll.u32 [#allocation29], 4
          %s800 = int_to_ptr.vmem [resolvable:$true] %s799
          %802 = dma.hbm_to_vmem [thread:$0]  %s20, 16, %s800, [#allocation28]
        $region48: #{flower_classifier_forward.1} parent=11 // pred_fallthru
          _
        // Predicated region
        $region49: #{flower_classifier_forward.1} parent=11 // pred_check
          %p803 = pneg %p577
        $region50: #{flower_classifier_forward.1} parent=11 // pred_check_branch
          %805 = sbr.rel (%p803) target = $region52
        $region51: #{flower_classifier_forward.1} parent=11 // pred_region
          _
        $region52: #{flower_classifier_forward.1} parent=11 // pred_fallthru
          _
        // Predicated region
        $region53: #{flower_classifier_forward.1} parent=11 // pred_check
          %p806 = pneg %p598
        $region54: #{flower_classifier_forward.1} parent=11 // pred_check_branch
          %808 = sbr.rel (%p806) target = $region56
        $region55: #{flower_classifier_forward.1} parent=11 // pred_region
          %s810 = ssub.s32 128, 128
          %811 = vsyncadd [#allocation31], %s810
          %s813 = sshll.u32 [#allocation30], 4
          %s814 = int_to_ptr.vmem [resolvable:$true] %s813
          %816 = dma.hbm_to_vmem [thread:$0]  %s22, 128, %s814, [#allocation31]
        $region56: #{flower_classifier_forward.1} parent=11 // pred_fallthru
          _
        // Predicated region
        $region57: #{flower_classifier_forward.1} parent=11 // pred_check
          %p817 = pneg %p619
        $region58: #{flower_classifier_forward.1} parent=11 // pred_check_branch
          %819 = sbr.rel (%p817) target = $region60
        $region59: #{flower_classifier_forward.1} parent=11 // pred_region
          %s821 = ssub.s32 65536, 65536
          %822 = vsyncadd [#allocation31], %s821
          %s823 = sshll.u32 [#allocation32], 4
          %s824 = int_to_ptr.vmem [resolvable:$true] %s823
          %829 = dma.hbm_to_vmem [thread:$0]  %s23, 65536, %s824, [#allocation31], 512, 512, 32
        $region60: #{flower_classifier_forward.1} parent=11 // pred_fallthru
          _
        // Predicated region
        $region61: #{flower_classifier_forward.1} parent=11 // pred_check
          %p830 = pneg %p640
        $region62: #{flower_classifier_forward.1} parent=11 // pred_check_branch
          %832 = sbr.rel (%p830) target = $region64
        $region63: #{flower_classifier_forward.1} parent=11 // pred_region
          %s834 = ssub.s32 64, 64
          %835 = vsyncadd [#allocation34], %s834
          %s837 = sshll.u32 [#allocation33], 4
          %s838 = int_to_ptr.vmem [resolvable:$true] %s837
          %840 = dma.hbm_to_vmem [thread:$0]  %s24, 64, %s838, [#allocation34]
        $region64: #{flower_classifier_forward.1} parent=11 // pred_fallthru
          _
        // Predicated region
        $region65: #{flower_classifier_forward.1} parent=11 // pred_check
          %p841 = pneg %p661
        $region66: #{flower_classifier_forward.1} parent=11 // pred_check_branch
          %843 = sbr.rel (%p841) target = $region68
        $region67: #{flower_classifier_forward.1} parent=11 // pred_region
          _
        $region68: #{flower_classifier_forward.1} parent=11 // pred_fallthru
          _
        // Predicated region
        $region69: #{flower_classifier_forward.1} parent=11 // pred_check
          %p844 = pneg %p682
        $region70: #{flower_classifier_forward.1} parent=11 // pred_check_branch
          %846 = sbr.rel (%p844) target = $region72
        $region71: #{flower_classifier_forward.1} parent=11 // pred_region
          _
        $region72: #{flower_classifier_forward.1} parent=11 // pred_fallthru
          _
      $region12: #{flower_classifier_forward.1} parent=5 // pred_fallthru
        _
      %p847 = scmp.lt.s32.totalorder %s55, 2
      // Predicated region
      $region73: #{flower_classifier_forward.1} parent=5 // pred_check
        %p848 = pneg %p847
      $region74: #{flower_classifier_forward.1} parent=5 // pred_check_branch
        %850 = sbr.rel (%p848) target = $region76
      $region75: #{flower_classifier_forward.1} parent=5 // pred_region
        // Predicated region
        $region77: #{flower_classifier_forward.1} parent=75 // pred_check
          %p851 = pneg %p180
        $region78: #{flower_classifier_forward.1} parent=75 // pred_check_branch
          %853 = sbr.rel (%p851) target = $region80
        $region79: #{flower_classifier_forward.1} parent=75 // pred_region
          %s854 = sand.u32 %s55, 1
          %s855 = scalar_lea.sflag [#allocation10], %s854
          %s856 = sand.u32 %s170, 1
          %s857 = scalar_lea.vmem [#allocation9], %s856
          %s859 = ssub.s32 16, 16
          %860 = vsyncadd %s855, %s859
          %s861 = smul.addr %s55, 16
          %s862 = scalar_lea.hbm %s5, %s861
          %s864 = sshll.u32 %s857, 4
          %s865 = int_to_ptr.vmem [resolvable:$true] %s864
          %867 = dma.hbm_to_vmem [thread:$0]  %s862, 16, %s865, %s855
        $region80: #{flower_classifier_forward.1} parent=75 // pred_fallthru
          _
        // Predicated region
        $region81: #{flower_classifier_forward.1} parent=75 // pred_check
          %p868 = pneg %p206
        $region82: #{flower_classifier_forward.1} parent=75 // pred_check_branch
          %870 = sbr.rel (%p868) target = $region84
        $region83: #{flower_classifier_forward.1} parent=75 // pred_region
          %s871 = sand.u32 %s55, 1
          %s872 = scalar_lea.sflag [#allocation10], %s871
          %s873 = sand.u32 %s196, 1
          %s874 = scalar_lea.vmem [#allocation11], %s873
          %s876 = ssub.s32 16, 16
          %877 = vsyncadd %s872, %s876
          %s878 = smul.addr %s55, 16
          %s879 = scalar_lea.hbm %s6, %s878
          %s881 = sshll.u32 %s874, 4
          %s882 = int_to_ptr.vmem [resolvable:$true] %s881
          %884 = dma.hbm_to_vmem [thread:$0]  %s879, 16, %s882, %s872
        $region84: #{flower_classifier_forward.1} parent=75 // pred_fallthru
          _
        // Predicated region
        $region85: #{flower_classifier_forward.1} parent=75 // pred_check
          %p885 = pneg %p232
        $region86: #{flower_classifier_forward.1} parent=75 // pred_check_branch
          %887 = sbr.rel (%p885) target = $region88
        $region87: #{flower_classifier_forward.1} parent=75 // pred_region
          %s888 = sand.u32 %s55, 1
          %s889 = scalar_lea.sflag [#allocation13], %s888
          %s890 = sand.u32 %s222, 1
          %s891 = smul.addr %s890, 384
          %s892 = scalar_lea.vmem [#allocation12], %s891
          %s894 = ssub.s32 6144, 6144
          %895 = vsyncadd %s889, %s894
          %s896 = smul.addr %s55, 48
          %s897 = smul.addr %s896, 128
          %s898 = scalar_lea.hbm %s7, %s897
          %s899 = sshll.u32 %s892, 4
          %s900 = int_to_ptr.vmem [resolvable:$true] %s899
          %905 = dma.hbm_to_vmem [thread:$0]  %s898, 6144, %s900, %s889, 384, 384, 24
        $region88: #{flower_classifier_forward.1} parent=75 // pred_fallthru
          _
        // Predicated region
        $region89: #{flower_classifier_forward.1} parent=75 // pred_check
          %p906 = pneg %p258
        $region90: #{flower_classifier_forward.1} parent=75 // pred_check_branch
          %908 = sbr.rel (%p906) target = $region92
        $region91: #{flower_classifier_forward.1} parent=75 // pred_region
          %s909 = sand.u32 %s55, 1
          %s910 = scalar_lea.sflag [#allocation13], %s909
          %s911 = sand.u32 %s248, 1
          %s912 = smul.addr %s911, 3
          %s913 = scalar_lea.vmem [#allocation14], %s912
          %s915 = ssub.s32 48, 48
          %916 = vsyncadd %s910, %s915
          %s917 = smul.addr %s55, 3
          %s918 = smul.addr %s917, 16
          %s919 = scalar_lea.hbm %s8, %s918
          %s921 = sshll.u32 %s913, 4
          %s922 = int_to_ptr.vmem [resolvable:$true] %s921
          %924 = dma.hbm_to_vmem [thread:$0]  %s919, 48, %s922, %s910
        $region92: #{flower_classifier_forward.1} parent=75 // pred_fallthru
          _
        // Predicated region
        $region93: #{flower_classifier_forward.1} parent=75 // pred_check
          %p925 = pneg %p284
        $region94: #{flower_classifier_forward.1} parent=75 // pred_check_branch
          %927 = sbr.rel (%p925) target = $region96
        $region95: #{flower_classifier_forward.1} parent=75 // pred_region
          %s928 = sand.u32 %s55, 1
          %s929 = scalar_lea.sflag [#allocation16], %s928
          %s930 = sand.u32 %s274, 1
          %s931 = smul.addr %s930, 128
          %s932 = scalar_lea.vmem [#allocation15], %s931
          %s934 = ssub.s32 2048, 2048
          %935 = vsyncadd %s929, %s934
          %s936 = smul.addr %s55, 16
          %s937 = smul.addr %s936, 128
          %s938 = scalar_lea.hbm %s9, %s937
          %s939 = sshll.u32 %s932, 4
          %s940 = int_to_ptr.vmem [resolvable:$true] %s939
          %945 = dma.hbm_to_vmem [thread:$0]  %s938, 2048, %s940, %s929, 128, 128, 8
        $region96: #{flower_classifier_forward.1} parent=75 // pred_fallthru
          _
        // Predicated region
        $region97: #{flower_classifier_forward.1} parent=75 // pred_check
          %p946 = pneg %p310
        $region98: #{flower_classifier_forward.1} parent=75 // pred_check_branch
          %948 = sbr.rel (%p946) target = $region100
        $region99: #{flower_classifier_forward.1} parent=75 // pred_region
          %s949 = sand.u32 %s55, 1
          %s950 = scalar_lea.sflag [#allocation16], %s949
          %s951 = sand.u32 %s300, 1
          %s952 = scalar_lea.vmem [#allocation17], %s951
          %s954 = ssub.s32 16, 16
          %955 = vsyncadd %s950, %s954
          %s956 = smul.addr %s55, 16
          %s957 = scalar_lea.hbm %s10, %s956
          %s959 = sshll.u32 %s952, 4
          %s960 = int_to_ptr.vmem [resolvable:$true] %s959
          %962 = dma.hbm_to_vmem [thread:$0]  %s957, 16, %s960, %s950
        $region100: #{flower_classifier_forward.1} parent=75 // pred_fallthru
          _
        // Predicated region
        $region101: #{flower_classifier_forward.1} parent=75 // pred_check
          %p963 = pneg %p336
        $region102: #{flower_classifier_forward.1} parent=75 // pred_check_branch
          %965 = sbr.rel (%p963) target = $region104
        $region103: #{flower_classifier_forward.1} parent=75 // pred_region
          %s966 = sand.u32 %s55, 1
          %s967 = scalar_lea.sflag [#allocation19], %s966
          %s968 = sand.u32 %s326, 1
          %s969 = scalar_lea.vmem [#allocation18], %s968
          %s971 = ssub.s32 16, 16
          %972 = vsyncadd %s967, %s971
          %s973 = smul.addr %s55, 16
          %s974 = scalar_lea.hbm %s11, %s973
          %s976 = sshll.u32 %s969, 4
          %s977 = int_to_ptr.vmem [resolvable:$true] %s976
          %979 = dma.hbm_to_vmem [thread:$0]  %s974, 16, %s977, %s967
        $region104: #{flower_classifier_forward.1} parent=75 // pred_fallthru
          _
        // Predicated region
        $region105: #{flower_classifier_forward.1} parent=75 // pred_check
          %p980 = pneg %p362
        $region106: #{flower_classifier_forward.1} parent=75 // pred_check_branch
          %982 = sbr.rel (%p980) target = $region108
        $region107: #{flower_classifier_forward.1} parent=75 // pred_region
          %s983 = sand.u32 %s55, 1
          %s984 = scalar_lea.sflag [#allocation19], %s983
          %s985 = sand.u32 %s352, 1
          %s986 = scalar_lea.vmem [#allocation20], %s985
          %s988 = ssub.s32 16, 16
          %989 = vsyncadd %s984, %s988
          %s990 = smul.addr %s55, 16
          %s991 = scalar_lea.hbm %s12, %s990
          %s993 = sshll.u32 %s986, 4
          %s994 = int_to_ptr.vmem [resolvable:$true] %s993
          %996 = dma.hbm_to_vmem [thread:$0]  %s991, 16, %s994, %s984
        $region108: #{flower_classifier_forward.1} parent=75 // pred_fallthru
          _
        // Predicated region
        $region109: #{flower_classifier_forward.1} parent=75 // pred_check
          %p997 = pneg %p388
        $region110: #{flower_classifier_forward.1} parent=75 // pred_check_branch
          %999 = sbr.rel (%p997) target = $region112
        $region111: #{flower_classifier_forward.1} parent=75 // pred_region
          %p1000 = scmp.lt.s32.totalorder %s55, 1
          %s1001 = scalar_select %p1000, %s55, 1
          %s1002 = smul.addr %s1001, 64
          %s1003 = smul.addr %s1002, 8
          %s1004 = scalar_lea.vmem %s13, %s1003
        $region112: #{flower_classifier_forward.1} parent=75 // pred_fallthru
          _
        // Predicated region
        $region113: #{flower_classifier_forward.1} parent=75 // pred_check
          %p1005 = pneg %p414
        $region114: #{flower_classifier_forward.1} parent=75 // pred_check_branch
          %1007 = sbr.rel (%p1005) target = $region116
        $region115: #{flower_classifier_forward.1} parent=75 // pred_region
          %s1008 = sand.u32 %s55, 1
          %s1009 = scalar_lea.sflag [#allocation22], %s1008
          %s1010 = sand.u32 %s404, 1
          %s1011 = smul.addr %s1010, 4
          %s1012 = scalar_lea.vmem [#allocation21], %s1011
          %s1014 = ssub.s32 64, 64
          %1015 = vsyncadd %s1009, %s1014
          %s1016 = smul.addr %s55, 4
          %s1017 = smul.addr %s1016, 16
          %s1018 = scalar_lea.hbm %s14, %s1017
          %s1020 = sshll.u32 %s1012, 4
          %s1021 = int_to_ptr.vmem [resolvable:$true] %s1020
          %1023 = dma.hbm_to_vmem [thread:$0]  %s1018, 64, %s1021, %s1009
        $region116: #{flower_classifier_forward.1} parent=75 // pred_fallthru
          _
        // Predicated region
        $region117: #{flower_classifier_forward.1} parent=75 // pred_check
          %p1024 = pneg %p440
        $region118: #{flower_classifier_forward.1} parent=75 // pred_check_branch
          %1026 = sbr.rel (%p1024) target = $region120
        $region119: #{flower_classifier_forward.1} parent=75 // pred_region
          %p1027 = scmp.lt.s32.totalorder %s55, 1
          %s1028 = scalar_select %p1027, %s55, 1
          %s1029 = smul.addr %s1028, 64
          %s1030 = smul.addr %s1029, 8
          %s1031 = scalar_lea.vmem %s15, %s1030
        $region120: #{flower_classifier_forward.1} parent=75 // pred_fallthru
          _
        // Predicated region
        $region121: #{flower_classifier_forward.1} parent=75 // pred_check
          %p1032 = pneg %p466
        $region122: #{flower_classifier_forward.1} parent=75 // pred_check_branch
          %1034 = sbr.rel (%p1032) target = $region124
        $region123: #{flower_classifier_forward.1} parent=75 // pred_region
          %s1035 = sand.u32 %s55, 1
          %s1036 = scalar_lea.sflag [#allocation22], %s1035
          %s1037 = sand.u32 %s456, 1
          %s1038 = scalar_lea.vmem [#allocation23], %s1037
          %s1040 = ssub.s32 16, 16
          %1041 = vsyncadd %s1036, %s1040
          %s1042 = smul.addr %s55, 16
          %s1043 = scalar_lea.hbm %s16, %s1042
          %s1045 = sshll.u32 %s1038, 4
          %s1046 = int_to_ptr.vmem [resolvable:$true] %s1045
          %1048 = dma.hbm_to_vmem [thread:$0]  %s1043, 16, %s1046, %s1036
        $region124: #{flower_classifier_forward.1} parent=75 // pred_fallthru
          _
      $region76: #{flower_classifier_forward.1} parent=5 // pred_fallthru
        _
      %p1049 = scmp.le.s32.totalorder 1, %s55
      %p1050 = scmp.lt.s32.totalorder %s55, 3
      %p1051 = pnand %p1049, %p1050
      %p1052 = pneg %p1051
      // Predicated region
      $region125: #{flower_classifier_forward.1} parent=5 // pred_check
        _
      $region126: #{flower_classifier_forward.1} parent=5 // pred_check_branch
        %1054 = sbr.rel (%p1051) target = $region128
      $region127: #{flower_classifier_forward.1} parent=5 // pred_region
        %s1055 = ssub.s32 %s55, 1
        // Predicated region
        $region129: #{flower_classifier_forward.1} parent=127 // pred_check
          %p1056 = pneg %p97
        $region130: #{flower_classifier_forward.1} parent=127 // pred_check_branch
          %1058 = sbr.rel (%p1056) target = $region132
        $region131: #{flower_classifier_forward.1} parent=127 // pred_region
          %1059 = dma.done [#allocation4], 12288
        $region132: #{flower_classifier_forward.1} parent=127 // pred_fallthru
          _
        // Predicated region
        $region133: #{flower_classifier_forward.1} parent=127 // pred_check
          %p1060 = pneg %p118
        $region134: #{flower_classifier_forward.1} parent=127 // pred_check_branch
          %1062 = sbr.rel (%p1060) target = $region136
        $region135: #{flower_classifier_forward.1} parent=127 // pred_region
          %1063 = dma.done [#allocation7], 16
        $region136: #{flower_classifier_forward.1} parent=127 // pred_fallthru
          _
        // Predicated region
        $region137: #{flower_classifier_forward.1} parent=127 // pred_check
          %p1064 = pneg %p139
        $region138: #{flower_classifier_forward.1} parent=127 // pred_check_branch
          %1066 = sbr.rel (%p1064) target = $region140
        $region139: #{flower_classifier_forward.1} parent=127 // pred_region
          %1067 = dma.done [#allocation7], 16
        $region140: #{flower_classifier_forward.1} parent=127 // pred_fallthru
          _
        %s1068 = sand.u32 %s60, 1
        %s1069 = scalar_lea.sflag [#allocation10], %s1068
        %s1070 = sand.u32 %s173, 1
        %s1071 = scalar_lea.vmem [#allocation9], %s1070
        // Predicated region
        $region141: #{flower_classifier_forward.1} parent=127 // pred_check
          %p1072 = pneg %p186
        $region142: #{flower_classifier_forward.1} parent=127 // pred_check_branch
          %1074 = sbr.rel (%p1072) target = $region144
        $region143: #{flower_classifier_forward.1} parent=127 // pred_region
          %1075 = dma.done %s1069, 16
        $region144: #{flower_classifier_forward.1} parent=127 // pred_fallthru
          _
        %s1076 = sand.u32 %s60, 1
        %s1077 = scalar_lea.sflag [#allocation10], %s1076
        %s1078 = sand.u32 %s199, 1
        %s1079 = scalar_lea.vmem [#allocation11], %s1078
        // Predicated region
        $region145: #{flower_classifier_forward.1} parent=127 // pred_check
          %p1080 = pneg %p212
        $region146: #{flower_classifier_forward.1} parent=127 // pred_check_branch
          %1082 = sbr.rel (%p1080) target = $region148
        $region147: #{flower_classifier_forward.1} parent=127 // pred_region
          %1083 = dma.done %s1077, 16
        $region148: #{flower_classifier_forward.1} parent=127 // pred_fallthru
          _
        %s1084 = sand.u32 %s60, 1
        %s1085 = scalar_lea.sflag [#allocation13], %s1084
        %s1086 = sand.u32 %s225, 1
        %s1087 = smul.addr %s1086, 384
        %s1088 = scalar_lea.vmem [#allocation12], %s1087
        // Predicated region
        $region149: #{flower_classifier_forward.1} parent=127 // pred_check
          %p1089 = pneg %p238
        $region150: #{flower_classifier_forward.1} parent=127 // pred_check_branch
          %1091 = sbr.rel (%p1089) target = $region152
        $region151: #{flower_classifier_forward.1} parent=127 // pred_region
          %1092 = dma.done %s1085, 6144
        $region152: #{flower_classifier_forward.1} parent=127 // pred_fallthru
          _
        %s1093 = sand.u32 %s60, 1
        %s1094 = scalar_lea.sflag [#allocation13], %s1093
        %s1095 = sand.u32 %s251, 1
        %s1096 = smul.addr %s1095, 3
        %s1097 = scalar_lea.vmem [#allocation14], %s1096
        // Predicated region
        $region153: #{flower_classifier_forward.1} parent=127 // pred_check
          %p1098 = pneg %p264
        $region154: #{flower_classifier_forward.1} parent=127 // pred_check_branch
          %1100 = sbr.rel (%p1098) target = $region156
        $region155: #{flower_classifier_forward.1} parent=127 // pred_region
          %1101 = dma.done %s1094, 48
        $region156: #{flower_classifier_forward.1} parent=127 // pred_fallthru
          _
        %s1102 = sand.u32 %s60, 1
        %s1103 = scalar_lea.sflag [#allocation16], %s1102
        %s1104 = sand.u32 %s277, 1
        %s1105 = smul.addr %s1104, 128
        %s1106 = scalar_lea.vmem [#allocation15], %s1105
        // Predicated region
        $region157: #{flower_classifier_forward.1} parent=127 // pred_check
          %p1107 = pneg %p290
        $region158: #{flower_classifier_forward.1} parent=127 // pred_check_branch
          %1109 = sbr.rel (%p1107) target = $region160
        $region159: #{flower_classifier_forward.1} parent=127 // pred_region
          %1110 = dma.done %s1103, 2048
        $region160: #{flower_classifier_forward.1} parent=127 // pred_fallthru
          _
        %s1111 = sand.u32 %s60, 1
        %s1112 = scalar_lea.sflag [#allocation16], %s1111
        %s1113 = sand.u32 %s303, 1
        %s1114 = scalar_lea.vmem [#allocation17], %s1113
        // Predicated region
        $region161: #{flower_classifier_forward.1} parent=127 // pred_check
          %p1115 = pneg %p316
        $region162: #{flower_classifier_forward.1} parent=127 // pred_check_branch
          %1117 = sbr.rel (%p1115) target = $region164
        $region163: #{flower_classifier_forward.1} parent=127 // pred_region
          %1118 = dma.done %s1112, 16
        $region164: #{flower_classifier_forward.1} parent=127 // pred_fallthru
          _
        %s1119 = sand.u32 %s60, 1
        %s1120 = scalar_lea.sflag [#allocation19], %s1119
        %s1121 = sand.u32 %s329, 1
        %s1122 = scalar_lea.vmem [#allocation18], %s1121
        // Predicated region
        $region165: #{flower_classifier_forward.1} parent=127 // pred_check
          %p1123 = pneg %p342
        $region166: #{flower_classifier_forward.1} parent=127 // pred_check_branch
          %1125 = sbr.rel (%p1123) target = $region168
        $region167: #{flower_classifier_forward.1} parent=127 // pred_region
          %1126 = dma.done %s1120, 16
        $region168: #{flower_classifier_forward.1} parent=127 // pred_fallthru
          _
        %s1127 = sand.u32 %s60, 1
        %s1128 = scalar_lea.sflag [#allocation19], %s1127
        %s1129 = sand.u32 %s355, 1
        %s1130 = scalar_lea.vmem [#allocation20], %s1129
        // Predicated region
        $region169: #{flower_classifier_forward.1} parent=127 // pred_check
          %p1131 = pneg %p368
        $region170: #{flower_classifier_forward.1} parent=127 // pred_check_branch
          %1133 = sbr.rel (%p1131) target = $region172
        $region171: #{flower_classifier_forward.1} parent=127 // pred_region
          %1134 = dma.done %s1128, 16
        $region172: #{flower_classifier_forward.1} parent=127 // pred_fallthru
          _
        %s1135 = sand.u32 %s60, 1
        %s1136 = scalar_lea.sflag [#allocation22], %s1135
        %s1137 = sand.u32 %s407, 1
        %s1138 = smul.addr %s1137, 4
        %s1139 = scalar_lea.vmem [#allocation21], %s1138
        // Predicated region
        $region173: #{flower_classifier_forward.1} parent=127 // pred_check
          %p1140 = pneg %p420
        $region174: #{flower_classifier_forward.1} parent=127 // pred_check_branch
          %1142 = sbr.rel (%p1140) target = $region176
        $region175: #{flower_classifier_forward.1} parent=127 // pred_region
          %1143 = dma.done %s1136, 64
        $region176: #{flower_classifier_forward.1} parent=127 // pred_fallthru
          _
        %s1144 = sand.u32 %s60, 1
        %s1145 = scalar_lea.sflag [#allocation22], %s1144
        %s1146 = sand.u32 %s459, 1
        %s1147 = scalar_lea.vmem [#allocation23], %s1146
        // Predicated region
        $region177: #{flower_classifier_forward.1} parent=127 // pred_check
          %p1148 = pneg %p472
        $region178: #{flower_classifier_forward.1} parent=127 // pred_check_branch
          %1150 = sbr.rel (%p1148) target = $region180
        $region179: #{flower_classifier_forward.1} parent=127 // pred_region
          %1151 = dma.done %s1145, 16
        $region180: #{flower_classifier_forward.1} parent=127 // pred_fallthru
          _
        // Predicated region
        $region181: #{flower_classifier_forward.1} parent=127 // pred_check
          %p1152 = pneg %p493
        $region182: #{flower_classifier_forward.1} parent=127 // pred_check_branch
          %1154 = sbr.rel (%p1152) target = $region184
        $region183: #{flower_classifier_forward.1} parent=127 // pred_region
          %1155 = dma.done [#allocation25], 16
        $region184: #{flower_classifier_forward.1} parent=127 // pred_fallthru
          _
        // Predicated region
        $region185: #{flower_classifier_forward.1} parent=127 // pred_check
          %p1156 = pneg %p514
        $region186: #{flower_classifier_forward.1} parent=127 // pred_check_branch
          %1158 = sbr.rel (%p1156) target = $region188
        $region187: #{flower_classifier_forward.1} parent=127 // pred_region
          %1159 = dma.done [#allocation25], 16
        $region188: #{flower_classifier_forward.1} parent=127 // pred_fallthru
          _
        // Predicated region
        $region189: #{flower_classifier_forward.1} parent=127 // pred_check
          %p1160 = pneg %p535
        $region190: #{flower_classifier_forward.1} parent=127 // pred_check_branch
          %1162 = sbr.rel (%p1160) target = $region192
        $region191: #{flower_classifier_forward.1} parent=127 // pred_region
          %1163 = dma.done [#allocation28], 16
        $region192: #{flower_classifier_forward.1} parent=127 // pred_fallthru
          _
        // Predicated region
        $region193: #{flower_classifier_forward.1} parent=127 // pred_check
          %p1164 = pneg %p556
        $region194: #{flower_classifier_forward.1} parent=127 // pred_check_branch
          %1166 = sbr.rel (%p1164) target = $region196
        $region195: #{flower_classifier_forward.1} parent=127 // pred_region
          %1167 = dma.done [#allocation28], 16
        $region196: #{flower_classifier_forward.1} parent=127 // pred_fallthru
          _
        // Predicated region
        $region197: #{flower_classifier_forward.1} parent=127 // pred_check
          %p1168 = pneg %p598
        $region198: #{flower_classifier_forward.1} parent=127 // pred_check_branch
          %1170 = sbr.rel (%p1168) target = $region200
        $region199: #{flower_classifier_forward.1} parent=127 // pred_region
          %1171 = dma.done [#allocation31], 128
        $region200: #{flower_classifier_forward.1} parent=127 // pred_fallthru
          _
        // Predicated region
        $region201: #{flower_classifier_forward.1} parent=127 // pred_check
          %p1172 = pneg %p619
        $region202: #{flower_classifier_forward.1} parent=127 // pred_check_branch
          %1174 = sbr.rel (%p1172) target = $region204
        $region203: #{flower_classifier_forward.1} parent=127 // pred_region
          %1175 = dma.done [#allocation31], 65536
        $region204: #{flower_classifier_forward.1} parent=127 // pred_fallthru
          _
        // Predicated region
        $region205: #{flower_classifier_forward.1} parent=127 // pred_check
          %p1176 = pneg %p640
        $region206: #{flower_classifier_forward.1} parent=127 // pred_check_branch
          %1178 = sbr.rel (%p1176) target = $region208
        $region207: #{flower_classifier_forward.1} parent=127 // pred_region
          %1179 = dma.done [#allocation34], 64
        $region208: #{flower_classifier_forward.1} parent=127 // pred_fallthru
          _
        %p1180 = pneg %p76
        %p1181 = pneg %p73
        %p1182 = pneg %p97
        %p1183 = pneg %p94
        %p1184 = pneg %p118
        %p1185 = pneg %p115
        %p1186 = pneg %p139
        %p1187 = pneg %p136
        %p1188 = pneg %p160
        %p1189 = pneg %p157
        %s1190 = sand.u32 %s60, 1
        %s1191 = scalar_lea.sflag [#allocation10], %s1190
        %s1192 = sand.u32 %s173, 1
        %s1193 = scalar_lea.vmem [#allocation9], %s1192
        %p1194 = pneg %p186
        %p1195 = pneg %p183
        %s1196 = sand.u32 %s60, 1
        %s1197 = scalar_lea.sflag [#allocation10], %s1196
        %s1198 = sand.u32 %s199, 1
        %s1199 = scalar_lea.vmem [#allocation11], %s1198
        %p1200 = pneg %p212
        %p1201 = pneg %p209
        %s1202 = sand.u32 %s60, 1
        %s1203 = scalar_lea.sflag [#allocation13], %s1202
        %s1204 = sand.u32 %s225, 1
        %s1205 = smul.addr %s1204, 384
        %s1206 = scalar_lea.vmem [#allocation12], %s1205
        %p1207 = pneg %p238
        %p1208 = pneg %p235
        %s1209 = sand.u32 %s60, 1
        %s1210 = scalar_lea.sflag [#allocation13], %s1209
        %s1211 = sand.u32 %s251, 1
        %s1212 = smul.addr %s1211, 3
        %s1213 = scalar_lea.vmem [#allocation14], %s1212
        %p1214 = pneg %p264
        %p1215 = pneg %p261
        %s1216 = sand.u32 %s60, 1
        %s1217 = scalar_lea.sflag [#allocation16], %s1216
        %s1218 = sand.u32 %s277, 1
        %s1219 = smul.addr %s1218, 128
        %s1220 = scalar_lea.vmem [#allocation15], %s1219
        %p1221 = pneg %p290
        %p1222 = pneg %p287
        %s1223 = sand.u32 %s60, 1
        %s1224 = scalar_lea.sflag [#allocation16], %s1223
        %s1225 = sand.u32 %s303, 1
        %s1226 = scalar_lea.vmem [#allocation17], %s1225
        %p1227 = pneg %p316
        %p1228 = pneg %p313
        %s1229 = sand.u32 %s60, 1
        %s1230 = scalar_lea.sflag [#allocation19], %s1229
        %s1231 = sand.u32 %s329, 1
        %s1232 = scalar_lea.vmem [#allocation18], %s1231
        %p1233 = pneg %p342
        %p1234 = pneg %p339
        %s1235 = sand.u32 %s60, 1
        %s1236 = scalar_lea.sflag [#allocation19], %s1235
        %s1237 = sand.u32 %s355, 1
        %s1238 = scalar_lea.vmem [#allocation20], %s1237
        %p1239 = pneg %p368
        %p1240 = pneg %p365
        %p1241 = scmp.lt.s32.totalorder %s60, 1
        %s1242 = scalar_select %p1241, %s60, 1
        %s1243 = smul.addr %s1242, 64
        %s1244 = smul.addr %s1243, 8
        %s1245 = scalar_lea.vmem %s13, %s1244
        %p1246 = pneg %p394
        %p1247 = pneg %p391
        %s1248 = sand.u32 %s60, 1
        %s1249 = scalar_lea.sflag [#allocation22], %s1248
        %s1250 = sand.u32 %s407, 1
        %s1251 = smul.addr %s1250, 4
        %s1252 = scalar_lea.vmem [#allocation21], %s1251
        %p1253 = pneg %p420
        %p1254 = pneg %p417
        %p1255 = scmp.lt.s32.totalorder %s60, 1
        %s1256 = scalar_select %p1255, %s60, 1
        %s1257 = smul.addr %s1256, 64
        %s1258 = smul.addr %s1257, 8
        %s1259 = scalar_lea.vmem %s15, %s1258
        %p1260 = pneg %p446
        %p1261 = pneg %p443
        %s1262 = sand.u32 %s60, 1
        %s1263 = scalar_lea.sflag [#allocation22], %s1262
        %s1264 = sand.u32 %s459, 1
        %s1265 = scalar_lea.vmem [#allocation23], %s1264
        %p1266 = pneg %p472
        %p1267 = pneg %p469
        %p1268 = pneg %p493
        %p1269 = pneg %p490
        %p1270 = pneg %p514
        %p1271 = pneg %p511
        %p1272 = pneg %p535
        %p1273 = pneg %p532
        %p1274 = pneg %p556
        %p1275 = pneg %p553
        %p1276 = pneg %p577
        %p1277 = pneg %p574
        %p1278 = pneg %p598
        %p1279 = pneg %p595
        %p1280 = pneg %p619
        %p1281 = pneg %p616
        %p1282 = pneg %p640
        %p1283 = pneg %p637
        %p1284 = pneg %p661
        %p1285 = pneg %p658
        %p1286 = pneg %p682
        %p1287 = pneg %p679
        %p1288 = pneg %p703
        %p1289 = pneg %p700
        %p1290 = scmp.lt.s32.totalorder %s60, 1
        %s1291 = scalar_select %p1290, %s60, 1
        %s1292 = smul.addr %s1291, 64
        %s1293 = smul.addr %s1292, 8
        %s1294 = scalar_lea.vmem %s13, %s1293
        %p1295 = scmp.lt.s32.totalorder %s60, 1
        %s1296 = scalar_select %p1295, %s60, 1
        %s1297 = smul.addr %s1296, 64
        %s1298 = smul.addr %s1297, 8
        %s1299 = scalar_lea.vmem %s15, %s1298
        %p1300 = scmp.eq.s32.totalorder %s60, 0
        // Predicated region
        $region209: #{flower_classifier_forward.1} parent=127 // pred_check
          %p1301 = pneg %p1300
        $region210: #{flower_classifier_forward.1} parent=127 // pred_check_branch
          %1303 = sbr.rel (%p1301) target = $region212
        $region211: #{flower_classifier_forward.1} parent=127 // pred_region
          %v1304 = vld [vmem:[%s0] sm:$0xff]
          %v1305 = vld [vmem:[%s0 + $0x8] sm:$0xff]
          %v1306 = vld [vmem:[%s0 + $0x10] sm:$0xff]
          %v1307 = vld [vmem:[%s0 + $0x18] sm:$0xff]
          %v1308 = vld [vmem:[%s0 + $0x20] sm:$0xff]
          %v1309 = vld [vmem:[%s0 + $0x28] sm:$0xff]
          %v1310 = vld [vmem:[#allocation3] sm:$0xff]
          %v1311 = vld [vmem:[#allocation3 + $0x8] sm:$0xff]
          %v1312 = vld [vmem:[#allocation3 + $0x10] sm:$0xff]
          %v1313 = vld [vmem:[#allocation3 + $0x18] sm:$0xff]
          %v1314 = vld [vmem:[#allocation3 + $0x20] sm:$0xff]
          %v1315 = vld [vmem:[#allocation3 + $0x28] sm:$0xff]
          %v1316 = vld [vmem:[#allocation3 + $0x30] sm:$0xff]
          %v1317 = vld [vmem:[#allocation3 + $0x38] sm:$0xff]
          %v1318 = vld [vmem:[#allocation3 + $0x40] sm:$0xff]
          %v1319 = vld [vmem:[#allocation3 + $0x48] sm:$0xff]
          %v1320 = vld [vmem:[#allocation3 + $0x50] sm:$0xff]
          %v1321 = vld [vmem:[#allocation3 + $0x58] sm:$0xff]
          %v1322 = vld [vmem:[#allocation3 + $0x60] sm:$0xff]
          %v1323 = vld [vmem:[#allocation3 + $0x68] sm:$0xff]
          %v1324 = vld [vmem:[#allocation3 + $0x70] sm:$0xff]
          %v1325 = vld [vmem:[#allocation3 + $0x78] sm:$0xff]
          %v1326 = vld [vmem:[#allocation3 + $0x80] sm:$0xff]
          %v1327 = vld [vmem:[#allocation3 + $0x88] sm:$0xff]
          %v1328 = vld [vmem:[#allocation3 + $0x90] sm:$0xff]
          %v1329 = vld [vmem:[#allocation3 + $0x98] sm:$0xff]
          %v1330 = vld [vmem:[#allocation3 + $0xa0] sm:$0xff]
          %v1331 = vld [vmem:[#allocation3 + $0xa8] sm:$0xff]
          %v1332 = vld [vmem:[#allocation3 + $0xb0] sm:$0xff]
          %v1333 = vld [vmem:[#allocation3 + $0xb8] sm:$0xff]
          %v1334 = vld [vmem:[#allocation3 + $0xc0] sm:$0xff]
          %v1335 = vld [vmem:[#allocation3 + $0xc8] sm:$0xff]
          %v1336 = vld [vmem:[#allocation3 + $0xd0] sm:$0xff]
          %v1337 = vld [vmem:[#allocation3 + $0xd8] sm:$0xff]
          %v1338 = vld [vmem:[#allocation3 + $0xe0] sm:$0xff]
          %v1339 = vld [vmem:[#allocation3 + $0xe8] sm:$0xff]
          %v1340 = vld [vmem:[#allocation3 + $0xf0] sm:$0xff]
          %v1341 = vld [vmem:[#allocation3 + $0xf8] sm:$0xff]
          %v1342 = vld [vmem:[#allocation3 + $0x100] sm:$0xff]
          %v1343 = vld [vmem:[#allocation3 + $0x108] sm:$0xff]
          %v1344 = vld [vmem:[#allocation3 + $0x110] sm:$0xff]
          %v1345 = vld [vmem:[#allocation3 + $0x118] sm:$0xff]
          %v1346 = vld [vmem:[#allocation3 + $0x120] sm:$0xff]
          %v1347 = vld [vmem:[#allocation3 + $0x128] sm:$0xff]
          %v1348 = vld [vmem:[#allocation3 + $0x130] sm:$0xff]
          %v1349 = vld [vmem:[#allocation3 + $0x138] sm:$0xff]
          %v1350 = vld [vmem:[#allocation3 + $0x140] sm:$0xff]
          %v1351 = vld [vmem:[#allocation3 + $0x148] sm:$0xff]
          %v1352 = vld [vmem:[#allocation3 + $0x150] sm:$0xff]
          %v1353 = vld [vmem:[#allocation3 + $0x158] sm:$0xff]
          %v1354 = vld [vmem:[#allocation3 + $0x160] sm:$0xff]
          %v1355 = vld [vmem:[#allocation3 + $0x168] sm:$0xff]
          %v1356 = vld [vmem:[#allocation3 + $0x170] sm:$0xff]
          %v1357 = vld [vmem:[#allocation3 + $0x178] sm:$0xff]
          %v1358 = vld [vmem:[#allocation3 + $0x180] sm:$0xff]
          %v1359 = vld [vmem:[#allocation3 + $0x188] sm:$0xff]
          %v1360 = vld [vmem:[#allocation3 + $0x190] sm:$0xff]
          %v1361 = vld [vmem:[#allocation3 + $0x198] sm:$0xff]
          %v1362 = vld [vmem:[#allocation3 + $0x1a0] sm:$0xff]
          %v1363 = vld [vmem:[#allocation3 + $0x1a8] sm:$0xff]
          %v1364 = vld [vmem:[#allocation3 + $0x1b0] sm:$0xff]
          %v1365 = vld [vmem:[#allocation3 + $0x1b8] sm:$0xff]
          %v1366 = vld [vmem:[#allocation3 + $0x1c0] sm:$0xff]
          %v1367 = vld [vmem:[#allocation3 + $0x1c8] sm:$0xff]
          %v1368 = vld [vmem:[#allocation3 + $0x1d0] sm:$0xff]
          %v1369 = vld [vmem:[#allocation3 + $0x1d8] sm:$0xff]
          %v1370 = vld [vmem:[#allocation3 + $0x1e0] sm:$0xff]
          %v1371 = vld [vmem:[#allocation3 + $0x1e8] sm:$0xff]
          %v1372 = vld [vmem:[#allocation3 + $0x1f0] sm:$0xff]
          %v1373 = vld [vmem:[#allocation3 + $0x1f8] sm:$0xff]
          %v1374 = vld [vmem:[#allocation3 + $0x200] sm:$0xff]
          %v1375 = vld [vmem:[#allocation3 + $0x208] sm:$0xff]
          %v1376 = vld [vmem:[#allocation3 + $0x210] sm:$0xff]
          %v1377 = vld [vmem:[#allocation3 + $0x218] sm:$0xff]
          %v1378 = vld [vmem:[#allocation3 + $0x220] sm:$0xff]
          %v1379 = vld [vmem:[#allocation3 + $0x228] sm:$0xff]
          %v1380 = vld [vmem:[#allocation3 + $0x230] sm:$0xff]
          %v1381 = vld [vmem:[#allocation3 + $0x238] sm:$0xff]
          %v1382 = vld [vmem:[#allocation3 + $0x240] sm:$0xff]
          %v1383 = vld [vmem:[#allocation3 + $0x248] sm:$0xff]
          %v1384 = vld [vmem:[#allocation3 + $0x250] sm:$0xff]
          %v1385 = vld [vmem:[#allocation3 + $0x258] sm:$0xff]
          %v1386 = vld [vmem:[#allocation3 + $0x260] sm:$0xff]
          %v1387 = vld [vmem:[#allocation3 + $0x268] sm:$0xff]
          %v1388 = vld [vmem:[#allocation3 + $0x270] sm:$0xff]
          %v1389 = vld [vmem:[#allocation3 + $0x278] sm:$0xff]
          %v1390 = vld [vmem:[#allocation3 + $0x280] sm:$0xff]
          %v1391 = vld [vmem:[#allocation3 + $0x288] sm:$0xff]
          %v1392 = vld [vmem:[#allocation3 + $0x290] sm:$0xff]
          %v1393 = vld [vmem:[#allocation3 + $0x298] sm:$0xff]
          %v1394 = vld [vmem:[#allocation3 + $0x2a0] sm:$0xff]
          %v1395 = vld [vmem:[#allocation3 + $0x2a8] sm:$0xff]
          %v1396 = vld [vmem:[#allocation3 + $0x2b0] sm:$0xff]
          %v1397 = vld [vmem:[#allocation3 + $0x2b8] sm:$0xff]
          %v1398 = vld [vmem:[#allocation3 + $0x2c0] sm:$0xff]
          %v1399 = vld [vmem:[#allocation3 + $0x2c8] sm:$0xff]
          %v1400 = vld [vmem:[#allocation3 + $0x2d0] sm:$0xff]
          %v1401 = vld [vmem:[#allocation3 + $0x2d8] sm:$0xff]
          %v1402 = vld [vmem:[#allocation3 + $0x2e0] sm:$0xff]
          %v1403 = vld [vmem:[#allocation3 + $0x2e8] sm:$0xff]
          %v1404 = vld [vmem:[#allocation3 + $0x2f0] sm:$0xff]
          %v1405 = vld [vmem:[#allocation3 + $0x2f8] sm:$0xff]
          %v1406 = vld [vmem:[#allocation6] sm:$0x1]
          %v1408 = vlaneseq
          %v1409 = vshrl.u32 %v1408, 7
          %v1410 = vsub.s32 0, %v1409
          %v1411 = vrot.slane %v1406, %v1410
          %1413 = vmatprep.subr.mxu0 0.0
          %1414 = vmatpush1.msra.mxu0 %v1310
          %1415 = vmatprep.subr.mxu0 0.0
          %1416 = vmatpush1.msra.mxu0 %v1311
          %1417 = vmatprep.subr.mxu0 0.0
          %1418 = vmatpush1.msra.mxu0 %v1312
          %1419 = vmatprep.subr.mxu0 0.0
          %1420 = vmatpush1.msra.mxu0 %v1313
          %1421 = vmatprep.subr.mxu0 0.0
          %1422 = vmatpush1.msra.mxu0 %v1314
          %1423 = vmatprep.subr.mxu0 0.0
          %1424 = vmatpush1.msra.mxu0 %v1315
          %1425 = vmatprep.subr.mxu0 0.0
          %1426 = vmatpush1.msra.mxu0 %v1316
          %1427 = vmatprep.subr.mxu0 0.0
          %1428 = vmatpush1.msra.mxu0 %v1317
          %1429 = vmatprep.subr.mxu0 0.0
          %1430 = vmatpush1.msra.mxu0 %v1318
          %1431 = vmatprep.subr.mxu0 0.0
          %1432 = vmatpush1.msra.mxu0 %v1319
          %1433 = vmatprep.subr.mxu0 0.0
          %1434 = vmatpush1.msra.mxu0 %v1320
          %1435 = vmatprep.subr.mxu0 0.0
          %1436 = vmatpush1.msra.mxu0 %v1321
          %1437 = vmatprep.subr.mxu0 0.0
          %1438 = vmatpush1.msra.mxu0 %v1322
          %1439 = vmatprep.subr.mxu0 0.0
          %1440 = vmatpush1.msra.mxu0 %v1323
          %1441 = vmatprep.subr.mxu0 0.0
          %1442 = vmatpush1.msra.mxu0 %v1324
          %1443 = vmatprep.subr.mxu0 0.0
          %1444 = vmatpush1.msra.mxu0 %v1325
          %1445 = vmatprep.subr.mxu0 0.0
          %1446 = vmatpush1.msra.mxu0 %v1326
          %1447 = vmatprep.subr.mxu0 0.0
          %1448 = vmatpush1.msra.mxu0 %v1327
          %1449 = vmatprep.subr.mxu0 0.0
          %1450 = vmatpush1.msra.mxu0 %v1328
          %1451 = vmatprep.subr.mxu0 0.0
          %1452 = vmatpush1.msra.mxu0 %v1329
          %1453 = vmatprep.subr.mxu0 0.0
          %1454 = vmatpush1.msra.mxu0 %v1330
          %1455 = vmatprep.subr.mxu0 0.0
          %1456 = vmatpush1.msra.mxu0 %v1331
          %1457 = vmatprep.subr.mxu0 0.0
          %1458 = vmatpush1.msra.mxu0 %v1332
          %1459 = vmatprep.subr.mxu0 0.0
          %1460 = vmatpush1.msra.mxu0 %v1333
          %1461 = vmatprep.subr.mxu0 0.0
          %1462 = vmatpush1.msra.mxu0 %v1334
          %1463 = vmatprep.subr.mxu0 0.0
          %1464 = vmatpush1.msra.mxu0 %v1335
          %1465 = vmatprep.subr.mxu0 0.0
          %1466 = vmatpush1.msra.mxu0 %v1336
          %1467 = vmatprep.subr.mxu0 0.0
          %1468 = vmatpush1.msra.mxu0 %v1337
          %1469 = vmatprep.subr.mxu0 0.0
          %1470 = vmatpush1.msra.mxu0 %v1338
          %1471 = vmatprep.subr.mxu0 0.0
          %1472 = vmatpush1.msra.mxu0 %v1339
          %1473 = vmatprep.subr.mxu0 0.0
          %1474 = vmatpush1.msra.mxu0 %v1340
          %1475 = vmatprep.subr.mxu0 0.0
          %1476 = vmatpush1.msra.mxu0 %v1341
          %1477 = vmatprep.mubr.f32.mxu0 %v1305
          %1478 = vmatmul.mubr.f32.gmra.mrb[0].mxu0 %v1304
          %v1479 = vpop.f32.mrb[0].mxu0
          %v1480 = vadd.f32 %v1411, %v1479
          %v1481 = vpop.f32.mrb[0].mxu0
          %1482 = vdwg.mxu0
          %1483 = vmatprep.subr.mxu0 0.0
          %1484 = vmatpush1.msra.mxu0 %v1342
          %1485 = vmatprep.subr.mxu0 0.0
          %1486 = vmatpush1.msra.mxu0 %v1343
          %1487 = vmatprep.subr.mxu0 0.0
          %1488 = vmatpush1.msra.mxu0 %v1344
          %1489 = vmatprep.subr.mxu0 0.0
          %1490 = vmatpush1.msra.mxu0 %v1345
          %1491 = vmatprep.subr.mxu0 0.0
          %1492 = vmatpush1.msra.mxu0 %v1346
          %1493 = vmatprep.subr.mxu0 0.0
          %1494 = vmatpush1.msra.mxu0 %v1347
          %1495 = vmatprep.subr.mxu0 0.0
          %1496 = vmatpush1.msra.mxu0 %v1348
          %1497 = vmatprep.subr.mxu0 0.0
          %1498 = vmatpush1.msra.mxu0 %v1349
          %1499 = vmatprep.subr.mxu0 0.0
          %1500 = vmatpush1.msra.mxu0 %v1350
          %1501 = vmatprep.subr.mxu0 0.0
          %1502 = vmatpush1.msra.mxu0 %v1351
          %1503 = vmatprep.subr.mxu0 0.0
          %1504 = vmatpush1.msra.mxu0 %v1352
          %1505 = vmatprep.subr.mxu0 0.0
          %1506 = vmatpush1.msra.mxu0 %v1353
          %1507 = vmatprep.subr.mxu0 0.0
          %1508 = vmatpush1.msra.mxu0 %v1354
          %1509 = vmatprep.subr.mxu0 0.0
          %1510 = vmatpush1.msra.mxu0 %v1355
          %1511 = vmatprep.subr.mxu0 0.0
          %1512 = vmatpush1.msra.mxu0 %v1356
          %1513 = vmatprep.subr.mxu0 0.0
          %1514 = vmatpush1.msra.mxu0 %v1357
          %1515 = vmatprep.subr.mxu0 0.0
          %1516 = vmatpush1.msra.mxu0 %v1358
          %1517 = vmatprep.subr.mxu0 0.0
          %1518 = vmatpush1.msra.mxu0 %v1359
          %1519 = vmatprep.subr.mxu0 0.0
          %1520 = vmatpush1.msra.mxu0 %v1360
          %1521 = vmatprep.subr.mxu0 0.0
          %1522 = vmatpush1.msra.mxu0 %v1361
          %1523 = vmatprep.subr.mxu0 0.0
          %1524 = vmatpush1.msra.mxu0 %v1362
          %1525 = vmatprep.subr.mxu0 0.0
          %1526 = vmatpush1.msra.mxu0 %v1363
          %1527 = vmatprep.subr.mxu0 0.0
          %1528 = vmatpush1.msra.mxu0 %v1364
          %1529 = vmatprep.subr.mxu0 0.0
          %1530 = vmatpush1.msra.mxu0 %v1365
          %1531 = vmatprep.subr.mxu0 0.0
          %1532 = vmatpush1.msra.mxu0 %v1366
          %1533 = vmatprep.subr.mxu0 0.0
          %1534 = vmatpush1.msra.mxu0 %v1367
          %1535 = vmatprep.subr.mxu0 0.0
          %1536 = vmatpush1.msra.mxu0 %v1368
          %1537 = vmatprep.subr.mxu0 0.0
          %1538 = vmatpush1.msra.mxu0 %v1369
          %1539 = vmatprep.subr.mxu0 0.0
          %1540 = vmatpush1.msra.mxu0 %v1370
          %1541 = vmatprep.subr.mxu0 0.0
          %1542 = vmatpush1.msra.mxu0 %v1371
          %1543 = vmatprep.subr.mxu0 0.0
          %1544 = vmatpush1.msra.mxu0 %v1372
          %1545 = vmatprep.subr.mxu0 0.0
          %1546 = vmatpush1.msra.mxu0 %v1373
          %1547 = vmatprep.mubr.f32.mxu0 %v1307
          %1548 = vmatmul.mubr.f32.gmra.mrb[0].mxu0 %v1306
          %v1549 = vpop.f32.mrb[0].mxu0
          %v1550 = vadd.f32 %v1480, %v1549
          %v1551 = vpop.f32.mrb[0].mxu0
          %1552 = vdwg.mxu0
          %1553 = vmatprep.subr.mxu0 0.0
          %1554 = vmatpush1.msra.mxu0 %v1374
          %1555 = vmatprep.subr.mxu0 0.0
          %1556 = vmatpush1.msra.mxu0 %v1375
          %1557 = vmatprep.subr.mxu0 0.0
          %1558 = vmatpush1.msra.mxu0 %v1376
          %1559 = vmatprep.subr.mxu0 0.0
          %1560 = vmatpush1.msra.mxu0 %v1377
          %1561 = vmatprep.subr.mxu0 0.0
          %1562 = vmatpush1.msra.mxu0 %v1378
          %1563 = vmatprep.subr.mxu0 0.0
          %1564 = vmatpush1.msra.mxu0 %v1379
          %1565 = vmatprep.subr.mxu0 0.0
          %1566 = vmatpush1.msra.mxu0 %v1380
          %1567 = vmatprep.subr.mxu0 0.0
          %1568 = vmatpush1.msra.mxu0 %v1381
          %1569 = vmatprep.subr.mxu0 0.0
          %1570 = vmatpush1.msra.mxu0 %v1382
          %1571 = vmatprep.subr.mxu0 0.0
          %1572 = vmatpush1.msra.mxu0 %v1383
          %1573 = vmatprep.subr.mxu0 0.0
          %1574 = vmatpush1.msra.mxu0 %v1384
          %1575 = vmatprep.subr.mxu0 0.0
          %1576 = vmatpush1.msra.mxu0 %v1385
          %1577 = vmatprep.subr.mxu0 0.0
          %1578 = vmatpush1.msra.mxu0 %v1386
          %1579 = vmatprep.subr.mxu0 0.0
          %1580 = vmatpush1.msra.mxu0 %v1387
          %1581 = vmatprep.subr.mxu0 0.0
          %1582 = vmatpush1.msra.mxu0 %v1388
          %1583 = vmatprep.subr.mxu0 0.0
          %1584 = vmatpush1.msra.mxu0 %v1389
          %1585 = vmatprep.subr.mxu0 0.0
          %1586 = vmatpush1.msra.mxu0 %v1390
          %1587 = vmatprep.subr.mxu0 0.0
          %1588 = vmatpush1.msra.mxu0 %v1391
          %1589 = vmatprep.subr.mxu0 0.0
          %1590 = vmatpush1.msra.mxu0 %v1392
          %1591 = vmatprep.subr.mxu0 0.0
          %1592 = vmatpush1.msra.mxu0 %v1393
          %1593 = vmatprep.subr.mxu0 0.0
          %1594 = vmatpush1.msra.mxu0 %v1394
          %1595 = vmatprep.subr.mxu0 0.0
          %1596 = vmatpush1.msra.mxu0 %v1395
          %1597 = vmatprep.subr.mxu0 0.0
          %1598 = vmatpush1.msra.mxu0 %v1396
          %1599 = vmatprep.subr.mxu0 0.0
          %1600 = vmatpush1.msra.mxu0 %v1397
          %1601 = vmatprep.subr.mxu0 0.0
          %1602 = vmatpush1.msra.mxu0 %v1398
          %1603 = vmatprep.subr.mxu0 0.0
          %1604 = vmatpush1.msra.mxu0 %v1399
          %1605 = vmatprep.subr.mxu0 0.0
          %1606 = vmatpush1.msra.mxu0 %v1400
          %1607 = vmatprep.subr.mxu0 0.0
          %1608 = vmatpush1.msra.mxu0 %v1401
          %1609 = vmatprep.subr.mxu0 0.0
          %1610 = vmatpush1.msra.mxu0 %v1402
          %1611 = vmatprep.subr.mxu0 0.0
          %1612 = vmatpush1.msra.mxu0 %v1403
          %1613 = vmatprep.subr.mxu0 0.0
          %1614 = vmatpush1.msra.mxu0 %v1404
          %1615 = vmatprep.subr.mxu0 0.0
          %1616 = vmatpush1.msra.mxu0 %v1405
          %1617 = vmatprep.mubr.f32.mxu0 %v1309
          %1618 = vmatmul.mubr.f32.gmra.mrb[0].mxu0 %v1308
          %v1619 = vpop.f32.mrb[0].mxu0
          %v1620 = vadd.f32 %v1550, %v1619
          %v1621 = vpop.f32.mrb[0].mxu0
          %1622 = vdwg.mxu0
          %v1623 = vld [vmem:[#allocation8] sm:$0x1]
          %v1624 = vld [vmem:[%s4] sm:$0x1]
          %v1625 = vadd.f32 %v1623, %v1624
          %1626 = vst [vmem:[#allocation2] sm:$0x1] %v1625
          %v1627 = vld [vmem:[%s4 + $0x1] sm:$0xf]
          %v1628 = vadd.f32 %v1620, %v1627
          %1629 = vst [vmem:[#allocation2 + $0x1] sm:$0xf] %v1628
          %1630 = vst [vmem:[#allocation2 + $0x5] sm:$0x7] 0.0
          %v1631 = vld [vmem:[#allocation8] sm:$0x1]
          %v1632 = vld [vmem:[%s4] sm:$0x1]
          %v1633 = vadd.f32 %v1631, %v1632
          %1634 = vst [vmem:[#allocation2 + $0x8] sm:$0x1] %v1633
          %v1635 = vld [vmem:[%s4 + $0x1] sm:$0xf]
          %v1637 = vrot.slane %v1635, 4
          %v1639 = vadd.f32 %v1620, %v1637
          %1640 = vst [vmem:[#allocation2 + $0x5] sm:$0xf0] %v1639
          %1641 = vst [vmem:[#allocation2 + $0xd] sm:$0x7] 0.0
        $region212: #{flower_classifier_forward.1} parent=127 // pred_fallthru
          _
        %v1642 = vld [vmem:[#allocation2] sm:$0xff]
        %v1643 = vld [vmem:[#allocation2 + $0x8] sm:$0xff]
        %v1644 = vld [vmem:[%s1071] sm:$0x1]
        %v1645 = vld [vmem:[%s1079] sm:$0x1]
        %1646 = vadd.xlane.f32.xlu0 %v1642
        %v1647 = vpop.xlane.xlu0 %1646
        %1648 = vadd.xlane.f32.xlu0 %v1643
        %v1649 = vpop.xlane.xlu0 %1648
        %v1650 = vrcp.pop 128.0
        %v1651 = vmul.f32 %v1647, %v1650
        %v1652 = vmul.f32 %v1649, %v1650
        %v1653 = vsub.f32 %v1642, %v1651
        %v1654 = vsub.f32 %v1643, %v1652
        %v1655 = vmul.f32 %v1653, %v1653
        %v1656 = vmul.f32 %v1654, %v1654
        %1657 = vadd.xlane.f32.xlu0 %v1655
        %v1658 = vpop.xlane.xlu0 %1657
        %1659 = vadd.xlane.f32.xlu0 %v1656
        %v1660 = vpop.xlane.xlu0 %1659
        %v1661 = vmul.f32 %v1658, %v1650
        %v1662 = vmul.f32 %v1660, %v1650
        %v1663 = vadd.f32 %v1661, 1e-06
        %v1664 = vadd.f32 %v1662, 1e-06
        %v1665 = vrsqrt.pop %v1663
        %v1666 = vrsqrt.pop %v1664
        %v1667 = vmul.f32 %v1653, %v1665
        %v1668 = vmul.f32 %v1654, %v1666
        %v1670 = vlaneseq
        %v1671 = vshrl.u32 %v1670, 7
        %v1672 = vsub.s32 0, %v1671
        %v1673 = vrot.slane %v1644, %v1672
        %v1675 = vmul.f32 %v1667, %v1673
        %v1676 = vmul.f32 %v1668, %v1673
        %v1678 = vlaneseq
        %v1679 = vshrl.u32 %v1678, 7
        %v1680 = vsub.s32 0, %v1679
        %v1681 = vrot.slane %v1645, %v1680
        %v1683 = vadd.f32 %v1675, %v1681
        %v1684 = vadd.f32 %v1676, %v1681
        %v1685 = vld [vmem:[%s1088] sm:$0xff]
        %v1686 = vld [vmem:[%s1088 + $0x8] sm:$0xff]
        %v1687 = vld [vmem:[%s1088 + $0x10] sm:$0xff]
        %v1688 = vld [vmem:[%s1088 + $0x18] sm:$0xff]
        %v1689 = vld [vmem:[%s1088 + $0x20] sm:$0xff]
        %v1690 = vld [vmem:[%s1088 + $0x28] sm:$0xff]
        %v1691 = vld [vmem:[%s1088 + $0x30] sm:$0xff]
        %v1692 = vld [vmem:[%s1088 + $0x38] sm:$0xff]
        %v1693 = vld [vmem:[%s1088 + $0x40] sm:$0xff]
        %v1694 = vld [vmem:[%s1088 + $0x48] sm:$0xff]
        %v1695 = vld [vmem:[%s1088 + $0x50] sm:$0xff]
        %v1696 = vld [vmem:[%s1088 + $0x58] sm:$0xff]
        %v1697 = vld [vmem:[%s1088 + $0x60] sm:$0xff]
        %v1698 = vld [vmem:[%s1088 + $0x68] sm:$0xff]
        %v1699 = vld [vmem:[%s1088 + $0x70] sm:$0xff]
        %v1700 = vld [vmem:[%s1088 + $0x78] sm:$0xff]
        %v1701 = vld [vmem:[%s1088 + $0x80] sm:$0xff]
        %v1702 = vld [vmem:[%s1088 + $0x88] sm:$0xff]
        %v1703 = vld [vmem:[%s1088 + $0x90] sm:$0xff]
        %v1704 = vld [vmem:[%s1088 + $0x98] sm:$0xff]
        %v1705 = vld [vmem:[%s1088 + $0xa0] sm:$0xff]
        %v1706 = vld [vmem:[%s1088 + $0xa8] sm:$0xff]
        %v1707 = vld [vmem:[%s1088 + $0xb0] sm:$0xff]
        %v1708 = vld [vmem:[%s1088 + $0xb8] sm:$0xff]
        %v1709 = vld [vmem:[%s1088 + $0xc0] sm:$0xff]
        %v1710 = vld [vmem:[%s1088 + $0xc8] sm:$0xff]
        %v1711 = vld [vmem:[%s1088 + $0xd0] sm:$0xff]
        %v1712 = vld [vmem:[%s1088 + $0xd8] sm:$0xff]
        %v1713 = vld [vmem:[%s1088 + $0xe0] sm:$0xff]
        %v1714 = vld [vmem:[%s1088 + $0xe8] sm:$0xff]
        %v1715 = vld [vmem:[%s1088 + $0xf0] sm:$0xff]
        %v1716 = vld [vmem:[%s1088 + $0xf8] sm:$0xff]
        %v1717 = vld [vmem:[%s1088 + $0x100] sm:$0xff]
        %v1718 = vld [vmem:[%s1088 + $0x108] sm:$0xff]
        %v1719 = vld [vmem:[%s1088 + $0x110] sm:$0xff]
        %v1720 = vld [vmem:[%s1088 + $0x118] sm:$0xff]
        %v1721 = vld [vmem:[%s1088 + $0x120] sm:$0xff]
        %v1722 = vld [vmem:[%s1088 + $0x128] sm:$0xff]
        %v1723 = vld [vmem:[%s1088 + $0x130] sm:$0xff]
        %v1724 = vld [vmem:[%s1088 + $0x138] sm:$0xff]
        %v1725 = vld [vmem:[%s1088 + $0x140] sm:$0xff]
        %v1726 = vld [vmem:[%s1088 + $0x148] sm:$0xff]
        %v1727 = vld [vmem:[%s1088 + $0x150] sm:$0xff]
        %v1728 = vld [vmem:[%s1088 + $0x158] sm:$0xff]
        %v1729 = vld [vmem:[%s1088 + $0x160] sm:$0xff]
        %v1730 = vld [vmem:[%s1088 + $0x168] sm:$0xff]
        %v1731 = vld [vmem:[%s1088 + $0x170] sm:$0xff]
        %v1732 = vld [vmem:[%s1088 + $0x178] sm:$0xff]
        %v1733 = vld [vmem:[%s1097] sm:$0x7]
        %v1735 = vlaneseq
        %v1736 = vshrl.u32 %v1735, 7
        %v1737 = vsub.s32 0, %v1736
        %v1738 = vrot.slane %v1733, %v1737
        %v1739 = vlaneseq
        %v1740 = vshrl.u32 %v1739, 7
        %v1741 = vsub.s32 1, %v1740
        %v1742 = vrot.slane %v1733, %v1741
        %v1743 = vlaneseq
        %v1744 = vshrl.u32 %v1743, 7
        %v1745 = vsub.s32 2, %v1744
        %v1746 = vrot.slane %v1733, %v1745
        %1750 = vmatprep.subr.mxu0 %v1686
        %1751 = vmatpush1.msra.mxu0 %v1685
        %1752 = vmatprep.subr.mxu0 %v1689
        %1753 = vmatpush1.msra.mxu0 %v1688
        %1754 = vmatprep.subr.mxu0 %v1692
        %1755 = vmatpush1.msra.mxu0 %v1691
        %1756 = vmatprep.subr.mxu0 %v1695
        %1757 = vmatpush1.msra.mxu0 %v1694
        %1758 = vmatprep.subr.mxu0 %v1698
        %1759 = vmatpush1.msra.mxu0 %v1697
        %1760 = vmatprep.subr.mxu0 %v1701
        %1761 = vmatpush1.msra.mxu0 %v1700
        %1762 = vmatprep.subr.mxu0 %v1704
        %1763 = vmatpush1.msra.mxu0 %v1703
        %1764 = vmatprep.subr.mxu0 %v1707
        %1765 = vmatpush1.msra.mxu0 %v1706
        %1766 = vmatprep.subr.mxu0 %v1710
        %1767 = vmatpush1.msra.mxu0 %v1709
        %1768 = vmatprep.subr.mxu0 %v1713
        %1769 = vmatpush1.msra.mxu0 %v1712
        %1770 = vmatprep.subr.mxu0 %v1716
        %1771 = vmatpush1.msra.mxu0 %v1715
        %1772 = vmatprep.subr.mxu0 %v1719
        %1773 = vmatpush1.msra.mxu0 %v1718
        %1774 = vmatprep.subr.mxu0 %v1722
        %1775 = vmatpush1.msra.mxu0 %v1721
        %1776 = vmatprep.subr.mxu0 %v1725
        %1777 = vmatpush1.msra.mxu0 %v1724
        %1778 = vmatprep.subr.mxu0 %v1728
        %1779 = vmatpush1.msra.mxu0 %v1727
        %1780 = vmatprep.subr.mxu0 %v1731
        %1781 = vmatpush1.msra.mxu0 %v1730
        %1782 = vmatprep.subr.mxu0 0.0
        %1783 = vmatpush1.msra.mxu0 0.0
        %1784 = vmatprep.subr.mxu0 0.0
        %1785 = vmatpush1.msra.mxu0 0.0
        %1786 = vmatprep.subr.mxu0 0.0
        %1787 = vmatpush1.msra.mxu0 0.0
        %1788 = vmatprep.subr.mxu0 0.0
        %1789 = vmatpush1.msra.mxu0 0.0
        %1790 = vmatprep.subr.mxu0 0.0
        %1791 = vmatpush1.msra.mxu0 0.0
        %1792 = vmatprep.subr.mxu0 0.0
        %1793 = vmatpush1.msra.mxu0 0.0
        %1794 = vmatprep.subr.mxu0 0.0
        %1795 = vmatpush1.msra.mxu0 0.0
        %1796 = vmatprep.subr.mxu0 0.0
        %1797 = vmatpush1.msra.mxu0 0.0
        %1798 = vmatprep.subr.mxu0 0.0
        %1799 = vmatpush1.msra.mxu0 0.0
        %1800 = vmatprep.subr.mxu0 0.0
        %1801 = vmatpush1.msra.mxu0 0.0
        %1802 = vmatprep.subr.mxu0 0.0
        %1803 = vmatpush1.msra.mxu0 0.0
        %1804 = vmatprep.subr.mxu0 0.0
        %1805 = vmatpush1.msra.mxu0 0.0
        %1806 = vmatprep.subr.mxu0 0.0
        %1807 = vmatpush1.msra.mxu0 0.0
        %1808 = vmatprep.subr.mxu0 0.0
        %1809 = vmatpush1.msra.mxu0 0.0
        %1810 = vmatprep.subr.mxu0 0.0
        %1811 = vmatpush1.msra.mxu0 0.0
        %1812 = vmatprep.subr.mxu0 0.0
        %1813 = vmatpush1.msra.mxu0 0.0
        %1814 = vmatprep.mubr.f32.mxu0 0.0
        %1815 = vmatmul.mubr.f32.gmra.mrb[0].mxu0 %v1683
        %v1816 = vpop.f32.mrb[0].mxu0
        %v1817 = vadd.f32 %v1738, %v1816
        %v1818 = vpop.f32.mrb[0].mxu0
        %v1819 = vadd.f32 %v1742, %v1818
        %1820 = vmatprep.mubr.f32.mxu0 0.0
        %1821 = vmatmul.mubr.f32.gmra.mrb[0].mxu0 %v1684
        %v1822 = vpop.f32.mrb[0].mxu0
        %v1823 = vadd.f32 %v1738, %v1822
        %v1824 = vpop.f32.mrb[0].mxu0
        %v1825 = vadd.f32 %v1742, %v1824
        %1826 = vdwg.mxu0
        %1827 = vmatprep.subr.mxu0 0.0
        %1828 = vmatpush1.msra.mxu0 %v1687
        %1829 = vmatprep.subr.mxu0 0.0
        %1830 = vmatpush1.msra.mxu0 %v1690
        %1831 = vmatprep.subr.mxu0 0.0
        %1832 = vmatpush1.msra.mxu0 %v1693
        %1833 = vmatprep.subr.mxu0 0.0
        %1834 = vmatpush1.msra.mxu0 %v1696
        %1835 = vmatprep.subr.mxu0 0.0
        %1836 = vmatpush1.msra.mxu0 %v1699
        %1837 = vmatprep.subr.mxu0 0.0
        %1838 = vmatpush1.msra.mxu0 %v1702
        %1839 = vmatprep.subr.mxu0 0.0
        %1840 = vmatpush1.msra.mxu0 %v1705
        %1841 = vmatprep.subr.mxu0 0.0
        %1842 = vmatpush1.msra.mxu0 %v1708
        %1843 = vmatprep.subr.mxu0 0.0
        %1844 = vmatpush1.msra.mxu0 %v1711
        %1845 = vmatprep.subr.mxu0 0.0
        %1846 = vmatpush1.msra.mxu0 %v1714
        %1847 = vmatprep.subr.mxu0 0.0
        %1848 = vmatpush1.msra.mxu0 %v1717
        %1849 = vmatprep.subr.mxu0 0.0
        %1850 = vmatpush1.msra.mxu0 %v1720
        %1851 = vmatprep.subr.mxu0 0.0
        %1852 = vmatpush1.msra.mxu0 %v1723
        %1853 = vmatprep.subr.mxu0 0.0
        %1854 = vmatpush1.msra.mxu0 %v1726
        %1855 = vmatprep.subr.mxu0 0.0
        %1856 = vmatpush1.msra.mxu0 %v1729
        %1857 = vmatprep.subr.mxu0 0.0
        %1858 = vmatpush1.msra.mxu0 %v1732
        %1859 = vmatprep.subr.mxu0 0.0
        %1860 = vmatpush1.msra.mxu0 0.0
        %1861 = vmatprep.subr.mxu0 0.0
        %1862 = vmatpush1.msra.mxu0 0.0
        %1863 = vmatprep.subr.mxu0 0.0
        %1864 = vmatpush1.msra.mxu0 0.0
        %1865 = vmatprep.subr.mxu0 0.0
        %1866 = vmatpush1.msra.mxu0 0.0
        %1867 = vmatprep.subr.mxu0 0.0
        %1868 = vmatpush1.msra.mxu0 0.0
        %1869 = vmatprep.subr.mxu0 0.0
        %1870 = vmatpush1.msra.mxu0 0.0
        %1871 = vmatprep.subr.mxu0 0.0
        %1872 = vmatpush1.msra.mxu0 0.0
        %1873 = vmatprep.subr.mxu0 0.0
        %1874 = vmatpush1.msra.mxu0 0.0
        %1875 = vmatprep.subr.mxu0 0.0
        %1876 = vmatpush1.msra.mxu0 0.0
        %1877 = vmatprep.subr.mxu0 0.0
        %1878 = vmatpush1.msra.mxu0 0.0
        %1879 = vmatprep.subr.mxu0 0.0
        %1880 = vmatpush1.msra.mxu0 0.0
        %1881 = vmatprep.subr.mxu0 0.0
        %1882 = vmatpush1.msra.mxu0 0.0
        %1883 = vmatprep.subr.mxu0 0.0
        %1884 = vmatpush1.msra.mxu0 0.0
        %1885 = vmatprep.subr.mxu0 0.0
        %1886 = vmatpush1.msra.mxu0 0.0
        %1887 = vmatprep.subr.mxu0 0.0
        %1888 = vmatpush1.msra.mxu0 0.0
        %1889 = vmatprep.subr.mxu0 0.0
        %1890 = vmatpush1.msra.mxu0 0.0
        %1891 = vmatprep.mubr.f32.mxu0 0.0
        %1892 = vmatmul.mubr.f32.gmra.mrb[0].mxu0 %v1683
        %v1893 = vpop.f32.mrb[0].mxu0
        %v1894 = vadd.f32 %v1746, %v1893
        %v1895 = vpop.f32.mrb[0].mxu0
        %1896 = vmatprep.mubr.f32.mxu0 0.0
        %1897 = vmatmul.mubr.f32.gmra.mrb[0].mxu0 %v1684
        %v1898 = vpop.f32.mrb[0].mxu0
        %v1899 = vadd.f32 %v1746, %v1898
        %v1900 = vpop.f32.mrb[0].mxu0
        %1901 = vdwg.mxu0
        %v1902 = vlaneseq
        %v1903 = vand.u32 %v1902, 127
        %vm1904 = vcmp.lt.s32.totalorder %v1903, 5
        %vm1905 = vcmask 261120
        %v1907 = vsel %vm1905, %v1817, 0
        %v1910 = vsel %vm1905, %v1819, 0
        %1912 = vmatprep.subr.mxu0 0.0
        %1913 = vmatpush1.xpose.msra.mxu0 %v1910
        %1914 = vmatprep.subr.mxu0 0.0
        %1915 = vmatpush1.xpose.msra.mxu0 0.0
        %1916 = vmatprep.subr.mxu0 0.0
        %1917 = vmatpush1.xpose.msra.mxu0 0.0
        %1918 = vmatprep.subr.mxu0 0.0
        %1919 = vmatpush1.xpose.msra.mxu0 0.0
        %1920 = vmatprep.subr.mxu0 0.0
        %1921 = vmatpush1.xpose.msra.mxu0 0.0
        %1922 = vmatprep.subr.mxu0 0.0
        %1923 = vmatpush1.xpose.msra.mxu0 0.0
        %1924 = vmatprep.subr.mxu0 0.0
        %1925 = vmatpush1.xpose.msra.mxu0 0.0
        %1926 = vmatprep.subr.mxu0 0.0
        %1927 = vmatpush1.xpose.msra.mxu0 0.0
        %1928 = vmatprep.subr.mxu0 0.0
        %1929 = vmatpush1.xpose.msra.mxu0 0.0
        %1930 = vmatprep.subr.mxu0 0.0
        %1931 = vmatpush1.xpose.msra.mxu0 0.0
        %1932 = vmatprep.subr.mxu0 0.0
        %1933 = vmatpush1.xpose.msra.mxu0 0.0
        %1934 = vmatprep.subr.mxu0 0.0
        %1935 = vmatpush1.xpose.msra.mxu0 0.0
        %1936 = vmatprep.subr.mxu0 0.0
        %1937 = vmatpush1.xpose.msra.mxu0 0.0
        %1938 = vmatprep.subr.mxu0 0.0
        %1939 = vmatpush1.xpose.msra.mxu0 0.0
        %1940 = vmatprep.subr.mxu0 0.0
        %1941 = vmatpush1.xpose.msra.mxu0 0.0
        %1942 = vmatprep.subr.mxu0 0.0
        %1943 = vmatpush1.xpose.msra.mxu0 0.0
        %1944 = vmatprep.subr.mxu0 0.0
        %1945 = vmatpush1.xpose.msra.mxu0 0.0
        %1946 = vmatprep.subr.mxu0 0.0
        %1947 = vmatpush1.xpose.msra.mxu0 0.0
        %1948 = vmatprep.subr.mxu0 0.0
        %1949 = vmatpush1.xpose.msra.mxu0 0.0
        %1950 = vmatprep.subr.mxu0 0.0
        %1951 = vmatpush1.xpose.msra.mxu0 0.0
        %1952 = vmatprep.subr.mxu0 0.0
        %1953 = vmatpush1.xpose.msra.mxu0 0.0
        %1954 = vmatprep.subr.mxu0 0.0
        %1955 = vmatpush1.xpose.msra.mxu0 0.0
        %1956 = vmatprep.subr.mxu0 0.0
        %1957 = vmatpush1.xpose.msra.mxu0 0.0
        %1958 = vmatprep.subr.mxu0 0.0
        %1959 = vmatpush1.xpose.msra.mxu0 0.0
        %1960 = vmatprep.subr.mxu0 0.0
        %1961 = vmatpush1.xpose.msra.mxu0 0.0
        %1962 = vmatprep.subr.mxu0 0.0
        %1963 = vmatpush1.xpose.msra.mxu0 0.0
        %1964 = vmatprep.subr.mxu0 0.0
        %1965 = vmatpush1.xpose.msra.mxu0 0.0
        %1966 = vmatprep.subr.mxu0 0.0
        %1967 = vmatpush1.xpose.msra.mxu0 0.0
        %1968 = vmatprep.subr.mxu0 0.0
        %1969 = vmatpush1.xpose.msra.mxu0 0.0
        %1970 = vmatprep.subr.mxu0 0.0
        %1971 = vmatpush1.xpose.msra.mxu0 0.0
        %1972 = vmatprep.subr.mxu0 0.0
        %1973 = vmatpush1.xpose.msra.mxu0 0.0
        %1974 = vmatprep.subr.mxu0 0.0
        %1975 = vmatpush1.xpose.msra.mxu0 0.0
        %1976 = vmatprep.mubr.f32.mxu0 0.0
        %1977 = vmatmul.mubr.f32.gmra.mrb[0].mxu0 %v1907
        %v1978 = vpop.f32.mrb[0].mxu0
        %v1979 = vadd.f32 0.0, %v1978
        %v1980 = vpop.f32.mrb[0].mxu0
        %1981 = vdwg.mxu0
        %v1982 = vmul.f32 %v1979, 0.17677669
        %v1983 = vsel %vm1904, %v1982, -1e+30
        %vm1984 = vcmask 64512
        %v1985 = vsel %vm1984, %v1983, -inf
        %1986 = vmax.xlane.f32.xlu0 %v1985
        %v1987 = vpop.xlane.xlu0 %1986
        %v1988 = vsub.f32 %v1983, %v1987
        %v1989 = vmul.f32 %v1988, 1.442695
        %v1990 = vpow.pop %v1989
        %v1991 = vsel %vm1984, %v1990, 0.0
        %1992 = vadd.xlane.f32.xlu0 %v1991
        %v1993 = vpop.xlane.xlu0 %1992
        %v1994 = vrcp.pop %v1993
        %v1995 = vmul.f32 %v1990, %v1994
        %v1997 = vsel %vm1984, %v1995, 0
        %1999 = vmatprep.subr.mxu0 0.0
        %2000 = vmatpush1.msra.mxu0 %v1894
        %2001 = vmatprep.subr.mxu0 0.0
        %2002 = vmatpush1.msra.mxu0 0.0
        %2003 = vmatprep.subr.mxu0 0.0
        %2004 = vmatpush1.msra.mxu0 0.0
        %2005 = vmatprep.subr.mxu0 0.0
        %2006 = vmatpush1.msra.mxu0 0.0
        %2007 = vmatprep.subr.mxu0 0.0
        %2008 = vmatpush1.msra.mxu0 0.0
        %2009 = vmatprep.subr.mxu0 0.0
        %2010 = vmatpush1.msra.mxu0 0.0
        %2011 = vmatprep.subr.mxu0 0.0
        %2012 = vmatpush1.msra.mxu0 0.0
        %2013 = vmatprep.subr.mxu0 0.0
        %2014 = vmatpush1.msra.mxu0 0.0
        %2015 = vmatprep.subr.mxu0 0.0
        %2016 = vmatpush1.msra.mxu0 0.0
        %2017 = vmatprep.subr.mxu0 0.0
        %2018 = vmatpush1.msra.mxu0 0.0
        %2019 = vmatprep.subr.mxu0 0.0
        %2020 = vmatpush1.msra.mxu0 0.0
        %2021 = vmatprep.subr.mxu0 0.0
        %2022 = vmatpush1.msra.mxu0 0.0
        %2023 = vmatprep.subr.mxu0 0.0
        %2024 = vmatpush1.msra.mxu0 0.0
        %2025 = vmatprep.subr.mxu0 0.0
        %2026 = vmatpush1.msra.mxu0 0.0
        %2027 = vmatprep.subr.mxu0 0.0
        %2028 = vmatpush1.msra.mxu0 0.0
        %2029 = vmatprep.subr.mxu0 0.0
        %2030 = vmatpush1.msra.mxu0 0.0
        %2031 = vmatprep.subr.mxu0 0.0
        %2032 = vmatpush1.msra.mxu0 0.0
        %2033 = vmatprep.subr.mxu0 0.0
        %2034 = vmatpush1.msra.mxu0 0.0
        %2035 = vmatprep.subr.mxu0 0.0
        %2036 = vmatpush1.msra.mxu0 0.0
        %2037 = vmatprep.subr.mxu0 0.0
        %2038 = vmatpush1.msra.mxu0 0.0
        %2039 = vmatprep.subr.mxu0 0.0
        %2040 = vmatpush1.msra.mxu0 0.0
        %2041 = vmatprep.subr.mxu0 0.0
        %2042 = vmatpush1.msra.mxu0 0.0
        %2043 = vmatprep.subr.mxu0 0.0
        %2044 = vmatpush1.msra.mxu0 0.0
        %2045 = vmatprep.subr.mxu0 0.0
        %2046 = vmatpush1.msra.mxu0 0.0
        %2047 = vmatprep.subr.mxu0 0.0
        %2048 = vmatpush1.msra.mxu0 0.0
        %2049 = vmatprep.subr.mxu0 0.0
        %2050 = vmatpush1.msra.mxu0 0.0
        %2051 = vmatprep.subr.mxu0 0.0
        %2052 = vmatpush1.msra.mxu0 0.0
        %2053 = vmatprep.subr.mxu0 0.0
        %2054 = vmatpush1.msra.mxu0 0.0
        %2055 = vmatprep.subr.mxu0 0.0
        %2056 = vmatpush1.msra.mxu0 0.0
        %2057 = vmatprep.subr.mxu0 0.0
        %2058 = vmatpush1.msra.mxu0 0.0
        %2059 = vmatprep.subr.mxu0 0.0
        %2060 = vmatpush1.msra.mxu0 0.0
        %2061 = vmatprep.subr.mxu0 0.0
        %2062 = vmatpush1.msra.mxu0 0.0
        %2063 = vmatprep.mubr.f32.mxu0 0.0
        %2064 = vmatmul.mubr.f32.gmra.mrb[0].mxu0 %v1997
        %v2065 = vpop.f32.mrb[0].mxu0
        %v2066 = vadd.f32 0.0, %v2065
        %v2067 = vpop.f32.mrb[0].mxu0
        %2068 = vdwg.mxu0
        %2069 = vrot.lane.b32.xlu0 %v1817, 96
        %v2070 = vpop.permute.xlu0 %2069
        %2071 = vrot.lane.b32.xlu0 %v1819, 96
        %v2072 = vpop.permute.xlu0 %2071
        %v2073 = vsel %vm1905, %v2070, 0
        %v2075 = vsel %vm1905, %v2072, 0
        %2077 = vmatprep.subr.mxu0 0.0
        %2078 = vmatpush1.xpose.msra.mxu0 %v2075
        %2079 = vmatprep.subr.mxu0 0.0
        %2080 = vmatpush1.xpose.msra.mxu0 0.0
        %2081 = vmatprep.subr.mxu0 0.0
        %2082 = vmatpush1.xpose.msra.mxu0 0.0
        %2083 = vmatprep.subr.mxu0 0.0
        %2084 = vmatpush1.xpose.msra.mxu0 0.0
        %2085 = vmatprep.subr.mxu0 0.0
        %2086 = vmatpush1.xpose.msra.mxu0 0.0
        %2087 = vmatprep.subr.mxu0 0.0
        %2088 = vmatpush1.xpose.msra.mxu0 0.0
        %2089 = vmatprep.subr.mxu0 0.0
        %2090 = vmatpush1.xpose.msra.mxu0 0.0
        %2091 = vmatprep.subr.mxu0 0.0
        %2092 = vmatpush1.xpose.msra.mxu0 0.0
        %2093 = vmatprep.subr.mxu0 0.0
        %2094 = vmatpush1.xpose.msra.mxu0 0.0
        %2095 = vmatprep.subr.mxu0 0.0
        %2096 = vmatpush1.xpose.msra.mxu0 0.0
        %2097 = vmatprep.subr.mxu0 0.0
        %2098 = vmatpush1.xpose.msra.mxu0 0.0
        %2099 = vmatprep.subr.mxu0 0.0
        %2100 = vmatpush1.xpose.msra.mxu0 0.0
        %2101 = vmatprep.subr.mxu0 0.0
        %2102 = vmatpush1.xpose.msra.mxu0 0.0
        %2103 = vmatprep.subr.mxu0 0.0
        %2104 = vmatpush1.xpose.msra.mxu0 0.0
        %2105 = vmatprep.subr.mxu0 0.0
        %2106 = vmatpush1.xpose.msra.mxu0 0.0
        %2107 = vmatprep.subr.mxu0 0.0
        %2108 = vmatpush1.xpose.msra.mxu0 0.0
        %2109 = vmatprep.subr.mxu0 0.0
        %2110 = vmatpush1.xpose.msra.mxu0 0.0
        %2111 = vmatprep.subr.mxu0 0.0
        %2112 = vmatpush1.xpose.msra.mxu0 0.0
        %2113 = vmatprep.subr.mxu0 0.0
        %2114 = vmatpush1.xpose.msra.mxu0 0.0
        %2115 = vmatprep.subr.mxu0 0.0
        %2116 = vmatpush1.xpose.msra.mxu0 0.0
        %2117 = vmatprep.subr.mxu0 0.0
        %2118 = vmatpush1.xpose.msra.mxu0 0.0
        %2119 = vmatprep.subr.mxu0 0.0
        %2120 = vmatpush1.xpose.msra.mxu0 0.0
        %2121 = vmatprep.subr.mxu0 0.0
        %2122 = vmatpush1.xpose.msra.mxu0 0.0
        %2123 = vmatprep.subr.mxu0 0.0
        %2124 = vmatpush1.xpose.msra.mxu0 0.0
        %2125 = vmatprep.subr.mxu0 0.0
        %2126 = vmatpush1.xpose.msra.mxu0 0.0
        %2127 = vmatprep.subr.mxu0 0.0
        %2128 = vmatpush1.xpose.msra.mxu0 0.0
        %2129 = vmatprep.subr.mxu0 0.0
        %2130 = vmatpush1.xpose.msra.mxu0 0.0
        %2131 = vmatprep.subr.mxu0 0.0
        %2132 = vmatpush1.xpose.msra.mxu0 0.0
        %2133 = vmatprep.subr.mxu0 0.0
        %2134 = vmatpush1.xpose.msra.mxu0 0.0
        %2135 = vmatprep.subr.mxu0 0.0
        %2136 = vmatpush1.xpose.msra.mxu0 0.0
        %2137 = vmatprep.subr.mxu0 0.0
        %2138 = vmatpush1.xpose.msra.mxu0 0.0
        %2139 = vmatprep.subr.mxu0 0.0
        %2140 = vmatpush1.xpose.msra.mxu0 0.0
        %2141 = vmatprep.mubr.f32.mxu0 0.0
        %2142 = vmatmul.mubr.f32.gmra.mrb[0].mxu0 %v2073
        %v2143 = vpop.f32.mrb[0].mxu0
        %v2144 = vadd.f32 0.0, %v2143
        %v2145 = vpop.f32.mrb[0].mxu0
        %2146 = vdwg.mxu0
        %v2147 = vmul.f32 %v2144, 0.17677669
        %v2148 = vsel %vm1904, %v2147, -1e+30
        %v2149 = vsel %vm1984, %v2148, -inf
        %2150 = vmax.xlane.f32.xlu0 %v2149
        %v2151 = vpop.xlane.xlu0 %2150
        %v2152 = vsub.f32 %v2148, %v2151
        %v2153 = vmul.f32 %v2152, 1.442695
        %v2154 = vpow.pop %v2153
        %v2155 = vsel %vm1984, %v2154, 0.0
        %2156 = vadd.xlane.f32.xlu0 %v2155
        %v2157 = vpop.xlane.xlu0 %2156
        %v2158 = vrcp.pop %v2157
        %v2159 = vmul.f32 %v2154, %v2158
        %2161 = vrot.lane.b32.xlu0 %v1894, 96
        %v2162 = vpop.permute.xlu0 %2161
        %v2165 = vsel %vm1984, %v2159, 0
        %2167 = vmatprep.subr.mxu0 0.0
        %2168 = vmatpush1.msra.mxu0 %v2162
        %2169 = vmatprep.subr.mxu0 0.0
        %2170 = vmatpush1.msra.mxu0 0.0
        %2171 = vmatprep.subr.mxu0 0.0
        %2172 = vmatpush1.msra.mxu0 0.0
        %2173 = vmatprep.subr.mxu0 0.0
        %2174 = vmatpush1.msra.mxu0 0.0
        %2175 = vmatprep.subr.mxu0 0.0
        %2176 = vmatpush1.msra.mxu0 0.0
        %2177 = vmatprep.subr.mxu0 0.0
        %2178 = vmatpush1.msra.mxu0 0.0
        %2179 = vmatprep.subr.mxu0 0.0
        %2180 = vmatpush1.msra.mxu0 0.0
        %2181 = vmatprep.subr.mxu0 0.0
        %2182 = vmatpush1.msra.mxu0 0.0
        %2183 = vmatprep.subr.mxu0 0.0
        %2184 = vmatpush1.msra.mxu0 0.0
        %2185 = vmatprep.subr.mxu0 0.0
        %2186 = vmatpush1.msra.mxu0 0.0
        %2187 = vmatprep.subr.mxu0 0.0
        %2188 = vmatpush1.msra.mxu0 0.0
        %2189 = vmatprep.subr.mxu0 0.0
        %2190 = vmatpush1.msra.mxu0 0.0
        %2191 = vmatprep.subr.mxu0 0.0
        %2192 = vmatpush1.msra.mxu0 0.0
        %2193 = vmatprep.subr.mxu0 0.0
        %2194 = vmatpush1.msra.mxu0 0.0
        %2195 = vmatprep.subr.mxu0 0.0
        %2196 = vmatpush1.msra.mxu0 0.0
        %2197 = vmatprep.subr.mxu0 0.0
        %2198 = vmatpush1.msra.mxu0 0.0
        %2199 = vmatprep.subr.mxu0 0.0
        %2200 = vmatpush1.msra.mxu0 0.0
        %2201 = vmatprep.subr.mxu0 0.0
        %2202 = vmatpush1.msra.mxu0 0.0
        %2203 = vmatprep.subr.mxu0 0.0
        %2204 = vmatpush1.msra.mxu0 0.0
        %2205 = vmatprep.subr.mxu0 0.0
        %2206 = vmatpush1.msra.mxu0 0.0
        %2207 = vmatprep.subr.mxu0 0.0
        %2208 = vmatpush1.msra.mxu0 0.0
        %2209 = vmatprep.subr.mxu0 0.0
        %2210 = vmatpush1.msra.mxu0 0.0
        %2211 = vmatprep.subr.mxu0 0.0
        %2212 = vmatpush1.msra.mxu0 0.0
        %2213 = vmatprep.subr.mxu0 0.0
        %2214 = vmatpush1.msra.mxu0 0.0
        %2215 = vmatprep.subr.mxu0 0.0
        %2216 = vmatpush1.msra.mxu0 0.0
        %2217 = vmatprep.subr.mxu0 0.0
        %2218 = vmatpush1.msra.mxu0 0.0
        %2219 = vmatprep.subr.mxu0 0.0
        %2220 = vmatpush1.msra.mxu0 0.0
        %2221 = vmatprep.subr.mxu0 0.0
        %2222 = vmatpush1.msra.mxu0 0.0
        %2223 = vmatprep.subr.mxu0 0.0
        %2224 = vmatpush1.msra.mxu0 0.0
        %2225 = vmatprep.subr.mxu0 0.0
        %2226 = vmatpush1.msra.mxu0 0.0
        %2227 = vmatprep.subr.mxu0 0.0
        %2228 = vmatpush1.msra.mxu0 0.0
        %2229 = vmatprep.subr.mxu0 0.0
        %2230 = vmatpush1.msra.mxu0 0.0
        %2231 = vmatprep.mubr.f32.mxu0 0.0
        %2232 = vmatmul.mubr.f32.gmra.mrb[0].mxu0 %v2165
        %v2233 = vpop.f32.mrb[0].mxu0
        %v2234 = vadd.f32 0.0, %v2233
        %v2235 = vpop.f32.mrb[0].mxu0
        %2236 = vdwg.mxu0
        %2237 = vrot.lane.b32.xlu0 %v1817, 64
        %v2238 = vpop.permute.xlu0 %2237
        %2239 = vrot.lane.b32.xlu0 %v1819, 64
        %v2240 = vpop.permute.xlu0 %2239
        %v2241 = vsel %vm1905, %v2238, 0
        %v2243 = vsel %vm1905, %v2240, 0
        %2245 = vmatprep.subr.mxu0 0.0
        %2246 = vmatpush1.xpose.msra.mxu0 %v2243
        %2247 = vmatprep.subr.mxu0 0.0
        %2248 = vmatpush1.xpose.msra.mxu0 0.0
        %2249 = vmatprep.subr.mxu0 0.0
        %2250 = vmatpush1.xpose.msra.mxu0 0.0
        %2251 = vmatprep.subr.mxu0 0.0
        %2252 = vmatpush1.xpose.msra.mxu0 0.0
        %2253 = vmatprep.subr.mxu0 0.0
        %2254 = vmatpush1.xpose.msra.mxu0 0.0
        %2255 = vmatprep.subr.mxu0 0.0
        %2256 = vmatpush1.xpose.msra.mxu0 0.0
        %2257 = vmatprep.subr.mxu0 0.0
        %2258 = vmatpush1.xpose.msra.mxu0 0.0
        %2259 = vmatprep.subr.mxu0 0.0
        %2260 = vmatpush1.xpose.msra.mxu0 0.0
        %2261 = vmatprep.subr.mxu0 0.0
        %2262 = vmatpush1.xpose.msra.mxu0 0.0
        %2263 = vmatprep.subr.mxu0 0.0
        %2264 = vmatpush1.xpose.msra.mxu0 0.0
        %2265 = vmatprep.subr.mxu0 0.0
        %2266 = vmatpush1.xpose.msra.mxu0 0.0
        %2267 = vmatprep.subr.mxu0 0.0
        %2268 = vmatpush1.xpose.msra.mxu0 0.0
        %2269 = vmatprep.subr.mxu0 0.0
        %2270 = vmatpush1.xpose.msra.mxu0 0.0
        %2271 = vmatprep.subr.mxu0 0.0
        %2272 = vmatpush1.xpose.msra.mxu0 0.0
        %2273 = vmatprep.subr.mxu0 0.0
        %2274 = vmatpush1.xpose.msra.mxu0 0.0
        %2275 = vmatprep.subr.mxu0 0.0
        %2276 = vmatpush1.xpose.msra.mxu0 0.0
        %2277 = vmatprep.subr.mxu0 0.0
        %2278 = vmatpush1.xpose.msra.mxu0 0.0
        %2279 = vmatprep.subr.mxu0 0.0
        %2280 = vmatpush1.xpose.msra.mxu0 0.0
        %2281 = vmatprep.subr.mxu0 0.0
        %2282 = vmatpush1.xpose.msra.mxu0 0.0
        %2283 = vmatprep.subr.mxu0 0.0
        %2284 = vmatpush1.xpose.msra.mxu0 0.0
        %2285 = vmatprep.subr.mxu0 0.0
        %2286 = vmatpush1.xpose.msra.mxu0 0.0
        %2287 = vmatprep.subr.mxu0 0.0
        %2288 = vmatpush1.xpose.msra.mxu0 0.0
        %2289 = vmatprep.subr.mxu0 0.0
        %2290 = vmatpush1.xpose.msra.mxu0 0.0
        %2291 = vmatprep.subr.mxu0 0.0
        %2292 = vmatpush1.xpose.msra.mxu0 0.0
        %2293 = vmatprep.subr.mxu0 0.0
        %2294 = vmatpush1.xpose.msra.mxu0 0.0
        %2295 = vmatprep.subr.mxu0 0.0
        %2296 = vmatpush1.xpose.msra.mxu0 0.0
        %2297 = vmatprep.subr.mxu0 0.0
        %2298 = vmatpush1.xpose.msra.mxu0 0.0
        %2299 = vmatprep.subr.mxu0 0.0
        %2300 = vmatpush1.xpose.msra.mxu0 0.0
        %2301 = vmatprep.subr.mxu0 0.0
        %2302 = vmatpush1.xpose.msra.mxu0 0.0
        %2303 = vmatprep.subr.mxu0 0.0
        %2304 = vmatpush1.xpose.msra.mxu0 0.0
        %2305 = vmatprep.subr.mxu0 0.0
        %2306 = vmatpush1.xpose.msra.mxu0 0.0
        %2307 = vmatprep.subr.mxu0 0.0
        %2308 = vmatpush1.xpose.msra.mxu0 0.0
        %2309 = vmatprep.mubr.f32.mxu0 0.0
        %2310 = vmatmul.mubr.f32.gmra.mrb[0].mxu0 %v2241
        %v2311 = vpop.f32.mrb[0].mxu0
        %v2312 = vadd.f32 0.0, %v2311
        %v2313 = vpop.f32.mrb[0].mxu0
        %2314 = vdwg.mxu0
        %v2315 = vmul.f32 %v2312, 0.17677669
        %v2316 = vsel %vm1904, %v2315, -1e+30
        %v2317 = vsel %vm1984, %v2316, -inf
        %2318 = vmax.xlane.f32.xlu0 %v2317
        %v2319 = vpop.xlane.xlu0 %2318
        %v2320 = vsub.f32 %v2316, %v2319
        %v2321 = vmul.f32 %v2320, 1.442695
        %v2322 = vpow.pop %v2321
        %v2323 = vsel %vm1984, %v2322, 0.0
        %2324 = vadd.xlane.f32.xlu0 %v2323
        %v2325 = vpop.xlane.xlu0 %2324
        %v2326 = vrcp.pop %v2325
        %v2327 = vmul.f32 %v2322, %v2326
        %2328 = vrot.lane.b32.xlu0 %v1894, 64
        %v2329 = vpop.permute.xlu0 %2328
        %v2332 = vsel %vm1984, %v2327, 0
        %2334 = vmatprep.subr.mxu0 0.0
        %2335 = vmatpush1.msra.mxu0 %v2329
        %2336 = vmatprep.subr.mxu0 0.0
        %2337 = vmatpush1.msra.mxu0 0.0
        %2338 = vmatprep.subr.mxu0 0.0
        %2339 = vmatpush1.msra.mxu0 0.0
        %2340 = vmatprep.subr.mxu0 0.0
        %2341 = vmatpush1.msra.mxu0 0.0
        %2342 = vmatprep.subr.mxu0 0.0
        %2343 = vmatpush1.msra.mxu0 0.0
        %2344 = vmatprep.subr.mxu0 0.0
        %2345 = vmatpush1.msra.mxu0 0.0
        %2346 = vmatprep.subr.mxu0 0.0
        %2347 = vmatpush1.msra.mxu0 0.0
        %2348 = vmatprep.subr.mxu0 0.0
        %2349 = vmatpush1.msra.mxu0 0.0
        %2350 = vmatprep.subr.mxu0 0.0
        %2351 = vmatpush1.msra.mxu0 0.0
        %2352 = vmatprep.subr.mxu0 0.0
        %2353 = vmatpush1.msra.mxu0 0.0
        %2354 = vmatprep.subr.mxu0 0.0
        %2355 = vmatpush1.msra.mxu0 0.0
        %2356 = vmatprep.subr.mxu0 0.0
        %2357 = vmatpush1.msra.mxu0 0.0
        %2358 = vmatprep.subr.mxu0 0.0
        %2359 = vmatpush1.msra.mxu0 0.0
        %2360 = vmatprep.subr.mxu0 0.0
        %2361 = vmatpush1.msra.mxu0 0.0
        %2362 = vmatprep.subr.mxu0 0.0
        %2363 = vmatpush1.msra.mxu0 0.0
        %2364 = vmatprep.subr.mxu0 0.0
        %2365 = vmatpush1.msra.mxu0 0.0
        %2366 = vmatprep.subr.mxu0 0.0
        %2367 = vmatpush1.msra.mxu0 0.0
        %2368 = vmatprep.subr.mxu0 0.0
        %2369 = vmatpush1.msra.mxu0 0.0
        %2370 = vmatprep.subr.mxu0 0.0
        %2371 = vmatpush1.msra.mxu0 0.0
        %2372 = vmatprep.subr.mxu0 0.0
        %2373 = vmatpush1.msra.mxu0 0.0
        %2374 = vmatprep.subr.mxu0 0.0
        %2375 = vmatpush1.msra.mxu0 0.0
        %2376 = vmatprep.subr.mxu0 0.0
        %2377 = vmatpush1.msra.mxu0 0.0
        %2378 = vmatprep.subr.mxu0 0.0
        %2379 = vmatpush1.msra.mxu0 0.0
        %2380 = vmatprep.subr.mxu0 0.0
        %2381 = vmatpush1.msra.mxu0 0.0
        %2382 = vmatprep.subr.mxu0 0.0
        %2383 = vmatpush1.msra.mxu0 0.0
        %2384 = vmatprep.subr.mxu0 0.0
        %2385 = vmatpush1.msra.mxu0 0.0
        %2386 = vmatprep.subr.mxu0 0.0
        %2387 = vmatpush1.msra.mxu0 0.0
        %2388 = vmatprep.subr.mxu0 0.0
        %2389 = vmatpush1.msra.mxu0 0.0
        %2390 = vmatprep.subr.mxu0 0.0
        %2391 = vmatpush1.msra.mxu0 0.0
        %2392 = vmatprep.subr.mxu0 0.0
        %2393 = vmatpush1.msra.mxu0 0.0
        %2394 = vmatprep.subr.mxu0 0.0
        %2395 = vmatpush1.msra.mxu0 0.0
        %2396 = vmatprep.subr.mxu0 0.0
        %2397 = vmatpush1.msra.mxu0 0.0
        %2398 = vmatprep.mubr.f32.mxu0 0.0
        %2399 = vmatmul.mubr.f32.gmra.mrb[0].mxu0 %v2332
        %v2400 = vpop.f32.mrb[0].mxu0
        %v2401 = vadd.f32 0.0, %v2400
        %v2402 = vpop.f32.mrb[0].mxu0
        %2403 = vdwg.mxu0
        %2404 = vrot.lane.b32.xlu0 %v1817, 32
        %v2405 = vpop.permute.xlu0 %2404
        %2406 = vrot.lane.b32.xlu0 %v1819, 32
        %v2407 = vpop.permute.xlu0 %2406
        %v2408 = vsel %vm1905, %v2405, 0
        %v2410 = vsel %vm1905, %v2407, 0
        %2412 = vmatprep.subr.mxu0 0.0
        %2413 = vmatpush1.xpose.msra.mxu0 %v2410
        %2414 = vmatprep.subr.mxu0 0.0
        %2415 = vmatpush1.xpose.msra.mxu0 0.0
        %2416 = vmatprep.subr.mxu0 0.0
        %2417 = vmatpush1.xpose.msra.mxu0 0.0
        %2418 = vmatprep.subr.mxu0 0.0
        %2419 = vmatpush1.xpose.msra.mxu0 0.0
        %2420 = vmatprep.subr.mxu0 0.0
        %2421 = vmatpush1.xpose.msra.mxu0 0.0
        %2422 = vmatprep.subr.mxu0 0.0
        %2423 = vmatpush1.xpose.msra.mxu0 0.0
        %2424 = vmatprep.subr.mxu0 0.0
        %2425 = vmatpush1.xpose.msra.mxu0 0.0
        %2426 = vmatprep.subr.mxu0 0.0
        %2427 = vmatpush1.xpose.msra.mxu0 0.0
        %2428 = vmatprep.subr.mxu0 0.0
        %2429 = vmatpush1.xpose.msra.mxu0 0.0
        %2430 = vmatprep.subr.mxu0 0.0
        %2431 = vmatpush1.xpose.msra.mxu0 0.0
        %2432 = vmatprep.subr.mxu0 0.0
        %2433 = vmatpush1.xpose.msra.mxu0 0.0
        %2434 = vmatprep.subr.mxu0 0.0
        %2435 = vmatpush1.xpose.msra.mxu0 0.0
        %2436 = vmatprep.subr.mxu0 0.0
        %2437 = vmatpush1.xpose.msra.mxu0 0.0
        %2438 = vmatprep.subr.mxu0 0.0
        %2439 = vmatpush1.xpose.msra.mxu0 0.0
        %2440 = vmatprep.subr.mxu0 0.0
        %2441 = vmatpush1.xpose.msra.mxu0 0.0
        %2442 = vmatprep.subr.mxu0 0.0
        %2443 = vmatpush1.xpose.msra.mxu0 0.0
        %2444 = vmatprep.subr.mxu0 0.0
        %2445 = vmatpush1.xpose.msra.mxu0 0.0
        %2446 = vmatprep.subr.mxu0 0.0
        %2447 = vmatpush1.xpose.msra.mxu0 0.0
        %2448 = vmatprep.subr.mxu0 0.0
        %2449 = vmatpush1.xpose.msra.mxu0 0.0
        %2450 = vmatprep.subr.mxu0 0.0
        %2451 = vmatpush1.xpose.msra.mxu0 0.0
        %2452 = vmatprep.subr.mxu0 0.0
        %2453 = vmatpush1.xpose.msra.mxu0 0.0
        %2454 = vmatprep.subr.mxu0 0.0
        %2455 = vmatpush1.xpose.msra.mxu0 0.0
        %2456 = vmatprep.subr.mxu0 0.0
        %2457 = vmatpush1.xpose.msra.mxu0 0.0
        %2458 = vmatprep.subr.mxu0 0.0
        %2459 = vmatpush1.xpose.msra.mxu0 0.0
        %2460 = vmatprep.subr.mxu0 0.0
        %2461 = vmatpush1.xpose.msra.mxu0 0.0
        %2462 = vmatprep.subr.mxu0 0.0
        %2463 = vmatpush1.xpose.msra.mxu0 0.0
        %2464 = vmatprep.subr.mxu0 0.0
        %2465 = vmatpush1.xpose.msra.mxu0 0.0
        %2466 = vmatprep.subr.mxu0 0.0
        %2467 = vmatpush1.xpose.msra.mxu0 0.0
        %2468 = vmatprep.subr.mxu0 0.0
        %2469 = vmatpush1.xpose.msra.mxu0 0.0
        %2470 = vmatprep.subr.mxu0 0.0
        %2471 = vmatpush1.xpose.msra.mxu0 0.0
        %2472 = vmatprep.subr.mxu0 0.0
        %2473 = vmatpush1.xpose.msra.mxu0 0.0
        %2474 = vmatprep.subr.mxu0 0.0
        %2475 = vmatpush1.xpose.msra.mxu0 0.0
        %2476 = vmatprep.mubr.f32.mxu0 0.0
        %2477 = vmatmul.mubr.f32.gmra.mrb[0].mxu0 %v2408
        %v2478 = vpop.f32.mrb[0].mxu0
        %v2479 = vadd.f32 0.0, %v2478
        %v2480 = vpop.f32.mrb[0].mxu0
        %2481 = vdwg.mxu0
        %v2482 = vmul.f32 %v2479, 0.17677669
        %v2483 = vsel %vm1904, %v2482, -1e+30
        %v2484 = vsel %vm1984, %v2483, -inf
        %2485 = vmax.xlane.f32.xlu0 %v2484
        %v2486 = vpop.xlane.xlu0 %2485
        %v2487 = vsub.f32 %v2483, %v2486
        %v2488 = vmul.f32 %v2487, 1.442695
        %v2489 = vpow.pop %v2488
        %v2490 = vsel %vm1984, %v2489, 0.0
        %2491 = vadd.xlane.f32.xlu0 %v2490
        %v2492 = vpop.xlane.xlu0 %2491
        %v2493 = vrcp.pop %v2492
        %v2494 = vmul.f32 %v2489, %v2493
        %2495 = vrot.lane.b32.xlu0 %v1894, 32
        %v2496 = vpop.permute.xlu0 %2495
        %v2499 = vsel %vm1984, %v2494, 0
        %2501 = vmatprep.subr.mxu0 0.0
        %2502 = vmatpush1.msra.mxu0 %v2496
        %2503 = vmatprep.subr.mxu0 0.0
        %2504 = vmatpush1.msra.mxu0 0.0
        %2505 = vmatprep.subr.mxu0 0.0
        %2506 = vmatpush1.msra.mxu0 0.0
        %2507 = vmatprep.subr.mxu0 0.0
        %2508 = vmatpush1.msra.mxu0 0.0
        %2509 = vmatprep.subr.mxu0 0.0
        %2510 = vmatpush1.msra.mxu0 0.0
        %2511 = vmatprep.subr.mxu0 0.0
        %2512 = vmatpush1.msra.mxu0 0.0
        %2513 = vmatprep.subr.mxu0 0.0
        %2514 = vmatpush1.msra.mxu0 0.0
        %2515 = vmatprep.subr.mxu0 0.0
        %2516 = vmatpush1.msra.mxu0 0.0
        %2517 = vmatprep.subr.mxu0 0.0
        %2518 = vmatpush1.msra.mxu0 0.0
        %2519 = vmatprep.subr.mxu0 0.0
        %2520 = vmatpush1.msra.mxu0 0.0
        %2521 = vmatprep.subr.mxu0 0.0
        %2522 = vmatpush1.msra.mxu0 0.0
        %2523 = vmatprep.subr.mxu0 0.0
        %2524 = vmatpush1.msra.mxu0 0.0
        %2525 = vmatprep.subr.mxu0 0.0
        %2526 = vmatpush1.msra.mxu0 0.0
        %2527 = vmatprep.subr.mxu0 0.0
        %2528 = vmatpush1.msra.mxu0 0.0
        %2529 = vmatprep.subr.mxu0 0.0
        %2530 = vmatpush1.msra.mxu0 0.0
        %2531 = vmatprep.subr.mxu0 0.0
        %2532 = vmatpush1.msra.mxu0 0.0
        %2533 = vmatprep.subr.mxu0 0.0
        %2534 = vmatpush1.msra.mxu0 0.0
        %2535 = vmatprep.subr.mxu0 0.0
        %2536 = vmatpush1.msra.mxu0 0.0
        %2537 = vmatprep.subr.mxu0 0.0
        %2538 = vmatpush1.msra.mxu0 0.0
        %2539 = vmatprep.subr.mxu0 0.0
        %2540 = vmatpush1.msra.mxu0 0.0
        %2541 = vmatprep.subr.mxu0 0.0
        %2542 = vmatpush1.msra.mxu0 0.0
        %2543 = vmatprep.subr.mxu0 0.0
        %2544 = vmatpush1.msra.mxu0 0.0
        %2545 = vmatprep.subr.mxu0 0.0
        %2546 = vmatpush1.msra.mxu0 0.0
        %2547 = vmatprep.subr.mxu0 0.0
        %2548 = vmatpush1.msra.mxu0 0.0
        %2549 = vmatprep.subr.mxu0 0.0
        %2550 = vmatpush1.msra.mxu0 0.0
        %2551 = vmatprep.subr.mxu0 0.0
        %2552 = vmatpush1.msra.mxu0 0.0
        %2553 = vmatprep.subr.mxu0 0.0
        %2554 = vmatpush1.msra.mxu0 0.0
        %2555 = vmatprep.subr.mxu0 0.0
        %2556 = vmatpush1.msra.mxu0 0.0
        %2557 = vmatprep.subr.mxu0 0.0
        %2558 = vmatpush1.msra.mxu0 0.0
        %2559 = vmatprep.subr.mxu0 0.0
        %2560 = vmatpush1.msra.mxu0 0.0
        %2561 = vmatprep.subr.mxu0 0.0
        %2562 = vmatpush1.msra.mxu0 0.0
        %2563 = vmatprep.subr.mxu0 0.0
        %2564 = vmatpush1.msra.mxu0 0.0
        %2565 = vmatprep.mubr.f32.mxu0 0.0
        %2566 = vmatmul.mubr.f32.gmra.mrb[0].mxu0 %v2499
        %v2567 = vpop.f32.mrb[0].mxu0
        %v2568 = vadd.f32 0.0, %v2567
        %v2569 = vpop.f32.mrb[0].mxu0
        %2570 = vdwg.mxu0
        %2572 = vrot.lane.b32.xlu0 %v2234, 32
        %v2573 = vpop.permute.xlu0 %2572
        %2576 = vrot.lane.b32.xlu0 %v2401, 64
        %v2577 = vpop.permute.xlu0 %2576
        %2580 = vrot.lane.b32.xlu0 %v2568, 96
        %v2581 = vpop.permute.xlu0 %2580
        %v2583 = vsel %vm1905, %v2066, %v2573
        %vm2584 = vcmask 523264
        %v2585 = vsel %vm2584, %v2583, %v2577
        %vm2586 = vcmask 785408
        %v2587 = vsel %vm2586, %v2585, %v2581
        %v2589 = vsel %vm1905, %v1823, 0
        %v2592 = vsel %vm1905, %v1825, 0
        %2594 = vmatprep.subr.mxu0 0.0
        %2595 = vmatpush1.xpose.msra.mxu0 %v2592
        %2596 = vmatprep.subr.mxu0 0.0
        %2597 = vmatpush1.xpose.msra.mxu0 0.0
        %2598 = vmatprep.subr.mxu0 0.0
        %2599 = vmatpush1.xpose.msra.mxu0 0.0
        %2600 = vmatprep.subr.mxu0 0.0
        %2601 = vmatpush1.xpose.msra.mxu0 0.0
        %2602 = vmatprep.subr.mxu0 0.0
        %2603 = vmatpush1.xpose.msra.mxu0 0.0
        %2604 = vmatprep.subr.mxu0 0.0
        %2605 = vmatpush1.xpose.msra.mxu0 0.0
        %2606 = vmatprep.subr.mxu0 0.0
        %2607 = vmatpush1.xpose.msra.mxu0 0.0
        %2608 = vmatprep.subr.mxu0 0.0
        %2609 = vmatpush1.xpose.msra.mxu0 0.0
        %2610 = vmatprep.subr.mxu0 0.0
        %2611 = vmatpush1.xpose.msra.mxu0 0.0
        %2612 = vmatprep.subr.mxu0 0.0
        %2613 = vmatpush1.xpose.msra.mxu0 0.0
        %2614 = vmatprep.subr.mxu0 0.0
        %2615 = vmatpush1.xpose.msra.mxu0 0.0
        %2616 = vmatprep.subr.mxu0 0.0
        %2617 = vmatpush1.xpose.msra.mxu0 0.0
        %2618 = vmatprep.subr.mxu0 0.0
        %2619 = vmatpush1.xpose.msra.mxu0 0.0
        %2620 = vmatprep.subr.mxu0 0.0
        %2621 = vmatpush1.xpose.msra.mxu0 0.0
        %2622 = vmatprep.subr.mxu0 0.0
        %2623 = vmatpush1.xpose.msra.mxu0 0.0
        %2624 = vmatprep.subr.mxu0 0.0
        %2625 = vmatpush1.xpose.msra.mxu0 0.0
        %2626 = vmatprep.subr.mxu0 0.0
        %2627 = vmatpush1.xpose.msra.mxu0 0.0
        %2628 = vmatprep.subr.mxu0 0.0
        %2629 = vmatpush1.xpose.msra.mxu0 0.0
        %2630 = vmatprep.subr.mxu0 0.0
        %2631 = vmatpush1.xpose.msra.mxu0 0.0
        %2632 = vmatprep.subr.mxu0 0.0
        %2633 = vmatpush1.xpose.msra.mxu0 0.0
        %2634 = vmatprep.subr.mxu0 0.0
        %2635 = vmatpush1.xpose.msra.mxu0 0.0
        %2636 = vmatprep.subr.mxu0 0.0
        %2637 = vmatpush1.xpose.msra.mxu0 0.0
        %2638 = vmatprep.subr.mxu0 0.0
        %2639 = vmatpush1.xpose.msra.mxu0 0.0
        %2640 = vmatprep.subr.mxu0 0.0
        %2641 = vmatpush1.xpose.msra.mxu0 0.0
        %2642 = vmatprep.subr.mxu0 0.0
        %2643 = vmatpush1.xpose.msra.mxu0 0.0
        %2644 = vmatprep.subr.mxu0 0.0
        %2645 = vmatpush1.xpose.msra.mxu0 0.0
        %2646 = vmatprep.subr.mxu0 0.0
        %2647 = vmatpush1.xpose.msra.mxu0 0.0
        %2648 = vmatprep.subr.mxu0 0.0
        %2649 = vmatpush1.xpose.msra.mxu0 0.0
        %2650 = vmatprep.subr.mxu0 0.0
        %2651 = vmatpush1.xpose.msra.mxu0 0.0
        %2652 = vmatprep.subr.mxu0 0.0
        %2653 = vmatpush1.xpose.msra.mxu0 0.0
        %2654 = vmatprep.subr.mxu0 0.0
        %2655 = vmatpush1.xpose.msra.mxu0 0.0
        %2656 = vmatprep.subr.mxu0 0.0
        %2657 = vmatpush1.xpose.msra.mxu0 0.0
        %2658 = vmatprep.mubr.f32.mxu0 0.0
        %2659 = vmatmul.mubr.f32.gmra.mrb[0].mxu0 %v2589
        %v2660 = vpop.f32.mrb[0].mxu0
        %v2661 = vadd.f32 0.0, %v2660
        %v2662 = vpop.f32.mrb[0].mxu0
        %2663 = vdwg.mxu0
        %v2664 = vmul.f32 %v2661, 0.17677669
        %v2665 = vsel %vm1904, %v2664, -1e+30
        %v2666 = vsel %vm1984, %v2665, -inf
        %2667 = vmax.xlane.f32.xlu0 %v2666
        %v2668 = vpop.xlane.xlu0 %2667
        %v2669 = vsub.f32 %v2665, %v2668
        %v2670 = vmul.f32 %v2669, 1.442695
        %v2671 = vpow.pop %v2670
        %v2672 = vsel %vm1984, %v2671, 0.0
        %2673 = vadd.xlane.f32.xlu0 %v2672
        %v2674 = vpop.xlane.xlu0 %2673
        %v2675 = vrcp.pop %v2674
        %v2676 = vmul.f32 %v2671, %v2675
        %v2678 = vsel %vm1984, %v2676, 0
        %2680 = vmatprep.subr.mxu0 0.0
        %2681 = vmatpush1.msra.mxu0 %v1899
        %2682 = vmatprep.subr.mxu0 0.0
        %2683 = vmatpush1.msra.mxu0 0.0
        %2684 = vmatprep.subr.mxu0 0.0
        %2685 = vmatpush1.msra.mxu0 0.0
        %2686 = vmatprep.subr.mxu0 0.0
        %2687 = vmatpush1.msra.mxu0 0.0
        %2688 = vmatprep.subr.mxu0 0.0
        %2689 = vmatpush1.msra.mxu0 0.0
        %2690 = vmatprep.subr.mxu0 0.0
        %2691 = vmatpush1.msra.mxu0 0.0
        %2692 = vmatprep.subr.mxu0 0.0
        %2693 = vmatpush1.msra.mxu0 0.0
        %2694 = vmatprep.subr.mxu0 0.0
        %2695 = vmatpush1.msra.mxu0 0.0
        %2696 = vmatprep.subr.mxu0 0.0
        %2697 = vmatpush1.msra.mxu0 0.0
        %2698 = vmatprep.subr.mxu0 0.0
        %2699 = vmatpush1.msra.mxu0 0.0
        %2700 = vmatprep.subr.mxu0 0.0
        %2701 = vmatpush1.msra.mxu0 0.0
        %2702 = vmatprep.subr.mxu0 0.0
        %2703 = vmatpush1.msra.mxu0 0.0
        %2704 = vmatprep.subr.mxu0 0.0
        %2705 = vmatpush1.msra.mxu0 0.0
        %2706 = vmatprep.subr.mxu0 0.0
        %2707 = vmatpush1.msra.mxu0 0.0
        %2708 = vmatprep.subr.mxu0 0.0
        %2709 = vmatpush1.msra.mxu0 0.0
        %2710 = vmatprep.subr.mxu0 0.0
        %2711 = vmatpush1.msra.mxu0 0.0
        %2712 = vmatprep.subr.mxu0 0.0
        %2713 = vmatpush1.msra.mxu0 0.0
        %2714 = vmatprep.subr.mxu0 0.0
        %2715 = vmatpush1.msra.mxu0 0.0
        %2716 = vmatprep.subr.mxu0 0.0
        %2717 = vmatpush1.msra.mxu0 0.0
        %2718 = vmatprep.subr.mxu0 0.0
        %2719 = vmatpush1.msra.mxu0 0.0
        %2720 = vmatprep.subr.mxu0 0.0
        %2721 = vmatpush1.msra.mxu0 0.0
        %2722 = vmatprep.subr.mxu0 0.0
        %2723 = vmatpush1.msra.mxu0 0.0
        %2724 = vmatprep.subr.mxu0 0.0
        %2725 = vmatpush1.msra.mxu0 0.0
        %2726 = vmatprep.subr.mxu0 0.0
        %2727 = vmatpush1.msra.mxu0 0.0
        %2728 = vmatprep.subr.mxu0 0.0
        %2729 = vmatpush1.msra.mxu0 0.0
        %2730 = vmatprep.subr.mxu0 0.0
        %2731 = vmatpush1.msra.mxu0 0.0
        %2732 = vmatprep.subr.mxu0 0.0
        %2733 = vmatpush1.msra.mxu0 0.0
        %2734 = vmatprep.subr.mxu0 0.0
        %2735 = vmatpush1.msra.mxu0 0.0
        %2736 = vmatprep.subr.mxu0 0.0
        %2737 = vmatpush1.msra.mxu0 0.0
        %2738 = vmatprep.subr.mxu0 0.0
        %2739 = vmatpush1.msra.mxu0 0.0
        %2740 = vmatprep.subr.mxu0 0.0
        %2741 = vmatpush1.msra.mxu0 0.0
        %2742 = vmatprep.subr.mxu0 0.0
        %2743 = vmatpush1.msra.mxu0 0.0
        %2744 = vmatprep.mubr.f32.mxu0 0.0
        %2745 = vmatmul.mubr.f32.gmra.mrb[0].mxu0 %v2678
        %v2746 = vpop.f32.mrb[0].mxu0
        %v2747 = vadd.f32 0.0, %v2746
        %v2748 = vpop.f32.mrb[0].mxu0
        %2749 = vdwg.mxu0
        %2750 = vrot.lane.b32.xlu0 %v1823, 96
        %v2751 = vpop.permute.xlu0 %2750
        %2752 = vrot.lane.b32.xlu0 %v1825, 96
        %v2753 = vpop.permute.xlu0 %2752
        %v2754 = vsel %vm1905, %v2751, 0
        %v2756 = vsel %vm1905, %v2753, 0
        %2758 = vmatprep.subr.mxu0 0.0
        %2759 = vmatpush1.xpose.msra.mxu0 %v2756
        %2760 = vmatprep.subr.mxu0 0.0
        %2761 = vmatpush1.xpose.msra.mxu0 0.0
        %2762 = vmatprep.subr.mxu0 0.0
        %2763 = vmatpush1.xpose.msra.mxu0 0.0
        %2764 = vmatprep.subr.mxu0 0.0
        %2765 = vmatpush1.xpose.msra.mxu0 0.0
        %2766 = vmatprep.subr.mxu0 0.0
        %2767 = vmatpush1.xpose.msra.mxu0 0.0
        %2768 = vmatprep.subr.mxu0 0.0
        %2769 = vmatpush1.xpose.msra.mxu0 0.0
        %2770 = vmatprep.subr.mxu0 0.0
        %2771 = vmatpush1.xpose.msra.mxu0 0.0
        %2772 = vmatprep.subr.mxu0 0.0
        %2773 = vmatpush1.xpose.msra.mxu0 0.0
        %2774 = vmatprep.subr.mxu0 0.0
        %2775 = vmatpush1.xpose.msra.mxu0 0.0
        %2776 = vmatprep.subr.mxu0 0.0
        %2777 = vmatpush1.xpose.msra.mxu0 0.0
        %2778 = vmatprep.subr.mxu0 0.0
        %2779 = vmatpush1.xpose.msra.mxu0 0.0
        %2780 = vmatprep.subr.mxu0 0.0
        %2781 = vmatpush1.xpose.msra.mxu0 0.0
        %2782 = vmatprep.subr.mxu0 0.0
        %2783 = vmatpush1.xpose.msra.mxu0 0.0
        %2784 = vmatprep.subr.mxu0 0.0
        %2785 = vmatpush1.xpose.msra.mxu0 0.0
        %2786 = vmatprep.subr.mxu0 0.0
        %2787 = vmatpush1.xpose.msra.mxu0 0.0
        %2788 = vmatprep.subr.mxu0 0.0
        %2789 = vmatpush1.xpose.msra.mxu0 0.0
        %2790 = vmatprep.subr.mxu0 0.0
        %2791 = vmatpush1.xpose.msra.mxu0 0.0
        %2792 = vmatprep.subr.mxu0 0.0
        %2793 = vmatpush1.xpose.msra.mxu0 0.0
        %2794 = vmatprep.subr.mxu0 0.0
        %2795 = vmatpush1.xpose.msra.mxu0 0.0
        %2796 = vmatprep.subr.mxu0 0.0
        %2797 = vmatpush1.xpose.msra.mxu0 0.0
        %2798 = vmatprep.subr.mxu0 0.0
        %2799 = vmatpush1.xpose.msra.mxu0 0.0
        %2800 = vmatprep.subr.mxu0 0.0
        %2801 = vmatpush1.xpose.msra.mxu0 0.0
        %2802 = vmatprep.subr.mxu0 0.0
        %2803 = vmatpush1.xpose.msra.mxu0 0.0
        %2804 = vmatprep.subr.mxu0 0.0
        %2805 = vmatpush1.xpose.msra.mxu0 0.0
        %2806 = vmatprep.subr.mxu0 0.0
        %2807 = vmatpush1.xpose.msra.mxu0 0.0
        %2808 = vmatprep.subr.mxu0 0.0
        %2809 = vmatpush1.xpose.msra.mxu0 0.0
        %2810 = vmatprep.subr.mxu0 0.0
        %2811 = vmatpush1.xpose.msra.mxu0 0.0
        %2812 = vmatprep.subr.mxu0 0.0
        %2813 = vmatpush1.xpose.msra.mxu0 0.0
        %2814 = vmatprep.subr.mxu0 0.0
        %2815 = vmatpush1.xpose.msra.mxu0 0.0
        %2816 = vmatprep.subr.mxu0 0.0
        %2817 = vmatpush1.xpose.msra.mxu0 0.0
        %2818 = vmatprep.subr.mxu0 0.0
        %2819 = vmatpush1.xpose.msra.mxu0 0.0
        %2820 = vmatprep.subr.mxu0 0.0
        %2821 = vmatpush1.xpose.msra.mxu0 0.0
        %2822 = vmatprep.mubr.f32.mxu0 0.0
        %2823 = vmatmul.mubr.f32.gmra.mrb[0].mxu0 %v2754
        %v2824 = vpop.f32.mrb[0].mxu0
        %v2825 = vadd.f32 0.0, %v2824
        %v2826 = vpop.f32.mrb[0].mxu0
        %2827 = vdwg.mxu0
        %v2828 = vmul.f32 %v2825, 0.17677669
        %v2829 = vsel %vm1904, %v2828, -1e+30
        %v2830 = vsel %vm1984, %v2829, -inf
        %2831 = vmax.xlane.f32.xlu0 %v2830
        %v2832 = vpop.xlane.xlu0 %2831
        %v2833 = vsub.f32 %v2829, %v2832
        %v2834 = vmul.f32 %v2833, 1.442695
        %v2835 = vpow.pop %v2834
        %v2836 = vsel %vm1984, %v2835, 0.0
        %2837 = vadd.xlane.f32.xlu0 %v2836
        %v2838 = vpop.xlane.xlu0 %2837
        %v2839 = vrcp.pop %v2838
        %v2840 = vmul.f32 %v2835, %v2839
        %2842 = vrot.lane.b32.xlu0 %v1899, 96
        %v2843 = vpop.permute.xlu0 %2842
        %v2846 = vsel %vm1984, %v2840, 0
        %2848 = vmatprep.subr.mxu0 0.0
        %2849 = vmatpush1.msra.mxu0 %v2843
        %2850 = vmatprep.subr.mxu0 0.0
        %2851 = vmatpush1.msra.mxu0 0.0
        %2852 = vmatprep.subr.mxu0 0.0
        %2853 = vmatpush1.msra.mxu0 0.0
        %2854 = vmatprep.subr.mxu0 0.0
        %2855 = vmatpush1.msra.mxu0 0.0
        %2856 = vmatprep.subr.mxu0 0.0
        %2857 = vmatpush1.msra.mxu0 0.0
        %2858 = vmatprep.subr.mxu0 0.0
        %2859 = vmatpush1.msra.mxu0 0.0
        %2860 = vmatprep.subr.mxu0 0.0
        %2861 = vmatpush1.msra.mxu0 0.0
        %2862 = vmatprep.subr.mxu0 0.0
        %2863 = vmatpush1.msra.mxu0 0.0
        %2864 = vmatprep.subr.mxu0 0.0
        %2865 = vmatpush1.msra.mxu0 0.0
        %2866 = vmatprep.subr.mxu0 0.0
        %2867 = vmatpush1.msra.mxu0 0.0
        %2868 = vmatprep.subr.mxu0 0.0
        %2869 = vmatpush1.msra.mxu0 0.0
        %2870 = vmatprep.subr.mxu0 0.0
        %2871 = vmatpush1.msra.mxu0 0.0
        %2872 = vmatprep.subr.mxu0 0.0
        %2873 = vmatpush1.msra.mxu0 0.0
        %2874 = vmatprep.subr.mxu0 0.0
        %2875 = vmatpush1.msra.mxu0 0.0
        %2876 = vmatprep.subr.mxu0 0.0
        %2877 = vmatpush1.msra.mxu0 0.0
        %2878 = vmatprep.subr.mxu0 0.0
        %2879 = vmatpush1.msra.mxu0 0.0
        %2880 = vmatprep.subr.mxu0 0.0
        %2881 = vmatpush1.msra.mxu0 0.0
        %2882 = vmatprep.subr.mxu0 0.0
        %2883 = vmatpush1.msra.mxu0 0.0
        %2884 = vmatprep.subr.mxu0 0.0
        %2885 = vmatpush1.msra.mxu0 0.0
        %2886 = vmatprep.subr.mxu0 0.0
        %2887 = vmatpush1.msra.mxu0 0.0
        %2888 = vmatprep.subr.mxu0 0.0
        %2889 = vmatpush1.msra.mxu0 0.0
        %2890 = vmatprep.subr.mxu0 0.0
        %2891 = vmatpush1.msra.mxu0 0.0
        %2892 = vmatprep.subr.mxu0 0.0
        %2893 = vmatpush1.msra.mxu0 0.0
        %2894 = vmatprep.subr.mxu0 0.0
        %2895 = vmatpush1.msra.mxu0 0.0
        %2896 = vmatprep.subr.mxu0 0.0
        %2897 = vmatpush1.msra.mxu0 0.0
        %2898 = vmatprep.subr.mxu0 0.0
        %2899 = vmatpush1.msra.mxu0 0.0
        %2900 = vmatprep.subr.mxu0 0.0
        %2901 = vmatpush1.msra.mxu0 0.0
        %2902 = vmatprep.subr.mxu0 0.0
        %2903 = vmatpush1.msra.mxu0 0.0
        %2904 = vmatprep.subr.mxu0 0.0
        %2905 = vmatpush1.msra.mxu0 0.0
        %2906 = vmatprep.subr.mxu0 0.0
        %2907 = vmatpush1.msra.mxu0 0.0
        %2908 = vmatprep.subr.mxu0 0.0
        %2909 = vmatpush1.msra.mxu0 0.0
        %2910 = vmatprep.subr.mxu0 0.0
        %2911 = vmatpush1.msra.mxu0 0.0
        %2912 = vmatprep.mubr.f32.mxu0 0.0
        %2913 = vmatmul.mubr.f32.gmra.mrb[0].mxu0 %v2846
        %v2914 = vpop.f32.mrb[0].mxu0
        %v2915 = vadd.f32 0.0, %v2914
        %v2916 = vpop.f32.mrb[0].mxu0
        %2917 = vdwg.mxu0
        %2918 = vrot.lane.b32.xlu0 %v1823, 64
        %v2919 = vpop.permute.xlu0 %2918
        %2920 = vrot.lane.b32.xlu0 %v1825, 64
        %v2921 = vpop.permute.xlu0 %2920
        %v2922 = vsel %vm1905, %v2919, 0
        %v2924 = vsel %vm1905, %v2921, 0
        %2926 = vmatprep.subr.mxu0 0.0
        %2927 = vmatpush1.xpose.msra.mxu0 %v2924
        %2928 = vmatprep.subr.mxu0 0.0
        %2929 = vmatpush1.xpose.msra.mxu0 0.0
        %2930 = vmatprep.subr.mxu0 0.0
        %2931 = vmatpush1.xpose.msra.mxu0 0.0
        %2932 = vmatprep.subr.mxu0 0.0
        %2933 = vmatpush1.xpose.msra.mxu0 0.0
        %2934 = vmatprep.subr.mxu0 0.0
        %2935 = vmatpush1.xpose.msra.mxu0 0.0
        %2936 = vmatprep.subr.mxu0 0.0
        %2937 = vmatpush1.xpose.msra.mxu0 0.0
        %2938 = vmatprep.subr.mxu0 0.0
        %2939 = vmatpush1.xpose.msra.mxu0 0.0
        %2940 = vmatprep.subr.mxu0 0.0
        %2941 = vmatpush1.xpose.msra.mxu0 0.0
        %2942 = vmatprep.subr.mxu0 0.0
        %2943 = vmatpush1.xpose.msra.mxu0 0.0
        %2944 = vmatprep.subr.mxu0 0.0
        %2945 = vmatpush1.xpose.msra.mxu0 0.0
        %2946 = vmatprep.subr.mxu0 0.0
        %2947 = vmatpush1.xpose.msra.mxu0 0.0
        %2948 = vmatprep.subr.mxu0 0.0
        %2949 = vmatpush1.xpose.msra.mxu0 0.0
        %2950 = vmatprep.subr.mxu0 0.0
        %2951 = vmatpush1.xpose.msra.mxu0 0.0
        %2952 = vmatprep.subr.mxu0 0.0
        %2953 = vmatpush1.xpose.msra.mxu0 0.0
        %2954 = vmatprep.subr.mxu0 0.0
        %2955 = vmatpush1.xpose.msra.mxu0 0.0
        %2956 = vmatprep.subr.mxu0 0.0
        %2957 = vmatpush1.xpose.msra.mxu0 0.0
        %2958 = vmatprep.subr.mxu0 0.0
        %2959 = vmatpush1.xpose.msra.mxu0 0.0
        %2960 = vmatprep.subr.mxu0 0.0
        %2961 = vmatpush1.xpose.msra.mxu0 0.0
        %2962 = vmatprep.subr.mxu0 0.0
        %2963 = vmatpush1.xpose.msra.mxu0 0.0
        %2964 = vmatprep.subr.mxu0 0.0
        %2965 = vmatpush1.xpose.msra.mxu0 0.0
        %2966 = vmatprep.subr.mxu0 0.0
        %2967 = vmatpush1.xpose.msra.mxu0 0.0
        %2968 = vmatprep.subr.mxu0 0.0
        %2969 = vmatpush1.xpose.msra.mxu0 0.0
        %2970 = vmatprep.subr.mxu0 0.0
        %2971 = vmatpush1.xpose.msra.mxu0 0.0
        %2972 = vmatprep.subr.mxu0 0.0
        %2973 = vmatpush1.xpose.msra.mxu0 0.0
        %2974 = vmatprep.subr.mxu0 0.0
        %2975 = vmatpush1.xpose.msra.mxu0 0.0
        %2976 = vmatprep.subr.mxu0 0.0
        %2977 = vmatpush1.xpose.msra.mxu0 0.0
        %2978 = vmatprep.subr.mxu0 0.0
        %2979 = vmatpush1.xpose.msra.mxu0 0.0
        %2980 = vmatprep.subr.mxu0 0.0
        %2981 = vmatpush1.xpose.msra.mxu0 0.0
        %2982 = vmatprep.subr.mxu0 0.0
        %2983 = vmatpush1.xpose.msra.mxu0 0.0
        %2984 = vmatprep.subr.mxu0 0.0
        %2985 = vmatpush1.xpose.msra.mxu0 0.0
        %2986 = vmatprep.subr.mxu0 0.0
        %2987 = vmatpush1.xpose.msra.mxu0 0.0
        %2988 = vmatprep.subr.mxu0 0.0
        %2989 = vmatpush1.xpose.msra.mxu0 0.0
        %2990 = vmatprep.mubr.f32.mxu0 0.0
        %2991 = vmatmul.mubr.f32.gmra.mrb[0].mxu0 %v2922
        %v2992 = vpop.f32.mrb[0].mxu0
        %v2993 = vadd.f32 0.0, %v2992
        %v2994 = vpop.f32.mrb[0].mxu0
        %2995 = vdwg.mxu0
        %v2996 = vmul.f32 %v2993, 0.17677669
        %v2997 = vsel %vm1904, %v2996, -1e+30
        %v2998 = vsel %vm1984, %v2997, -inf
        %2999 = vmax.xlane.f32.xlu0 %v2998
        %v3000 = vpop.xlane.xlu0 %2999
        %v3001 = vsub.f32 %v2997, %v3000
        %v3002 = vmul.f32 %v3001, 1.442695
        %v3003 = vpow.pop %v3002
        %v3004 = vsel %vm1984, %v3003, 0.0
        %3005 = vadd.xlane.f32.xlu0 %v3004
        %v3006 = vpop.xlane.xlu0 %3005
        %v3007 = vrcp.pop %v3006
        %v3008 = vmul.f32 %v3003, %v3007
        %3009 = vrot.lane.b32.xlu0 %v1899, 64
        %v3010 = vpop.permute.xlu0 %3009
        %v3013 = vsel %vm1984, %v3008, 0
        %3015 = vmatprep.subr.mxu0 0.0
        %3016 = vmatpush1.msra.mxu0 %v3010
        %3017 = vmatprep.subr.mxu0 0.0
        %3018 = vmatpush1.msra.mxu0 0.0
        %3019 = vmatprep.subr.mxu0 0.0
        %3020 = vmatpush1.msra.mxu0 0.0
        %3021 = vmatprep.subr.mxu0 0.0
        %3022 = vmatpush1.msra.mxu0 0.0
        %3023 = vmatprep.subr.mxu0 0.0
        %3024 = vmatpush1.msra.mxu0 0.0
        %3025 = vmatprep.subr.mxu0 0.0
        %3026 = vmatpush1.msra.mxu0 0.0
        %3027 = vmatprep.subr.mxu0 0.0
        %3028 = vmatpush1.msra.mxu0 0.0
        %3029 = vmatprep.subr.mxu0 0.0
        %3030 = vmatpush1.msra.mxu0 0.0
        %3031 = vmatprep.subr.mxu0 0.0
        %3032 = vmatpush1.msra.mxu0 0.0
        %3033 = vmatprep.subr.mxu0 0.0
        %3034 = vmatpush1.msra.mxu0 0.0
        %3035 = vmatprep.subr.mxu0 0.0
        %3036 = vmatpush1.msra.mxu0 0.0
        %3037 = vmatprep.subr.mxu0 0.0
        %3038 = vmatpush1.msra.mxu0 0.0
        %3039 = vmatprep.subr.mxu0 0.0
        %3040 = vmatpush1.msra.mxu0 0.0
        %3041 = vmatprep.subr.mxu0 0.0
        %3042 = vmatpush1.msra.mxu0 0.0
        %3043 = vmatprep.subr.mxu0 0.0
        %3044 = vmatpush1.msra.mxu0 0.0
        %3045 = vmatprep.subr.mxu0 0.0
        %3046 = vmatpush1.msra.mxu0 0.0
        %3047 = vmatprep.subr.mxu0 0.0
        %3048 = vmatpush1.msra.mxu0 0.0
        %3049 = vmatprep.subr.mxu0 0.0
        %3050 = vmatpush1.msra.mxu0 0.0
        %3051 = vmatprep.subr.mxu0 0.0
        %3052 = vmatpush1.msra.mxu0 0.0
        %3053 = vmatprep.subr.mxu0 0.0
        %3054 = vmatpush1.msra.mxu0 0.0
        %3055 = vmatprep.subr.mxu0 0.0
        %3056 = vmatpush1.msra.mxu0 0.0
        %3057 = vmatprep.subr.mxu0 0.0
        %3058 = vmatpush1.msra.mxu0 0.0
        %3059 = vmatprep.subr.mxu0 0.0
        %3060 = vmatpush1.msra.mxu0 0.0
        %3061 = vmatprep.subr.mxu0 0.0
        %3062 = vmatpush1.msra.mxu0 0.0
        %3063 = vmatprep.subr.mxu0 0.0
        %3064 = vmatpush1.msra.mxu0 0.0
        %3065 = vmatprep.subr.mxu0 0.0
        %3066 = vmatpush1.msra.mxu0 0.0
        %3067 = vmatprep.subr.mxu0 0.0
        %3068 = vmatpush1.msra.mxu0 0.0
        %3069 = vmatprep.subr.mxu0 0.0
        %3070 = vmatpush1.msra.mxu0 0.0
        %3071 = vmatprep.subr.mxu0 0.0
        %3072 = vmatpush1.msra.mxu0 0.0
        %3073 = vmatprep.subr.mxu0 0.0
        %3074 = vmatpush1.msra.mxu0 0.0
        %3075 = vmatprep.subr.mxu0 0.0
        %3076 = vmatpush1.msra.mxu0 0.0
        %3077 = vmatprep.subr.mxu0 0.0
        %3078 = vmatpush1.msra.mxu0 0.0
        %3079 = vmatprep.mubr.f32.mxu0 0.0
        %3080 = vmatmul.mubr.f32.gmra.mrb[0].mxu0 %v3013
        %v3081 = vpop.f32.mrb[0].mxu0
        %v3082 = vadd.f32 0.0, %v3081
        %v3083 = vpop.f32.mrb[0].mxu0
        %3084 = vdwg.mxu0
        %3085 = vrot.lane.b32.xlu0 %v1823, 32
        %v3086 = vpop.permute.xlu0 %3085
        %3087 = vrot.lane.b32.xlu0 %v1825, 32
        %v3088 = vpop.permute.xlu0 %3087
        %v3089 = vsel %vm1905, %v3086, 0
        %v3091 = vsel %vm1905, %v3088, 0
        %3093 = vmatprep.subr.mxu0 0.0
        %3094 = vmatpush1.xpose.msra.mxu0 %v3091
        %3095 = vmatprep.subr.mxu0 0.0
        %3096 = vmatpush1.xpose.msra.mxu0 0.0
        %3097 = vmatprep.subr.mxu0 0.0
        %3098 = vmatpush1.xpose.msra.mxu0 0.0
        %3099 = vmatprep.subr.mxu0 0.0
        %3100 = vmatpush1.xpose.msra.mxu0 0.0
        %3101 = vmatprep.subr.mxu0 0.0
        %3102 = vmatpush1.xpose.msra.mxu0 0.0
        %3103 = vmatprep.subr.mxu0 0.0
        %3104 = vmatpush1.xpose.msra.mxu0 0.0
        %3105 = vmatprep.subr.mxu0 0.0
        %3106 = vmatpush1.xpose.msra.mxu0 0.0
        %3107 = vmatprep.subr.mxu0 0.0
        %3108 = vmatpush1.xpose.msra.mxu0 0.0
        %3109 = vmatprep.subr.mxu0 0.0
        %3110 = vmatpush1.xpose.msra.mxu0 0.0
        %3111 = vmatprep.subr.mxu0 0.0
        %3112 = vmatpush1.xpose.msra.mxu0 0.0
        %3113 = vmatprep.subr.mxu0 0.0
        %3114 = vmatpush1.xpose.msra.mxu0 0.0
        %3115 = vmatprep.subr.mxu0 0.0
        %3116 = vmatpush1.xpose.msra.mxu0 0.0
        %3117 = vmatprep.subr.mxu0 0.0
        %3118 = vmatpush1.xpose.msra.mxu0 0.0
        %3119 = vmatprep.subr.mxu0 0.0
        %3120 = vmatpush1.xpose.msra.mxu0 0.0
        %3121 = vmatprep.subr.mxu0 0.0
        %3122 = vmatpush1.xpose.msra.mxu0 0.0
        %3123 = vmatprep.subr.mxu0 0.0
        %3124 = vmatpush1.xpose.msra.mxu0 0.0
        %3125 = vmatprep.subr.mxu0 0.0
        %3126 = vmatpush1.xpose.msra.mxu0 0.0
        %3127 = vmatprep.subr.mxu0 0.0
        %3128 = vmatpush1.xpose.msra.mxu0 0.0
        %3129 = vmatprep.subr.mxu0 0.0
        %3130 = vmatpush1.xpose.msra.mxu0 0.0
        %3131 = vmatprep.subr.mxu0 0.0
        %3132 = vmatpush1.xpose.msra.mxu0 0.0
        %3133 = vmatprep.subr.mxu0 0.0
        %3134 = vmatpush1.xpose.msra.mxu0 0.0
        %3135 = vmatprep.subr.mxu0 0.0
        %3136 = vmatpush1.xpose.msra.mxu0 0.0
        %3137 = vmatprep.subr.mxu0 0.0
        %3138 = vmatpush1.xpose.msra.mxu0 0.0
        %3139 = vmatprep.subr.mxu0 0.0
        %3140 = vmatpush1.xpose.msra.mxu0 0.0
        %3141 = vmatprep.subr.mxu0 0.0
        %3142 = vmatpush1.xpose.msra.mxu0 0.0
        %3143 = vmatprep.subr.mxu0 0.0
        %3144 = vmatpush1.xpose.msra.mxu0 0.0
        %3145 = vmatprep.subr.mxu0 0.0
        %3146 = vmatpush1.xpose.msra.mxu0 0.0
        %3147 = vmatprep.subr.mxu0 0.0
        %3148 = vmatpush1.xpose.msra.mxu0 0.0
        %3149 = vmatprep.subr.mxu0 0.0
        %3150 = vmatpush1.xpose.msra.mxu0 0.0
        %3151 = vmatprep.subr.mxu0 0.0
        %3152 = vmatpush1.xpose.msra.mxu0 0.0
        %3153 = vmatprep.subr.mxu0 0.0
        %3154 = vmatpush1.xpose.msra.mxu0 0.0
        %3155 = vmatprep.subr.mxu0 0.0
        %3156 = vmatpush1.xpose.msra.mxu0 0.0
        %3157 = vmatprep.mubr.f32.mxu0 0.0
        %3158 = vmatmul.mubr.f32.gmra.mrb[0].mxu0 %v3089
        %v3159 = vpop.f32.mrb[0].mxu0
        %v3160 = vadd.f32 0.0, %v3159
        %v3161 = vpop.f32.mrb[0].mxu0
        %3162 = vdwg.mxu0
        %v3163 = vmul.f32 %v3160, 0.17677669
        %v3164 = vsel %vm1904, %v3163, -1e+30
        %v3165 = vsel %vm1984, %v3164, -inf
        %3166 = vmax.xlane.f32.xlu0 %v3165
        %v3167 = vpop.xlane.xlu0 %3166
        %v3168 = vsub.f32 %v3164, %v3167
        %v3169 = vmul.f32 %v3168, 1.442695
        %v3170 = vpow.pop %v3169
        %v3171 = vsel %vm1984, %v3170, 0.0
        %3172 = vadd.xlane.f32.xlu0 %v3171
        %v3173 = vpop.xlane.xlu0 %3172
        %v3174 = vrcp.pop %v3173
        %v3175 = vmul.f32 %v3170, %v3174
        %3176 = vrot.lane.b32.xlu0 %v1899, 32
        %v3177 = vpop.permute.xlu0 %3176
        %v3180 = vsel %vm1984, %v3175, 0
        %3182 = vmatprep.subr.mxu0 0.0
        %3183 = vmatpush1.msra.mxu0 %v3177
        %3184 = vmatprep.subr.mxu0 0.0
        %3185 = vmatpush1.msra.mxu0 0.0
        %3186 = vmatprep.subr.mxu0 0.0
        %3187 = vmatpush1.msra.mxu0 0.0
        %3188 = vmatprep.subr.mxu0 0.0
        %3189 = vmatpush1.msra.mxu0 0.0
        %3190 = vmatprep.subr.mxu0 0.0
        %3191 = vmatpush1.msra.mxu0 0.0
        %3192 = vmatprep.subr.mxu0 0.0
        %3193 = vmatpush1.msra.mxu0 0.0
        %3194 = vmatprep.subr.mxu0 0.0
        %3195 = vmatpush1.msra.mxu0 0.0
        %3196 = vmatprep.subr.mxu0 0.0
        %3197 = vmatpush1.msra.mxu0 0.0
        %3198 = vmatprep.subr.mxu0 0.0
        %3199 = vmatpush1.msra.mxu0 0.0
        %3200 = vmatprep.subr.mxu0 0.0
        %3201 = vmatpush1.msra.mxu0 0.0
        %3202 = vmatprep.subr.mxu0 0.0
        %3203 = vmatpush1.msra.mxu0 0.0
        %3204 = vmatprep.subr.mxu0 0.0
        %3205 = vmatpush1.msra.mxu0 0.0
        %3206 = vmatprep.subr.mxu0 0.0
        %3207 = vmatpush1.msra.mxu0 0.0
        %3208 = vmatprep.subr.mxu0 0.0
        %3209 = vmatpush1.msra.mxu0 0.0
        %3210 = vmatprep.subr.mxu0 0.0
        %3211 = vmatpush1.msra.mxu0 0.0
        %3212 = vmatprep.subr.mxu0 0.0
        %3213 = vmatpush1.msra.mxu0 0.0
        %3214 = vmatprep.subr.mxu0 0.0
        %3215 = vmatpush1.msra.mxu0 0.0
        %3216 = vmatprep.subr.mxu0 0.0
        %3217 = vmatpush1.msra.mxu0 0.0
        %3218 = vmatprep.subr.mxu0 0.0
        %3219 = vmatpush1.msra.mxu0 0.0
        %3220 = vmatprep.subr.mxu0 0.0
        %3221 = vmatpush1.msra.mxu0 0.0
        %3222 = vmatprep.subr.mxu0 0.0
        %3223 = vmatpush1.msra.mxu0 0.0
        %3224 = vmatprep.subr.mxu0 0.0
        %3225 = vmatpush1.msra.mxu0 0.0
        %3226 = vmatprep.subr.mxu0 0.0
        %3227 = vmatpush1.msra.mxu0 0.0
        %3228 = vmatprep.subr.mxu0 0.0
        %3229 = vmatpush1.msra.mxu0 0.0
        %3230 = vmatprep.subr.mxu0 0.0
        %3231 = vmatpush1.msra.mxu0 0.0
        %3232 = vmatprep.subr.mxu0 0.0
        %3233 = vmatpush1.msra.mxu0 0.0
        %3234 = vmatprep.subr.mxu0 0.0
        %3235 = vmatpush1.msra.mxu0 0.0
        %3236 = vmatprep.subr.mxu0 0.0
        %3237 = vmatpush1.msra.mxu0 0.0
        %3238 = vmatprep.subr.mxu0 0.0
        %3239 = vmatpush1.msra.mxu0 0.0
        %3240 = vmatprep.subr.mxu0 0.0
        %3241 = vmatpush1.msra.mxu0 0.0
        %3242 = vmatprep.subr.mxu0 0.0
        %3243 = vmatpush1.msra.mxu0 0.0
        %3244 = vmatprep.subr.mxu0 0.0
        %3245 = vmatpush1.msra.mxu0 0.0
        %3246 = vmatprep.mubr.f32.mxu0 0.0
        %3247 = vmatmul.mubr.f32.gmra.mrb[0].mxu0 %v3180
        %v3248 = vpop.f32.mrb[0].mxu0
        %v3249 = vadd.f32 0.0, %v3248
        %v3250 = vpop.f32.mrb[0].mxu0
        %3251 = vdwg.mxu0
        %3253 = vrot.lane.b32.xlu0 %v2915, 32
        %v3254 = vpop.permute.xlu0 %3253
        %3257 = vrot.lane.b32.xlu0 %v3082, 64
        %v3258 = vpop.permute.xlu0 %3257
        %3261 = vrot.lane.b32.xlu0 %v3249, 96
        %v3262 = vpop.permute.xlu0 %3261
        %v3264 = vsel %vm1905, %v2747, %v3254
        %v3265 = vsel %vm2584, %v3264, %v3258
        %v3266 = vsel %vm2586, %v3265, %v3262
        %v3267 = vld [vmem:[%s1106] sm:$0xff]
        %v3268 = vld [vmem:[%s1106 + $0x8] sm:$0xff]
        %v3269 = vld [vmem:[%s1106 + $0x10] sm:$0xff]
        %v3270 = vld [vmem:[%s1106 + $0x18] sm:$0xff]
        %v3271 = vld [vmem:[%s1106 + $0x20] sm:$0xff]
        %v3272 = vld [vmem:[%s1106 + $0x28] sm:$0xff]
        %v3273 = vld [vmem:[%s1106 + $0x30] sm:$0xff]
        %v3274 = vld [vmem:[%s1106 + $0x38] sm:$0xff]
        %v3275 = vld [vmem:[%s1106 + $0x40] sm:$0xff]
        %v3276 = vld [vmem:[%s1106 + $0x48] sm:$0xff]
        %v3277 = vld [vmem:[%s1106 + $0x50] sm:$0xff]
        %v3278 = vld [vmem:[%s1106 + $0x58] sm:$0xff]
        %v3279 = vld [vmem:[%s1106 + $0x60] sm:$0xff]
        %v3280 = vld [vmem:[%s1106 + $0x68] sm:$0xff]
        %v3281 = vld [vmem:[%s1106 + $0x70] sm:$0xff]
        %v3282 = vld [vmem:[%s1106 + $0x78] sm:$0xff]
        %3283 = vmatprep.subr.mxu0 0.0
        %3284 = vmatpush1.msra.mxu0 %v3267
        %3285 = vmatprep.subr.mxu0 0.0
        %3286 = vmatpush1.msra.mxu0 %v3268
        %3287 = vmatprep.subr.mxu0 0.0
        %3288 = vmatpush1.msra.mxu0 %v3269
        %3289 = vmatprep.subr.mxu0 0.0
        %3290 = vmatpush1.msra.mxu0 %v3270
        %3291 = vmatprep.subr.mxu0 0.0
        %3292 = vmatpush1.msra.mxu0 %v3271
        %3293 = vmatprep.subr.mxu0 0.0
        %3294 = vmatpush1.msra.mxu0 %v3272
        %3295 = vmatprep.subr.mxu0 0.0
        %3296 = vmatpush1.msra.mxu0 %v3273
        %3297 = vmatprep.subr.mxu0 0.0
        %3298 = vmatpush1.msra.mxu0 %v3274
        %3299 = vmatprep.subr.mxu0 0.0
        %3300 = vmatpush1.msra.mxu0 %v3275
        %3301 = vmatprep.subr.mxu0 0.0
        %3302 = vmatpush1.msra.mxu0 %v3276
        %3303 = vmatprep.subr.mxu0 0.0
        %3304 = vmatpush1.msra.mxu0 %v3277
        %3305 = vmatprep.subr.mxu0 0.0
        %3306 = vmatpush1.msra.mxu0 %v3278
        %3307 = vmatprep.subr.mxu0 0.0
        %3308 = vmatpush1.msra.mxu0 %v3279
        %3309 = vmatprep.subr.mxu0 0.0
        %3310 = vmatpush1.msra.mxu0 %v3280
        %3311 = vmatprep.subr.mxu0 0.0
        %3312 = vmatpush1.msra.mxu0 %v3281
        %3313 = vmatprep.subr.mxu0 0.0
        %3314 = vmatpush1.msra.mxu0 %v3282
        %3315 = vmatprep.subr.mxu0 0.0
        %3316 = vmatpush1.msra.mxu0 0.0
        %3317 = vmatprep.subr.mxu0 0.0
        %3318 = vmatpush1.msra.mxu0 0.0
        %3319 = vmatprep.subr.mxu0 0.0
        %3320 = vmatpush1.msra.mxu0 0.0
        %3321 = vmatprep.subr.mxu0 0.0
        %3322 = vmatpush1.msra.mxu0 0.0
        %3323 = vmatprep.subr.mxu0 0.0
        %3324 = vmatpush1.msra.mxu0 0.0
        %3325 = vmatprep.subr.mxu0 0.0
        %3326 = vmatpush1.msra.mxu0 0.0
        %3327 = vmatprep.subr.mxu0 0.0
        %3328 = vmatpush1.msra.mxu0 0.0
        %3329 = vmatprep.subr.mxu0 0.0
        %3330 = vmatpush1.msra.mxu0 0.0
        %3331 = vmatprep.subr.mxu0 0.0
        %3332 = vmatpush1.msra.mxu0 0.0
        %3333 = vmatprep.subr.mxu0 0.0
        %3334 = vmatpush1.msra.mxu0 0.0
        %3335 = vmatprep.subr.mxu0 0.0
        %3336 = vmatpush1.msra.mxu0 0.0
        %3337 = vmatprep.subr.mxu0 0.0
        %3338 = vmatpush1.msra.mxu0 0.0
        %3339 = vmatprep.subr.mxu0 0.0
        %3340 = vmatpush1.msra.mxu0 0.0
        %3341 = vmatprep.subr.mxu0 0.0
        %3342 = vmatpush1.msra.mxu0 0.0
        %3343 = vmatprep.subr.mxu0 0.0
        %3344 = vmatpush1.msra.mxu0 0.0
        %3345 = vmatprep.subr.mxu0 0.0
        %3346 = vmatpush1.msra.mxu0 0.0
        %3347 = vmatprep.mubr.f32.mxu0 0.0
        %3348 = vmatmul.mubr.f32.gmra.mrb[0].mxu0 %v2587
        %v3349 = vpop.f32.mrb[0].mxu0
        %v3350 = vadd.f32 0.0, %v3349
        %v3351 = vpop.f32.mrb[0].mxu0
        %3352 = vmatprep.mubr.f32.mxu0 0.0
        %3353 = vmatmul.mubr.f32.gmra.mrb[0].mxu0 %v3266
        %v3354 = vpop.f32.mrb[0].mxu0
        %v3355 = vadd.f32 0.0, %v3354
        %v3356 = vpop.f32.mrb[0].mxu0
        %3357 = vdwg.mxu0
        %v3358 = vadd.f32 %v1642, %v3350
        %v3359 = vadd.f32 %v1643, %v3355
        %v3360 = vld [vmem:[%s1114] sm:$0x1]
        %v3362 = vlaneseq
        %v3363 = vshrl.u32 %v3362, 7
        %v3364 = vsub.s32 0, %v3363
        %v3365 = vrot.slane %v3360, %v3364
        %v3367 = vadd.f32 %v3358, %v3365
        %v3368 = vadd.f32 %v3359, %v3365
        %v3369 = vld [vmem:[%s1122] sm:$0x1]
        %v3370 = vld [vmem:[%s1130] sm:$0x1]
        %3371 = vadd.xlane.f32.xlu0 %v3367
        %v3372 = vpop.xlane.xlu0 %3371
        %3373 = vadd.xlane.f32.xlu0 %v3368
        %v3374 = vpop.xlane.xlu0 %3373
        %v3375 = vmul.f32 %v3372, %v1650
        %v3376 = vmul.f32 %v3374, %v1650
        %v3377 = vsub.f32 %v3367, %v3375
        %v3378 = vsub.f32 %v3368, %v3376
        %v3379 = vmul.f32 %v3377, %v3377
        %v3380 = vmul.f32 %v3378, %v3378
        %3381 = vadd.xlane.f32.xlu0 %v3379
        %v3382 = vpop.xlane.xlu0 %3381
        %3383 = vadd.xlane.f32.xlu0 %v3380
        %v3384 = vpop.xlane.xlu0 %3383
        %v3385 = vmul.f32 %v3382, %v1650
        %v3386 = vmul.f32 %v3384, %v1650
        %v3387 = vadd.f32 %v3385, 1e-06
        %v3388 = vadd.f32 %v3386, 1e-06
        %v3389 = vrsqrt.pop %v3387
        %v3390 = vrsqrt.pop %v3388
        %v3391 = vmul.f32 %v3377, %v3389
        %v3392 = vmul.f32 %v3378, %v3390
        %v3394 = vlaneseq
        %v3395 = vshrl.u32 %v3394, 7
        %v3396 = vsub.s32 0, %v3395
        %v3397 = vrot.slane %v3369, %v3396
        %v3399 = vmul.f32 %v3391, %v3397
        %v3400 = vmul.f32 %v3392, %v3397
        %v3402 = vlaneseq
        %v3403 = vshrl.u32 %v3402, 7
        %v3404 = vsub.s32 0, %v3403
        %v3405 = vrot.slane %v3370, %v3404
        %v3407 = vadd.f32 %v3399, %v3405
        %v3408 = vadd.f32 %v3400, %v3405
        %v3409 = vld [vmem:[%s1294] sm:$0xff]
        %v3410 = vld [vmem:[%s1294 + $0x8] sm:$0xff]
        %v3411 = vld [vmem:[%s1294 + $0x10] sm:$0xff]
        %v3412 = vld [vmem:[%s1294 + $0x18] sm:$0xff]
        %v3413 = vld [vmem:[%s1294 + $0x20] sm:$0xff]
        %v3414 = vld [vmem:[%s1294 + $0x28] sm:$0xff]
        %v3415 = vld [vmem:[%s1294 + $0x30] sm:$0xff]
        %v3416 = vld [vmem:[%s1294 + $0x38] sm:$0xff]
        %v3417 = vld [vmem:[%s1294 + $0x40] sm:$0xff]
        %v3418 = vld [vmem:[%s1294 + $0x48] sm:$0xff]
        %v3419 = vld [vmem:[%s1294 + $0x50] sm:$0xff]
        %v3420 = vld [vmem:[%s1294 + $0x58] sm:$0xff]
        %v3421 = vld [vmem:[%s1294 + $0x60] sm:$0xff]
        %v3422 = vld [vmem:[%s1294 + $0x68] sm:$0xff]
        %v3423 = vld [vmem:[%s1294 + $0x70] sm:$0xff]
        %v3424 = vld [vmem:[%s1294 + $0x78] sm:$0xff]
        %v3425 = vld [vmem:[%s1294 + $0x80] sm:$0xff]
        %v3426 = vld [vmem:[%s1294 + $0x88] sm:$0xff]
        %v3427 = vld [vmem:[%s1294 + $0x90] sm:$0xff]
        %v3428 = vld [vmem:[%s1294 + $0x98] sm:$0xff]
        %v3429 = vld [vmem:[%s1294 + $0xa0] sm:$0xff]
        %v3430 = vld [vmem:[%s1294 + $0xa8] sm:$0xff]
        %v3431 = vld [vmem:[%s1294 + $0xb0] sm:$0xff]
        %v3432 = vld [vmem:[%s1294 + $0xb8] sm:$0xff]
        %v3433 = vld [vmem:[%s1294 + $0xc0] sm:$0xff]
        %v3434 = vld [vmem:[%s1294 + $0xc8] sm:$0xff]
        %v3435 = vld [vmem:[%s1294 + $0xd0] sm:$0xff]
        %v3436 = vld [vmem:[%s1294 + $0xd8] sm:$0xff]
        %v3437 = vld [vmem:[%s1294 + $0xe0] sm:$0xff]
        %v3438 = vld [vmem:[%s1294 + $0xe8] sm:$0xff]
        %v3439 = vld [vmem:[%s1294 + $0xf0] sm:$0xff]
        %v3440 = vld [vmem:[%s1294 + $0xf8] sm:$0xff]
        %v3441 = vld [vmem:[%s1294 + $0x100] sm:$0xff]
        %v3442 = vld [vmem:[%s1294 + $0x108] sm:$0xff]
        %v3443 = vld [vmem:[%s1294 + $0x110] sm:$0xff]
        %v3444 = vld [vmem:[%s1294 + $0x118] sm:$0xff]
        %v3445 = vld [vmem:[%s1294 + $0x120] sm:$0xff]
        %v3446 = vld [vmem:[%s1294 + $0x128] sm:$0xff]
        %v3447 = vld [vmem:[%s1294 + $0x130] sm:$0xff]
        %v3448 = vld [vmem:[%s1294 + $0x138] sm:$0xff]
        %v3449 = vld [vmem:[%s1294 + $0x140] sm:$0xff]
        %v3450 = vld [vmem:[%s1294 + $0x148] sm:$0xff]
        %v3451 = vld [vmem:[%s1294 + $0x150] sm:$0xff]
        %v3452 = vld [vmem:[%s1294 + $0x158] sm:$0xff]
        %v3453 = vld [vmem:[%s1294 + $0x160] sm:$0xff]
        %v3454 = vld [vmem:[%s1294 + $0x168] sm:$0xff]
        %v3455 = vld [vmem:[%s1294 + $0x170] sm:$0xff]
        %v3456 = vld [vmem:[%s1294 + $0x178] sm:$0xff]
        %v3457 = vld [vmem:[%s1294 + $0x180] sm:$0xff]
        %v3458 = vld [vmem:[%s1294 + $0x188] sm:$0xff]
        %v3459 = vld [vmem:[%s1294 + $0x190] sm:$0xff]
        %v3460 = vld [vmem:[%s1294 + $0x198] sm:$0xff]
        %v3461 = vld [vmem:[%s1294 + $0x1a0] sm:$0xff]
        %v3462 = vld [vmem:[%s1294 + $0x1a8] sm:$0xff]
        %v3463 = vld [vmem:[%s1294 + $0x1b0] sm:$0xff]
        %v3464 = vld [vmem:[%s1294 + $0x1b8] sm:$0xff]
        %v3465 = vld [vmem:[%s1294 + $0x1c0] sm:$0xff]
        %v3466 = vld [vmem:[%s1294 + $0x1c8] sm:$0xff]
        %v3467 = vld [vmem:[%s1294 + $0x1d0] sm:$0xff]
        %v3468 = vld [vmem:[%s1294 + $0x1d8] sm:$0xff]
        %v3469 = vld [vmem:[%s1294 + $0x1e0] sm:$0xff]
        %v3470 = vld [vmem:[%s1294 + $0x1e8] sm:$0xff]
        %v3471 = vld [vmem:[%s1294 + $0x1f0] sm:$0xff]
        %v3472 = vld [vmem:[%s1294 + $0x1f8] sm:$0xff]
        %v3473 = vld [vmem:[%s1139] sm:$0xf]
        %v3475 = vlaneseq
        %v3476 = vshrl.u32 %v3475, 7
        %v3477 = vsub.s32 0, %v3476
        %v3478 = vrot.slane %v3473, %v3477
        %v3479 = vlaneseq
        %v3480 = vshrl.u32 %v3479, 7
        %v3481 = vsub.s32 1, %v3480
        %v3482 = vrot.slane %v3473, %v3481
        %v3483 = vlaneseq
        %v3484 = vshrl.u32 %v3483, 7
        %v3485 = vsub.s32 2, %v3484
        %v3486 = vrot.slane %v3473, %v3485
        %v3487 = vlaneseq
        %v3488 = vshrl.u32 %v3487, 7
        %v3489 = vsub.s32 3, %v3488
        %v3490 = vrot.slane %v3473, %v3489
        %3495 = vmatprep.subr.mxu0 %v3410
        %3496 = vmatpush1.msra.mxu0 %v3409
        %3497 = vmatprep.subr.mxu0 %v3414
        %3498 = vmatpush1.msra.mxu0 %v3413
        %3499 = vmatprep.subr.mxu0 %v3418
        %3500 = vmatpush1.msra.mxu0 %v3417
        %3501 = vmatprep.subr.mxu0 %v3422
        %3502 = vmatpush1.msra.mxu0 %v3421
        %3503 = vmatprep.subr.mxu0 %v3426
        %3504 = vmatpush1.msra.mxu0 %v3425
        %3505 = vmatprep.subr.mxu0 %v3430
        %3506 = vmatpush1.msra.mxu0 %v3429
        %3507 = vmatprep.subr.mxu0 %v3434
        %3508 = vmatpush1.msra.mxu0 %v3433
        %3509 = vmatprep.subr.mxu0 %v3438
        %3510 = vmatpush1.msra.mxu0 %v3437
        %3511 = vmatprep.subr.mxu0 %v3442
        %3512 = vmatpush1.msra.mxu0 %v3441
        %3513 = vmatprep.subr.mxu0 %v3446
        %3514 = vmatpush1.msra.mxu0 %v3445
        %3515 = vmatprep.subr.mxu0 %v3450
        %3516 = vmatpush1.msra.mxu0 %v3449
        %3517 = vmatprep.subr.mxu0 %v3454
        %3518 = vmatpush1.msra.mxu0 %v3453
        %3519 = vmatprep.subr.mxu0 %v3458
        %3520 = vmatpush1.msra.mxu0 %v3457
        %3521 = vmatprep.subr.mxu0 %v3462
        %3522 = vmatpush1.msra.mxu0 %v3461
        %3523 = vmatprep.subr.mxu0 %v3466
        %3524 = vmatpush1.msra.mxu0 %v3465
        %3525 = vmatprep.subr.mxu0 %v3470
        %3526 = vmatpush1.msra.mxu0 %v3469
        %3527 = vmatprep.subr.mxu0 0.0
        %3528 = vmatpush1.msra.mxu0 0.0
        %3529 = vmatprep.subr.mxu0 0.0
        %3530 = vmatpush1.msra.mxu0 0.0
        %3531 = vmatprep.subr.mxu0 0.0
        %3532 = vmatpush1.msra.mxu0 0.0
        %3533 = vmatprep.subr.mxu0 0.0
        %3534 = vmatpush1.msra.mxu0 0.0
        %3535 = vmatprep.subr.mxu0 0.0
        %3536 = vmatpush1.msra.mxu0 0.0
        %3537 = vmatprep.subr.mxu0 0.0
        %3538 = vmatpush1.msra.mxu0 0.0
        %3539 = vmatprep.subr.mxu0 0.0
        %3540 = vmatpush1.msra.mxu0 0.0
        %3541 = vmatprep.subr.mxu0 0.0
        %3542 = vmatpush1.msra.mxu0 0.0
        %3543 = vmatprep.subr.mxu0 0.0
        %3544 = vmatpush1.msra.mxu0 0.0
        %3545 = vmatprep.subr.mxu0 0.0
        %3546 = vmatpush1.msra.mxu0 0.0
        %3547 = vmatprep.subr.mxu0 0.0
        %3548 = vmatpush1.msra.mxu0 0.0
        %3549 = vmatprep.subr.mxu0 0.0
        %3550 = vmatpush1.msra.mxu0 0.0
        %3551 = vmatprep.subr.mxu0 0.0
        %3552 = vmatpush1.msra.mxu0 0.0
        %3553 = vmatprep.subr.mxu0 0.0
        %3554 = vmatpush1.msra.mxu0 0.0
        %3555 = vmatprep.subr.mxu0 0.0
        %3556 = vmatpush1.msra.mxu0 0.0
        %3557 = vmatprep.subr.mxu0 0.0
        %3558 = vmatpush1.msra.mxu0 0.0
        %3559 = vmatprep.mubr.f32.mxu0 0.0
        %3560 = vmatmul.mubr.f32.gmra.mrb[0].mxu0 %v3407
        %v3561 = vpop.f32.mrb[0].mxu0
        %v3562 = vadd.f32 %v3478, %v3561
        %v3563 = vpop.f32.mrb[0].mxu0
        %v3564 = vadd.f32 %v3482, %v3563
        %3565 = vmatprep.mubr.f32.mxu0 0.0
        %3566 = vmatmul.mubr.f32.gmra.mrb[0].mxu0 %v3408
        %v3567 = vpop.f32.mrb[0].mxu0
        %v3568 = vadd.f32 %v3478, %v3567
        %v3569 = vpop.f32.mrb[0].mxu0
        %v3570 = vadd.f32 %v3482, %v3569
        %3571 = vdwg.mxu0
        %3572 = vmatprep.subr.mxu0 %v3412
        %3573 = vmatpush1.msra.mxu0 %v3411
        %3574 = vmatprep.subr.mxu0 %v3416
        %3575 = vmatpush1.msra.mxu0 %v3415
        %3576 = vmatprep.subr.mxu0 %v3420
        %3577 = vmatpush1.msra.mxu0 %v3419
        %3578 = vmatprep.subr.mxu0 %v3424
        %3579 = vmatpush1.msra.mxu0 %v3423
        %3580 = vmatprep.subr.mxu0 %v3428
        %3581 = vmatpush1.msra.mxu0 %v3427
        %3582 = vmatprep.subr.mxu0 %v3432
        %3583 = vmatpush1.msra.mxu0 %v3431
        %3584 = vmatprep.subr.mxu0 %v3436
        %3585 = vmatpush1.msra.mxu0 %v3435
        %3586 = vmatprep.subr.mxu0 %v3440
        %3587 = vmatpush1.msra.mxu0 %v3439
        %3588 = vmatprep.subr.mxu0 %v3444
        %3589 = vmatpush1.msra.mxu0 %v3443
        %3590 = vmatprep.subr.mxu0 %v3448
        %3591 = vmatpush1.msra.mxu0 %v3447
        %3592 = vmatprep.subr.mxu0 %v3452
        %3593 = vmatpush1.msra.mxu0 %v3451
        %3594 = vmatprep.subr.mxu0 %v3456
        %3595 = vmatpush1.msra.mxu0 %v3455
        %3596 = vmatprep.subr.mxu0 %v3460
        %3597 = vmatpush1.msra.mxu0 %v3459
        %3598 = vmatprep.subr.mxu0 %v3464
        %3599 = vmatpush1.msra.mxu0 %v3463
        %3600 = vmatprep.subr.mxu0 %v3468
        %3601 = vmatpush1.msra.mxu0 %v3467
        %3602 = vmatprep.subr.mxu0 %v3472
        %3603 = vmatpush1.msra.mxu0 %v3471
        %3604 = vmatprep.subr.mxu0 0.0
        %3605 = vmatpush1.msra.mxu0 0.0
        %3606 = vmatprep.subr.mxu0 0.0
        %3607 = vmatpush1.msra.mxu0 0.0
        %3608 = vmatprep.subr.mxu0 0.0
        %3609 = vmatpush1.msra.mxu0 0.0
        %3610 = vmatprep.subr.mxu0 0.0
        %3611 = vmatpush1.msra.mxu0 0.0
        %3612 = vmatprep.subr.mxu0 0.0
        %3613 = vmatpush1.msra.mxu0 0.0
        %3614 = vmatprep.subr.mxu0 0.0
        %3615 = vmatpush1.msra.mxu0 0.0
        %3616 = vmatprep.subr.mxu0 0.0
        %3617 = vmatpush1.msra.mxu0 0.0
        %3618 = vmatprep.subr.mxu0 0.0
        %3619 = vmatpush1.msra.mxu0 0.0
        %3620 = vmatprep.subr.mxu0 0.0
        %3621 = vmatpush1.msra.mxu0 0.0
        %3622 = vmatprep.subr.mxu0 0.0
        %3623 = vmatpush1.msra.mxu0 0.0
        %3624 = vmatprep.subr.mxu0 0.0
        %3625 = vmatpush1.msra.mxu0 0.0
        %3626 = vmatprep.subr.mxu0 0.0
        %3627 = vmatpush1.msra.mxu0 0.0
        %3628 = vmatprep.subr.mxu0 0.0
        %3629 = vmatpush1.msra.mxu0 0.0
        %3630 = vmatprep.subr.mxu0 0.0
        %3631 = vmatpush1.msra.mxu0 0.0
        %3632 = vmatprep.subr.mxu0 0.0
        %3633 = vmatpush1.msra.mxu0 0.0
        %3634 = vmatprep.subr.mxu0 0.0
        %3635 = vmatpush1.msra.mxu0 0.0
        %3636 = vmatprep.mubr.f32.mxu0 0.0
        %3637 = vmatmul.mubr.f32.gmra.mrb[0].mxu0 %v3407
        %v3638 = vpop.f32.mrb[0].mxu0
        %v3639 = vadd.f32 %v3486, %v3638
        %v3640 = vpop.f32.mrb[0].mxu0
        %v3641 = vadd.f32 %v3490, %v3640
        %3642 = vmatprep.mubr.f32.mxu0 0.0
        %3643 = vmatmul.mubr.f32.gmra.mrb[0].mxu0 %v3408
        %v3644 = vpop.f32.mrb[0].mxu0
        %v3645 = vadd.f32 %v3486, %v3644
        %v3646 = vpop.f32.mrb[0].mxu0
        %v3647 = vadd.f32 %v3490, %v3646
        %3648 = vdwg.mxu0
        %v3649 = vmul.f32 %v3562, %v3562
        %v3650 = vmul.f32 %v3564, %v3564
        %v3651 = vmul.f32 %v3639, %v3639
        %v3652 = vmul.f32 %v3641, %v3641
        %v3653 = vmul.f32 %v3568, %v3568
        %v3654 = vmul.f32 %v3570, %v3570
        %v3655 = vmul.f32 %v3645, %v3645
        %v3656 = vmul.f32 %v3647, %v3647
        %v3657 = vmul.f32 %v3562, %v3649
        %v3658 = vmul.f32 %v3564, %v3650
        %v3659 = vmul.f32 %v3639, %v3651
        %v3660 = vmul.f32 %v3641, %v3652
        %v3661 = vmul.f32 %v3568, %v3653
        %v3662 = vmul.f32 %v3570, %v3654
        %v3663 = vmul.f32 %v3645, %v3655
        %v3664 = vmul.f32 %v3647, %v3656
        %v3665 = vmul.f32 %v3657, 0.044715
        %v3666 = vmul.f32 %v3658, 0.044715
        %v3667 = vmul.f32 %v3659, 0.044715
        %v3668 = vmul.f32 %v3660, 0.044715
        %v3669 = vmul.f32 %v3661, 0.044715
        %v3670 = vmul.f32 %v3662, 0.044715
        %v3671 = vmul.f32 %v3663, 0.044715
        %v3672 = vmul.f32 %v3664, 0.044715
        %v3673 = vadd.f32 %v3562, %v3665
        %v3674 = vadd.f32 %v3564, %v3666
        %v3675 = vadd.f32 %v3639, %v3667
        %v3676 = vadd.f32 %v3641, %v3668
        %v3677 = vadd.f32 %v3568, %v3669
        %v3678 = vadd.f32 %v3570, %v3670
        %v3679 = vadd.f32 %v3645, %v3671
        %v3680 = vadd.f32 %v3647, %v3672
        %v3681 = vmul.f32 %v3673, 0.7978846
        %v3682 = vmul.f32 %v3674, 0.7978846
        %v3683 = vmul.f32 %v3675, 0.7978846
        %v3684 = vmul.f32 %v3676, 0.7978846
        %v3685 = vmul.f32 %v3677, 0.7978846
        %v3686 = vmul.f32 %v3678, 0.7978846
        %v3687 = vmul.f32 %v3679, 0.7978846
        %v3688 = vmul.f32 %v3680, 0.7978846
        %v3689 = vtanh.pop %v3681
        %v3690 = vtanh.pop %v3682
        %v3691 = vtanh.pop %v3683
        %v3692 = vtanh.pop %v3684
        %v3693 = vtanh.pop %v3685
        %v3694 = vtanh.pop %v3686
        %v3695 = vtanh.pop %v3687
        %v3696 = vtanh.pop %v3688
        %v3697 = vadd.f32 %v3689, 1.0
        %v3698 = vadd.f32 %v3690, 1.0
        %v3699 = vadd.f32 %v3691, 1.0
        %v3700 = vadd.f32 %v3692, 1.0
        %v3701 = vadd.f32 %v3693, 1.0
        %v3702 = vadd.f32 %v3694, 1.0
        %v3703 = vadd.f32 %v3695, 1.0
        %v3704 = vadd.f32 %v3696, 1.0
        %v3705 = vmul.f32 %v3697, 0.5
        %v3706 = vmul.f32 %v3698, 0.5
        %v3707 = vmul.f32 %v3699, 0.5
        %v3708 = vmul.f32 %v3700, 0.5
        %v3709 = vmul.f32 %v3701, 0.5
        %v3710 = vmul.f32 %v3702, 0.5
        %v3711 = vmul.f32 %v3703, 0.5
        %v3712 = vmul.f32 %v3704, 0.5
        %v3713 = vmul.f32 %v3562, %v3705
        %v3714 = vmul.f32 %v3564, %v3706
        %v3715 = vmul.f32 %v3639, %v3707
        %v3716 = vmul.f32 %v3641, %v3708
        %v3717 = vmul.f32 %v3568, %v3709
        %v3718 = vmul.f32 %v3570, %v3710
        %v3719 = vmul.f32 %v3645, %v3711
        %v3720 = vmul.f32 %v3647, %v3712
        %v3721 = vld [vmem:[%s1299] sm:$0xff]
        %v3722 = vld [vmem:[%s1299 + $0x8] sm:$0xff]
        %v3723 = vld [vmem:[%s1299 + $0x10] sm:$0xff]
        %v3724 = vld [vmem:[%s1299 + $0x18] sm:$0xff]
        %v3725 = vld [vmem:[%s1299 + $0x20] sm:$0xff]
        %v3726 = vld [vmem:[%s1299 + $0x28] sm:$0xff]
        %v3727 = vld [vmem:[%s1299 + $0x30] sm:$0xff]
        %v3728 = vld [vmem:[%s1299 + $0x38] sm:$0xff]
        %v3729 = vld [vmem:[%s1299 + $0x40] sm:$0xff]
        %v3730 = vld [vmem:[%s1299 + $0x48] sm:$0xff]
        %v3731 = vld [vmem:[%s1299 + $0x50] sm:$0xff]
        %v3732 = vld [vmem:[%s1299 + $0x58] sm:$0xff]
        %v3733 = vld [vmem:[%s1299 + $0x60] sm:$0xff]
        %v3734 = vld [vmem:[%s1299 + $0x68] sm:$0xff]
        %v3735 = vld [vmem:[%s1299 + $0x70] sm:$0xff]
        %v3736 = vld [vmem:[%s1299 + $0x78] sm:$0xff]
        %v3737 = vld [vmem:[%s1299 + $0x80] sm:$0xff]
        %v3738 = vld [vmem:[%s1299 + $0x88] sm:$0xff]
        %v3739 = vld [vmem:[%s1299 + $0x90] sm:$0xff]
        %v3740 = vld [vmem:[%s1299 + $0x98] sm:$0xff]
        %v3741 = vld [vmem:[%s1299 + $0xa0] sm:$0xff]
        %v3742 = vld [vmem:[%s1299 + $0xa8] sm:$0xff]
        %v3743 = vld [vmem:[%s1299 + $0xb0] sm:$0xff]
        %v3744 = vld [vmem:[%s1299 + $0xb8] sm:$0xff]
        %v3745 = vld [vmem:[%s1299 + $0xc0] sm:$0xff]
        %v3746 = vld [vmem:[%s1299 + $0xc8] sm:$0xff]
        %v3747 = vld [vmem:[%s1299 + $0xd0] sm:$0xff]
        %v3748 = vld [vmem:[%s1299 + $0xd8] sm:$0xff]
        %v3749 = vld [vmem:[%s1299 + $0xe0] sm:$0xff]
        %v3750 = vld [vmem:[%s1299 + $0xe8] sm:$0xff]
        %v3751 = vld [vmem:[%s1299 + $0xf0] sm:$0xff]
        %v3752 = vld [vmem:[%s1299 + $0xf8] sm:$0xff]
        %v3753 = vld [vmem:[%s1299 + $0x100] sm:$0xff]
        %v3754 = vld [vmem:[%s1299 + $0x108] sm:$0xff]
        %v3755 = vld [vmem:[%s1299 + $0x110] sm:$0xff]
        %v3756 = vld [vmem:[%s1299 + $0x118] sm:$0xff]
        %v3757 = vld [vmem:[%s1299 + $0x120] sm:$0xff]
        %v3758 = vld [vmem:[%s1299 + $0x128] sm:$0xff]
        %v3759 = vld [vmem:[%s1299 + $0x130] sm:$0xff]
        %v3760 = vld [vmem:[%s1299 + $0x138] sm:$0xff]
        %v3761 = vld [vmem:[%s1299 + $0x140] sm:$0xff]
        %v3762 = vld [vmem:[%s1299 + $0x148] sm:$0xff]
        %v3763 = vld [vmem:[%s1299 + $0x150] sm:$0xff]
        %v3764 = vld [vmem:[%s1299 + $0x158] sm:$0xff]
        %v3765 = vld [vmem:[%s1299 + $0x160] sm:$0xff]
        %v3766 = vld [vmem:[%s1299 + $0x168] sm:$0xff]
        %v3767 = vld [vmem:[%s1299 + $0x170] sm:$0xff]
        %v3768 = vld [vmem:[%s1299 + $0x178] sm:$0xff]
        %v3769 = vld [vmem:[%s1299 + $0x180] sm:$0xff]
        %v3770 = vld [vmem:[%s1299 + $0x188] sm:$0xff]
        %v3771 = vld [vmem:[%s1299 + $0x190] sm:$0xff]
        %v3772 = vld [vmem:[%s1299 + $0x198] sm:$0xff]
        %v3773 = vld [vmem:[%s1299 + $0x1a0] sm:$0xff]
        %v3774 = vld [vmem:[%s1299 + $0x1a8] sm:$0xff]
        %v3775 = vld [vmem:[%s1299 + $0x1b0] sm:$0xff]
        %v3776 = vld [vmem:[%s1299 + $0x1b8] sm:$0xff]
        %v3777 = vld [vmem:[%s1299 + $0x1c0] sm:$0xff]
        %v3778 = vld [vmem:[%s1299 + $0x1c8] sm:$0xff]
        %v3779 = vld [vmem:[%s1299 + $0x1d0] sm:$0xff]
        %v3780 = vld [vmem:[%s1299 + $0x1d8] sm:$0xff]
        %v3781 = vld [vmem:[%s1299 + $0x1e0] sm:$0xff]
        %v3782 = vld [vmem:[%s1299 + $0x1e8] sm:$0xff]
        %v3783 = vld [vmem:[%s1299 + $0x1f0] sm:$0xff]
        %v3784 = vld [vmem:[%s1299 + $0x1f8] sm:$0xff]
        %v3785 = vld [vmem:[%s1147] sm:$0x1]
        %v3787 = vlaneseq
        %v3788 = vshrl.u32 %v3787, 7
        %v3789 = vsub.s32 0, %v3788
        %v3790 = vrot.slane %v3785, %v3789
        %3792 = vmatprep.subr.mxu0 0.0
        %3793 = vmatpush1.msra.mxu0 %v3721
        %3794 = vmatprep.subr.mxu0 0.0
        %3795 = vmatpush1.msra.mxu0 %v3722
        %3796 = vmatprep.subr.mxu0 0.0
        %3797 = vmatpush1.msra.mxu0 %v3723
        %3798 = vmatprep.subr.mxu0 0.0
        %3799 = vmatpush1.msra.mxu0 %v3724
        %3800 = vmatprep.subr.mxu0 0.0
        %3801 = vmatpush1.msra.mxu0 %v3725
        %3802 = vmatprep.subr.mxu0 0.0
        %3803 = vmatpush1.msra.mxu0 %v3726
        %3804 = vmatprep.subr.mxu0 0.0
        %3805 = vmatpush1.msra.mxu0 %v3727
        %3806 = vmatprep.subr.mxu0 0.0
        %3807 = vmatpush1.msra.mxu0 %v3728
        %3808 = vmatprep.subr.mxu0 0.0
        %3809 = vmatpush1.msra.mxu0 %v3729
        %3810 = vmatprep.subr.mxu0 0.0
        %3811 = vmatpush1.msra.mxu0 %v3730
        %3812 = vmatprep.subr.mxu0 0.0
        %3813 = vmatpush1.msra.mxu0 %v3731
        %3814 = vmatprep.subr.mxu0 0.0
        %3815 = vmatpush1.msra.mxu0 %v3732
        %3816 = vmatprep.subr.mxu0 0.0
        %3817 = vmatpush1.msra.mxu0 %v3733
        %3818 = vmatprep.subr.mxu0 0.0
        %3819 = vmatpush1.msra.mxu0 %v3734
        %3820 = vmatprep.subr.mxu0 0.0
        %3821 = vmatpush1.msra.mxu0 %v3735
        %3822 = vmatprep.subr.mxu0 0.0
        %3823 = vmatpush1.msra.mxu0 %v3736
        %3824 = vmatprep.subr.mxu0 0.0
        %3825 = vmatpush1.msra.mxu0 %v3737
        %3826 = vmatprep.subr.mxu0 0.0
        %3827 = vmatpush1.msra.mxu0 %v3738
        %3828 = vmatprep.subr.mxu0 0.0
        %3829 = vmatpush1.msra.mxu0 %v3739
        %3830 = vmatprep.subr.mxu0 0.0
        %3831 = vmatpush1.msra.mxu0 %v3740
        %3832 = vmatprep.subr.mxu0 0.0
        %3833 = vmatpush1.msra.mxu0 %v3741
        %3834 = vmatprep.subr.mxu0 0.0
        %3835 = vmatpush1.msra.mxu0 %v3742
        %3836 = vmatprep.subr.mxu0 0.0
        %3837 = vmatpush1.msra.mxu0 %v3743
        %3838 = vmatprep.subr.mxu0 0.0
        %3839 = vmatpush1.msra.mxu0 %v3744
        %3840 = vmatprep.subr.mxu0 0.0
        %3841 = vmatpush1.msra.mxu0 %v3745
        %3842 = vmatprep.subr.mxu0 0.0
        %3843 = vmatpush1.msra.mxu0 %v3746
        %3844 = vmatprep.subr.mxu0 0.0
        %3845 = vmatpush1.msra.mxu0 %v3747
        %3846 = vmatprep.subr.mxu0 0.0
        %3847 = vmatpush1.msra.mxu0 %v3748
        %3848 = vmatprep.subr.mxu0 0.0
        %3849 = vmatpush1.msra.mxu0 %v3749
        %3850 = vmatprep.subr.mxu0 0.0
        %3851 = vmatpush1.msra.mxu0 %v3750
        %3852 = vmatprep.subr.mxu0 0.0
        %3853 = vmatpush1.msra.mxu0 %v3751
        %3854 = vmatprep.subr.mxu0 0.0
        %3855 = vmatpush1.msra.mxu0 %v3752
        %3856 = vmatprep.mubr.f32.mxu0 %v3714
        %3857 = vmatmul.mubr.f32.gmra.mrb[0].mxu0 %v3713
        %v3858 = vpop.f32.mrb[0].mxu0
        %v3859 = vadd.f32 %v3790, %v3858
        %v3860 = vpop.f32.mrb[0].mxu0
        %3861 = vmatprep.mubr.f32.mxu0 %v3718
        %3862 = vmatmul.mubr.f32.gmra.mrb[0].mxu0 %v3717
        %v3863 = vpop.f32.mrb[0].mxu0
        %v3864 = vadd.f32 %v3790, %v3863
        %v3865 = vpop.f32.mrb[0].mxu0
        %3866 = vdwg.mxu0
        %3867 = vmatprep.subr.mxu0 0.0
        %3868 = vmatpush1.msra.mxu0 %v3753
        %3869 = vmatprep.subr.mxu0 0.0
        %3870 = vmatpush1.msra.mxu0 %v3754
        %3871 = vmatprep.subr.mxu0 0.0
        %3872 = vmatpush1.msra.mxu0 %v3755
        %3873 = vmatprep.subr.mxu0 0.0
        %3874 = vmatpush1.msra.mxu0 %v3756
        %3875 = vmatprep.subr.mxu0 0.0
        %3876 = vmatpush1.msra.mxu0 %v3757
        %3877 = vmatprep.subr.mxu0 0.0
        %3878 = vmatpush1.msra.mxu0 %v3758
        %3879 = vmatprep.subr.mxu0 0.0
        %3880 = vmatpush1.msra.mxu0 %v3759
        %3881 = vmatprep.subr.mxu0 0.0
        %3882 = vmatpush1.msra.mxu0 %v3760
        %3883 = vmatprep.subr.mxu0 0.0
        %3884 = vmatpush1.msra.mxu0 %v3761
        %3885 = vmatprep.subr.mxu0 0.0
        %3886 = vmatpush1.msra.mxu0 %v3762
        %3887 = vmatprep.subr.mxu0 0.0
        %3888 = vmatpush1.msra.mxu0 %v3763
        %3889 = vmatprep.subr.mxu0 0.0
        %3890 = vmatpush1.msra.mxu0 %v3764
        %3891 = vmatprep.subr.mxu0 0.0
        %3892 = vmatpush1.msra.mxu0 %v3765
        %3893 = vmatprep.subr.mxu0 0.0
        %3894 = vmatpush1.msra.mxu0 %v3766
        %3895 = vmatprep.subr.mxu0 0.0
        %3896 = vmatpush1.msra.mxu0 %v3767
        %3897 = vmatprep.subr.mxu0 0.0
        %3898 = vmatpush1.msra.mxu0 %v3768
        %3899 = vmatprep.subr.mxu0 0.0
        %3900 = vmatpush1.msra.mxu0 %v3769
        %3901 = vmatprep.subr.mxu0 0.0
        %3902 = vmatpush1.msra.mxu0 %v3770
        %3903 = vmatprep.subr.mxu0 0.0
        %3904 = vmatpush1.msra.mxu0 %v3771
        %3905 = vmatprep.subr.mxu0 0.0
        %3906 = vmatpush1.msra.mxu0 %v3772
        %3907 = vmatprep.subr.mxu0 0.0
        %3908 = vmatpush1.msra.mxu0 %v3773
        %3909 = vmatprep.subr.mxu0 0.0
        %3910 = vmatpush1.msra.mxu0 %v3774
        %3911 = vmatprep.subr.mxu0 0.0
        %3912 = vmatpush1.msra.mxu0 %v3775
        %3913 = vmatprep.subr.mxu0 0.0
        %3914 = vmatpush1.msra.mxu0 %v3776
        %3915 = vmatprep.subr.mxu0 0.0
        %3916 = vmatpush1.msra.mxu0 %v3777
        %3917 = vmatprep.subr.mxu0 0.0
        %3918 = vmatpush1.msra.mxu0 %v3778
        %3919 = vmatprep.subr.mxu0 0.0
        %3920 = vmatpush1.msra.mxu0 %v3779
        %3921 = vmatprep.subr.mxu0 0.0
        %3922 = vmatpush1.msra.mxu0 %v3780
        %3923 = vmatprep.subr.mxu0 0.0
        %3924 = vmatpush1.msra.mxu0 %v3781
        %3925 = vmatprep.subr.mxu0 0.0
        %3926 = vmatpush1.msra.mxu0 %v3782
        %3927 = vmatprep.subr.mxu0 0.0
        %3928 = vmatpush1.msra.mxu0 %v3783
        %3929 = vmatprep.subr.mxu0 0.0
        %3930 = vmatpush1.msra.mxu0 %v3784
        %3931 = vmatprep.mubr.f32.mxu0 %v3716
        %3932 = vmatmul.mubr.f32.gmra.mrb[0].mxu0 %v3715
        %v3933 = vpop.f32.mrb[0].mxu0
        %v3934 = vadd.f32 %v3859, %v3933
        %v3935 = vpop.f32.mrb[0].mxu0
        %3936 = vmatprep.mubr.f32.mxu0 %v3720
        %3937 = vmatmul.mubr.f32.gmra.mrb[0].mxu0 %v3719
        %v3938 = vpop.f32.mrb[0].mxu0
        %v3939 = vadd.f32 %v3864, %v3938
        %v3940 = vpop.f32.mrb[0].mxu0
        %3941 = vdwg.mxu0
        %v3942 = vadd.f32 %v3367, %v3934
        %v3943 = vadd.f32 %v3368, %v3939
        %3944 = vst [vmem:[#allocation2] sm:$0xff] %v3942
        %3945 = vst [vmem:[#allocation2 + $0x8] sm:$0xff] %v3943
        %p3946 = scmp.eq.s32.totalorder %s60, 1
        // Predicated region
        $region213: #{flower_classifier_forward.1} parent=127 // pred_check
          %p3947 = pneg %p3946
        $region214: #{flower_classifier_forward.1} parent=127 // pred_check_branch
          %3949 = sbr.rel (%p3947) target = $region216
        $region215: #{flower_classifier_forward.1} parent=127 // pred_region
          %v3951 = vrot.slane %v3943, 7
          %vm3953 = vcmask 1040384
          %v3954 = vsel %vm3953, %v3942, %v3951
          %v3955 = vld [vmem:[#allocation24] sm:$0x1]
          %v3956 = vld [vmem:[#allocation26] sm:$0x1]
          %vm3957 = vcmask 1041408
          %v3958 = vsel %vm3957, %v3954, 0.0
          %3959 = vadd.xlane.f32.xlu0 %v3958
          %v3960 = vpop.xlane.xlu0 %3959
          %v3961 = vmul.f32 %v3960, %v1650
          %v3962 = vsub.f32 %v3954, %v3961
          %v3963 = vmul.f32 %v3962, %v3962
          %v3964 = vsel %vm3957, %v3963, 0.0
          %3965 = vadd.xlane.f32.xlu0 %v3964
          %v3966 = vpop.xlane.xlu0 %3965
          %v3967 = vmul.f32 %v3966, %v1650
          %v3968 = vadd.f32 %v3967, 1e-06
          %v3969 = vrsqrt.pop %v3968
          %v3970 = vmul.f32 %v3962, %v3969
          %v3972 = vlaneseq
          %v3973 = vshrl.u32 %v3972, 7
          %v3974 = vsub.s32 0, %v3973
          %v3975 = vrot.slane %v3955, %v3974
          %v3977 = vmul.f32 %v3970, %v3975
          %v3979 = vlaneseq
          %v3980 = vshrl.u32 %v3979, 7
          %v3981 = vsub.s32 0, %v3980
          %v3982 = vrot.slane %v3956, %v3981
          %v3984 = vadd.f32 %v3977, %v3982
          %v3985 = vld [vmem:[#allocation27] sm:$0x1]
          %v3986 = vld [vmem:[#allocation29] sm:$0x1]
          %v3987 = vsel %vm3957, %v3984, 0.0
          %3988 = vadd.xlane.f32.xlu0 %v3987
          %v3989 = vpop.xlane.xlu0 %3988
          %v3990 = vmul.f32 %v3989, %v1650
          %v3991 = vsub.f32 %v3984, %v3990
          %v3992 = vmul.f32 %v3991, %v3991
          %v3993 = vsel %vm3957, %v3992, 0.0
          %3994 = vadd.xlane.f32.xlu0 %v3993
          %v3995 = vpop.xlane.xlu0 %3994
          %v3996 = vmul.f32 %v3995, %v1650
          %v3997 = vadd.f32 %v3996, 1e-05
          %v3998 = vrsqrt.pop %v3997
          %v3999 = vmul.f32 %v3991, %v3998
          %v4001 = vlaneseq
          %v4002 = vshrl.u32 %v4001, 7
          %v4003 = vsub.s32 0, %v4002
          %v4004 = vrot.slane %v3985, %v4003
          %v4006 = vmul.f32 %v3999, %v4004
          %v4008 = vlaneseq
          %v4009 = vshrl.u32 %v4008, 7
          %v4010 = vsub.s32 0, %v4009
          %v4011 = vrot.slane %v3986, %v4010
          %v4013 = vadd.f32 %v4006, %v4011
          %v4014 = vld [vmem:[%s21] sm:$0xff]
          %v4015 = vld [vmem:[%s21 + $0x8] sm:$0xff]
          %v4016 = vld [vmem:[%s21 + $0x10] sm:$0xff]
          %v4017 = vld [vmem:[%s21 + $0x18] sm:$0xff]
          %v4018 = vld [vmem:[%s21 + $0x20] sm:$0xff]
          %v4019 = vld [vmem:[%s21 + $0x28] sm:$0xff]
          %v4020 = vld [vmem:[%s21 + $0x30] sm:$0xff]
          %v4021 = vld [vmem:[%s21 + $0x38] sm:$0xff]
          %v4022 = vld [vmem:[%s21 + $0x40] sm:$0xff]
          %v4023 = vld [vmem:[%s21 + $0x48] sm:$0xff]
          %v4024 = vld [vmem:[%s21 + $0x50] sm:$0xff]
          %v4025 = vld [vmem:[%s21 + $0x58] sm:$0xff]
          %v4026 = vld [vmem:[%s21 + $0x60] sm:$0xff]
          %v4027 = vld [vmem:[%s21 + $0x68] sm:$0xff]
          %v4028 = vld [vmem:[%s21 + $0x70] sm:$0xff]
          %v4029 = vld [vmem:[%s21 + $0x78] sm:$0xff]
          %v4030 = vld [vmem:[%s21 + $0x80] sm:$0xff]
          %v4031 = vld [vmem:[%s21 + $0x88] sm:$0xff]
          %v4032 = vld [vmem:[%s21 + $0x90] sm:$0xff]
          %v4033 = vld [vmem:[%s21 + $0x98] sm:$0xff]
          %v4034 = vld [vmem:[%s21 + $0xa0] sm:$0xff]
          %v4035 = vld [vmem:[%s21 + $0xa8] sm:$0xff]
          %v4036 = vld [vmem:[%s21 + $0xb0] sm:$0xff]
          %v4037 = vld [vmem:[%s21 + $0xb8] sm:$0xff]
          %v4038 = vld [vmem:[%s21 + $0xc0] sm:$0xff]
          %v4039 = vld [vmem:[%s21 + $0xc8] sm:$0xff]
          %v4040 = vld [vmem:[%s21 + $0xd0] sm:$0xff]
          %v4041 = vld [vmem:[%s21 + $0xd8] sm:$0xff]
          %v4042 = vld [vmem:[%s21 + $0xe0] sm:$0xff]
          %v4043 = vld [vmem:[%s21 + $0xe8] sm:$0xff]
          %v4044 = vld [vmem:[%s21 + $0xf0] sm:$0xff]
          %v4045 = vld [vmem:[%s21 + $0xf8] sm:$0xff]
          %v4046 = vld [vmem:[%s21 + $0x100] sm:$0xff]
          %v4047 = vld [vmem:[%s21 + $0x108] sm:$0xff]
          %v4048 = vld [vmem:[%s21 + $0x110] sm:$0xff]
          %v4049 = vld [vmem:[%s21 + $0x118] sm:$0xff]
          %v4050 = vld [vmem:[%s21 + $0x120] sm:$0xff]
          %v4051 = vld [vmem:[%s21 + $0x128] sm:$0xff]
          %v4052 = vld [vmem:[%s21 + $0x130] sm:$0xff]
          %v4053 = vld [vmem:[%s21 + $0x138] sm:$0xff]
          %v4054 = vld [vmem:[%s21 + $0x140] sm:$0xff]
          %v4055 = vld [vmem:[%s21 + $0x148] sm:$0xff]
          %v4056 = vld [vmem:[%s21 + $0x150] sm:$0xff]
          %v4057 = vld [vmem:[%s21 + $0x158] sm:$0xff]
          %v4058 = vld [vmem:[%s21 + $0x160] sm:$0xff]
          %v4059 = vld [vmem:[%s21 + $0x168] sm:$0xff]
          %v4060 = vld [vmem:[%s21 + $0x170] sm:$0xff]
          %v4061 = vld [vmem:[%s21 + $0x178] sm:$0xff]
          %v4062 = vld [vmem:[%s21 + $0x180] sm:$0xff]
          %v4063 = vld [vmem:[%s21 + $0x188] sm:$0xff]
          %v4064 = vld [vmem:[%s21 + $0x190] sm:$0xff]
          %v4065 = vld [vmem:[%s21 + $0x198] sm:$0xff]
          %v4066 = vld [vmem:[%s21 + $0x1a0] sm:$0xff]
          %v4067 = vld [vmem:[%s21 + $0x1a8] sm:$0xff]
          %v4068 = vld [vmem:[%s21 + $0x1b0] sm:$0xff]
          %v4069 = vld [vmem:[%s21 + $0x1b8] sm:$0xff]
          %v4070 = vld [vmem:[%s21 + $0x1c0] sm:$0xff]
          %v4071 = vld [vmem:[%s21 + $0x1c8] sm:$0xff]
          %v4072 = vld [vmem:[%s21 + $0x1d0] sm:$0xff]
          %v4073 = vld [vmem:[%s21 + $0x1d8] sm:$0xff]
          %v4074 = vld [vmem:[%s21 + $0x1e0] sm:$0xff]
          %v4075 = vld [vmem:[%s21 + $0x1e8] sm:$0xff]
          %v4076 = vld [vmem:[%s21 + $0x1f0] sm:$0xff]
          %v4077 = vld [vmem:[%s21 + $0x1f8] sm:$0xff]
          %v4078 = vld [vmem:[%s21 + $0x200] sm:$0xff]
          %v4079 = vld [vmem:[%s21 + $0x208] sm:$0xff]
          %v4080 = vld [vmem:[%s21 + $0x210] sm:$0xff]
          %v4081 = vld [vmem:[%s21 + $0x218] sm:$0xff]
          %v4082 = vld [vmem:[%s21 + $0x220] sm:$0xff]
          %v4083 = vld [vmem:[%s21 + $0x228] sm:$0xff]
          %v4084 = vld [vmem:[%s21 + $0x230] sm:$0xff]
          %v4085 = vld [vmem:[%s21 + $0x238] sm:$0xff]
          %v4086 = vld [vmem:[%s21 + $0x240] sm:$0xff]
          %v4087 = vld [vmem:[%s21 + $0x248] sm:$0xff]
          %v4088 = vld [vmem:[%s21 + $0x250] sm:$0xff]
          %v4089 = vld [vmem:[%s21 + $0x258] sm:$0xff]
          %v4090 = vld [vmem:[%s21 + $0x260] sm:$0xff]
          %v4091 = vld [vmem:[%s21 + $0x268] sm:$0xff]
          %v4092 = vld [vmem:[%s21 + $0x270] sm:$0xff]
          %v4093 = vld [vmem:[%s21 + $0x278] sm:$0xff]
          %v4094 = vld [vmem:[%s21 + $0x280] sm:$0xff]
          %v4095 = vld [vmem:[%s21 + $0x288] sm:$0xff]
          %v4096 = vld [vmem:[%s21 + $0x290] sm:$0xff]
          %v4097 = vld [vmem:[%s21 + $0x298] sm:$0xff]
          %v4098 = vld [vmem:[%s21 + $0x2a0] sm:$0xff]
          %v4099 = vld [vmem:[%s21 + $0x2a8] sm:$0xff]
          %v4100 = vld [vmem:[%s21 + $0x2b0] sm:$0xff]
          %v4101 = vld [vmem:[%s21 + $0x2b8] sm:$0xff]
          %v4102 = vld [vmem:[%s21 + $0x2c0] sm:$0xff]
          %v4103 = vld [vmem:[%s21 + $0x2c8] sm:$0xff]
          %v4104 = vld [vmem:[%s21 + $0x2d0] sm:$0xff]
          %v4105 = vld [vmem:[%s21 + $0x2d8] sm:$0xff]
          %v4106 = vld [vmem:[%s21 + $0x2e0] sm:$0xff]
          %v4107 = vld [vmem:[%s21 + $0x2e8] sm:$0xff]
          %v4108 = vld [vmem:[%s21 + $0x2f0] sm:$0xff]
          %v4109 = vld [vmem:[%s21 + $0x2f8] sm:$0xff]
          %v4110 = vld [vmem:[%s21 + $0x300] sm:$0xff]
          %v4111 = vld [vmem:[%s21 + $0x308] sm:$0xff]
          %v4112 = vld [vmem:[%s21 + $0x310] sm:$0xff]
          %v4113 = vld [vmem:[%s21 + $0x318] sm:$0xff]
          %v4114 = vld [vmem:[%s21 + $0x320] sm:$0xff]
          %v4115 = vld [vmem:[%s21 + $0x328] sm:$0xff]
          %v4116 = vld [vmem:[%s21 + $0x330] sm:$0xff]
          %v4117 = vld [vmem:[%s21 + $0x338] sm:$0xff]
          %v4118 = vld [vmem:[%s21 + $0x340] sm:$0xff]
          %v4119 = vld [vmem:[%s21 + $0x348] sm:$0xff]
          %v4120 = vld [vmem:[%s21 + $0x350] sm:$0xff]
          %v4121 = vld [vmem:[%s21 + $0x358] sm:$0xff]
          %v4122 = vld [vmem:[%s21 + $0x360] sm:$0xff]
          %v4123 = vld [vmem:[%s21 + $0x368] sm:$0xff]
          %v4124 = vld [vmem:[%s21 + $0x370] sm:$0xff]
          %v4125 = vld [vmem:[%s21 + $0x378] sm:$0xff]
          %v4126 = vld [vmem:[%s21 + $0x380] sm:$0xff]
          %v4127 = vld [vmem:[%s21 + $0x388] sm:$0xff]
          %v4128 = vld [vmem:[%s21 + $0x390] sm:$0xff]
          %v4129 = vld [vmem:[%s21 + $0x398] sm:$0xff]
          %v4130 = vld [vmem:[%s21 + $0x3a0] sm:$0xff]
          %v4131 = vld [vmem:[%s21 + $0x3a8] sm:$0xff]
          %v4132 = vld [vmem:[%s21 + $0x3b0] sm:$0xff]
          %v4133 = vld [vmem:[%s21 + $0x3b8] sm:$0xff]
          %v4134 = vld [vmem:[%s21 + $0x3c0] sm:$0xff]
          %v4135 = vld [vmem:[%s21 + $0x3c8] sm:$0xff]
          %v4136 = vld [vmem:[%s21 + $0x3d0] sm:$0xff]
          %v4137 = vld [vmem:[%s21 + $0x3d8] sm:$0xff]
          %v4138 = vld [vmem:[%s21 + $0x3e0] sm:$0xff]
          %v4139 = vld [vmem:[%s21 + $0x3e8] sm:$0xff]
          %v4140 = vld [vmem:[%s21 + $0x3f0] sm:$0xff]
          %v4141 = vld [vmem:[%s21 + $0x3f8] sm:$0xff]
          %v4142 = vld [vmem:[#allocation30] sm:$0xff]
          %v4144 = vlaneseq
          %v4145 = vshrl.u32 %v4144, 7
          %v4146 = vsub.s32 0, %v4145
          %v4147 = vrot.slane %v4142, %v4146
          %v4148 = vlaneseq
          %v4149 = vshrl.u32 %v4148, 7
          %v4150 = vsub.s32 1, %v4149
          %v4151 = vrot.slane %v4142, %v4150
          %v4152 = vlaneseq
          %v4153 = vshrl.u32 %v4152, 7
          %v4154 = vsub.s32 2, %v4153
          %v4155 = vrot.slane %v4142, %v4154
          %v4156 = vlaneseq
          %v4157 = vshrl.u32 %v4156, 7
          %v4158 = vsub.s32 3, %v4157
          %v4159 = vrot.slane %v4142, %v4158
          %v4160 = vlaneseq
          %v4161 = vshrl.u32 %v4160, 7
          %v4162 = vsub.s32 4, %v4161
          %v4163 = vrot.slane %v4142, %v4162
          %v4164 = vlaneseq
          %v4165 = vshrl.u32 %v4164, 7
          %v4166 = vsub.s32 5, %v4165
          %v4167 = vrot.slane %v4142, %v4166
          %v4168 = vlaneseq
          %v4169 = vshrl.u32 %v4168, 7
          %v4170 = vsub.s32 6, %v4169
          %v4171 = vrot.slane %v4142, %v4170
          %v4172 = vlaneseq
          %v4173 = vshrl.u32 %v4172, 7
          %v4174 = vsub.s32 7, %v4173
          %v4175 = vrot.slane %v4142, %v4174
          %4184 = vmatprep.subr.mxu0 %v4015
          %4185 = vmatpush1.msra.mxu0 %v4014
          %4186 = vmatprep.subr.mxu0 %v4023
          %4187 = vmatpush1.msra.mxu0 %v4022
          %4188 = vmatprep.subr.mxu0 %v4031
          %4189 = vmatpush1.msra.mxu0 %v4030
          %4190 = vmatprep.subr.mxu0 %v4039
          %4191 = vmatpush1.msra.mxu0 %v4038
          %4192 = vmatprep.subr.mxu0 %v4047
          %4193 = vmatpush1.msra.mxu0 %v4046
          %4194 = vmatprep.subr.mxu0 %v4055
          %4195 = vmatpush1.msra.mxu0 %v4054
          %4196 = vmatprep.subr.mxu0 %v4063
          %4197 = vmatpush1.msra.mxu0 %v4062
          %4198 = vmatprep.subr.mxu0 %v4071
          %4199 = vmatpush1.msra.mxu0 %v4070
          %4200 = vmatprep.subr.mxu0 %v4079
          %4201 = vmatpush1.msra.mxu0 %v4078
          %4202 = vmatprep.subr.mxu0 %v4087
          %4203 = vmatpush1.msra.mxu0 %v4086
          %4204 = vmatprep.subr.mxu0 %v4095
          %4205 = vmatpush1.msra.mxu0 %v4094
          %4206 = vmatprep.subr.mxu0 %v4103
          %4207 = vmatpush1.msra.mxu0 %v4102
          %4208 = vmatprep.subr.mxu0 %v4111
          %4209 = vmatpush1.msra.mxu0 %v4110
          %4210 = vmatprep.subr.mxu0 %v4119
          %4211 = vmatpush1.msra.mxu0 %v4118
          %4212 = vmatprep.subr.mxu0 %v4127
          %4213 = vmatpush1.msra.mxu0 %v4126
          %4214 = vmatprep.subr.mxu0 %v4135
          %4215 = vmatpush1.msra.mxu0 %v4134
          %4216 = vmatprep.subr.mxu0 0.0
          %4217 = vmatpush1.msra.mxu0 0.0
          %4218 = vmatprep.subr.mxu0 0.0
          %4219 = vmatpush1.msra.mxu0 0.0
          %4220 = vmatprep.subr.mxu0 0.0
          %4221 = vmatpush1.msra.mxu0 0.0
          %4222 = vmatprep.subr.mxu0 0.0
          %4223 = vmatpush1.msra.mxu0 0.0
          %4224 = vmatprep.subr.mxu0 0.0
          %4225 = vmatpush1.msra.mxu0 0.0
          %4226 = vmatprep.subr.mxu0 0.0
          %4227 = vmatpush1.msra.mxu0 0.0
          %4228 = vmatprep.subr.mxu0 0.0
          %4229 = vmatpush1.msra.mxu0 0.0
          %4230 = vmatprep.subr.mxu0 0.0
          %4231 = vmatpush1.msra.mxu0 0.0
          %4232 = vmatprep.subr.mxu0 0.0
          %4233 = vmatpush1.msra.mxu0 0.0
          %4234 = vmatprep.subr.mxu0 0.0
          %4235 = vmatpush1.msra.mxu0 0.0
          %4236 = vmatprep.subr.mxu0 0.0
          %4237 = vmatpush1.msra.mxu0 0.0
          %4238 = vmatprep.subr.mxu0 0.0
          %4239 = vmatpush1.msra.mxu0 0.0
          %4240 = vmatprep.subr.mxu0 0.0
          %4241 = vmatpush1.msra.mxu0 0.0
          %4242 = vmatprep.subr.mxu0 0.0
          %4243 = vmatpush1.msra.mxu0 0.0
          %4244 = vmatprep.subr.mxu0 0.0
          %4245 = vmatpush1.msra.mxu0 0.0
          %4246 = vmatprep.subr.mxu0 0.0
          %4247 = vmatpush1.msra.mxu0 0.0
          %4248 = vmatprep.mubr.f32.mxu0 0.0
          %4249 = vmatmul.mubr.f32.gmra.mrb[0].mxu0 %v4013
          %v4250 = vpop.f32.mrb[0].mxu0
          %v4251 = vadd.f32 %v4147, %v4250
          %v4252 = vpop.f32.mrb[0].mxu0
          %v4253 = vadd.f32 %v4151, %v4252
          %4254 = vdwg.mxu0
          %4255 = vmatprep.subr.mxu0 %v4017
          %4256 = vmatpush1.msra.mxu0 %v4016
          %4257 = vmatprep.subr.mxu0 %v4025
          %4258 = vmatpush1.msra.mxu0 %v4024
          %4259 = vmatprep.subr.mxu0 %v4033
          %4260 = vmatpush1.msra.mxu0 %v4032
          %4261 = vmatprep.subr.mxu0 %v4041
          %4262 = vmatpush1.msra.mxu0 %v4040
          %4263 = vmatprep.subr.mxu0 %v4049
          %4264 = vmatpush1.msra.mxu0 %v4048
          %4265 = vmatprep.subr.mxu0 %v4057
          %4266 = vmatpush1.msra.mxu0 %v4056
          %4267 = vmatprep.subr.mxu0 %v4065
          %4268 = vmatpush1.msra.mxu0 %v4064
          %4269 = vmatprep.subr.mxu0 %v4073
          %4270 = vmatpush1.msra.mxu0 %v4072
          %4271 = vmatprep.subr.mxu0 %v4081
          %4272 = vmatpush1.msra.mxu0 %v4080
          %4273 = vmatprep.subr.mxu0 %v4089
          %4274 = vmatpush1.msra.mxu0 %v4088
          %4275 = vmatprep.subr.mxu0 %v4097
          %4276 = vmatpush1.msra.mxu0 %v4096
          %4277 = vmatprep.subr.mxu0 %v4105
          %4278 = vmatpush1.msra.mxu0 %v4104
          %4279 = vmatprep.subr.mxu0 %v4113
          %4280 = vmatpush1.msra.mxu0 %v4112
          %4281 = vmatprep.subr.mxu0 %v4121
          %4282 = vmatpush1.msra.mxu0 %v4120
          %4283 = vmatprep.subr.mxu0 %v4129
          %4284 = vmatpush1.msra.mxu0 %v4128
          %4285 = vmatprep.subr.mxu0 %v4137
          %4286 = vmatpush1.msra.mxu0 %v4136
          %4287 = vmatprep.subr.mxu0 0.0
          %4288 = vmatpush1.msra.mxu0 0.0
          %4289 = vmatprep.subr.mxu0 0.0
          %4290 = vmatpush1.msra.mxu0 0.0
          %4291 = vmatprep.subr.mxu0 0.0
          %4292 = vmatpush1.msra.mxu0 0.0
          %4293 = vmatprep.subr.mxu0 0.0
          %4294 = vmatpush1.msra.mxu0 0.0
          %4295 = vmatprep.subr.mxu0 0.0
          %4296 = vmatpush1.msra.mxu0 0.0
          %4297 = vmatprep.subr.mxu0 0.0
          %4298 = vmatpush1.msra.mxu0 0.0
          %4299 = vmatprep.subr.mxu0 0.0
          %4300 = vmatpush1.msra.mxu0 0.0
          %4301 = vmatprep.subr.mxu0 0.0
          %4302 = vmatpush1.msra.mxu0 0.0
          %4303 = vmatprep.subr.mxu0 0.0
          %4304 = vmatpush1.msra.mxu0 0.0
          %4305 = vmatprep.subr.mxu0 0.0
          %4306 = vmatpush1.msra.mxu0 0.0
          %4307 = vmatprep.subr.mxu0 0.0
          %4308 = vmatpush1.msra.mxu0 0.0
          %4309 = vmatprep.subr.mxu0 0.0
          %4310 = vmatpush1.msra.mxu0 0.0
          %4311 = vmatprep.subr.mxu0 0.0
          %4312 = vmatpush1.msra.mxu0 0.0
          %4313 = vmatprep.subr.mxu0 0.0
          %4314 = vmatpush1.msra.mxu0 0.0
          %4315 = vmatprep.subr.mxu0 0.0
          %4316 = vmatpush1.msra.mxu0 0.0
          %4317 = vmatprep.subr.mxu0 0.0
          %4318 = vmatpush1.msra.mxu0 0.0
          %4319 = vmatprep.mubr.f32.mxu0 0.0
          %4320 = vmatmul.mubr.f32.gmra.mrb[0].mxu0 %v4013
          %v4321 = vpop.f32.mrb[0].mxu0
          %v4322 = vadd.f32 %v4155, %v4321
          %v4323 = vpop.f32.mrb[0].mxu0
          %v4324 = vadd.f32 %v4159, %v4323
          %4325 = vdwg.mxu0
          %4326 = vmatprep.subr.mxu0 %v4019
          %4327 = vmatpush1.msra.mxu0 %v4018
          %4328 = vmatprep.subr.mxu0 %v4027
          %4329 = vmatpush1.msra.mxu0 %v4026
          %4330 = vmatprep.subr.mxu0 %v4035
          %4331 = vmatpush1.msra.mxu0 %v4034
          %4332 = vmatprep.subr.mxu0 %v4043
          %4333 = vmatpush1.msra.mxu0 %v4042
          %4334 = vmatprep.subr.mxu0 %v4051
          %4335 = vmatpush1.msra.mxu0 %v4050
          %4336 = vmatprep.subr.mxu0 %v4059
          %4337 = vmatpush1.msra.mxu0 %v4058
          %4338 = vmatprep.subr.mxu0 %v4067
          %4339 = vmatpush1.msra.mxu0 %v4066
          %4340 = vmatprep.subr.mxu0 %v4075
          %4341 = vmatpush1.msra.mxu0 %v4074
          %4342 = vmatprep.subr.mxu0 %v4083
          %4343 = vmatpush1.msra.mxu0 %v4082
          %4344 = vmatprep.subr.mxu0 %v4091
          %4345 = vmatpush1.msra.mxu0 %v4090
          %4346 = vmatprep.subr.mxu0 %v4099
          %4347 = vmatpush1.msra.mxu0 %v4098
          %4348 = vmatprep.subr.mxu0 %v4107
          %4349 = vmatpush1.msra.mxu0 %v4106
          %4350 = vmatprep.subr.mxu0 %v4115
          %4351 = vmatpush1.msra.mxu0 %v4114
          %4352 = vmatprep.subr.mxu0 %v4123
          %4353 = vmatpush1.msra.mxu0 %v4122
          %4354 = vmatprep.subr.mxu0 %v4131
          %4355 = vmatpush1.msra.mxu0 %v4130
          %4356 = vmatprep.subr.mxu0 %v4139
          %4357 = vmatpush1.msra.mxu0 %v4138
          %4358 = vmatprep.subr.mxu0 0.0
          %4359 = vmatpush1.msra.mxu0 0.0
          %4360 = vmatprep.subr.mxu0 0.0
          %4361 = vmatpush1.msra.mxu0 0.0
          %4362 = vmatprep.subr.mxu0 0.0
          %4363 = vmatpush1.msra.mxu0 0.0
          %4364 = vmatprep.subr.mxu0 0.0
          %4365 = vmatpush1.msra.mxu0 0.0
          %4366 = vmatprep.subr.mxu0 0.0
          %4367 = vmatpush1.msra.mxu0 0.0
          %4368 = vmatprep.subr.mxu0 0.0
          %4369 = vmatpush1.msra.mxu0 0.0
          %4370 = vmatprep.subr.mxu0 0.0
          %4371 = vmatpush1.msra.mxu0 0.0
          %4372 = vmatprep.subr.mxu0 0.0
          %4373 = vmatpush1.msra.mxu0 0.0
          %4374 = vmatprep.subr.mxu0 0.0
          %4375 = vmatpush1.msra.mxu0 0.0
          %4376 = vmatprep.subr.mxu0 0.0
          %4377 = vmatpush1.msra.mxu0 0.0
          %4378 = vmatprep.subr.mxu0 0.0
          %4379 = vmatpush1.msra.mxu0 0.0
          %4380 = vmatprep.subr.mxu0 0.0
          %4381 = vmatpush1.msra.mxu0 0.0
          %4382 = vmatprep.subr.mxu0 0.0
          %4383 = vmatpush1.msra.mxu0 0.0
          %4384 = vmatprep.subr.mxu0 0.0
          %4385 = vmatpush1.msra.mxu0 0.0
          %4386 = vmatprep.subr.mxu0 0.0
          %4387 = vmatpush1.msra.mxu0 0.0
          %4388 = vmatprep.subr.mxu0 0.0
          %4389 = vmatpush1.msra.mxu0 0.0
          %4390 = vmatprep.mubr.f32.mxu0 0.0
          %4391 = vmatmul.mubr.f32.gmra.mrb[0].mxu0 %v4013
          %v4392 = vpop.f32.mrb[0].mxu0
          %v4393 = vadd.f32 %v4163, %v4392
          %v4394 = vpop.f32.mrb[0].mxu0
          %v4395 = vadd.f32 %v4167, %v4394
          %4396 = vdwg.mxu0
          %4397 = vmatprep.subr.mxu0 %v4021
          %4398 = vmatpush1.msra.mxu0 %v4020
          %4399 = vmatprep.subr.mxu0 %v4029
          %4400 = vmatpush1.msra.mxu0 %v4028
          %4401 = vmatprep.subr.mxu0 %v4037
          %4402 = vmatpush1.msra.mxu0 %v4036
          %4403 = vmatprep.subr.mxu0 %v4045
          %4404 = vmatpush1.msra.mxu0 %v4044
          %4405 = vmatprep.subr.mxu0 %v4053
          %4406 = vmatpush1.msra.mxu0 %v4052
          %4407 = vmatprep.subr.mxu0 %v4061
          %4408 = vmatpush1.msra.mxu0 %v4060
          %4409 = vmatprep.subr.mxu0 %v4069
          %4410 = vmatpush1.msra.mxu0 %v4068
          %4411 = vmatprep.subr.mxu0 %v4077
          %4412 = vmatpush1.msra.mxu0 %v4076
          %4413 = vmatprep.subr.mxu0 %v4085
          %4414 = vmatpush1.msra.mxu0 %v4084
          %4415 = vmatprep.subr.mxu0 %v4093
          %4416 = vmatpush1.msra.mxu0 %v4092
          %4417 = vmatprep.subr.mxu0 %v4101
          %4418 = vmatpush1.msra.mxu0 %v4100
          %4419 = vmatprep.subr.mxu0 %v4109
          %4420 = vmatpush1.msra.mxu0 %v4108
          %4421 = vmatprep.subr.mxu0 %v4117
          %4422 = vmatpush1.msra.mxu0 %v4116
          %4423 = vmatprep.subr.mxu0 %v4125
          %4424 = vmatpush1.msra.mxu0 %v4124
          %4425 = vmatprep.subr.mxu0 %v4133
          %4426 = vmatpush1.msra.mxu0 %v4132
          %4427 = vmatprep.subr.mxu0 %v4141
          %4428 = vmatpush1.msra.mxu0 %v4140
          %4429 = vmatprep.subr.mxu0 0.0
          %4430 = vmatpush1.msra.mxu0 0.0
          %4431 = vmatprep.subr.mxu0 0.0
          %4432 = vmatpush1.msra.mxu0 0.0
          %4433 = vmatprep.subr.mxu0 0.0
          %4434 = vmatpush1.msra.mxu0 0.0
          %4435 = vmatprep.subr.mxu0 0.0
          %4436 = vmatpush1.msra.mxu0 0.0
          %4437 = vmatprep.subr.mxu0 0.0
          %4438 = vmatpush1.msra.mxu0 0.0
          %4439 = vmatprep.subr.mxu0 0.0
          %4440 = vmatpush1.msra.mxu0 0.0
          %4441 = vmatprep.subr.mxu0 0.0
          %4442 = vmatpush1.msra.mxu0 0.0
          %4443 = vmatprep.subr.mxu0 0.0
          %4444 = vmatpush1.msra.mxu0 0.0
          %4445 = vmatprep.subr.mxu0 0.0
          %4446 = vmatpush1.msra.mxu0 0.0
          %4447 = vmatprep.subr.mxu0 0.0
          %4448 = vmatpush1.msra.mxu0 0.0
          %4449 = vmatprep.subr.mxu0 0.0
          %4450 = vmatpush1.msra.mxu0 0.0
          %4451 = vmatprep.subr.mxu0 0.0
          %4452 = vmatpush1.msra.mxu0 0.0
          %4453 = vmatprep.subr.mxu0 0.0
          %4454 = vmatpush1.msra.mxu0 0.0
          %4455 = vmatprep.subr.mxu0 0.0
          %4456 = vmatpush1.msra.mxu0 0.0
          %4457 = vmatprep.subr.mxu0 0.0
          %4458 = vmatpush1.msra.mxu0 0.0
          %4459 = vmatprep.subr.mxu0 0.0
          %4460 = vmatpush1.msra.mxu0 0.0
          %4461 = vmatprep.mubr.f32.mxu0 0.0
          %4462 = vmatmul.mubr.f32.gmra.mrb[0].mxu0 %v4013
          %v4463 = vpop.f32.mrb[0].mxu0
          %v4464 = vadd.f32 %v4171, %v4463
          %v4465 = vpop.f32.mrb[0].mxu0
          %v4466 = vadd.f32 %v4175, %v4465
          %4467 = vdwg.mxu0
          %v4468 = vmul.f32 %v4251, %v4251
          %v4469 = vmul.f32 %v4253, %v4253
          %v4470 = vmul.f32 %v4322, %v4322
          %v4471 = vmul.f32 %v4324, %v4324
          %v4472 = vmul.f32 %v4393, %v4393
          %v4473 = vmul.f32 %v4395, %v4395
          %v4474 = vmul.f32 %v4464, %v4464
          %v4475 = vmul.f32 %v4466, %v4466
          %v4476 = vmul.f32 %v4251, %v4468
          %v4477 = vmul.f32 %v4253, %v4469
          %v4478 = vmul.f32 %v4322, %v4470
          %v4479 = vmul.f32 %v4324, %v4471
          %v4480 = vmul.f32 %v4393, %v4472
          %v4481 = vmul.f32 %v4395, %v4473
          %v4482 = vmul.f32 %v4464, %v4474
          %v4483 = vmul.f32 %v4466, %v4475
          %v4484 = vmul.f32 %v4476, 0.044715
          %v4485 = vmul.f32 %v4477, 0.044715
          %v4486 = vmul.f32 %v4478, 0.044715
          %v4487 = vmul.f32 %v4479, 0.044715
          %v4488 = vmul.f32 %v4480, 0.044715
          %v4489 = vmul.f32 %v4481, 0.044715
          %v4490 = vmul.f32 %v4482, 0.044715
          %v4491 = vmul.f32 %v4483, 0.044715
          %v4492 = vadd.f32 %v4251, %v4484
          %v4493 = vadd.f32 %v4253, %v4485
          %v4494 = vadd.f32 %v4322, %v4486
          %v4495 = vadd.f32 %v4324, %v4487
          %v4496 = vadd.f32 %v4393, %v4488
          %v4497 = vadd.f32 %v4395, %v4489
          %v4498 = vadd.f32 %v4464, %v4490
          %v4499 = vadd.f32 %v4466, %v4491
          %v4500 = vmul.f32 %v4492, 0.7978846
          %v4501 = vmul.f32 %v4493, 0.7978846
          %v4502 = vmul.f32 %v4494, 0.7978846
          %v4503 = vmul.f32 %v4495, 0.7978846
          %v4504 = vmul.f32 %v4496, 0.7978846
          %v4505 = vmul.f32 %v4497, 0.7978846
          %v4506 = vmul.f32 %v4498, 0.7978846
          %v4507 = vmul.f32 %v4499, 0.7978846
          %v4508 = vtanh.pop %v4500
          %v4509 = vtanh.pop %v4501
          %v4510 = vtanh.pop %v4502
          %v4511 = vtanh.pop %v4503
          %v4512 = vtanh.pop %v4504
          %v4513 = vtanh.pop %v4505
          %v4514 = vtanh.pop %v4506
          %v4515 = vtanh.pop %v4507
          %v4516 = vadd.f32 %v4508, 1.0
          %v4517 = vadd.f32 %v4509, 1.0
          %v4518 = vadd.f32 %v4510, 1.0
          %v4519 = vadd.f32 %v4511, 1.0
          %v4520 = vadd.f32 %v4512, 1.0
          %v4521 = vadd.f32 %v4513, 1.0
          %v4522 = vadd.f32 %v4514, 1.0
          %v4523 = vadd.f32 %v4515, 1.0
          %v4524 = vmul.f32 %v4516, 0.5
          %v4525 = vmul.f32 %v4517, 0.5
          %v4526 = vmul.f32 %v4518, 0.5
          %v4527 = vmul.f32 %v4519, 0.5
          %v4528 = vmul.f32 %v4520, 0.5
          %v4529 = vmul.f32 %v4521, 0.5
          %v4530 = vmul.f32 %v4522, 0.5
          %v4531 = vmul.f32 %v4523, 0.5
          %v4532 = vmul.f32 %v4251, %v4524
          %v4533 = vmul.f32 %v4253, %v4525
          %v4534 = vmul.f32 %v4322, %v4526
          %v4535 = vmul.f32 %v4324, %v4527
          %v4536 = vmul.f32 %v4393, %v4528
          %v4537 = vmul.f32 %v4395, %v4529
          %v4538 = vmul.f32 %v4464, %v4530
          %v4539 = vmul.f32 %v4466, %v4531
          %v4540 = vld [vmem:[#allocation32] sm:$0xff]
          %v4541 = vld [vmem:[#allocation32 + $0x8] sm:$0xff]
          %v4542 = vld [vmem:[#allocation32 + $0x10] sm:$0xff]
          %v4543 = vld [vmem:[#allocation32 + $0x18] sm:$0xff]
          %v4544 = vld [vmem:[#allocation32 + $0x20] sm:$0xff]
          %v4545 = vld [vmem:[#allocation32 + $0x28] sm:$0xff]
          %v4546 = vld [vmem:[#allocation32 + $0x30] sm:$0xff]
          %v4547 = vld [vmem:[#allocation32 + $0x38] sm:$0xff]
          %v4548 = vld [vmem:[#allocation32 + $0x40] sm:$0xff]
          %v4549 = vld [vmem:[#allocation32 + $0x48] sm:$0xff]
          %v4550 = vld [vmem:[#allocation32 + $0x50] sm:$0xff]
          %v4551 = vld [vmem:[#allocation32 + $0x58] sm:$0xff]
          %v4552 = vld [vmem:[#allocation32 + $0x60] sm:$0xff]
          %v4553 = vld [vmem:[#allocation32 + $0x68] sm:$0xff]
          %v4554 = vld [vmem:[#allocation32 + $0x70] sm:$0xff]
          %v4555 = vld [vmem:[#allocation32 + $0x78] sm:$0xff]
          %v4556 = vld [vmem:[#allocation32 + $0x80] sm:$0xff]
          %v4557 = vld [vmem:[#allocation32 + $0x88] sm:$0xff]
          %v4558 = vld [vmem:[#allocation32 + $0x90] sm:$0xff]
          %v4559 = vld [vmem:[#allocation32 + $0x98] sm:$0xff]
          %v4560 = vld [vmem:[#allocation32 + $0xa0] sm:$0xff]
          %v4561 = vld [vmem:[#allocation32 + $0xa8] sm:$0xff]
          %v4562 = vld [vmem:[#allocation32 + $0xb0] sm:$0xff]
          %v4563 = vld [vmem:[#allocation32 + $0xb8] sm:$0xff]
          %v4564 = vld [vmem:[#allocation32 + $0xc0] sm:$0xff]
          %v4565 = vld [vmem:[#allocation32 + $0xc8] sm:$0xff]
          %v4566 = vld [vmem:[#allocation32 + $0xd0] sm:$0xff]
          %v4567 = vld [vmem:[#allocation32 + $0xd8] sm:$0xff]
          %v4568 = vld [vmem:[#allocation32 + $0xe0] sm:$0xff]
          %v4569 = vld [vmem:[#allocation32 + $0xe8] sm:$0xff]
          %v4570 = vld [vmem:[#allocation32 + $0xf0] sm:$0xff]
          %v4571 = vld [vmem:[#allocation32 + $0xf8] sm:$0xff]
          %v4572 = vld [vmem:[#allocation32 + $0x100] sm:$0xff]
          %v4573 = vld [vmem:[#allocation32 + $0x108] sm:$0xff]
          %v4574 = vld [vmem:[#allocation32 + $0x110] sm:$0xff]
          %v4575 = vld [vmem:[#allocation32 + $0x118] sm:$0xff]
          %v4576 = vld [vmem:[#allocation32 + $0x120] sm:$0xff]
          %v4577 = vld [vmem:[#allocation32 + $0x128] sm:$0xff]
          %v4578 = vld [vmem:[#allocation32 + $0x130] sm:$0xff]
          %v4579 = vld [vmem:[#allocation32 + $0x138] sm:$0xff]
          %v4580 = vld [vmem:[#allocation32 + $0x140] sm:$0xff]
          %v4581 = vld [vmem:[#allocation32 + $0x148] sm:$0xff]
          %v4582 = vld [vmem:[#allocation32 + $0x150] sm:$0xff]
          %v4583 = vld [vmem:[#allocation32 + $0x158] sm:$0xff]
          %v4584 = vld [vmem:[#allocation32 + $0x160] sm:$0xff]
          %v4585 = vld [vmem:[#allocation32 + $0x168] sm:$0xff]
          %v4586 = vld [vmem:[#allocation32 + $0x170] sm:$0xff]
          %v4587 = vld [vmem:[#allocation32 + $0x178] sm:$0xff]
          %v4588 = vld [vmem:[#allocation32 + $0x180] sm:$0xff]
          %v4589 = vld [vmem:[#allocation32 + $0x188] sm:$0xff]
          %v4590 = vld [vmem:[#allocation32 + $0x190] sm:$0xff]
          %v4591 = vld [vmem:[#allocation32 + $0x198] sm:$0xff]
          %v4592 = vld [vmem:[#allocation32 + $0x1a0] sm:$0xff]
          %v4593 = vld [vmem:[#allocation32 + $0x1a8] sm:$0xff]
          %v4594 = vld [vmem:[#allocation32 + $0x1b0] sm:$0xff]
          %v4595 = vld [vmem:[#allocation32 + $0x1b8] sm:$0xff]
          %v4596 = vld [vmem:[#allocation32 + $0x1c0] sm:$0xff]
          %v4597 = vld [vmem:[#allocation32 + $0x1c8] sm:$0xff]
          %v4598 = vld [vmem:[#allocation32 + $0x1d0] sm:$0xff]
          %v4599 = vld [vmem:[#allocation32 + $0x1d8] sm:$0xff]
          %v4600 = vld [vmem:[#allocation32 + $0x1e0] sm:$0xff]
          %v4601 = vld [vmem:[#allocation32 + $0x1e8] sm:$0xff]
          %v4602 = vld [vmem:[#allocation32 + $0x1f0] sm:$0xff]
          %v4603 = vld [vmem:[#allocation32 + $0x1f8] sm:$0xff]
          %v4604 = vld [vmem:[#allocation32 + $0x200] sm:$0xff]
          %v4605 = vld [vmem:[#allocation32 + $0x208] sm:$0xff]
          %v4606 = vld [vmem:[#allocation32 + $0x210] sm:$0xff]
          %v4607 = vld [vmem:[#allocation32 + $0x218] sm:$0xff]
          %v4608 = vld [vmem:[#allocation32 + $0x220] sm:$0xff]
          %v4609 = vld [vmem:[#allocation32 + $0x228] sm:$0xff]
          %v4610 = vld [vmem:[#allocation32 + $0x230] sm:$0xff]
          %v4611 = vld [vmem:[#allocation32 + $0x238] sm:$0xff]
          %v4612 = vld [vmem:[#allocation32 + $0x240] sm:$0xff]
          %v4613 = vld [vmem:[#allocation32 + $0x248] sm:$0xff]
          %v4614 = vld [vmem:[#allocation32 + $0x250] sm:$0xff]
          %v4615 = vld [vmem:[#allocation32 + $0x258] sm:$0xff]
          %v4616 = vld [vmem:[#allocation32 + $0x260] sm:$0xff]
          %v4617 = vld [vmem:[#allocation32 + $0x268] sm:$0xff]
          %v4618 = vld [vmem:[#allocation32 + $0x270] sm:$0xff]
          %v4619 = vld [vmem:[#allocation32 + $0x278] sm:$0xff]
          %v4620 = vld [vmem:[#allocation32 + $0x280] sm:$0xff]
          %v4621 = vld [vmem:[#allocation32 + $0x288] sm:$0xff]
          %v4622 = vld [vmem:[#allocation32 + $0x290] sm:$0xff]
          %v4623 = vld [vmem:[#allocation32 + $0x298] sm:$0xff]
          %v4624 = vld [vmem:[#allocation32 + $0x2a0] sm:$0xff]
          %v4625 = vld [vmem:[#allocation32 + $0x2a8] sm:$0xff]
          %v4626 = vld [vmem:[#allocation32 + $0x2b0] sm:$0xff]
          %v4627 = vld [vmem:[#allocation32 + $0x2b8] sm:$0xff]
          %v4628 = vld [vmem:[#allocation32 + $0x2c0] sm:$0xff]
          %v4629 = vld [vmem:[#allocation32 + $0x2c8] sm:$0xff]
          %v4630 = vld [vmem:[#allocation32 + $0x2d0] sm:$0xff]
          %v4631 = vld [vmem:[#allocation32 + $0x2d8] sm:$0xff]
          %v4632 = vld [vmem:[#allocation32 + $0x2e0] sm:$0xff]
          %v4633 = vld [vmem:[#allocation32 + $0x2e8] sm:$0xff]
          %v4634 = vld [vmem:[#allocation32 + $0x2f0] sm:$0xff]
          %v4635 = vld [vmem:[#allocation32 + $0x2f8] sm:$0xff]
          %v4636 = vld [vmem:[#allocation32 + $0x300] sm:$0xff]
          %v4637 = vld [vmem:[#allocation32 + $0x308] sm:$0xff]
          %v4638 = vld [vmem:[#allocation32 + $0x310] sm:$0xff]
          %v4639 = vld [vmem:[#allocation32 + $0x318] sm:$0xff]
          %v4640 = vld [vmem:[#allocation32 + $0x320] sm:$0xff]
          %v4641 = vld [vmem:[#allocation32 + $0x328] sm:$0xff]
          %v4642 = vld [vmem:[#allocation32 + $0x330] sm:$0xff]
          %v4643 = vld [vmem:[#allocation32 + $0x338] sm:$0xff]
          %v4644 = vld [vmem:[#allocation32 + $0x340] sm:$0xff]
          %v4645 = vld [vmem:[#allocation32 + $0x348] sm:$0xff]
          %v4646 = vld [vmem:[#allocation32 + $0x350] sm:$0xff]
          %v4647 = vld [vmem:[#allocation32 + $0x358] sm:$0xff]
          %v4648 = vld [vmem:[#allocation32 + $0x360] sm:$0xff]
          %v4649 = vld [vmem:[#allocation32 + $0x368] sm:$0xff]
          %v4650 = vld [vmem:[#allocation32 + $0x370] sm:$0xff]
          %v4651 = vld [vmem:[#allocation32 + $0x378] sm:$0xff]
          %v4652 = vld [vmem:[#allocation32 + $0x380] sm:$0xff]
          %v4653 = vld [vmem:[#allocation32 + $0x388] sm:$0xff]
          %v4654 = vld [vmem:[#allocation32 + $0x390] sm:$0xff]
          %v4655 = vld [vmem:[#allocation32 + $0x398] sm:$0xff]
          %v4656 = vld [vmem:[#allocation32 + $0x3a0] sm:$0xff]
          %v4657 = vld [vmem:[#allocation32 + $0x3a8] sm:$0xff]
          %v4658 = vld [vmem:[#allocation32 + $0x3b0] sm:$0xff]
          %v4659 = vld [vmem:[#allocation32 + $0x3b8] sm:$0xff]
          %v4660 = vld [vmem:[#allocation32 + $0x3c0] sm:$0xff]
          %v4661 = vld [vmem:[#allocation32 + $0x3c8] sm:$0xff]
          %v4662 = vld [vmem:[#allocation32 + $0x3d0] sm:$0xff]
          %v4663 = vld [vmem:[#allocation32 + $0x3d8] sm:$0xff]
          %v4664 = vld [vmem:[#allocation32 + $0x3e0] sm:$0xff]
          %v4665 = vld [vmem:[#allocation32 + $0x3e8] sm:$0xff]
          %v4666 = vld [vmem:[#allocation32 + $0x3f0] sm:$0xff]
          %v4667 = vld [vmem:[#allocation32 + $0x3f8] sm:$0xff]
          %v4668 = vld [vmem:[#allocation32 + $0x400] sm:$0xff]
          %v4669 = vld [vmem:[#allocation32 + $0x408] sm:$0xff]
          %v4670 = vld [vmem:[#allocation32 + $0x410] sm:$0xff]
          %v4671 = vld [vmem:[#allocation32 + $0x418] sm:$0xff]
          %v4672 = vld [vmem:[#allocation32 + $0x420] sm:$0xff]
          %v4673 = vld [vmem:[#allocation32 + $0x428] sm:$0xff]
          %v4674 = vld [vmem:[#allocation32 + $0x430] sm:$0xff]
          %v4675 = vld [vmem:[#allocation32 + $0x438] sm:$0xff]
          %v4676 = vld [vmem:[#allocation32 + $0x440] sm:$0xff]
          %v4677 = vld [vmem:[#allocation32 + $0x448] sm:$0xff]
          %v4678 = vld [vmem:[#allocation32 + $0x450] sm:$0xff]
          %v4679 = vld [vmem:[#allocation32 + $0x458] sm:$0xff]
          %v4680 = vld [vmem:[#allocation32 + $0x460] sm:$0xff]
          %v4681 = vld [vmem:[#allocation32 + $0x468] sm:$0xff]
          %v4682 = vld [vmem:[#allocation32 + $0x470] sm:$0xff]
          %v4683 = vld [vmem:[#allocation32 + $0x478] sm:$0xff]
          %v4684 = vld [vmem:[#allocation32 + $0x480] sm:$0xff]
          %v4685 = vld [vmem:[#allocation32 + $0x488] sm:$0xff]
          %v4686 = vld [vmem:[#allocation32 + $0x490] sm:$0xff]
          %v4687 = vld [vmem:[#allocation32 + $0x498] sm:$0xff]
          %v4688 = vld [vmem:[#allocation32 + $0x4a0] sm:$0xff]
          %v4689 = vld [vmem:[#allocation32 + $0x4a8] sm:$0xff]
          %v4690 = vld [vmem:[#allocation32 + $0x4b0] sm:$0xff]
          %v4691 = vld [vmem:[#allocation32 + $0x4b8] sm:$0xff]
          %v4692 = vld [vmem:[#allocation32 + $0x4c0] sm:$0xff]
          %v4693 = vld [vmem:[#allocation32 + $0x4c8] sm:$0xff]
          %v4694 = vld [vmem:[#allocation32 + $0x4d0] sm:$0xff]
          %v4695 = vld [vmem:[#allocation32 + $0x4d8] sm:$0xff]
          %v4696 = vld [vmem:[#allocation32 + $0x4e0] sm:$0xff]
          %v4697 = vld [vmem:[#allocation32 + $0x4e8] sm:$0xff]
          %v4698 = vld [vmem:[#allocation32 + $0x4f0] sm:$0xff]
          %v4699 = vld [vmem:[#allocation32 + $0x4f8] sm:$0xff]
          %v4700 = vld [vmem:[#allocation32 + $0x500] sm:$0xff]
          %v4701 = vld [vmem:[#allocation32 + $0x508] sm:$0xff]
          %v4702 = vld [vmem:[#allocation32 + $0x510] sm:$0xff]
          %v4703 = vld [vmem:[#allocation32 + $0x518] sm:$0xff]
          %v4704 = vld [vmem:[#allocation32 + $0x520] sm:$0xff]
          %v4705 = vld [vmem:[#allocation32 + $0x528] sm:$0xff]
          %v4706 = vld [vmem:[#allocation32 + $0x530] sm:$0xff]
          %v4707 = vld [vmem:[#allocation32 + $0x538] sm:$0xff]
          %v4708 = vld [vmem:[#allocation32 + $0x540] sm:$0xff]
          %v4709 = vld [vmem:[#allocation32 + $0x548] sm:$0xff]
          %v4710 = vld [vmem:[#allocation32 + $0x550] sm:$0xff]
          %v4711 = vld [vmem:[#allocation32 + $0x558] sm:$0xff]
          %v4712 = vld [vmem:[#allocation32 + $0x560] sm:$0xff]
          %v4713 = vld [vmem:[#allocation32 + $0x568] sm:$0xff]
          %v4714 = vld [vmem:[#allocation32 + $0x570] sm:$0xff]
          %v4715 = vld [vmem:[#allocation32 + $0x578] sm:$0xff]
          %v4716 = vld [vmem:[#allocation32 + $0x580] sm:$0xff]
          %v4717 = vld [vmem:[#allocation32 + $0x588] sm:$0xff]
          %v4718 = vld [vmem:[#allocation32 + $0x590] sm:$0xff]
          %v4719 = vld [vmem:[#allocation32 + $0x598] sm:$0xff]
          %v4720 = vld [vmem:[#allocation32 + $0x5a0] sm:$0xff]
          %v4721 = vld [vmem:[#allocation32 + $0x5a8] sm:$0xff]
          %v4722 = vld [vmem:[#allocation32 + $0x5b0] sm:$0xff]
          %v4723 = vld [vmem:[#allocation32 + $0x5b8] sm:$0xff]
          %v4724 = vld [vmem:[#allocation32 + $0x5c0] sm:$0xff]
          %v4725 = vld [vmem:[#allocation32 + $0x5c8] sm:$0xff]
          %v4726 = vld [vmem:[#allocation32 + $0x5d0] sm:$0xff]
          %v4727 = vld [vmem:[#allocation32 + $0x5d8] sm:$0xff]
          %v4728 = vld [vmem:[#allocation32 + $0x5e0] sm:$0xff]
          %v4729 = vld [vmem:[#allocation32 + $0x5e8] sm:$0xff]
          %v4730 = vld [vmem:[#allocation32 + $0x5f0] sm:$0xff]
          %v4731 = vld [vmem:[#allocation32 + $0x5f8] sm:$0xff]
          %v4732 = vld [vmem:[#allocation32 + $0x600] sm:$0xff]
          %v4733 = vld [vmem:[#allocation32 + $0x608] sm:$0xff]
          %v4734 = vld [vmem:[#allocation32 + $0x610] sm:$0xff]
          %v4735 = vld [vmem:[#allocation32 + $0x618] sm:$0xff]
          %v4736 = vld [vmem:[#allocation32 + $0x620] sm:$0xff]
          %v4737 = vld [vmem:[#allocation32 + $0x628] sm:$0xff]
          %v4738 = vld [vmem:[#allocation32 + $0x630] sm:$0xff]
          %v4739 = vld [vmem:[#allocation32 + $0x638] sm:$0xff]
          %v4740 = vld [vmem:[#allocation32 + $0x640] sm:$0xff]
          %v4741 = vld [vmem:[#allocation32 + $0x648] sm:$0xff]
          %v4742 = vld [vmem:[#allocation32 + $0x650] sm:$0xff]
          %v4743 = vld [vmem:[#allocation32 + $0x658] sm:$0xff]
          %v4744 = vld [vmem:[#allocation32 + $0x660] sm:$0xff]
          %v4745 = vld [vmem:[#allocation32 + $0x668] sm:$0xff]
          %v4746 = vld [vmem:[#allocation32 + $0x670] sm:$0xff]
          %v4747 = vld [vmem:[#allocation32 + $0x678] sm:$0xff]
          %v4748 = vld [vmem:[#allocation32 + $0x680] sm:$0xff]
          %v4749 = vld [vmem:[#allocation32 + $0x688] sm:$0xff]
          %v4750 = vld [vmem:[#allocation32 + $0x690] sm:$0xff]
          %v4751 = vld [vmem:[#allocation32 + $0x698] sm:$0xff]
          %v4752 = vld [vmem:[#allocation32 + $0x6a0] sm:$0xff]
          %v4753 = vld [vmem:[#allocation32 + $0x6a8] sm:$0xff]
          %v4754 = vld [vmem:[#allocation32 + $0x6b0] sm:$0xff]
          %v4755 = vld [vmem:[#allocation32 + $0x6b8] sm:$0xff]
          %v4756 = vld [vmem:[#allocation32 + $0x6c0] sm:$0xff]
          %v4757 = vld [vmem:[#allocation32 + $0x6c8] sm:$0xff]
          %v4758 = vld [vmem:[#allocation32 + $0x6d0] sm:$0xff]
          %v4759 = vld [vmem:[#allocation32 + $0x6d8] sm:$0xff]
          %v4760 = vld [vmem:[#allocation32 + $0x6e0] sm:$0xff]
          %v4761 = vld [vmem:[#allocation32 + $0x6e8] sm:$0xff]
          %v4762 = vld [vmem:[#allocation32 + $0x6f0] sm:$0xff]
          %v4763 = vld [vmem:[#allocation32 + $0x6f8] sm:$0xff]
          %v4764 = vld [vmem:[#allocation32 + $0x700] sm:$0xff]
          %v4765 = vld [vmem:[#allocation32 + $0x708] sm:$0xff]
          %v4766 = vld [vmem:[#allocation32 + $0x710] sm:$0xff]
          %v4767 = vld [vmem:[#allocation32 + $0x718] sm:$0xff]
          %v4768 = vld [vmem:[#allocation32 + $0x720] sm:$0xff]
          %v4769 = vld [vmem:[#allocation32 + $0x728] sm:$0xff]
          %v4770 = vld [vmem:[#allocation32 + $0x730] sm:$0xff]
          %v4771 = vld [vmem:[#allocation32 + $0x738] sm:$0xff]
          %v4772 = vld [vmem:[#allocation32 + $0x740] sm:$0xff]
          %v4773 = vld [vmem:[#allocation32 + $0x748] sm:$0xff]
          %v4774 = vld [vmem:[#allocation32 + $0x750] sm:$0xff]
          %v4775 = vld [vmem:[#allocation32 + $0x758] sm:$0xff]
          %v4776 = vld [vmem:[#allocation32 + $0x760] sm:$0xff]
          %v4777 = vld [vmem:[#allocation32 + $0x768] sm:$0xff]
          %v4778 = vld [vmem:[#allocation32 + $0x770] sm:$0xff]
          %v4779 = vld [vmem:[#allocation32 + $0x778] sm:$0xff]
          %v4780 = vld [vmem:[#allocation32 + $0x780] sm:$0xff]
          %v4781 = vld [vmem:[#allocation32 + $0x788] sm:$0xff]
          %v4782 = vld [vmem:[#allocation32 + $0x790] sm:$0xff]
          %v4783 = vld [vmem:[#allocation32 + $0x798] sm:$0xff]
          %v4784 = vld [vmem:[#allocation32 + $0x7a0] sm:$0xff]
          %v4785 = vld [vmem:[#allocation32 + $0x7a8] sm:$0xff]
          %v4786 = vld [vmem:[#allocation32 + $0x7b0] sm:$0xff]
          %v4787 = vld [vmem:[#allocation32 + $0x7b8] sm:$0xff]
          %v4788 = vld [vmem:[#allocation32 + $0x7c0] sm:$0xff]
          %v4789 = vld [vmem:[#allocation32 + $0x7c8] sm:$0xff]
          %v4790 = vld [vmem:[#allocation32 + $0x7d0] sm:$0xff]
          %v4791 = vld [vmem:[#allocation32 + $0x7d8] sm:$0xff]
          %v4792 = vld [vmem:[#allocation32 + $0x7e0] sm:$0xff]
          %v4793 = vld [vmem:[#allocation32 + $0x7e8] sm:$0xff]
          %v4794 = vld [vmem:[#allocation32 + $0x7f0] sm:$0xff]
          %v4795 = vld [vmem:[#allocation32 + $0x7f8] sm:$0xff]
          %v4796 = vld [vmem:[#allocation32 + $0x800] sm:$0xff]
          %v4797 = vld [vmem:[#allocation32 + $0x808] sm:$0xff]
          %v4798 = vld [vmem:[#allocation32 + $0x810] sm:$0xff]
          %v4799 = vld [vmem:[#allocation32 + $0x818] sm:$0xff]
          %v4800 = vld [vmem:[#allocation32 + $0x820] sm:$0xff]
          %v4801 = vld [vmem:[#allocation32 + $0x828] sm:$0xff]
          %v4802 = vld [vmem:[#allocation32 + $0x830] sm:$0xff]
          %v4803 = vld [vmem:[#allocation32 + $0x838] sm:$0xff]
          %v4804 = vld [vmem:[#allocation32 + $0x840] sm:$0xff]
          %v4805 = vld [vmem:[#allocation32 + $0x848] sm:$0xff]
          %v4806 = vld [vmem:[#allocation32 + $0x850] sm:$0xff]
          %v4807 = vld [vmem:[#allocation32 + $0x858] sm:$0xff]
          %v4808 = vld [vmem:[#allocation32 + $0x860] sm:$0xff]
          %v4809 = vld [vmem:[#allocation32 + $0x868] sm:$0xff]
          %v4810 = vld [vmem:[#allocation32 + $0x870] sm:$0xff]
          %v4811 = vld [vmem:[#allocation32 + $0x878] sm:$0xff]
          %v4812 = vld [vmem:[#allocation32 + $0x880] sm:$0xff]
          %v4813 = vld [vmem:[#allocation32 + $0x888] sm:$0xff]
          %v4814 = vld [vmem:[#allocation32 + $0x890] sm:$0xff]
          %v4815 = vld [vmem:[#allocation32 + $0x898] sm:$0xff]
          %v4816 = vld [vmem:[#allocation32 + $0x8a0] sm:$0xff]
          %v4817 = vld [vmem:[#allocation32 + $0x8a8] sm:$0xff]
          %v4818 = vld [vmem:[#allocation32 + $0x8b0] sm:$0xff]
          %v4819 = vld [vmem:[#allocation32 + $0x8b8] sm:$0xff]
          %v4820 = vld [vmem:[#allocation32 + $0x8c0] sm:$0xff]
          %v4821 = vld [vmem:[#allocation32 + $0x8c8] sm:$0xff]
          %v4822 = vld [vmem:[#allocation32 + $0x8d0] sm:$0xff]
          %v4823 = vld [vmem:[#allocation32 + $0x8d8] sm:$0xff]
          %v4824 = vld [vmem:[#allocation32 + $0x8e0] sm:$0xff]
          %v4825 = vld [vmem:[#allocation32 + $0x8e8] sm:$0xff]
          %v4826 = vld [vmem:[#allocation32 + $0x8f0] sm:$0xff]
          %v4827 = vld [vmem:[#allocation32 + $0x8f8] sm:$0xff]
          %v4828 = vld [vmem:[#allocation32 + $0x900] sm:$0xff]
          %v4829 = vld [vmem:[#allocation32 + $0x908] sm:$0xff]
          %v4830 = vld [vmem:[#allocation32 + $0x910] sm:$0xff]
          %v4831 = vld [vmem:[#allocation32 + $0x918] sm:$0xff]
          %v4832 = vld [vmem:[#allocation32 + $0x920] sm:$0xff]
          %v4833 = vld [vmem:[#allocation32 + $0x928] sm:$0xff]
          %v4834 = vld [vmem:[#allocation32 + $0x930] sm:$0xff]
          %v4835 = vld [vmem:[#allocation32 + $0x938] sm:$0xff]
          %v4836 = vld [vmem:[#allocation32 + $0x940] sm:$0xff]
          %v4837 = vld [vmem:[#allocation32 + $0x948] sm:$0xff]
          %v4838 = vld [vmem:[#allocation32 + $0x950] sm:$0xff]
          %v4839 = vld [vmem:[#allocation32 + $0x958] sm:$0xff]
          %v4840 = vld [vmem:[#allocation32 + $0x960] sm:$0xff]
          %v4841 = vld [vmem:[#allocation32 + $0x968] sm:$0xff]
          %v4842 = vld [vmem:[#allocation32 + $0x970] sm:$0xff]
          %v4843 = vld [vmem:[#allocation32 + $0x978] sm:$0xff]
          %v4844 = vld [vmem:[#allocation32 + $0x980] sm:$0xff]
          %v4845 = vld [vmem:[#allocation32 + $0x988] sm:$0xff]
          %v4846 = vld [vmem:[#allocation32 + $0x990] sm:$0xff]
          %v4847 = vld [vmem:[#allocation32 + $0x998] sm:$0xff]
          %v4848 = vld [vmem:[#allocation32 + $0x9a0] sm:$0xff]
          %v4849 = vld [vmem:[#allocation32 + $0x9a8] sm:$0xff]
          %v4850 = vld [vmem:[#allocation32 + $0x9b0] sm:$0xff]
          %v4851 = vld [vmem:[#allocation32 + $0x9b8] sm:$0xff]
          %v4852 = vld [vmem:[#allocation32 + $0x9c0] sm:$0xff]
          %v4853 = vld [vmem:[#allocation32 + $0x9c8] sm:$0xff]
          %v4854 = vld [vmem:[#allocation32 + $0x9d0] sm:$0xff]
          %v4855 = vld [vmem:[#allocation32 + $0x9d8] sm:$0xff]
          %v4856 = vld [vmem:[#allocation32 + $0x9e0] sm:$0xff]
          %v4857 = vld [vmem:[#allocation32 + $0x9e8] sm:$0xff]
          %v4858 = vld [vmem:[#allocation32 + $0x9f0] sm:$0xff]
          %v4859 = vld [vmem:[#allocation32 + $0x9f8] sm:$0xff]
          %v4860 = vld [vmem:[#allocation32 + $0xa00] sm:$0xff]
          %v4861 = vld [vmem:[#allocation32 + $0xa08] sm:$0xff]
          %v4862 = vld [vmem:[#allocation32 + $0xa10] sm:$0xff]
          %v4863 = vld [vmem:[#allocation32 + $0xa18] sm:$0xff]
          %v4864 = vld [vmem:[#allocation32 + $0xa20] sm:$0xff]
          %v4865 = vld [vmem:[#allocation32 + $0xa28] sm:$0xff]
          %v4866 = vld [vmem:[#allocation32 + $0xa30] sm:$0xff]
          %v4867 = vld [vmem:[#allocation32 + $0xa38] sm:$0xff]
          %v4868 = vld [vmem:[#allocation32 + $0xa40] sm:$0xff]
          %v4869 = vld [vmem:[#allocation32 + $0xa48] sm:$0xff]
          %v4870 = vld [vmem:[#allocation32 + $0xa50] sm:$0xff]
          %v4871 = vld [vmem:[#allocation32 + $0xa58] sm:$0xff]
          %v4872 = vld [vmem:[#allocation32 + $0xa60] sm:$0xff]
          %v4873 = vld [vmem:[#allocation32 + $0xa68] sm:$0xff]
          %v4874 = vld [vmem:[#allocation32 + $0xa70] sm:$0xff]
          %v4875 = vld [vmem:[#allocation32 + $0xa78] sm:$0xff]
          %v4876 = vld [vmem:[#allocation32 + $0xa80] sm:$0xff]
          %v4877 = vld [vmem:[#allocation32 + $0xa88] sm:$0xff]
          %v4878 = vld [vmem:[#allocation32 + $0xa90] sm:$0xff]
          %v4879 = vld [vmem:[#allocation32 + $0xa98] sm:$0xff]
          %v4880 = vld [vmem:[#allocation32 + $0xaa0] sm:$0xff]
          %v4881 = vld [vmem:[#allocation32 + $0xaa8] sm:$0xff]
          %v4882 = vld [vmem:[#allocation32 + $0xab0] sm:$0xff]
          %v4883 = vld [vmem:[#allocation32 + $0xab8] sm:$0xff]
          %v4884 = vld [vmem:[#allocation32 + $0xac0] sm:$0xff]
          %v4885 = vld [vmem:[#allocation32 + $0xac8] sm:$0xff]
          %v4886 = vld [vmem:[#allocation32 + $0xad0] sm:$0xff]
          %v4887 = vld [vmem:[#allocation32 + $0xad8] sm:$0xff]
          %v4888 = vld [vmem:[#allocation32 + $0xae0] sm:$0xff]
          %v4889 = vld [vmem:[#allocation32 + $0xae8] sm:$0xff]
          %v4890 = vld [vmem:[#allocation32 + $0xaf0] sm:$0xff]
          %v4891 = vld [vmem:[#allocation32 + $0xaf8] sm:$0xff]
          %v4892 = vld [vmem:[#allocation32 + $0xb00] sm:$0xff]
          %v4893 = vld [vmem:[#allocation32 + $0xb08] sm:$0xff]
          %v4894 = vld [vmem:[#allocation32 + $0xb10] sm:$0xff]
          %v4895 = vld [vmem:[#allocation32 + $0xb18] sm:$0xff]
          %v4896 = vld [vmem:[#allocation32 + $0xb20] sm:$0xff]
          %v4897 = vld [vmem:[#allocation32 + $0xb28] sm:$0xff]
          %v4898 = vld [vmem:[#allocation32 + $0xb30] sm:$0xff]
          %v4899 = vld [vmem:[#allocation32 + $0xb38] sm:$0xff]
          %v4900 = vld [vmem:[#allocation32 + $0xb40] sm:$0xff]
          %v4901 = vld [vmem:[#allocation32 + $0xb48] sm:$0xff]
          %v4902 = vld [vmem:[#allocation32 + $0xb50] sm:$0xff]
          %v4903 = vld [vmem:[#allocation32 + $0xb58] sm:$0xff]
          %v4904 = vld [vmem:[#allocation32 + $0xb60] sm:$0xff]
          %v4905 = vld [vmem:[#allocation32 + $0xb68] sm:$0xff]
          %v4906 = vld [vmem:[#allocation32 + $0xb70] sm:$0xff]
          %v4907 = vld [vmem:[#allocation32 + $0xb78] sm:$0xff]
          %v4908 = vld [vmem:[#allocation32 + $0xb80] sm:$0xff]
          %v4909 = vld [vmem:[#allocation32 + $0xb88] sm:$0xff]
          %v4910 = vld [vmem:[#allocation32 + $0xb90] sm:$0xff]
          %v4911 = vld [vmem:[#allocation32 + $0xb98] sm:$0xff]
          %v4912 = vld [vmem:[#allocation32 + $0xba0] sm:$0xff]
          %v4913 = vld [vmem:[#allocation32 + $0xba8] sm:$0xff]
          %v4914 = vld [vmem:[#allocation32 + $0xbb0] sm:$0xff]
          %v4915 = vld [vmem:[#allocation32 + $0xbb8] sm:$0xff]
          %v4916 = vld [vmem:[#allocation32 + $0xbc0] sm:$0xff]
          %v4917 = vld [vmem:[#allocation32 + $0xbc8] sm:$0xff]
          %v4918 = vld [vmem:[#allocation32 + $0xbd0] sm:$0xff]
          %v4919 = vld [vmem:[#allocation32 + $0xbd8] sm:$0xff]
          %v4920 = vld [vmem:[#allocation32 + $0xbe0] sm:$0xff]
          %v4921 = vld [vmem:[#allocation32 + $0xbe8] sm:$0xff]
          %v4922 = vld [vmem:[#allocation32 + $0xbf0] sm:$0xff]
          %v4923 = vld [vmem:[#allocation32 + $0xbf8] sm:$0xff]
          %v4924 = vld [vmem:[#allocation32 + $0xc00] sm:$0xff]
          %v4925 = vld [vmem:[#allocation32 + $0xc08] sm:$0xff]
          %v4926 = vld [vmem:[#allocation32 + $0xc10] sm:$0xff]
          %v4927 = vld [vmem:[#allocation32 + $0xc18] sm:$0xff]
          %v4928 = vld [vmem:[#allocation32 + $0xc20] sm:$0xff]
          %v4929 = vld [vmem:[#allocation32 + $0xc28] sm:$0xff]
          %v4930 = vld [vmem:[#allocation32 + $0xc30] sm:$0xff]
          %v4931 = vld [vmem:[#allocation32 + $0xc38] sm:$0xff]
          %v4932 = vld [vmem:[#allocation32 + $0xc40] sm:$0xff]
          %v4933 = vld [vmem:[#allocation32 + $0xc48] sm:$0xff]
          %v4934 = vld [vmem:[#allocation32 + $0xc50] sm:$0xff]
          %v4935 = vld [vmem:[#allocation32 + $0xc58] sm:$0xff]
          %v4936 = vld [vmem:[#allocation32 + $0xc60] sm:$0xff]
          %v4937 = vld [vmem:[#allocation32 + $0xc68] sm:$0xff]
          %v4938 = vld [vmem:[#allocation32 + $0xc70] sm:$0xff]
          %v4939 = vld [vmem:[#allocation32 + $0xc78] sm:$0xff]
          %v4940 = vld [vmem:[#allocation32 + $0xc80] sm:$0xff]
          %v4941 = vld [vmem:[#allocation32 + $0xc88] sm:$0xff]
          %v4942 = vld [vmem:[#allocation32 + $0xc90] sm:$0xff]
          %v4943 = vld [vmem:[#allocation32 + $0xc98] sm:$0xff]
          %v4944 = vld [vmem:[#allocation32 + $0xca0] sm:$0xff]
          %v4945 = vld [vmem:[#allocation32 + $0xca8] sm:$0xff]
          %v4946 = vld [vmem:[#allocation32 + $0xcb0] sm:$0xff]
          %v4947 = vld [vmem:[#allocation32 + $0xcb8] sm:$0xff]
          %v4948 = vld [vmem:[#allocation32 + $0xcc0] sm:$0xff]
          %v4949 = vld [vmem:[#allocation32 + $0xcc8] sm:$0xff]
          %v4950 = vld [vmem:[#allocation32 + $0xcd0] sm:$0xff]
          %v4951 = vld [vmem:[#allocation32 + $0xcd8] sm:$0xff]
          %v4952 = vld [vmem:[#allocation32 + $0xce0] sm:$0xff]
          %v4953 = vld [vmem:[#allocation32 + $0xce8] sm:$0xff]
          %v4954 = vld [vmem:[#allocation32 + $0xcf0] sm:$0xff]
          %v4955 = vld [vmem:[#allocation32 + $0xcf8] sm:$0xff]
          %v4956 = vld [vmem:[#allocation32 + $0xd00] sm:$0xff]
          %v4957 = vld [vmem:[#allocation32 + $0xd08] sm:$0xff]
          %v4958 = vld [vmem:[#allocation32 + $0xd10] sm:$0xff]
          %v4959 = vld [vmem:[#allocation32 + $0xd18] sm:$0xff]
          %v4960 = vld [vmem:[#allocation32 + $0xd20] sm:$0xff]
          %v4961 = vld [vmem:[#allocation32 + $0xd28] sm:$0xff]
          %v4962 = vld [vmem:[#allocation32 + $0xd30] sm:$0xff]
          %v4963 = vld [vmem:[#allocation32 + $0xd38] sm:$0xff]
          %v4964 = vld [vmem:[#allocation32 + $0xd40] sm:$0xff]
          %v4965 = vld [vmem:[#allocation32 + $0xd48] sm:$0xff]
          %v4966 = vld [vmem:[#allocation32 + $0xd50] sm:$0xff]
          %v4967 = vld [vmem:[#allocation32 + $0xd58] sm:$0xff]
          %v4968 = vld [vmem:[#allocation32 + $0xd60] sm:$0xff]
          %v4969 = vld [vmem:[#allocation32 + $0xd68] sm:$0xff]
          %v4970 = vld [vmem:[#allocation32 + $0xd70] sm:$0xff]
          %v4971 = vld [vmem:[#allocation32 + $0xd78] sm:$0xff]
          %v4972 = vld [vmem:[#allocation32 + $0xd80] sm:$0xff]
          %v4973 = vld [vmem:[#allocation32 + $0xd88] sm:$0xff]
          %v4974 = vld [vmem:[#allocation32 + $0xd90] sm:$0xff]
          %v4975 = vld [vmem:[#allocation32 + $0xd98] sm:$0xff]
          %v4976 = vld [vmem:[#allocation32 + $0xda0] sm:$0xff]
          %v4977 = vld [vmem:[#allocation32 + $0xda8] sm:$0xff]
          %v4978 = vld [vmem:[#allocation32 + $0xdb0] sm:$0xff]
          %v4979 = vld [vmem:[#allocation32 + $0xdb8] sm:$0xff]
          %v4980 = vld [vmem:[#allocation32 + $0xdc0] sm:$0xff]
          %v4981 = vld [vmem:[#allocation32 + $0xdc8] sm:$0xff]
          %v4982 = vld [vmem:[#allocation32 + $0xdd0] sm:$0xff]
          %v4983 = vld [vmem:[#allocation32 + $0xdd8] sm:$0xff]
          %v4984 = vld [vmem:[#allocation32 + $0xde0] sm:$0xff]
          %v4985 = vld [vmem:[#allocation32 + $0xde8] sm:$0xff]
          %v4986 = vld [vmem:[#allocation32 + $0xdf0] sm:$0xff]
          %v4987 = vld [vmem:[#allocation32 + $0xdf8] sm:$0xff]
          %v4988 = vld [vmem:[#allocation32 + $0xe00] sm:$0xff]
          %v4989 = vld [vmem:[#allocation32 + $0xe08] sm:$0xff]
          %v4990 = vld [vmem:[#allocation32 + $0xe10] sm:$0xff]
          %v4991 = vld [vmem:[#allocation32 + $0xe18] sm:$0xff]
          %v4992 = vld [vmem:[#allocation32 + $0xe20] sm:$0xff]
          %v4993 = vld [vmem:[#allocation32 + $0xe28] sm:$0xff]
          %v4994 = vld [vmem:[#allocation32 + $0xe30] sm:$0xff]
          %v4995 = vld [vmem:[#allocation32 + $0xe38] sm:$0xff]
          %v4996 = vld [vmem:[#allocation32 + $0xe40] sm:$0xff]
          %v4997 = vld [vmem:[#allocation32 + $0xe48] sm:$0xff]
          %v4998 = vld [vmem:[#allocation32 + $0xe50] sm:$0xff]
          %v4999 = vld [vmem:[#allocation32 + $0xe58] sm:$0xff]
          %v5000 = vld [vmem:[#allocation32 + $0xe60] sm:$0xff]
          %v5001 = vld [vmem:[#allocation32 + $0xe68] sm:$0xff]
          %v5002 = vld [vmem:[#allocation32 + $0xe70] sm:$0xff]
          %v5003 = vld [vmem:[#allocation32 + $0xe78] sm:$0xff]
          %v5004 = vld [vmem:[#allocation32 + $0xe80] sm:$0xff]
          %v5005 = vld [vmem:[#allocation32 + $0xe88] sm:$0xff]
          %v5006 = vld [vmem:[#allocation32 + $0xe90] sm:$0xff]
          %v5007 = vld [vmem:[#allocation32 + $0xe98] sm:$0xff]
          %v5008 = vld [vmem:[#allocation32 + $0xea0] sm:$0xff]
          %v5009 = vld [vmem:[#allocation32 + $0xea8] sm:$0xff]
          %v5010 = vld [vmem:[#allocation32 + $0xeb0] sm:$0xff]
          %v5011 = vld [vmem:[#allocation32 + $0xeb8] sm:$0xff]
          %v5012 = vld [vmem:[#allocation32 + $0xec0] sm:$0xff]
          %v5013 = vld [vmem:[#allocation32 + $0xec8] sm:$0xff]
          %v5014 = vld [vmem:[#allocation32 + $0xed0] sm:$0xff]
          %v5015 = vld [vmem:[#allocation32 + $0xed8] sm:$0xff]
          %v5016 = vld [vmem:[#allocation32 + $0xee0] sm:$0xff]
          %v5017 = vld [vmem:[#allocation32 + $0xee8] sm:$0xff]
          %v5018 = vld [vmem:[#allocation32 + $0xef0] sm:$0xff]
          %v5019 = vld [vmem:[#allocation32 + $0xef8] sm:$0xff]
          %v5020 = vld [vmem:[#allocation32 + $0xf00] sm:$0xff]
          %v5021 = vld [vmem:[#allocation32 + $0xf08] sm:$0xff]
          %v5022 = vld [vmem:[#allocation32 + $0xf10] sm:$0xff]
          %v5023 = vld [vmem:[#allocation32 + $0xf18] sm:$0xff]
          %v5024 = vld [vmem:[#allocation32 + $0xf20] sm:$0xff]
          %v5025 = vld [vmem:[#allocation32 + $0xf28] sm:$0xff]
          %v5026 = vld [vmem:[#allocation32 + $0xf30] sm:$0xff]
          %v5027 = vld [vmem:[#allocation32 + $0xf38] sm:$0xff]
          %v5028 = vld [vmem:[#allocation32 + $0xf40] sm:$0xff]
          %v5029 = vld [vmem:[#allocation32 + $0xf48] sm:$0xff]
          %v5030 = vld [vmem:[#allocation32 + $0xf50] sm:$0xff]
          %v5031 = vld [vmem:[#allocation32 + $0xf58] sm:$0xff]
          %v5032 = vld [vmem:[#allocation32 + $0xf60] sm:$0xff]
          %v5033 = vld [vmem:[#allocation32 + $0xf68] sm:$0xff]
          %v5034 = vld [vmem:[#allocation32 + $0xf70] sm:$0xff]
          %v5035 = vld [vmem:[#allocation32 + $0xf78] sm:$0xff]
          %v5036 = vld [vmem:[#allocation32 + $0xf80] sm:$0xff]
          %v5037 = vld [vmem:[#allocation32 + $0xf88] sm:$0xff]
          %v5038 = vld [vmem:[#allocation32 + $0xf90] sm:$0xff]
          %v5039 = vld [vmem:[#allocation32 + $0xf98] sm:$0xff]
          %v5040 = vld [vmem:[#allocation32 + $0xfa0] sm:$0xff]
          %v5041 = vld [vmem:[#allocation32 + $0xfa8] sm:$0xff]
          %v5042 = vld [vmem:[#allocation32 + $0xfb0] sm:$0xff]
          %v5043 = vld [vmem:[#allocation32 + $0xfb8] sm:$0xff]
          %v5044 = vld [vmem:[#allocation32 + $0xfc0] sm:$0xff]
          %v5045 = vld [vmem:[#allocation32 + $0xfc8] sm:$0xff]
          %v5046 = vld [vmem:[#allocation32 + $0xfd0] sm:$0xff]
          %v5047 = vld [vmem:[#allocation32 + $0xfd8] sm:$0xff]
          %v5048 = vld [vmem:[#allocation32 + $0xfe0] sm:$0xff]
          %v5049 = vld [vmem:[#allocation32 + $0xfe8] sm:$0xff]
          %v5050 = vld [vmem:[#allocation32 + $0xff0] sm:$0xff]
          %v5051 = vld [vmem:[#allocation32 + $0xff8] sm:$0xff]
          %v5052 = vld [vmem:[#allocation33] sm:$0xf]
          %v5054 = vlaneseq
          %v5055 = vshrl.u32 %v5054, 7
          %v5056 = vsub.s32 0, %v5055
          %v5057 = vrot.slane %v5052, %v5056
          %v5058 = vlaneseq
          %v5059 = vshrl.u32 %v5058, 7
          %v5060 = vsub.s32 1, %v5059
          %v5061 = vrot.slane %v5052, %v5060
          %v5062 = vlaneseq
          %v5063 = vshrl.u32 %v5062, 7
          %v5064 = vsub.s32 2, %v5063
          %v5065 = vrot.slane %v5052, %v5064
          %v5066 = vlaneseq
          %v5067 = vshrl.u32 %v5066, 7
          %v5068 = vsub.s32 3, %v5067
          %v5069 = vrot.slane %v5052, %v5068
          %5074 = vmatprep.subr.mxu0 %v4541
          %5075 = vmatpush1.msra.mxu0 %v4540
          %5076 = vmatprep.subr.mxu0 %v4545
          %5077 = vmatpush1.msra.mxu0 %v4544
          %5078 = vmatprep.subr.mxu0 %v4549
          %5079 = vmatpush1.msra.mxu0 %v4548
          %5080 = vmatprep.subr.mxu0 %v4553
          %5081 = vmatpush1.msra.mxu0 %v4552
          %5082 = vmatprep.subr.mxu0 %v4557
          %5083 = vmatpush1.msra.mxu0 %v4556
          %5084 = vmatprep.subr.mxu0 %v4561
          %5085 = vmatpush1.msra.mxu0 %v4560
          %5086 = vmatprep.subr.mxu0 %v4565
          %5087 = vmatpush1.msra.mxu0 %v4564
          %5088 = vmatprep.subr.mxu0 %v4569
          %5089 = vmatpush1.msra.mxu0 %v4568
          %5090 = vmatprep.subr.mxu0 %v4573
          %5091 = vmatpush1.msra.mxu0 %v4572
          %5092 = vmatprep.subr.mxu0 %v4577
          %5093 = vmatpush1.msra.mxu0 %v4576
          %5094 = vmatprep.subr.mxu0 %v4581
          %5095 = vmatpush1.msra.mxu0 %v4580
          %5096 = vmatprep.subr.mxu0 %v4585
          %5097 = vmatpush1.msra.mxu0 %v4584
          %5098 = vmatprep.subr.mxu0 %v4589
          %5099 = vmatpush1.msra.mxu0 %v4588
          %5100 = vmatprep.subr.mxu0 %v4593
          %5101 = vmatpush1.msra.mxu0 %v4592
          %5102 = vmatprep.subr.mxu0 %v4597
          %5103 = vmatpush1.msra.mxu0 %v4596
          %5104 = vmatprep.subr.mxu0 %v4601
          %5105 = vmatpush1.msra.mxu0 %v4600
          %5106 = vmatprep.subr.mxu0 %v4605
          %5107 = vmatpush1.msra.mxu0 %v4604
          %5108 = vmatprep.subr.mxu0 %v4609
          %5109 = vmatpush1.msra.mxu0 %v4608
          %5110 = vmatprep.subr.mxu0 %v4613
          %5111 = vmatpush1.msra.mxu0 %v4612
          %5112 = vmatprep.subr.mxu0 %v4617
          %5113 = vmatpush1.msra.mxu0 %v4616
          %5114 = vmatprep.subr.mxu0 %v4621
          %5115 = vmatpush1.msra.mxu0 %v4620
          %5116 = vmatprep.subr.mxu0 %v4625
          %5117 = vmatpush1.msra.mxu0 %v4624
          %5118 = vmatprep.subr.mxu0 %v4629
          %5119 = vmatpush1.msra.mxu0 %v4628
          %5120 = vmatprep.subr.mxu0 %v4633
          %5121 = vmatpush1.msra.mxu0 %v4632
          %5122 = vmatprep.subr.mxu0 %v4637
          %5123 = vmatpush1.msra.mxu0 %v4636
          %5124 = vmatprep.subr.mxu0 %v4641
          %5125 = vmatpush1.msra.mxu0 %v4640
          %5126 = vmatprep.subr.mxu0 %v4645
          %5127 = vmatpush1.msra.mxu0 %v4644
          %5128 = vmatprep.subr.mxu0 %v4649
          %5129 = vmatpush1.msra.mxu0 %v4648
          %5130 = vmatprep.subr.mxu0 %v4653
          %5131 = vmatpush1.msra.mxu0 %v4652
          %5132 = vmatprep.subr.mxu0 %v4657
          %5133 = vmatpush1.msra.mxu0 %v4656
          %5134 = vmatprep.subr.mxu0 %v4661
          %5135 = vmatpush1.msra.mxu0 %v4660
          %5136 = vmatprep.subr.mxu0 %v4665
          %5137 = vmatpush1.msra.mxu0 %v4664
          %5138 = vmatprep.mubr.f32.mxu0 %v4533
          %5139 = vmatmul.mubr.f32.gmra.mrb[0].mxu0 %v4532
          %v5140 = vpop.f32.mrb[0].mxu0
          %v5141 = vadd.f32 %v5057, %v5140
          %v5142 = vpop.f32.mrb[0].mxu0
          %v5143 = vadd.f32 %v5061, %v5142
          %5144 = vdwg.mxu0
          %5145 = vmatprep.subr.mxu0 %v4669
          %5146 = vmatpush1.msra.mxu0 %v4668
          %5147 = vmatprep.subr.mxu0 %v4673
          %5148 = vmatpush1.msra.mxu0 %v4672
          %5149 = vmatprep.subr.mxu0 %v4677
          %5150 = vmatpush1.msra.mxu0 %v4676
          %5151 = vmatprep.subr.mxu0 %v4681
          %5152 = vmatpush1.msra.mxu0 %v4680
          %5153 = vmatprep.subr.mxu0 %v4685
          %5154 = vmatpush1.msra.mxu0 %v4684
          %5155 = vmatprep.subr.mxu0 %v4689
          %5156 = vmatpush1.msra.mxu0 %v4688
          %5157 = vmatprep.subr.mxu0 %v4693
          %5158 = vmatpush1.msra.mxu0 %v4692
          %5159 = vmatprep.subr.mxu0 %v4697
          %5160 = vmatpush1.msra.mxu0 %v4696
          %5161 = vmatprep.subr.mxu0 %v4701
          %5162 = vmatpush1.msra.mxu0 %v4700
          %5163 = vmatprep.subr.mxu0 %v4705
          %5164 = vmatpush1.msra.mxu0 %v4704
          %5165 = vmatprep.subr.mxu0 %v4709
          %5166 = vmatpush1.msra.mxu0 %v4708
          %5167 = vmatprep.subr.mxu0 %v4713
          %5168 = vmatpush1.msra.mxu0 %v4712
          %5169 = vmatprep.subr.mxu0 %v4717
          %5170 = vmatpush1.msra.mxu0 %v4716
          %5171 = vmatprep.subr.mxu0 %v4721
          %5172 = vmatpush1.msra.mxu0 %v4720
          %5173 = vmatprep.subr.mxu0 %v4725
          %5174 = vmatpush1.msra.mxu0 %v4724
          %5175 = vmatprep.subr.mxu0 %v4729
          %5176 = vmatpush1.msra.mxu0 %v4728
          %5177 = vmatprep.subr.mxu0 %v4733
          %5178 = vmatpush1.msra.mxu0 %v4732
          %5179 = vmatprep.subr.mxu0 %v4737
          %5180 = vmatpush1.msra.mxu0 %v4736
          %5181 = vmatprep.subr.mxu0 %v4741
          %5182 = vmatpush1.msra.mxu0 %v4740
          %5183 = vmatprep.subr.mxu0 %v4745
          %5184 = vmatpush1.msra.mxu0 %v4744
          %5185 = vmatprep.subr.mxu0 %v4749
          %5186 = vmatpush1.msra.mxu0 %v4748
          %5187 = vmatprep.subr.mxu0 %v4753
          %5188 = vmatpush1.msra.mxu0 %v4752
          %5189 = vmatprep.subr.mxu0 %v4757
          %5190 = vmatpush1.msra.mxu0 %v4756
          %5191 = vmatprep.subr.mxu0 %v4761
          %5192 = vmatpush1.msra.mxu0 %v4760
          %5193 = vmatprep.subr.mxu0 %v4765
          %5194 = vmatpush1.msra.mxu0 %v4764
          %5195 = vmatprep.subr.mxu0 %v4769
          %5196 = vmatpush1.msra.mxu0 %v4768
          %5197 = vmatprep.subr.mxu0 %v4773
          %5198 = vmatpush1.msra.mxu0 %v4772
          %5199 = vmatprep.subr.mxu0 %v4777
          %5200 = vmatpush1.msra.mxu0 %v4776
          %5201 = vmatprep.subr.mxu0 %v4781
          %5202 = vmatpush1.msra.mxu0 %v4780
          %5203 = vmatprep.subr.mxu0 %v4785
          %5204 = vmatpush1.msra.mxu0 %v4784
          %5205 = vmatprep.subr.mxu0 %v4789
          %5206 = vmatpush1.msra.mxu0 %v4788
          %5207 = vmatprep.subr.mxu0 %v4793
          %5208 = vmatpush1.msra.mxu0 %v4792
          %5209 = vmatprep.mubr.f32.mxu0 %v4535
          %5210 = vmatmul.mubr.f32.gmra.mrb[0].mxu0 %v4534
          %v5211 = vpop.f32.mrb[0].mxu0
          %v5212 = vadd.f32 %v5141, %v5211
          %v5213 = vpop.f32.mrb[0].mxu0
          %v5214 = vadd.f32 %v5143, %v5213
          %5215 = vdwg.mxu0
          %5216 = vmatprep.subr.mxu0 %v4797
          %5217 = vmatpush1.msra.mxu0 %v4796
          %5218 = vmatprep.subr.mxu0 %v4801
          %5219 = vmatpush1.msra.mxu0 %v4800
          %5220 = vmatprep.subr.mxu0 %v4805
          %5221 = vmatpush1.msra.mxu0 %v4804
          %5222 = vmatprep.subr.mxu0 %v4809
          %5223 = vmatpush1.msra.mxu0 %v4808
          %5224 = vmatprep.subr.mxu0 %v4813
          %5225 = vmatpush1.msra.mxu0 %v4812
          %5226 = vmatprep.subr.mxu0 %v4817
          %5227 = vmatpush1.msra.mxu0 %v4816
          %5228 = vmatprep.subr.mxu0 %v4821
          %5229 = vmatpush1.msra.mxu0 %v4820
          %5230 = vmatprep.subr.mxu0 %v4825
          %5231 = vmatpush1.msra.mxu0 %v4824
          %5232 = vmatprep.subr.mxu0 %v4829
          %5233 = vmatpush1.msra.mxu0 %v4828
          %5234 = vmatprep.subr.mxu0 %v4833
          %5235 = vmatpush1.msra.mxu0 %v4832
          %5236 = vmatprep.subr.mxu0 %v4837
          %5237 = vmatpush1.msra.mxu0 %v4836
          %5238 = vmatprep.subr.mxu0 %v4841
          %5239 = vmatpush1.msra.mxu0 %v4840
          %5240 = vmatprep.subr.mxu0 %v4845
          %5241 = vmatpush1.msra.mxu0 %v4844
          %5242 = vmatprep.subr.mxu0 %v4849
          %5243 = vmatpush1.msra.mxu0 %v4848
          %5244 = vmatprep.subr.mxu0 %v4853
          %5245 = vmatpush1.msra.mxu0 %v4852
          %5246 = vmatprep.subr.mxu0 %v4857
          %5247 = vmatpush1.msra.mxu0 %v4856
          %5248 = vmatprep.subr.mxu0 %v4861
          %5249 = vmatpush1.msra.mxu0 %v4860
          %5250 = vmatprep.subr.mxu0 %v4865
          %5251 = vmatpush1.msra.mxu0 %v4864
          %5252 = vmatprep.subr.mxu0 %v4869
          %5253 = vmatpush1.msra.mxu0 %v4868
          %5254 = vmatprep.subr.mxu0 %v4873
          %5255 = vmatpush1.msra.mxu0 %v4872
          %5256 = vmatprep.subr.mxu0 %v4877
          %5257 = vmatpush1.msra.mxu0 %v4876
          %5258 = vmatprep.subr.mxu0 %v4881
          %5259 = vmatpush1.msra.mxu0 %v4880
          %5260 = vmatprep.subr.mxu0 %v4885
          %5261 = vmatpush1.msra.mxu0 %v4884
          %5262 = vmatprep.subr.mxu0 %v4889
          %5263 = vmatpush1.msra.mxu0 %v4888
          %5264 = vmatprep.subr.mxu0 %v4893
          %5265 = vmatpush1.msra.mxu0 %v4892
          %5266 = vmatprep.subr.mxu0 %v4897
          %5267 = vmatpush1.msra.mxu0 %v4896
          %5268 = vmatprep.subr.mxu0 %v4901
          %5269 = vmatpush1.msra.mxu0 %v4900
          %5270 = vmatprep.subr.mxu0 %v4905
          %5271 = vmatpush1.msra.mxu0 %v4904
          %5272 = vmatprep.subr.mxu0 %v4909
          %5273 = vmatpush1.msra.mxu0 %v4908
          %5274 = vmatprep.subr.mxu0 %v4913
          %5275 = vmatpush1.msra.mxu0 %v4912
          %5276 = vmatprep.subr.mxu0 %v4917
          %5277 = vmatpush1.msra.mxu0 %v4916
          %5278 = vmatprep.subr.mxu0 %v4921
          %5279 = vmatpush1.msra.mxu0 %v4920
          %5280 = vmatprep.mubr.f32.mxu0 %v4537
          %5281 = vmatmul.mubr.f32.gmra.mrb[0].mxu0 %v4536
          %v5282 = vpop.f32.mrb[0].mxu0
          %v5283 = vadd.f32 %v5212, %v5282
          %v5284 = vpop.f32.mrb[0].mxu0
          %v5285 = vadd.f32 %v5214, %v5284
          %5286 = vdwg.mxu0
          %5287 = vmatprep.subr.mxu0 %v4925
          %5288 = vmatpush1.msra.mxu0 %v4924
          %5289 = vmatprep.subr.mxu0 %v4929
          %5290 = vmatpush1.msra.mxu0 %v4928
          %5291 = vmatprep.subr.mxu0 %v4933
          %5292 = vmatpush1.msra.mxu0 %v4932
          %5293 = vmatprep.subr.mxu0 %v4937
          %5294 = vmatpush1.msra.mxu0 %v4936
          %5295 = vmatprep.subr.mxu0 %v4941
          %5296 = vmatpush1.msra.mxu0 %v4940
          %5297 = vmatprep.subr.mxu0 %v4945
          %5298 = vmatpush1.msra.mxu0 %v4944
          %5299 = vmatprep.subr.mxu0 %v4949
          %5300 = vmatpush1.msra.mxu0 %v4948
          %5301 = vmatprep.subr.mxu0 %v4953
          %5302 = vmatpush1.msra.mxu0 %v4952
          %5303 = vmatprep.subr.mxu0 %v4957
          %5304 = vmatpush1.msra.mxu0 %v4956
          %5305 = vmatprep.subr.mxu0 %v4961
          %5306 = vmatpush1.msra.mxu0 %v4960
          %5307 = vmatprep.subr.mxu0 %v4965
          %5308 = vmatpush1.msra.mxu0 %v4964
          %5309 = vmatprep.subr.mxu0 %v4969
          %5310 = vmatpush1.msra.mxu0 %v4968
          %5311 = vmatprep.subr.mxu0 %v4973
          %5312 = vmatpush1.msra.mxu0 %v4972
          %5313 = vmatprep.subr.mxu0 %v4977
          %5314 = vmatpush1.msra.mxu0 %v4976
          %5315 = vmatprep.subr.mxu0 %v4981
          %5316 = vmatpush1.msra.mxu0 %v4980
          %5317 = vmatprep.subr.mxu0 %v4985
          %5318 = vmatpush1.msra.mxu0 %v4984
          %5319 = vmatprep.subr.mxu0 %v4989
          %5320 = vmatpush1.msra.mxu0 %v4988
          %5321 = vmatprep.subr.mxu0 %v4993
          %5322 = vmatpush1.msra.mxu0 %v4992
          %5323 = vmatprep.subr.mxu0 %v4997
          %5324 = vmatpush1.msra.mxu0 %v4996
          %5325 = vmatprep.subr.mxu0 %v5001
          %5326 = vmatpush1.msra.mxu0 %v5000
          %5327 = vmatprep.subr.mxu0 %v5005
          %5328 = vmatpush1.msra.mxu0 %v5004
          %5329 = vmatprep.subr.mxu0 %v5009
          %5330 = vmatpush1.msra.mxu0 %v5008
          %5331 = vmatprep.subr.mxu0 %v5013
          %5332 = vmatpush1.msra.mxu0 %v5012
          %5333 = vmatprep.subr.mxu0 %v5017
          %5334 = vmatpush1.msra.mxu0 %v5016
          %5335 = vmatprep.subr.mxu0 %v5021
          %5336 = vmatpush1.msra.mxu0 %v5020
          %5337 = vmatprep.subr.mxu0 %v5025
          %5338 = vmatpush1.msra.mxu0 %v5024
          %5339 = vmatprep.subr.mxu0 %v5029
          %5340 = vmatpush1.msra.mxu0 %v5028
          %5341 = vmatprep.subr.mxu0 %v5033
          %5342 = vmatpush1.msra.mxu0 %v5032
          %5343 = vmatprep.subr.mxu0 %v5037
          %5344 = vmatpush1.msra.mxu0 %v5036
          %5345 = vmatprep.subr.mxu0 %v5041
          %5346 = vmatpush1.msra.mxu0 %v5040
          %5347 = vmatprep.subr.mxu0 %v5045
          %5348 = vmatpush1.msra.mxu0 %v5044
          %5349 = vmatprep.subr.mxu0 %v5049
          %5350 = vmatpush1.msra.mxu0 %v5048
          %5351 = vmatprep.mubr.f32.mxu0 %v4539
          %5352 = vmatmul.mubr.f32.gmra.mrb[0].mxu0 %v4538
          %v5353 = vpop.f32.mrb[0].mxu0
          %v5354 = vadd.f32 %v5283, %v5353
          %v5355 = vpop.f32.mrb[0].mxu0
          %v5356 = vadd.f32 %v5285, %v5355
          %5357 = vdwg.mxu0
          %5358 = vmatprep.subr.mxu0 %v4543
          %5359 = vmatpush1.msra.mxu0 %v4542
          %5360 = vmatprep.subr.mxu0 %v4547
          %5361 = vmatpush1.msra.mxu0 %v4546
          %5362 = vmatprep.subr.mxu0 %v4551
          %5363 = vmatpush1.msra.mxu0 %v4550
          %5364 = vmatprep.subr.mxu0 %v4555
          %5365 = vmatpush1.msra.mxu0 %v4554
          %5366 = vmatprep.subr.mxu0 %v4559
          %5367 = vmatpush1.msra.mxu0 %v4558
          %5368 = vmatprep.subr.mxu0 %v4563
          %5369 = vmatpush1.msra.mxu0 %v4562
          %5370 = vmatprep.subr.mxu0 %v4567
          %5371 = vmatpush1.msra.mxu0 %v4566
          %5372 = vmatprep.subr.mxu0 %v4571
          %5373 = vmatpush1.msra.mxu0 %v4570
          %5374 = vmatprep.subr.mxu0 %v4575
          %5375 = vmatpush1.msra.mxu0 %v4574
          %5376 = vmatprep.subr.mxu0 %v4579
          %5377 = vmatpush1.msra.mxu0 %v4578
          %5378 = vmatprep.subr.mxu0 %v4583
          %5379 = vmatpush1.msra.mxu0 %v4582
          %5380 = vmatprep.subr.mxu0 %v4587
          %5381 = vmatpush1.msra.mxu0 %v4586
          %5382 = vmatprep.subr.mxu0 %v4591
          %5383 = vmatpush1.msra.mxu0 %v4590
          %5384 = vmatprep.subr.mxu0 %v4595
          %5385 = vmatpush1.msra.mxu0 %v4594
          %5386 = vmatprep.subr.mxu0 %v4599
          %5387 = vmatpush1.msra.mxu0 %v4598
          %5388 = vmatprep.subr.mxu0 %v4603
          %5389 = vmatpush1.msra.mxu0 %v4602
          %5390 = vmatprep.subr.mxu0 %v4607
          %5391 = vmatpush1.msra.mxu0 %v4606
          %5392 = vmatprep.subr.mxu0 %v4611
          %5393 = vmatpush1.msra.mxu0 %v4610
          %5394 = vmatprep.subr.mxu0 %v4615
          %5395 = vmatpush1.msra.mxu0 %v4614
          %5396 = vmatprep.subr.mxu0 %v4619
          %5397 = vmatpush1.msra.mxu0 %v4618
          %5398 = vmatprep.subr.mxu0 %v4623
          %5399 = vmatpush1.msra.mxu0 %v4622
          %5400 = vmatprep.subr.mxu0 %v4627
          %5401 = vmatpush1.msra.mxu0 %v4626
          %5402 = vmatprep.subr.mxu0 %v4631
          %5403 = vmatpush1.msra.mxu0 %v4630
          %5404 = vmatprep.subr.mxu0 %v4635
          %5405 = vmatpush1.msra.mxu0 %v4634
          %5406 = vmatprep.subr.mxu0 %v4639
          %5407 = vmatpush1.msra.mxu0 %v4638
          %5408 = vmatprep.subr.mxu0 %v4643
          %5409 = vmatpush1.msra.mxu0 %v4642
          %5410 = vmatprep.subr.mxu0 %v4647
          %5411 = vmatpush1.msra.mxu0 %v4646
          %5412 = vmatprep.subr.mxu0 %v4651
          %5413 = vmatpush1.msra.mxu0 %v4650
          %5414 = vmatprep.subr.mxu0 %v4655
          %5415 = vmatpush1.msra.mxu0 %v4654
          %5416 = vmatprep.subr.mxu0 %v4659
          %5417 = vmatpush1.msra.mxu0 %v4658
          %5418 = vmatprep.subr.mxu0 %v4663
          %5419 = vmatpush1.msra.mxu0 %v4662
          %5420 = vmatprep.subr.mxu0 %v4667
          %5421 = vmatpush1.msra.mxu0 %v4666
          %5422 = vmatprep.mubr.f32.mxu0 %v4533
          %5423 = vmatmul.mubr.f32.gmra.mrb[0].mxu0 %v4532
          %v5424 = vpop.f32.mrb[0].mxu0
          %v5425 = vadd.f32 %v5065, %v5424
          %v5426 = vpop.f32.mrb[0].mxu0
          %v5427 = vadd.f32 %v5069, %v5426
          %5428 = vdwg.mxu0
          %5429 = vmatprep.subr.mxu0 %v4671
          %5430 = vmatpush1.msra.mxu0 %v4670
          %5431 = vmatprep.subr.mxu0 %v4675
          %5432 = vmatpush1.msra.mxu0 %v4674
          %5433 = vmatprep.subr.mxu0 %v4679
          %5434 = vmatpush1.msra.mxu0 %v4678
          %5435 = vmatprep.subr.mxu0 %v4683
          %5436 = vmatpush1.msra.mxu0 %v4682
          %5437 = vmatprep.subr.mxu0 %v4687
          %5438 = vmatpush1.msra.mxu0 %v4686
          %5439 = vmatprep.subr.mxu0 %v4691
          %5440 = vmatpush1.msra.mxu0 %v4690
          %5441 = vmatprep.subr.mxu0 %v4695
          %5442 = vmatpush1.msra.mxu0 %v4694
          %5443 = vmatprep.subr.mxu0 %v4699
          %5444 = vmatpush1.msra.mxu0 %v4698
          %5445 = vmatprep.subr.mxu0 %v4703
          %5446 = vmatpush1.msra.mxu0 %v4702
          %5447 = vmatprep.subr.mxu0 %v4707
          %5448 = vmatpush1.msra.mxu0 %v4706
          %5449 = vmatprep.subr.mxu0 %v4711
          %5450 = vmatpush1.msra.mxu0 %v4710
          %5451 = vmatprep.subr.mxu0 %v4715
          %5452 = vmatpush1.msra.mxu0 %v4714
          %5453 = vmatprep.subr.mxu0 %v4719
          %5454 = vmatpush1.msra.mxu0 %v4718
          %5455 = vmatprep.subr.mxu0 %v4723
          %5456 = vmatpush1.msra.mxu0 %v4722
          %5457 = vmatprep.subr.mxu0 %v4727
          %5458 = vmatpush1.msra.mxu0 %v4726
          %5459 = vmatprep.subr.mxu0 %v4731
          %5460 = vmatpush1.msra.mxu0 %v4730
          %5461 = vmatprep.subr.mxu0 %v4735
          %5462 = vmatpush1.msra.mxu0 %v4734
          %5463 = vmatprep.subr.mxu0 %v4739
          %5464 = vmatpush1.msra.mxu0 %v4738
          %5465 = vmatprep.subr.mxu0 %v4743
          %5466 = vmatpush1.msra.mxu0 %v4742
          %5467 = vmatprep.subr.mxu0 %v4747
          %5468 = vmatpush1.msra.mxu0 %v4746
          %5469 = vmatprep.subr.mxu0 %v4751
          %5470 = vmatpush1.msra.mxu0 %v4750
          %5471 = vmatprep.subr.mxu0 %v4755
          %5472 = vmatpush1.msra.mxu0 %v4754
          %5473 = vmatprep.subr.mxu0 %v4759
          %5474 = vmatpush1.msra.mxu0 %v4758
          %5475 = vmatprep.subr.mxu0 %v4763
          %5476 = vmatpush1.msra.mxu0 %v4762
          %5477 = vmatprep.subr.mxu0 %v4767
          %5478 = vmatpush1.msra.mxu0 %v4766
          %5479 = vmatprep.subr.mxu0 %v4771
          %5480 = vmatpush1.msra.mxu0 %v4770
          %5481 = vmatprep.subr.mxu0 %v4775
          %5482 = vmatpush1.msra.mxu0 %v4774
          %5483 = vmatprep.subr.mxu0 %v4779
          %5484 = vmatpush1.msra.mxu0 %v4778
          %5485 = vmatprep.subr.mxu0 %v4783
          %5486 = vmatpush1.msra.mxu0 %v4782
          %5487 = vmatprep.subr.mxu0 %v4787
          %5488 = vmatpush1.msra.mxu0 %v4786
          %5489 = vmatprep.subr.mxu0 %v4791
          %5490 = vmatpush1.msra.mxu0 %v4790
          %5491 = vmatprep.subr.mxu0 %v4795
          %5492 = vmatpush1.msra.mxu0 %v4794
          %5493 = vmatprep.mubr.f32.mxu0 %v4535
          %5494 = vmatmul.mubr.f32.gmra.mrb[0].mxu0 %v4534
          %v5495 = vpop.f32.mrb[0].mxu0
          %v5496 = vadd.f32 %v5425, %v5495
          %v5497 = vpop.f32.mrb[0].mxu0
          %v5498 = vadd.f32 %v5427, %v5497
          %5499 = vdwg.mxu0
          %5500 = vmatprep.subr.mxu0 %v4799
          %5501 = vmatpush1.msra.mxu0 %v4798
          %5502 = vmatprep.subr.mxu0 %v4803
          %5503 = vmatpush1.msra.mxu0 %v4802
          %5504 = vmatprep.subr.mxu0 %v4807
          %5505 = vmatpush1.msra.mxu0 %v4806
          %5506 = vmatprep.subr.mxu0 %v4811
          %5507 = vmatpush1.msra.mxu0 %v4810
          %5508 = vmatprep.subr.mxu0 %v4815
          %5509 = vmatpush1.msra.mxu0 %v4814
          %5510 = vmatprep.subr.mxu0 %v4819
          %5511 = vmatpush1.msra.mxu0 %v4818
          %5512 = vmatprep.subr.mxu0 %v4823
          %5513 = vmatpush1.msra.mxu0 %v4822
          %5514 = vmatprep.subr.mxu0 %v4827
          %5515 = vmatpush1.msra.mxu0 %v4826
          %5516 = vmatprep.subr.mxu0 %v4831
          %5517 = vmatpush1.msra.mxu0 %v4830
          %5518 = vmatprep.subr.mxu0 %v4835
          %5519 = vmatpush1.msra.mxu0 %v4834
          %5520 = vmatprep.subr.mxu0 %v4839
          %5521 = vmatpush1.msra.mxu0 %v4838
          %5522 = vmatprep.subr.mxu0 %v4843
          %5523 = vmatpush1.msra.mxu0 %v4842
          %5524 = vmatprep.subr.mxu0 %v4847
          %5525 = vmatpush1.msra.mxu0 %v4846
          %5526 = vmatprep.subr.mxu0 %v4851
          %5527 = vmatpush1.msra.mxu0 %v4850
          %5528 = vmatprep.subr.mxu0 %v4855
          %5529 = vmatpush1.msra.mxu0 %v4854
          %5530 = vmatprep.subr.mxu0 %v4859
          %5531 = vmatpush1.msra.mxu0 %v4858
          %5532 = vmatprep.subr.mxu0 %v4863
          %5533 = vmatpush1.msra.mxu0 %v4862
          %5534 = vmatprep.subr.mxu0 %v4867
          %5535 = vmatpush1.msra.mxu0 %v4866
          %5536 = vmatprep.subr.mxu0 %v4871
          %5537 = vmatpush1.msra.mxu0 %v4870
          %5538 = vmatprep.subr.mxu0 %v4875
          %5539 = vmatpush1.msra.mxu0 %v4874
          %5540 = vmatprep.subr.mxu0 %v4879
          %5541 = vmatpush1.msra.mxu0 %v4878
          %5542 = vmatprep.subr.mxu0 %v4883
          %5543 = vmatpush1.msra.mxu0 %v4882
          %5544 = vmatprep.subr.mxu0 %v4887
          %5545 = vmatpush1.msra.mxu0 %v4886
          %5546 = vmatprep.subr.mxu0 %v4891
          %5547 = vmatpush1.msra.mxu0 %v4890
          %5548 = vmatprep.subr.mxu0 %v4895
          %5549 = vmatpush1.msra.mxu0 %v4894
          %5550 = vmatprep.subr.mxu0 %v4899
          %5551 = vmatpush1.msra.mxu0 %v4898
          %5552 = vmatprep.subr.mxu0 %v4903
          %5553 = vmatpush1.msra.mxu0 %v4902
          %5554 = vmatprep.subr.mxu0 %v4907
          %5555 = vmatpush1.msra.mxu0 %v4906
          %5556 = vmatprep.subr.mxu0 %v4911
          %5557 = vmatpush1.msra.mxu0 %v4910
          %5558 = vmatprep.subr.mxu0 %v4915
          %5559 = vmatpush1.msra.mxu0 %v4914
          %5560 = vmatprep.subr.mxu0 %v4919
          %5561 = vmatpush1.msra.mxu0 %v4918
          %5562 = vmatprep.subr.mxu0 %v4923
          %5563 = vmatpush1.msra.mxu0 %v4922
          %5564 = vmatprep.mubr.f32.mxu0 %v4537
          %5565 = vmatmul.mubr.f32.gmra.mrb[0].mxu0 %v4536
          %v5566 = vpop.f32.mrb[0].mxu0
          %v5567 = vadd.f32 %v5496, %v5566
          %v5568 = vpop.f32.mrb[0].mxu0
          %v5569 = vadd.f32 %v5498, %v5568
          %5570 = vdwg.mxu0
          %5571 = vmatprep.subr.mxu0 %v4927
          %5572 = vmatpush1.msra.mxu0 %v4926
          %5573 = vmatprep.subr.mxu0 %v4931
          %5574 = vmatpush1.msra.mxu0 %v4930
          %5575 = vmatprep.subr.mxu0 %v4935
          %5576 = vmatpush1.msra.mxu0 %v4934
          %5577 = vmatprep.subr.mxu0 %v4939
          %5578 = vmatpush1.msra.mxu0 %v4938
          %5579 = vmatprep.subr.mxu0 %v4943
          %5580 = vmatpush1.msra.mxu0 %v4942
          %5581 = vmatprep.subr.mxu0 %v4947
          %5582 = vmatpush1.msra.mxu0 %v4946
          %5583 = vmatprep.subr.mxu0 %v4951
          %5584 = vmatpush1.msra.mxu0 %v4950
          %5585 = vmatprep.subr.mxu0 %v4955
          %5586 = vmatpush1.msra.mxu0 %v4954
          %5587 = vmatprep.subr.mxu0 %v4959
          %5588 = vmatpush1.msra.mxu0 %v4958
          %5589 = vmatprep.subr.mxu0 %v4963
          %5590 = vmatpush1.msra.mxu0 %v4962
          %5591 = vmatprep.subr.mxu0 %v4967
          %5592 = vmatpush1.msra.mxu0 %v4966
          %5593 = vmatprep.subr.mxu0 %v4971
          %5594 = vmatpush1.msra.mxu0 %v4970
          %5595 = vmatprep.subr.mxu0 %v4975
          %5596 = vmatpush1.msra.mxu0 %v4974
          %5597 = vmatprep.subr.mxu0 %v4979
          %5598 = vmatpush1.msra.mxu0 %v4978
          %5599 = vmatprep.subr.mxu0 %v4983
          %5600 = vmatpush1.msra.mxu0 %v4982
          %5601 = vmatprep.subr.mxu0 %v4987
          %5602 = vmatpush1.msra.mxu0 %v4986
          %5603 = vmatprep.subr.mxu0 %v4991
          %5604 = vmatpush1.msra.mxu0 %v4990
          %5605 = vmatprep.subr.mxu0 %v4995
          %5606 = vmatpush1.msra.mxu0 %v4994
          %5607 = vmatprep.subr.mxu0 %v4999
          %5608 = vmatpush1.msra.mxu0 %v4998
          %5609 = vmatprep.subr.mxu0 %v5003
          %5610 = vmatpush1.msra.mxu0 %v5002
          %5611 = vmatprep.subr.mxu0 %v5007
          %5612 = vmatpush1.msra.mxu0 %v5006
          %5613 = vmatprep.subr.mxu0 %v5011
          %5614 = vmatpush1.msra.mxu0 %v5010
          %5615 = vmatprep.subr.mxu0 %v5015
          %5616 = vmatpush1.msra.mxu0 %v5014
          %5617 = vmatprep.subr.mxu0 %v5019
          %5618 = vmatpush1.msra.mxu0 %v5018
          %5619 = vmatprep.subr.mxu0 %v5023
          %5620 = vmatpush1.msra.mxu0 %v5022
          %5621 = vmatprep.subr.mxu0 %v5027
          %5622 = vmatpush1.msra.mxu0 %v5026
          %5623 = vmatprep.subr.mxu0 %v5031
          %5624 = vmatpush1.msra.mxu0 %v5030
          %5625 = vmatprep.subr.mxu0 %v5035
          %5626 = vmatpush1.msra.mxu0 %v5034
          %5627 = vmatprep.subr.mxu0 %v5039
          %5628 = vmatpush1.msra.mxu0 %v5038
          %5629 = vmatprep.subr.mxu0 %v5043
          %5630 = vmatpush1.msra.mxu0 %v5042
          %5631 = vmatprep.subr.mxu0 %v5047
          %5632 = vmatpush1.msra.mxu0 %v5046
          %5633 = vmatprep.subr.mxu0 %v5051
          %5634 = vmatpush1.msra.mxu0 %v5050
          %5635 = vmatprep.mubr.f32.mxu0 %v4539
          %5636 = vmatmul.mubr.f32.gmra.mrb[0].mxu0 %v4538
          %v5637 = vpop.f32.mrb[0].mxu0
          %v5638 = vadd.f32 %v5567, %v5637
          %v5639 = vpop.f32.mrb[0].mxu0
          %v5640 = vadd.f32 %v5569, %v5639
          %5641 = vdwg.mxu0
          %v5642 = vmul.f32 %v5354, %v5354
          %v5643 = vmul.f32 %v5356, %v5356
          %v5644 = vmul.f32 %v5638, %v5638
          %v5645 = vmul.f32 %v5640, %v5640
          %v5646 = vmul.f32 %v5354, %v5642
          %v5647 = vmul.f32 %v5356, %v5643
          %v5648 = vmul.f32 %v5638, %v5644
          %v5649 = vmul.f32 %v5640, %v5645
          %v5650 = vmul.f32 %v5646, 0.044715
          %v5651 = vmul.f32 %v5647, 0.044715
          %v5652 = vmul.f32 %v5648, 0.044715
          %v5653 = vmul.f32 %v5649, 0.044715
          %v5654 = vadd.f32 %v5354, %v5650
          %v5655 = vadd.f32 %v5356, %v5651
          %v5656 = vadd.f32 %v5638, %v5652
          %v5657 = vadd.f32 %v5640, %v5653
          %v5658 = vmul.f32 %v5654, 0.7978846
          %v5659 = vmul.f32 %v5655, 0.7978846
          %v5660 = vmul.f32 %v5656, 0.7978846
          %v5661 = vmul.f32 %v5657, 0.7978846
          %v5662 = vtanh.pop %v5658
          %v5663 = vtanh.pop %v5659
          %v5664 = vtanh.pop %v5660
          %v5665 = vtanh.pop %v5661
          %v5666 = vadd.f32 %v5662, 1.0
          %v5667 = vadd.f32 %v5663, 1.0
          %v5668 = vadd.f32 %v5664, 1.0
          %v5669 = vadd.f32 %v5665, 1.0
          %v5670 = vmul.f32 %v5666, 0.5
          %v5671 = vmul.f32 %v5667, 0.5
          %v5672 = vmul.f32 %v5668, 0.5
          %v5673 = vmul.f32 %v5669, 0.5
          %v5674 = vmul.f32 %v5354, %v5670
          %v5675 = vmul.f32 %v5356, %v5671
          %v5676 = vmul.f32 %v5638, %v5672
          %v5677 = vmul.f32 %v5640, %v5673
          %v5678 = vld [vmem:[%s25] sm:$0xff]
          %v5679 = vld [vmem:[%s25 + $0x8] sm:$0xff]
          %v5680 = vld [vmem:[%s25 + $0x10] sm:$0xff]
          %v5681 = vld [vmem:[%s25 + $0x18] sm:$0xff]
          %v5682 = vld [vmem:[%s25 + $0x20] sm:$0xff]
          %v5683 = vld [vmem:[%s25 + $0x28] sm:$0xff]
          %v5684 = vld [vmem:[%s25 + $0x30] sm:$0xff]
          %v5685 = vld [vmem:[%s25 + $0x38] sm:$0xff]
          %v5686 = vld [vmem:[%s25 + $0x40] sm:$0xff]
          %v5687 = vld [vmem:[%s25 + $0x48] sm:$0xff]
          %v5688 = vld [vmem:[%s25 + $0x50] sm:$0xff]
          %v5689 = vld [vmem:[%s25 + $0x58] sm:$0xff]
          %v5690 = vld [vmem:[%s25 + $0x60] sm:$0xff]
          %v5691 = vld [vmem:[%s25 + $0x68] sm:$0xff]
          %v5692 = vld [vmem:[%s25 + $0x70] sm:$0xff]
          %v5693 = vld [vmem:[%s25 + $0x78] sm:$0xff]
          %v5694 = vld [vmem:[%s25 + $0x80] sm:$0xff]
          %v5695 = vld [vmem:[%s25 + $0x88] sm:$0xff]
          %v5696 = vld [vmem:[%s25 + $0x90] sm:$0xff]
          %v5697 = vld [vmem:[%s25 + $0x98] sm:$0xff]
          %v5698 = vld [vmem:[%s25 + $0xa0] sm:$0xff]
          %v5699 = vld [vmem:[%s25 + $0xa8] sm:$0xff]
          %v5700 = vld [vmem:[%s25 + $0xb0] sm:$0xff]
          %v5701 = vld [vmem:[%s25 + $0xb8] sm:$0xff]
          %v5702 = vld [vmem:[%s25 + $0xc0] sm:$0xff]
          %v5703 = vld [vmem:[%s25 + $0xc8] sm:$0xff]
          %v5704 = vld [vmem:[%s25 + $0xd0] sm:$0xff]
          %v5705 = vld [vmem:[%s25 + $0xd8] sm:$0xff]
          %v5706 = vld [vmem:[%s25 + $0xe0] sm:$0xff]
          %v5707 = vld [vmem:[%s25 + $0xe8] sm:$0xff]
          %v5708 = vld [vmem:[%s25 + $0xf0] sm:$0xff]
          %v5709 = vld [vmem:[%s25 + $0xf8] sm:$0xff]
          %v5710 = vld [vmem:[%s25 + $0x100] sm:$0xff]
          %v5711 = vld [vmem:[%s25 + $0x108] sm:$0xff]
          %v5712 = vld [vmem:[%s25 + $0x110] sm:$0xff]
          %v5713 = vld [vmem:[%s25 + $0x118] sm:$0xff]
          %v5714 = vld [vmem:[%s25 + $0x120] sm:$0xff]
          %v5715 = vld [vmem:[%s25 + $0x128] sm:$0xff]
          %v5716 = vld [vmem:[%s25 + $0x130] sm:$0xff]
          %v5717 = vld [vmem:[%s25 + $0x138] sm:$0xff]
          %v5718 = vld [vmem:[%s25 + $0x140] sm:$0xff]
          %v5719 = vld [vmem:[%s25 + $0x148] sm:$0xff]
          %v5720 = vld [vmem:[%s25 + $0x150] sm:$0xff]
          %v5721 = vld [vmem:[%s25 + $0x158] sm:$0xff]
          %v5722 = vld [vmem:[%s25 + $0x160] sm:$0xff]
          %v5723 = vld [vmem:[%s25 + $0x168] sm:$0xff]
          %v5724 = vld [vmem:[%s25 + $0x170] sm:$0xff]
          %v5725 = vld [vmem:[%s25 + $0x178] sm:$0xff]
          %v5726 = vld [vmem:[%s25 + $0x180] sm:$0xff]
          %v5727 = vld [vmem:[%s25 + $0x188] sm:$0xff]
          %v5728 = vld [vmem:[%s25 + $0x190] sm:$0xff]
          %v5729 = vld [vmem:[%s25 + $0x198] sm:$0xff]
          %v5730 = vld [vmem:[%s25 + $0x1a0] sm:$0xff]
          %v5731 = vld [vmem:[%s25 + $0x1a8] sm:$0xff]
          %v5732 = vld [vmem:[%s25 + $0x1b0] sm:$0xff]
          %v5733 = vld [vmem:[%s25 + $0x1b8] sm:$0xff]
          %v5734 = vld [vmem:[%s25 + $0x1c0] sm:$0xff]
          %v5735 = vld [vmem:[%s25 + $0x1c8] sm:$0xff]
          %v5736 = vld [vmem:[%s25 + $0x1d0] sm:$0xff]
          %v5737 = vld [vmem:[%s25 + $0x1d8] sm:$0xff]
          %v5738 = vld [vmem:[%s25 + $0x1e0] sm:$0xff]
          %v5739 = vld [vmem:[%s25 + $0x1e8] sm:$0xff]
          %v5740 = vld [vmem:[%s25 + $0x1f0] sm:$0xff]
          %v5741 = vld [vmem:[%s25 + $0x1f8] sm:$0xff]
          %v5742 = vld [vmem:[%s26] sm:$0x1]
          %v5744 = vlaneseq
          %v5745 = vshrl.u32 %v5744, 7
          %v5746 = vsub.s32 0, %v5745
          %v5747 = vrot.slane %v5742, %v5746
          %5749 = vmatprep.subr.mxu0 0.0
          %5750 = vmatpush1.msra.mxu0 %v5678
          %5751 = vmatprep.subr.mxu0 0.0
          %5752 = vmatpush1.msra.mxu0 %v5679
          %5753 = vmatprep.subr.mxu0 0.0
          %5754 = vmatpush1.msra.mxu0 %v5680
          %5755 = vmatprep.subr.mxu0 0.0
          %5756 = vmatpush1.msra.mxu0 %v5681
          %5757 = vmatprep.subr.mxu0 0.0
          %5758 = vmatpush1.msra.mxu0 %v5682
          %5759 = vmatprep.subr.mxu0 0.0
          %5760 = vmatpush1.msra.mxu0 %v5683
          %5761 = vmatprep.subr.mxu0 0.0
          %5762 = vmatpush1.msra.mxu0 %v5684
          %5763 = vmatprep.subr.mxu0 0.0
          %5764 = vmatpush1.msra.mxu0 %v5685
          %5765 = vmatprep.subr.mxu0 0.0
          %5766 = vmatpush1.msra.mxu0 %v5686
          %5767 = vmatprep.subr.mxu0 0.0
          %5768 = vmatpush1.msra.mxu0 %v5687
          %5769 = vmatprep.subr.mxu0 0.0
          %5770 = vmatpush1.msra.mxu0 %v5688
          %5771 = vmatprep.subr.mxu0 0.0
          %5772 = vmatpush1.msra.mxu0 %v5689
          %5773 = vmatprep.subr.mxu0 0.0
          %5774 = vmatpush1.msra.mxu0 %v5690
          %5775 = vmatprep.subr.mxu0 0.0
          %5776 = vmatpush1.msra.mxu0 %v5691
          %5777 = vmatprep.subr.mxu0 0.0
          %5778 = vmatpush1.msra.mxu0 %v5692
          %5779 = vmatprep.subr.mxu0 0.0
          %5780 = vmatpush1.msra.mxu0 %v5693
          %5781 = vmatprep.subr.mxu0 0.0
          %5782 = vmatpush1.msra.mxu0 %v5694
          %5783 = vmatprep.subr.mxu0 0.0
          %5784 = vmatpush1.msra.mxu0 %v5695
          %5785 = vmatprep.subr.mxu0 0.0
          %5786 = vmatpush1.msra.mxu0 %v5696
          %5787 = vmatprep.subr.mxu0 0.0
          %5788 = vmatpush1.msra.mxu0 %v5697
          %5789 = vmatprep.subr.mxu0 0.0
          %5790 = vmatpush1.msra.mxu0 %v5698
          %5791 = vmatprep.subr.mxu0 0.0
          %5792 = vmatpush1.msra.mxu0 %v5699
          %5793 = vmatprep.subr.mxu0 0.0
          %5794 = vmatpush1.msra.mxu0 %v5700
          %5795 = vmatprep.subr.mxu0 0.0
          %5796 = vmatpush1.msra.mxu0 %v5701
          %5797 = vmatprep.subr.mxu0 0.0
          %5798 = vmatpush1.msra.mxu0 %v5702
          %5799 = vmatprep.subr.mxu0 0.0
          %5800 = vmatpush1.msra.mxu0 %v5703
          %5801 = vmatprep.subr.mxu0 0.0
          %5802 = vmatpush1.msra.mxu0 %v5704
          %5803 = vmatprep.subr.mxu0 0.0
          %5804 = vmatpush1.msra.mxu0 %v5705
          %5805 = vmatprep.subr.mxu0 0.0
          %5806 = vmatpush1.msra.mxu0 %v5706
          %5807 = vmatprep.subr.mxu0 0.0
          %5808 = vmatpush1.msra.mxu0 %v5707
          %5809 = vmatprep.subr.mxu0 0.0
          %5810 = vmatpush1.msra.mxu0 %v5708
          %5811 = vmatprep.subr.mxu0 0.0
          %5812 = vmatpush1.msra.mxu0 %v5709
          %5813 = vmatprep.mubr.f32.mxu0 %v5675
          %5814 = vmatmul.mubr.f32.gmra.mrb[0].mxu0 %v5674
          %v5815 = vpop.f32.mrb[0].mxu0
          %v5816 = vadd.f32 %v5747, %v5815
          %v5817 = vpop.f32.mrb[0].mxu0
          %5818 = vdwg.mxu0
          %5819 = vmatprep.subr.mxu0 0.0
          %5820 = vmatpush1.msra.mxu0 %v5710
          %5821 = vmatprep.subr.mxu0 0.0
          %5822 = vmatpush1.msra.mxu0 %v5711
          %5823 = vmatprep.subr.mxu0 0.0
          %5824 = vmatpush1.msra.mxu0 %v5712
          %5825 = vmatprep.subr.mxu0 0.0
          %5826 = vmatpush1.msra.mxu0 %v5713
          %5827 = vmatprep.subr.mxu0 0.0
          %5828 = vmatpush1.msra.mxu0 %v5714
          %5829 = vmatprep.subr.mxu0 0.0
          %5830 = vmatpush1.msra.mxu0 %v5715
          %5831 = vmatprep.subr.mxu0 0.0
          %5832 = vmatpush1.msra.mxu0 %v5716
          %5833 = vmatprep.subr.mxu0 0.0
          %5834 = vmatpush1.msra.mxu0 %v5717
          %5835 = vmatprep.subr.mxu0 0.0
          %5836 = vmatpush1.msra.mxu0 %v5718
          %5837 = vmatprep.subr.mxu0 0.0
          %5838 = vmatpush1.msra.mxu0 %v5719
          %5839 = vmatprep.subr.mxu0 0.0
          %5840 = vmatpush1.msra.mxu0 %v5720
          %5841 = vmatprep.subr.mxu0 0.0
          %5842 = vmatpush1.msra.mxu0 %v5721
          %5843 = vmatprep.subr.mxu0 0.0
          %5844 = vmatpush1.msra.mxu0 %v5722
          %5845 = vmatprep.subr.mxu0 0.0
          %5846 = vmatpush1.msra.mxu0 %v5723
          %5847 = vmatprep.subr.mxu0 0.0
          %5848 = vmatpush1.msra.mxu0 %v5724
          %5849 = vmatprep.subr.mxu0 0.0
          %5850 = vmatpush1.msra.mxu0 %v5725
          %5851 = vmatprep.subr.mxu0 0.0
          %5852 = vmatpush1.msra.mxu0 %v5726
          %5853 = vmatprep.subr.mxu0 0.0
          %5854 = vmatpush1.msra.mxu0 %v5727
          %5855 = vmatprep.subr.mxu0 0.0
          %5856 = vmatpush1.msra.mxu0 %v5728
          %5857 = vmatprep.subr.mxu0 0.0
          %5858 = vmatpush1.msra.mxu0 %v5729
          %5859 = vmatprep.subr.mxu0 0.0
          %5860 = vmatpush1.msra.mxu0 %v5730
          %5861 = vmatprep.subr.mxu0 0.0
          %5862 = vmatpush1.msra.mxu0 %v5731
          %5863 = vmatprep.subr.mxu0 0.0
          %5864 = vmatpush1.msra.mxu0 %v5732
          %5865 = vmatprep.subr.mxu0 0.0
          %5866 = vmatpush1.msra.mxu0 %v5733
          %5867 = vmatprep.subr.mxu0 0.0
          %5868 = vmatpush1.msra.mxu0 %v5734
          %5869 = vmatprep.subr.mxu0 0.0
          %5870 = vmatpush1.msra.mxu0 %v5735
          %5871 = vmatprep.subr.mxu0 0.0
          %5872 = vmatpush1.msra.mxu0 %v5736
          %5873 = vmatprep.subr.mxu0 0.0
          %5874 = vmatpush1.msra.mxu0 %v5737
          %5875 = vmatprep.subr.mxu0 0.0
          %5876 = vmatpush1.msra.mxu0 %v5738
          %5877 = vmatprep.subr.mxu0 0.0
          %5878 = vmatpush1.msra.mxu0 %v5739
          %5879 = vmatprep.subr.mxu0 0.0
          %5880 = vmatpush1.msra.mxu0 %v5740
          %5881 = vmatprep.subr.mxu0 0.0
          %5882 = vmatpush1.msra.mxu0 %v5741
          %5883 = vmatprep.mubr.f32.mxu0 %v5677
          %5884 = vmatmul.mubr.f32.gmra.mrb[0].mxu0 %v5676
          %v5885 = vpop.f32.mrb[0].mxu0
          %v5886 = vadd.f32 %v5816, %v5885
          %v5887 = vpop.f32.mrb[0].mxu0
          %5888 = vdwg.mxu0
          %5889 = vst [vmem:[#allocation35] sm:$0x3] %v5886
        $region216: #{flower_classifier_forward.1} parent=127 // pred_fallthru
          _
        // Predicated region
        $region217: #{flower_classifier_forward.1} parent=127 // pred_check
          %p5890 = pneg %p700
        $region218: #{flower_classifier_forward.1} parent=127 // pred_check_branch
          %5892 = sbr.rel (%p5890) target = $region220
        $region219: #{flower_classifier_forward.1} parent=127 // pred_region
          %s5894 = ssub.s32 32, 32
          %5895 = vsyncadd [#allocation5], %s5894
          %s5897 = sshll.u32 [#allocation35], 4
          %s5898 = int_to_ptr.vmem [resolvable:$true] %s5897
          %5900 = dma.vmem_to_hbm [thread:$0]  %s5898, 32, %s27, [#allocation5]
        $region220: #{flower_classifier_forward.1} parent=127 // pred_fallthru
          _
        // Predicated region
        $region221: #{flower_classifier_forward.1} parent=127 // pred_check
          %p5901 = pneg %p700
        $region222: #{flower_classifier_forward.1} parent=127 // pred_check_branch
          %5903 = sbr.rel (%p5901) target = $region224
        $region223: #{flower_classifier_forward.1} parent=127 // pred_region
          %5904 = dma.done [#allocation5], 32
        $region224: #{flower_classifier_forward.1} parent=127 // pred_fallthru
          _
      $region128: #{flower_classifier_forward.1} parent=5 // pred_fallthru
        _
      %p5905 = scmp.le.s32.totalorder 2, %s55
      // Predicated region
      $region225: #{flower_classifier_forward.1} parent=5 // pred_check
        %p5906 = pneg %p5905
      $region226: #{flower_classifier_forward.1} parent=5 // pred_check_branch
        %5908 = sbr.rel (%p5906) target = $region228
      $region227: #{flower_classifier_forward.1} parent=5 // pred_region
        %s5909 = ssub.s32 %s55, 2
      $region228: #{flower_classifier_forward.1} parent=5 // pred_fallthru
        _
    $region6: #{flower_classifier_forward.1} parent=1 // loop_footer
      %s59 = sadd.s32 1, %s55
    $region7: #{flower_classifier_forward.1} parent=1 // loop_footer_branch
      %54 = sbr.rel target = $region3
    $region8: #{flower_classifier_forward.1} parent=1 // loop_exit
      _
    %5910 = vsyncpa [#allocation4], 1
    %s5911 = scalar_lea.sflag [#allocation4], 1
    %5912 = vsyncpa %s5911, 1
    %5913 = vsyncpa [#allocation7], 1
    %5914 = vsyncpa [#allocation10], 1
    %s5915 = scalar_lea.sflag [#allocation10], 1
    %5916 = vsyncpa %s5915, 1
    %5917 = vsyncpa [#allocation13], 1
    %s5918 = scalar_lea.sflag [#allocation13], 1
    %5919 = vsyncpa %s5918, 1
    %5920 = vsyncpa [#allocation16], 1
    %s5921 = scalar_lea.sflag [#allocation16], 1
    %5922 = vsyncpa %s5921, 1
    %5923 = vsyncpa [#allocation19], 1
    %s5924 = scalar_lea.sflag [#allocation19], 1
    %5925 = vsyncpa %s5924, 1
    %5926 = vsyncpa [#allocation22], 1
    %s5927 = scalar_lea.sflag [#allocation22], 1
    %5928 = vsyncpa %s5927, 1
    %5929 = vsyncpa [#allocation25], 1
    %5930 = vsyncpa [#allocation28], 1
    %5931 = vsyncpa [#allocation31], 1
    %5932 = vsyncpa [#allocation34], 1
    %5933 = vsyncpa [#allocation5], 1
    %s5934 = scalar_lea.sflag [#allocation5], 1
    %5935 = vsyncpa %s5934, 1

</llo_original>
